<compile_context>
chip_gen: v7x
topology: tpu7x:2x2x1
jax: 0.10.0
libtpu: 0.0.40
codegen_flags: <defaults>
</compile_context>

<pallas_src>
import math
import functools
from functools import reduce

import numpy as np
import jax
import jax.numpy as jnp
from jax.experimental import pallas as pl
from jax.experimental.pallas import tpu as pltpu

_LANES = 128
_EPS = 1e-5


# --------------------------- weight packing ----------------------------------

class Packer:
    """Packs 2-D weights / 1-D biases into one (R, lanes) f32 buffer.

    Every entry is placed at an 8-aligned row offset (so in-kernel static
    slices are sublane-tile aligned) and zero-padded to the lane width.
    Kernels look entries up via a static {name: (row_off, rows, cols)} dict.
    """

    def __init__(self):
        self._items = []

    def add(self, name, arr):
        arr = np.asarray(arr, np.float32)
        if arr.ndim == 1:
            arr = arr.reshape(1, -1)
        assert arr.ndim == 2, name
        self._items.append((name, arr))

    def finalize(self):
        max_c = max(a.shape[1] for _, a in self._items)
        lanes = max(_LANES, -(-max_c // _LANES) * _LANES)
        meta, rows = {}, 0
        for name, a in self._items:
            r, c = a.shape
            meta[name] = (rows, r, c)
            rows += -(-r // 8) * 8
        buf = np.zeros((max(rows, 8), lanes), np.float32)
        for name, a in self._items:
            off, r, c = meta[name]
            buf[off:off + r, :c] = a
        return jnp.asarray(buf), meta


def _slicer(w_ref, meta):
    def W(name):
        off, r, c = meta[name]
        return w_ref[off:off + r, 0:c]     # static slice -> cheap sub-tile load
    return W


# ------------------------------ kernels ---------------------------------------

def _input_kernel(xr_ref, e_ref, y_ref, m_ref, w_ref,
                  xo_ref, eo_ref, yo_ref, *, n, meta):
    """mlp_in_X_r / mlp_in_E / mlp_in_y fused, with masking (per batch element)."""
    W = _slicer(w_ref, meta)
    xr = xr_ref[0]                     # (n, dXr)
    e = e_ref[0]                       # (n*n, dEin)
    yv = y_ref[0]                      # (1, dyin)
    m = m_ref[0]                       # (n, 1)
    em_flat = (m[:, None, :] * m[None, :, :]).reshape(n * n, 1)

    h = jnp.maximum(jnp.dot(xr, W("wX1"), preferred_element_type=jnp.float32)
                    + W("bX1"), 0.0)
    xh = jnp.maximum(jnp.dot(h, W("wX2"), preferred_element_type=jnp.float32)
                     + W("bX2"), 0.0) * m

    he = jnp.maximum(jnp.dot(e, W("wE1"), preferred_element_type=jnp.float32)
                     + W("bE1"), 0.0)
    eh = jnp.maximum(jnp.dot(he, W("wE2"), preferred_element_type=jnp.float32)
                     + W("bE2"), 0.0) * em_flat

    hy = jnp.maximum(jnp.dot(yv, W("wy1"), preferred_element_type=jnp.float32)
                     + W("by1"), 0.0)
    yh = jnp.maximum(jnp.dot(hy, W("wy2"), preferred_element_type=jnp.float32)
                     + W("by2"), 0.0)

    xo_ref[0] = xh.astype(xo_ref.dtype)
    eo_ref[0] = eh.astype(eo_ref.dtype)
    yo_ref[0] = yh.astype(yo_ref.dtype)


def _layers_kernel(x_ref, e_ref, y_ref, m_ref, w_ref,
                   xo_ref, eo_ref, yo_ref,
                   *, n, dx, de, dy, n_layers, inv_sqrt_df, eps, meta):
    """All XEyTransformerLayer blocks, unrolled, for one batch element."""
    x = x_ref[0]                       # (n, dx)
    e = e_ref[0]                       # (n*n, de)
    yv = y_ref[0]                      # (1, dy)
    m = m_ref[0]                       # (n, 1)

    em_flat = (m[:, None, :] * m[None, :, :]).reshape(n * n, 1)   # pair mask
    key_mask = m[None, :, :] > 0.0                                # (1, n, 1)

    def layer_norm(t, g, b):
        mu = jnp.mean(t, axis=-1, keepdims=True)
        var = jnp.mean((t - mu) ** 2, axis=-1, keepdims=True)
        return (t - mu) * jax.lax.rsqrt(var + eps) * g + b

    def stats4(t, cnt):
        # torch: mean / min / max / std(unbiased) over all rows (no masking,
        # matches reference; cnt>1 assumed -- n==1 graphs would NaN like torch).
        mu = jnp.mean(t, axis=0, keepdims=True)
        mi = jnp.min(t, axis=0, keepdims=True)
        ma = jnp.max(t, axis=0, keepdims=True)
        sd = jnp.sqrt(jnp.sum((t - mu) ** 2, axis=0, keepdims=True) / (cnt - 1.0))
        return (mu, mi, ma, sd)

    for l in range(n_layers):
        def W(name, _l=l):
            off, r, c = meta[f"L{_l}/{name}"]
            return w_ref[off:off + r, 0:c]

        # ------------------------- NodeEdgeBlock -----------------------------
        qkv = (jnp.dot(x, W("wqkv"), preferred_element_type=jnp.float32)
               + W("bqkv")) * m
        q = qkv[:, 0:dx]
        k = qkv[:, dx:2 * dx]
        v = qkv[:, 2 * dx:3 * dx]

        ee = (jnp.dot(e, W("wee"), preferred_element_type=jnp.float32)
              + W("bee")) * em_flat                       # [e_mul | e_add]
        e_mul = ee[:, 0:dx].reshape(n, n, dx)
        e_add = ee[:, dx:2 * dx].reshape(n, n, dx)

        film = (jnp.dot(yv, W("wfilm"), preferred_element_type=jnp.float32)
                + W("bfilm"))                             # (1, 4*dx)
        ye_add = film[:, 0:dx][None]                      # (1, 1, dx)
        ye_mul = film[:, dx:2 * dx][None]
        yx_add = film[:, 2 * dx:3 * dx]                   # (1, dx)
        yx_mul = film[:, 3 * dx:4 * dx]

        # per-channel attention logits with edge FiLM (stay resident in VMEM)
        yq = (q[:, None, :] * k[None, :, :]) * inv_sqrt_df
        yq = yq * (e_mul + 1.0) + e_add                   # (n, n, dx)

        # E update: global-feature FiLM, e_out linear, pair mask
        newE = (ye_add + (ye_mul + 1.0) * yq).reshape(n * n, dx)
        newE = (jnp.dot(newE, W("weo"), preferred_element_type=jnp.float32)
                + W("beo")) * em_flat                     # (n*n, de)

        # masked softmax over keys (axis=1), per feature channel
        y_msk = jnp.where(key_mask, yq, jnp.float32(-1e30))
        y_max = jnp.max(y_msk, axis=1, keepdims=True)
        p_un = jnp.where(key_mask, jnp.exp(y_msk - y_max), 0.0)
        denom = jnp.maximum(jnp.sum(p_un, axis=1, keepdims=True),
                            jnp.float32(1e-30))
        attn = p_un / denom
        wV = jnp.sum(attn * v[None, :, :], axis=1)        # (n, dx)

        # X update: global-feature FiLM, x_out linear, node mask
        newX = (jnp.dot(yx_add + (yx_mul + 1.0) * wV, W("wxo"),
                        preferred_element_type=jnp.float32) + W("bxo")) * m

        # global-feature (y) update: y_y(y) + x_y(stats(X)) + e_y(stats(E)),
        # then the y_out 2-layer MLP.
        new_y = (jnp.dot(yv, W("wyy"), preferred_element_type=jnp.float32)
                 + W("bycat"))
        for si, s in enumerate(stats4(x, float(n))):
            new_y = new_y + jnp.dot(s, W(f"wxy{si}"),
                                    preferred_element_type=jnp.float32)
        for si, s in enumerate(stats4(e, float(n * n))):
            new_y = new_y + jnp.dot(s, W(f"wey{si}"),
                                    preferred_element_type=jnp.float32)
        new_y = jnp.maximum(jnp.dot(new_y, W("wyo0"),
                                    preferred_element_type=jnp.float32)
                            + W("byo0"), 0.0)
        new_y = (jnp.dot(new_y, W("wyo1"), preferred_element_type=jnp.float32)
                 + W("byo1"))

        # ---------- residual + LN + FFN + residual + LN  (X / E / y) ---------
        def ln_ffn_ln(t, upd, p):
            a = layer_norm(t + upd, W(p + "g1"), W(p + "b1"))
            h = jnp.maximum(jnp.dot(a, W(p + "w1"),
                                    preferred_element_type=jnp.float32)
                            + W(p + "fb1"), 0.0)
            f = a + jnp.dot(h, W(p + "w2"),
                            preferred_element_type=jnp.float32) + W(p + "fb2")
            return layer_norm(f, W(p + "g2"), W(p + "b2"))

        x = ln_ffn_ln(x, newX, "X_")
        e = ln_ffn_ln(e, newE, "E_")
        yv = ln_ffn_ln(yv, new_y, "y_")

    xo_ref[0] = x.astype(xo_ref.dtype)
    eo_ref[0] = e.astype(eo_ref.dtype)
    yo_ref[0] = yv.astype(yo_ref.dtype)


def _output_kernel(xh_ref, yh_ref, x0_ref, y0_ref, e0_ref, m_ref, w_ref,
                   xo_ref, eo_ref, yo_ref, *, n, out_x, out_y, meta):
    """Output heads (+ residual skips) and final PlaceHolder-style masking."""
    W = _slicer(w_ref, meta)
    m = m_ref[0]                                           # (n, 1)
    em_flat = (m[:, None, :] * m[None, :, :]).reshape(n * n, 1)

    xh = xh_ref[0]                                         # (n, dx)
    yh = yh_ref[0]                                         # (1, dy)

    h = jnp.maximum(jnp.dot(xh, W("woX1"), preferred_element_type=jnp.float32)
                    + W("boX1"), 0.0)
    xo = (jnp.dot(h, W("woX2"), preferred_element_type=jnp.float32) + W("boX2")
          + x0_ref[0][:, 0:out_x]) * m

    hy = jnp.maximum(jnp.dot(yh, W("woy1"), preferred_element_type=jnp.float32)
                     + W("boy1"), 0.0)
    yo = (jnp.dot(hy, W("woy2"), preferred_element_type=jnp.float32) + W("boy2")
          + y0_ref[0][:, 0:out_y])

    eo = e0_ref[0] * em_flat                               # returned E = masked original

    xo_ref[0] = xo.astype(xo_ref.dtype)
    eo_ref[0] = eo.astype(eo_ref.dtype)
    yo_ref[0] = yo.astype(yo_ref.dtype)


# --------------------------- pallas_call wrapper ------------------------------

def _batched_call(kernel, batch_inputs, const_inputs, out_shapes):
    """Grid over batch; each per-batch operand gets a (1, ...) block, constant
    (weight) operands get a single full-extent block that Pallas keeps resident
    across grid steps."""
    bs = batch_inputs[0].shape[0]
    in_specs = []
    for a in batch_inputs:
        in_specs.append(pl.BlockSpec(
            (1,) + a.shape[1:],
            lambda b, _nd=a.ndim: (b,) + (0,) * (_nd - 1)))
    for w in const_inputs:
        in_specs.append(pl.BlockSpec(
            w.shape, lambda b, _nd=w.ndim: (0,) * _nd))
    out_specs = []
    for s in out_shapes:
        out_specs.append(pl.BlockSpec(
            (1,) + s.shape[1:],
            lambda b, _nd=len(s.shape): (b,) + (0,) * (_nd - 1)))
    return pl.pallas_call(
        kernel,
        out_shape=tuple(out_shapes),
        grid_spec=pltpu.PrefetchScalarGridSpec(
            num_scalar_prefetch=0,
            grid=(bs,),
            in_specs=in_specs,
            out_specs=out_specs),
        compiler_params=pltpu.CompilerParams(
            dimension_semantics=("parallel",)),   # both TCs on v7x; cheap loop on v5e/v6e
    )(*batch_inputs, *const_inputs)


# ------------------------------ model glue ------------------------------------

def apply_rope(x, pos, base=10000.0):
    """RotaryPositionalEmbeddings with n_heads=1 (even head_dim path)."""
    bs, n, d = x.shape
    assert d % 2 == 0  # TODO(synk): odd head_dim branch not exercised with these dims
    inv_freq = 1.0 / (base ** (jnp.arange(0, d, 2, dtype=jnp.float32) / d))
    freqs = pos[..., None].astype(jnp.float32) * inv_freq   # (bs, n, d//2)
    cos = jnp.cos(freqs)
    sin = jnp.sin(freqs)
    x1 = x[..., 0::2]
    x2 = x[..., 1::2]
    r1 = x1 * cos - x2 * sin
    r2 = x1 * sin + x2 * cos
    return jnp.stack([r1, r2], axis=-1).reshape(bs, n, d)


def make_graph_transformer_forward(metas, cfg):
    meta_in, meta_layers, meta_out = metas
    dx, de, dy = cfg["dx"], cfg["de"], cfg["dy"]
    n_layers, n_head = cfg["n_layers"], cfg["n_head"]
    out_x, out_y = cfg["out_X"], cfg["out_y"]
    inv_sqrt_df = 1.0 / math.sqrt(dx // n_head)

    def forward(packed, X, E, r, y, node_mask, pos_idx):
        bs, n = X.shape[0], X.shape[1]
        dein = E.shape[-1]
        m3 = node_mask[..., None]                          # (bs, n, 1)
        y3 = y[:, None, :]                                 # (bs, 1, dy_in)
        E_flat_in = E.reshape(bs, n * n, dein)

        X_r = apply_rope(jnp.concatenate([X, r], axis=-1), pos_idx)

        # ---------------- input stage (1 pallas_call) -----------------------
        Xh, Eh, yh = _batched_call(
            functools.partial(_input_kernel, n=n, meta=meta_in),
            [X_r, E_flat_in, y3, m3], [packed["w_in"]],
            [jax.ShapeDtypeStruct((bs, n, dx), jnp.float32),
             jax.ShapeDtypeStruct((bs, n * n, de), jnp.float32),
             jax.ShapeDtypeStruct((bs, 1, dy), jnp.float32)])
        # symmetrize hidden E (pair mask already applied in-kernel; mask is symmetric)
        Eh = Eh.reshape(bs, n, n, de)
        Eh = (0.5 * (Eh + jnp.swapaxes(Eh, 1, 2))).reshape(bs, n * n, de)

        # ----------- all transformer layers (1 pallas_call) -----------------
        Xh, Eh, yh = _batched_call(
            functools.partial(_layers_kernel, n=n, dx=dx, de=de, dy=dy,
                              n_layers=n_layers, inv_sqrt_df=inv_sqrt_df,
                              eps=_EPS, meta=meta_layers),
            [Xh, Eh, yh, m3], [packed["w_layers"]],
            [jax.ShapeDtypeStruct((bs, n, dx), jnp.float32),
             jax.ShapeDtypeStruct((bs, n * n, de), jnp.float32),
             jax.ShapeDtypeStruct((bs, 1, dy), jnp.float32)])

        # ---------------- output heads (1 pallas_call) ----------------------
        Xo, Eo, yo = _batched_call(
            functools.partial(_output_kernel, n=n, out_x=out_x, out_y=out_y,
                              meta=meta_out),
            [Xh, yh, X, y3, E_flat_in, m3], [packed["w_out"]],
            [jax.ShapeDtypeStruct((bs, n, out_x), jnp.float32),
             jax.ShapeDtypeStruct((bs, n * n, dein), jnp.float32),
             jax.ShapeDtypeStruct((bs, 1, out_y), jnp.float32)])
        return Xo, Eo.reshape(bs, n, n, dein), yo[:, 0, :]

    return jax.jit(forward)


# --------------------------- deterministic init -------------------------------

class KeyGen:
    def __init__(self, key):
        self._key = key

    def __call__(self):
        self._key, sub = jax.random.split(self._key)
        return sub


def init_linear(kg, d_in, d_out):
    bound = 1.0 / math.sqrt(d_in)
    return {"w": jax.random.uniform(kg(), (d_in, d_out), jnp.float32, -bound, bound),
            "b": jax.random.uniform(kg(), (d_out,), jnp.float32, -bound, bound)}


def init_ln(d):
    return {"g": jnp.ones((d,), jnp.float32), "b": jnp.zeros((d,), jnp.float32)}


def init_node_edge_block(kg, dx, de, dy):
    return {
        "q": init_linear(kg, dx, dx), "k": init_linear(kg, dx, dx),
        "v": init_linear(kg, dx, dx),
        "e_add": init_linear(kg, de, dx), "e_mul": init_linear(kg, de, dx),
        "y_e_mul": init_linear(kg, dy, dx), "y_e_add": init_linear(kg, dy, dx),
        "y_x_mul": init_linear(kg, dy, dx), "y_x_add": init_linear(kg, dy, dx),
        "y_y": init_linear(kg, dy, dy),
        "x_y": init_linear(kg, 4 * dx, dy),
        "e_y": init_linear(kg, 4 * de, dy),
        "x_out": init_linear(kg, dx, dx), "e_out": init_linear(kg, dx, de),
        "y_out0": init_linear(kg, dy, dy), "y_out1": init_linear(kg, dy, dy),
    }


def init_layer(kg, dx, de, dy, dim_ffX, dim_ffE, dim_ffy):
    return {
        "attn": init_node_edge_block(kg, dx, de, dy),
        "linX1": init_linear(kg, dx, dim_ffX), "linX2": init_linear(kg, dim_ffX, dx),
        "normX1": init_ln(dx), "normX2": init_ln(dx),
        "linE1": init_linear(kg, de, dim_ffE), "linE2": init_linear(kg, dim_ffE, de),
        "normE1": init_ln(de), "normE2": init_ln(de),
        "lin_y1": init_linear(kg, dy, dim_ffy), "lin_y2": init_linear(kg, dim_ffy, dy),
        "norm_y1": init_ln(dy), "norm_y2": init_ln(dy),
    }


def init_graph_transformer(kg, n_layers, input_dims, hidden_mlp_dims,
                           hidden_dims, output_dims):
    dx, de, dy = hidden_dims["dx"], hidden_dims["de"], hidden_dims["dy"]
    return {
        "mlp_in_E": [init_linear(kg, input_dims["E"], hidden_mlp_dims["E"]),
                     init_linear(kg, hidden_mlp_dims["E"], de)],
        "mlp_in_y": [init_linear(kg, input_dims["y"], hidden_mlp_dims["y"]),
                     init_linear(kg, hidden_mlp_dims["y"], dy)],
        "mlp_in_X_r": [init_linear(kg, input_dims["X"] + input_dims["r"],
                                   hidden_mlp_dims["X"] + hidden_mlp_dims["r"]),
                       init_linear(kg, hidden_mlp_dims["X"] + hidden_mlp_dims["r"], dx)],
        "layers": [init_layer(kg, dx, de, dy, hidden_dims["dim_ffX"],
                              hidden_dims["dim_ffE"], hidden_dims["dim_ffy"])
                   for _ in range(n_layers)],
        "mlp_out_X": [init_linear(kg, dx, hidden_mlp_dims["X"]),
                      init_linear(kg, hidden_mlp_dims["X"], output_dims["X"])],
        # mlp_out_E exists in the reference but does not affect the returned E
        # (the reference returns the ORIGINAL E, masked); kept for structure only.
        "mlp_out_E": [init_linear(kg, de, hidden_mlp_dims["E"]),
                      init_linear(kg, hidden_mlp_dims["E"], output_dims["E"])],
        "mlp_out_y": [init_linear(kg, dy, hidden_mlp_dims["y"]),
                      init_linear(kg, hidden_mlp_dims["y"], output_dims["y"])],
    }


# ------------------------------ param packing ---------------------------------

def pack_input_params(p):
    pk = Packer()
    pk.add("wX1", p["mlp_in_X_r"][0]["w"]); pk.add("bX1", p["mlp_in_X_r"][0]["b"])
    pk.add("wX2", p["mlp_in_X_r"][1]["w"]); pk.add("bX2", p["mlp_in_X_r"][1]["b"])
    pk.add("wE1", p["mlp_in_E"][0]["w"]); pk.add("bE1", p["mlp_in_E"][0]["b"])
    pk.add("wE2", p["mlp_in_E"][1]["w"]); pk.add("bE2", p["mlp_in_E"][1]["b"])
    pk.add("wy1", p["mlp_in_y"][0]["w"]); pk.add("by1", p["mlp_in_y"][0]["b"])
    pk.add("wy2", p["mlp_in_y"][1]["w"]); pk.add("by2", p["mlp_in_y"][1]["b"])
    return pk.finalize()


def pack_layer_params(layers, dx, de, dy):
    pk = Packer()
    for l, lp in enumerate(layers):
        a = lp["attn"]
        P = f"L{l}/"
        pk.add(P + "wqkv", np.concatenate([np.asarray(a["q"]["w"]),
                                           np.asarray(a["k"]["w"]),
                                           np.asarray(a["v"]["w"])], axis=1))
        pk.add(P + "bqkv", np.concatenate([np.asarray(a["q"]["b"]),
                                           np.asarray(a["k"]["b"]),
                                           np.asarray(a["v"]["b"])]))
        pk.add(P + "wee", np.concatenate([np.asarray(a["e_mul"]["w"]),
                                          np.asarray(a["e_add"]["w"])], axis=1))
        pk.add(P + "bee", np.concatenate([np.asarray(a["e_mul"]["b"]),
                                          np.asarray(a["e_add"]["b"])]))
        pk.add(P + "wfilm", np.concatenate([np.asarray(a["y_e_add"]["w"]),
                                            np.asarray(a["y_e_mul"]["w"]),
                                            np.asarray(a["y_x_add"]["w"]),
                                            np.asarray(a["y_x_mul"]["w"])], axis=1))
        pk.add(P + "bfilm", np.concatenate([np.asarray(a["y_e_add"]["b"]),
                                            np.asarray(a["y_e_mul"]["b"]),
                                            np.asarray(a["y_x_add"]["b"]),
                                            np.asarray(a["y_x_mul"]["b"])]))
        pk.add(P + "weo", a["e_out"]["w"]); pk.add(P + "beo", a["e_out"]["b"])
        pk.add(P + "wxo", a["x_out"]["w"]); pk.add(P + "bxo", a["x_out"]["b"])
        pk.add(P + "wyy", a["y_y"]["w"])
        wxy = np.asarray(a["x_y"]["w"]); wey = np.asarray(a["e_y"]["w"])
        for i in range(4):
            pk.add(P + f"wxy{i}", wxy[i * dx:(i + 1) * dx])
            pk.add(P + f"wey{i}", wey[i * de:(i + 1) * de])
        pk.add(P + "bycat", np.asarray(a["y_y"]["b"]) + np.asarray(a["x_y"]["b"])
               + np.asarray(a["e_y"]["b"]))
        pk.add(P + "wyo0", a["y_out0"]["w"]); pk.add(P + "byo0", a["y_out0"]["b"])
        pk.add(P + "wyo1", a["y_out1"]["w"]); pk.add(P + "byo1", a["y_out1"]["b"])
        for tag, ln1, lin1, lin2, ln2 in [
                ("X_", lp["normX1"], lp["linX1"], lp["linX2"], lp["normX2"]),
                ("E_", lp["normE1"], lp["linE1"], lp["linE2"], lp["normE2"]),
                ("y_", lp["norm_y1"], lp["lin_y1"], lp["lin_y2"], lp["norm_y2"])]:
            pk.add(P + tag + "g1", ln1["g"]); pk.add(P + tag + "b1", ln1["b"])
            pk.add(P + tag + "w1", lin1["w"]); pk.add(P + tag + "fb1", lin1["b"])
            pk.add(P + tag + "w2", lin2["w"]); pk.add(P + tag + "fb2", lin2["b"])
            pk.add(P + tag + "g2", ln2["g"]); pk.add(P + tag + "b2", ln2["b"])
    return pk.finalize()


def pack_output_params(p):
    pk = Packer()
    pk.add("woX1", p["mlp_out_X"][0]["w"]); pk.add("boX1", p["mlp_out_X"][0]["b"])
    pk.add("woX2", p["mlp_out_X"][1]["w"]); pk.add("boX2", p["mlp_out_X"][1]["b"])
    pk.add("woy1", p["mlp_out_y"][0]["w"]); pk.add("boy1", p["mlp_out_y"][0]["b"])
    pk.add("woy2", p["mlp_out_y"][1]["w"]); pk.add("boy2", p["mlp_out_y"][1]["b"])
    return pk.finalize()


# ------------------------------ host helpers ----------------------------------

def unnormalize_positions_np(normalized_pos):
    """GCD-based integer position recovery (host-side, data dependent)."""
    normalized_pos = np.asarray(normalized_pos)
    bs, n = normalized_pos.shape
    out = np.zeros((bs, n), dtype=np.int64)
    for b in range(bs):
        scaled = np.round(normalized_pos[b] * 10000.0).astype(np.int64)
        nz = scaled[scaled > 0]
        if len(nz) > 1:
            g = reduce(math.gcd, [int(v) for v in nz])
            if g > 1:
                scaled = scaled // g
        out[b] = scaled
    return out


# ----------------------------------- main --------------------------------------

if __name__ == "__main__":
    n_layers = 2
    input_dims = {"X": 6, "E": 5, "y": 4, "r": 8}
    hidden_mlp_dims = {"X": 16, "E": 16, "y": 16, "r": 8}
    hidden_dims = {"dx": 32, "de": 16, "dy": 16, "n_head": 4,
                   "dim_ffX": 64, "dim_ffE": 32, "dim_ffy": 32}
    output_dims = {"X": 6, "E": 5, "y": 4}
    bs, n = 2, 8

    # deterministic parameters + packed weight buffers
    raw = init_graph_transformer(KeyGen(jax.random.PRNGKey(42)), n_layers,
                                 input_dims, hidden_mlp_dims, hidden_dims,
                                 output_dims)
    w_in, meta_in = pack_input_params(raw)
    w_layers, meta_layers = pack_layer_params(raw["layers"], hidden_dims["dx"],
                                              hidden_dims["de"], hidden_dims["dy"])
    w_out, meta_out = pack_output_params(raw)
    packed = {"w_in": w_in, "w_layers": w_layers, "w_out": w_out}

    fwd = make_graph_transformer_forward(
        (meta_in, meta_layers, meta_out),
        dict(dx=hidden_dims["dx"], de=hidden_dims["de"], dy=hidden_dims["dy"],
             n_head=hidden_dims["n_head"], n_layers=n_layers,
             out_X=output_dims["X"], out_y=output_dims["y"]))

    # deterministic inputs
    kX, kE, kr, ky = jax.random.split(jax.random.PRNGKey(0), 4)
    X = jax.random.normal(kX, (bs, n, input_dims["X"]), jnp.float32)
    E = jax.random.normal(kE, (bs, n, n, input_dims["E"]), jnp.float32)
    E = 0.5 * (E + jnp.swapaxes(E, 1, 2))
    r = jax.random.uniform(kr, (bs, n, input_dims["r"]), jnp.float32, 0.1, 1.0)
    pos_norm = jnp.tile((jnp.arange(1, n + 1, dtype=jnp.float32) / n)[None, :], (bs, 1))
    r = r.at[:, :, 7].set(pos_norm)
    y = jax.random.normal(ky, (bs, input_dims["y"]), jnp.float32)
    node_mask = jnp.ones((bs, n), jnp.float32)
    node_mask = node_mask.at[1, n - 2:].set(0.0)

    # host-side gcd-based position recovery (matches unnormalize_positions)
    pos_idx = jnp.asarray(unnormalize_positions_np(r[:, :, 7]), dtype=jnp.float32)

    Xo, Eo, yo = fwd(packed, X, E, r, y, node_mask, pos_idx)
    jax.block_until_ready((Xo, Eo, yo))
    assert Xo.shape == (bs, n, output_dims["X"])
    assert Eo.shape == (bs, n, n, input_dims["E"])
    assert yo.shape == (bs, output_dims["y"])
    assert bool(jnp.all(jnp.isfinite(Xo))) and bool(jnp.all(jnp.isfinite(yo)))
    assert bool(jnp.all(jnp.isfinite(Eo)))
    print("KERNEL_OK")
</pallas_src>

<mosaic_0001>
module attributes {stable_mosaic.version = 11 : i64} {
  func.func @_input_kernel(%arg0: i32, %arg1: memref<1x8x14xf32, #tpu.memory_space<vmem>>, %arg2: memref<1x64x5xf32, #tpu.memory_space<vmem>>, %arg3: memref<1x1x4xf32, #tpu.memory_space<vmem>>, %arg4: memref<1x8x1xf32, #tpu.memory_space<vmem>>, %arg5: memref<136x128xf32, #tpu.memory_space<vmem>>, %arg6: memref<1x8x32xf32, #tpu.memory_space<vmem>>, %arg7: memref<1x64x16xf32, #tpu.memory_space<vmem>>, %arg8: memref<1x1x16xf32, #tpu.memory_space<vmem>>) attributes {dimension_semantics = [#tpu.dimension_semantics<parallel>], iteration_bounds = array<i64: 2>, scalar_prefetch = 0 : i64, scratch_operands = 0 : i64, tpu.core_type = #tpu.core_type<tc>, window_params = [{transform_indices = @transform_0, window_bounds = array<i64: 1, 8, 14>}, {transform_indices = @transform_1, window_bounds = array<i64: 1, 64, 5>}, {transform_indices = @transform_2, window_bounds = array<i64: 1, 1, 4>}, {transform_indices = @transform_3, window_bounds = array<i64: 1, 8, 1>}, {pipeline_mode = #tpu.pipeline_mode<synchronous>, transform_indices = @transform_4, window_bounds = array<i64: 136, 128>}, {transform_indices = @transform_5, window_bounds = array<i64: 1, 8, 32>}, {transform_indices = @transform_6, window_bounds = array<i64: 1, 64, 16>}, {transform_indices = @transform_7, window_bounds = array<i64: 1, 1, 16>}]} {
    %c0 = arith.constant 0 : index
    %c0_0 = arith.constant 0 : index
    %c0_1 = arith.constant 0 : index
    %0 = vector.load %arg1[%c0, %c0_0, %c0_1] : memref<1x8x14xf32, #tpu.memory_space<vmem>>, vector<1x8x14xf32>
    %1 = vector.shape_cast %0 : vector<1x8x14xf32> to vector<8x14xf32>
    %c0_2 = arith.constant 0 : index
    %c0_3 = arith.constant 0 : index
    %c0_4 = arith.constant 0 : index
    %2 = vector.load %arg2[%c0_2, %c0_3, %c0_4] : memref<1x64x5xf32, #tpu.memory_space<vmem>>, vector<1x64x5xf32>
    %3 = vector.shape_cast %2 : vector<1x64x5xf32> to vector<64x5xf32>
    %c0_5 = arith.constant 0 : index
    %c0_6 = arith.constant 0 : index
    %c0_7 = arith.constant 0 : index
    %4 = vector.load %arg3[%c0_5, %c0_6, %c0_7] : memref<1x1x4xf32, #tpu.memory_space<vmem>>, vector<1x1x4xf32>
    %5 = vector.shape_cast %4 : vector<1x1x4xf32> to vector<1x4xf32>
    %c0_8 = arith.constant 0 : index
    %c0_9 = arith.constant 0 : index
    %c0_10 = arith.constant 0 : index
    %6 = vector.load %arg4[%c0_8, %c0_9, %c0_10] : memref<1x8x1xf32, #tpu.memory_space<vmem>>, vector<1x8x1xf32>
    %7 = vector.shape_cast %6 : vector<1x8x1xf32> to vector<8x1xf32>
    %8 = vector.shape_cast %7 : vector<8x1xf32> to vector<8x1x1xf32>
    %9 = vector.shape_cast %7 : vector<8x1xf32> to vector<1x8x1xf32>
    %10 = vector.broadcast %8 : vector<8x1x1xf32> to vector<8x8x1xf32>
    %11 = vector.broadcast %9 : vector<1x8x1xf32> to vector<8x8x1xf32>
    %12 = arith.mulf %10, %11 : vector<8x8x1xf32>
    %13 = vector.shape_cast %12 : vector<8x8x1xf32> to vector<64x1xf32>
    %c0_11 = arith.constant 0 : index
    %c0_12 = arith.constant 0 : index
    %14 = vector.load %arg5[%c0_11, %c0_12] : memref<136x128xf32, #tpu.memory_space<vmem>>, vector<14x24xf32>
    %cst = arith.constant dense<0.000000e+00> : vector<8x24xf32>
    %15 = tpu.matmul %1, %14, %cst {dimension_numbers = #tpu.dot_dimension_numbers<[1], [0], [0], [1], [0, 0, 1, 1], [], []>} : vector<8x14xf32>, vector<14x24xf32>, vector<8x24xf32> -> vector<8x24xf32>
    %c16 = arith.constant 16 : index
    %c0_13 = arith.constant 0 : index
    %16 = vector.load %arg5[%c16, %c0_13] : memref<136x128xf32, #tpu.memory_space<vmem>>, vector<1x24xf32>
    %17 = vector.broadcast %16 : vector<1x24xf32> to vector<8x24xf32>
    %18 = arith.addf %15, %17 : vector<8x24xf32>
    %cst_14 = arith.constant 0.000000e+00 : f32
    %19 = vector.broadcast %cst_14 : f32 to vector<8x24xf32>
    %20 = arith.maximumf %18, %19 : vector<8x24xf32>
    %c24 = arith.constant 24 : index
    %c0_15 = arith.constant 0 : index
    %21 = vector.load %arg5[%c24, %c0_15] : memref<136x128xf32, #tpu.memory_space<vmem>>, vector<24x32xf32>
    %cst_16 = arith.constant dense<0.000000e+00> : vector<8x32xf32>
    %22 = tpu.matmul %20, %21, %cst_16 {dimension_numbers = #tpu.dot_dimension_numbers<[1], [0], [0], [1], [0, 0, 1, 1], [], []>} : vector<8x24xf32>, vector<24x32xf32>, vector<8x32xf32> -> vector<8x32xf32>
    %c48 = arith.constant 48 : index
    %c0_17 = arith.constant 0 : index
    %23 = vector.load %arg5[%c48, %c0_17] : memref<136x128xf32, #tpu.memory_space<vmem>>, vector<1x32xf32>
    %24 = vector.broadcast %23 : vector<1x32xf32> to vector<8x32xf32>
    %25 = arith.addf %22, %24 : vector<8x32xf32>
    %cst_18 = arith.constant 0.000000e+00 : f32
    %26 = vector.broadcast %cst_18 : f32 to vector<8x32xf32>
    %27 = arith.maximumf %25, %26 : vector<8x32xf32>
    %28 = vector.broadcast %7 : vector<8x1xf32> to vector<8x32xf32>
    %29 = arith.mulf %27, %28 : vector<8x32xf32>
    %c56 = arith.constant 56 : index
    %c0_19 = arith.constant 0 : index
    %30 = vector.load %arg5[%c56, %c0_19] : memref<136x128xf32, #tpu.memory_space<vmem>>, vector<5x16xf32>
    %cst_20 = arith.constant dense<0.000000e+00> : vector<64x16xf32>
    %31 = tpu.matmul %3, %30, %cst_20 {dimension_numbers = #tpu.dot_dimension_numbers<[1], [0], [0], [1], [0, 0, 1, 1], [], []>} : vector<64x5xf32>, vector<5x16xf32>, vector<64x16xf32> -> vector<64x16xf32>
    %c64 = arith.constant 64 : index
    %c0_21 = arith.constant 0 : index
    %32 = vector.load %arg5[%c64, %c0_21] : memref<136x128xf32, #tpu.memory_space<vmem>>, vector<1x16xf32>
    %33 = vector.broadcast %32 : vector<1x16xf32> to vector<64x16xf32>
    %34 = arith.addf %31, %33 : vector<64x16xf32>
    %cst_22 = arith.constant 0.000000e+00 : f32
    %35 = vector.broadcast %cst_22 : f32 to vector<64x16xf32>
    %36 = arith.maximumf %34, %35 : vector<64x16xf32>
    %c72 = arith.constant 72 : index
    %c0_23 = arith.constant 0 : index
    %37 = vector.load %arg5[%c72, %c0_23] : memref<136x128xf32, #tpu.memory_space<vmem>>, vector<16x16xf32>
    %cst_24 = arith.constant dense<0.000000e+00> : vector<64x16xf32>
    %38 = tpu.matmul %36, %37, %cst_24 {dimension_numbers = #tpu.dot_dimension_numbers<[1], [0], [0], [1], [0, 0, 1, 1], [], []>} : vector<64x16xf32>, vector<16x16xf32>, vector<64x16xf32> -> vector<64x16xf32>
    %c88 = arith.constant 88 : index
    %c0_25 = arith.constant 0 : index
    %39 = vector.load %arg5[%c88, %c0_25] : memref<136x128xf32, #tpu.memory_space<vmem>>, vector<1x16xf32>
    %40 = vector.broadcast %39 : vector<1x16xf32> to vector<64x16xf32>
    %41 = arith.addf %38, %40 : vector<64x16xf32>
    %cst_26 = arith.constant 0.000000e+00 : f32
    %42 = vector.broadcast %cst_26 : f32 to vector<64x16xf32>
    %43 = arith.maximumf %41, %42 : vector<64x16xf32>
    %44 = vector.broadcast %13 : vector<64x1xf32> to vector<64x16xf32>
    %45 = arith.mulf %43, %44 : vector<64x16xf32>
    %c96 = arith.constant 96 : index
    %c0_27 = arith.constant 0 : index
    %46 = vector.load %arg5[%c96, %c0_27] : memref<136x128xf32, #tpu.memory_space<vmem>>, vector<4x16xf32>
    %cst_28 = arith.constant dense<0.000000e+00> : vector<1x16xf32>
    %47 = tpu.matmul %5, %46, %cst_28 {dimension_numbers = #tpu.dot_dimension_numbers<[1], [0], [0], [1], [0, 0, 1, 1], [], []>} : vector<1x4xf32>, vector<4x16xf32>, vector<1x16xf32> -> vector<1x16xf32>
    %c104 = arith.constant 104 : index
    %c0_29 = arith.constant 0 : index
    %48 = vector.load %arg5[%c104, %c0_29] : memref<136x128xf32, #tpu.memory_space<vmem>>, vector<1x16xf32>
    %49 = arith.addf %47, %48 : vector<1x16xf32>
    %cst_30 = arith.constant 0.000000e+00 : f32
    %50 = vector.broadcast %cst_30 : f32 to vector<1x16xf32>
    %51 = arith.maximumf %49, %50 : vector<1x16xf32>
    %c112 = arith.constant 112 : index
    %c0_31 = arith.constant 0 : index
    %52 = vector.load %arg5[%c112, %c0_31] : memref<136x128xf32, #tpu.memory_space<vmem>>, vector<16x16xf32>
    %cst_32 = arith.constant dense<0.000000e+00> : vector<1x16xf32>
    %53 = tpu.matmul %51, %52, %cst_32 {dimension_numbers = #tpu.dot_dimension_numbers<[1], [0], [0], [1], [0, 0, 1, 1], [], []>} : vector<1x16xf32>, vector<16x16xf32>, vector<1x16xf32> -> vector<1x16xf32>
    %c128 = arith.constant 128 : index
    %c0_33 = arith.constant 0 : index
    %54 = vector.load %arg5[%c128, %c0_33] : memref<136x128xf32, #tpu.memory_space<vmem>>, vector<1x16xf32>
    %55 = arith.addf %53, %54 : vector<1x16xf32>
    %cst_34 = arith.constant 0.000000e+00 : f32
    %56 = vector.broadcast %cst_34 : f32 to vector<1x16xf32>
    %57 = arith.maximumf %55, %56 : vector<1x16xf32>
    %c0_35 = arith.constant 0 : index
    %c0_36 = arith.constant 0 : index
    %c0_37 = arith.constant 0 : index
    %58 = vector.load %arg6[%c0_35, %c0_36, %c0_37] : memref<1x8x32xf32, #tpu.memory_space<vmem>>, vector<1x8x32xf32>
    %59 = vector.shape_cast %58 : vector<1x8x32xf32> to vector<8x32xf32>
    %60 = vector.shape_cast %29 : vector<8x32xf32> to vector<1x8x32xf32>
    tpu.vector_store %arg6[%c0_35, %c0_36, %c0_37], %60 {strides = array<i32>} : memref<1x8x32xf32, #tpu.memory_space<vmem>>, vector<1x8x32xf32>,
    %c0_38 = arith.constant 0 : index
    %c0_39 = arith.constant 0 : index
    %c0_40 = arith.constant 0 : index
    %61 = vector.load %arg7[%c0_38, %c0_39, %c0_40] : memref<1x64x16xf32, #tpu.memory_space<vmem>>, vector<1x64x16xf32>
    %62 = vector.shape_cast %61 : vector<1x64x16xf32> to vector<64x16xf32>
    %63 = vector.shape_cast %45 : vector<64x16xf32> to vector<1x64x16xf32>
    tpu.vector_store %arg7[%c0_38, %c0_39, %c0_40], %63 {strides = array<i32>} : memref<1x64x16xf32, #tpu.memory_space<vmem>>, vector<1x64x16xf32>,
    %c0_41 = arith.constant 0 : index
    %c0_42 = arith.constant 0 : index
    %c0_43 = arith.constant 0 : index
    %64 = vector.load %arg8[%c0_41, %c0_42, %c0_43] : memref<1x1x16xf32, #tpu.memory_space<vmem>>, vector<1x1x16xf32>
    %65 = vector.shape_cast %64 : vector<1x1x16xf32> to vector<1x16xf32>
    %66 = vector.shape_cast %57 : vector<1x16xf32> to vector<1x1x16xf32>
    tpu.vector_store %arg8[%c0_41, %c0_42, %c0_43], %66 {strides = array<i32>} : memref<1x1x16xf32, #tpu.memory_space<vmem>>, vector<1x1x16xf32>,
    return
  }
  func.func @transform_0(%arg0: i32) -> (i32, i32, i32) {
    %c0_i32 = arith.constant 0 : i32
    %c0_i32_0 = arith.constant 0 : i32
    %c0_i32_1 = arith.constant 0 : i32
    return %arg0, %c0_i32, %c0_i32_0 : i32, i32, i32
  }
  func.func @transform_1(%arg0: i32) -> (i32, i32, i32) {
    %c0_i32 = arith.constant 0 : i32
    %c0_i32_0 = arith.constant 0 : i32
    %c0_i32_1 = arith.constant 0 : i32
    return %arg0, %c0_i32, %c0_i32_0 : i32, i32, i32
  }
  func.func @transform_2(%arg0: i32) -> (i32, i32, i32) {
    %c0_i32 = arith.constant 0 : i32
    %c0_i32_0 = arith.constant 0 : i32
    %c0_i32_1 = arith.constant 0 : i32
    return %arg0, %c0_i32, %c0_i32_0 : i32, i32, i32
  }
  func.func @transform_3(%arg0: i32) -> (i32, i32, i32) {
    %c0_i32 = arith.constant 0 : i32
    %c0_i32_0 = arith.constant 0 : i32
    %c0_i32_1 = arith.constant 0 : i32
    return %arg0, %c0_i32, %c0_i32_0 : i32, i32, i32
  }
  func.func @transform_4(%arg0: i32) -> (i32, i32) {
    %c0_i32 = arith.constant 0 : i32
    %c0_i32_0 = arith.constant 0 : i32
    %c0_i32_1 = arith.constant 0 : i32
    return %c0_i32, %c0_i32_0 : i32, i32
  }
  func.func @transform_5(%arg0: i32) -> (i32, i32, i32) {
    %c0_i32 = arith.constant 0 : i32
    %c0_i32_0 = arith.constant 0 : i32
    %c0_i32_1 = arith.constant 0 : i32
    return %arg0, %c0_i32, %c0_i32_0 : i32, i32, i32
  }
  func.func @transform_6(%arg0: i32) -> (i32, i32, i32) {
    %c0_i32 = arith.constant 0 : i32
    %c0_i32_0 = arith.constant 0 : i32
    %c0_i32_1 = arith.constant 0 : i32
    return %arg0, %c0_i32, %c0_i32_0 : i32, i32, i32
  }
  func.func @transform_7(%arg0: i32) -> (i32, i32, i32) {
    %c0_i32 = arith.constant 0 : i32
    %c0_i32_0 = arith.constant 0 : i32
    %c0_i32_1 = arith.constant 0 : i32
    return %arg0, %c0_i32, %c0_i32_0 : i32, i32, i32
  }
}

module attributes {stable_mosaic.version = 11 : i64} {
  func.func @_output_kernel(%arg0: i32, %arg1: memref<1x8x32xf32, #tpu.memory_space<vmem>>, %arg2: memref<1x1x16xf32, #tpu.memory_space<vmem>>, %arg3: memref<1x8x6xf32, #tpu.memory_space<vmem>>, %arg4: memref<1x1x4xf32, #tpu.memory_space<vmem>>, %arg5: memref<1x64x5xf32, #tpu.memory_space<vmem>>, %arg6: memref<1x8x1xf32, #tpu.memory_space<vmem>>, %arg7: memref<112x128xf32, #tpu.memory_space<vmem>>, %arg8: memref<1x8x6xf32, #tpu.memory_space<vmem>>, %arg9: memref<1x64x5xf32, #tpu.memory_space<vmem>>, %arg10: memref<1x1x4xf32, #tpu.memory_space<vmem>>) attributes {dimension_semantics = [#tpu.dimension_semantics<parallel>], iteration_bounds = array<i64: 2>, scalar_prefetch = 0 : i64, scratch_operands = 0 : i64, tpu.core_type = #tpu.core_type<tc>, window_params = [{transform_indices = @transform_0, window_bounds = array<i64: 1, 8, 32>}, {transform_indices = @transform_1, window_bounds = array<i64: 1, 1, 16>}, {transform_indices = @transform_2, window_bounds = array<i64: 1, 8, 6>}, {transform_indices = @transform_3, window_bounds = array<i64: 1, 1, 4>}, {transform_indices = @transform_4, window_bounds = array<i64: 1, 64, 5>}, {transform_indices = @transform_5, window_bounds = array<i64: 1, 8, 1>}, {pipeline_mode = #tpu.pipeline_mode<synchronous>, transform_indices = @transform_6, window_bounds = array<i64: 112, 128>}, {transform_indices = @transform_7, window_bounds = array<i64: 1, 8, 6>}, {transform_indices = @transform_8, window_bounds = array<i64: 1, 64, 5>}, {transform_indices = @transform_9, window_bounds = array<i64: 1, 1, 4>}]} {
    %c0 = arith.constant 0 : index
    %c0_0 = arith.constant 0 : index
    %c0_1 = arith.constant 0 : index
    %0 = vector.load %arg6[%c0, %c0_0, %c0_1] : memref<1x8x1xf32, #tpu.memory_space<vmem>>, vector<1x8x1xf32>
    %1 = vector.shape_cast %0 : vector<1x8x1xf32> to vector<8x1xf32>
    %2 = vector.shape_cast %1 : vector<8x1xf32> to vector<8x1x1xf32>
    %3 = vector.shape_cast %1 : vector<8x1xf32> to vector<1x8x1xf32>
    %4 = vector.broadcast %2 : vector<8x1x1xf32> to vector<8x8x1xf32>
    %5 = vector.broadcast %3 : vector<1x8x1xf32> to vector<8x8x1xf32>
    %6 = arith.mulf %4, %5 : vector<8x8x1xf32>
    %7 = vector.shape_cast %6 : vector<8x8x1xf32> to vector<64x1xf32>
    %c0_2 = arith.constant 0 : index
    %c0_3 = arith.constant 0 : index
    %c0_4 = arith.constant 0 : index
    %8 = vector.load %arg1[%c0_2, %c0_3, %c0_4] : memref<1x8x32xf32, #tpu.memory_space<vmem>>, vector<1x8x32xf32>
    %9 = vector.shape_cast %8 : vector<1x8x32xf32> to vector<8x32xf32>
    %c0_5 = arith.constant 0 : index
    %c0_6 = arith.constant 0 : index
    %c0_7 = arith.constant 0 : index
    %10 = vector.load %arg2[%c0_5, %c0_6, %c0_7] : memref<1x1x16xf32, #tpu.memory_space<vmem>>, vector<1x1x16xf32>
    %11 = vector.shape_cast %10 : vector<1x1x16xf32> to vector<1x16xf32>
    %c0_8 = arith.constant 0 : index
    %c0_9 = arith.constant 0 : index
    %12 = vector.load %arg7[%c0_8, %c0_9] : memref<112x128xf32, #tpu.memory_space<vmem>>, vector<32x16xf32>
    %cst = arith.constant dense<0.000000e+00> : vector<8x16xf32>
    %13 = tpu.matmul %9, %12, %cst {dimension_numbers = #tpu.dot_dimension_numbers<[1], [0], [0], [1], [0, 0, 1, 1], [], []>} : vector<8x32xf32>, vector<32x16xf32>, vector<8x16xf32> -> vector<8x16xf32>
    %c32 = arith.constant 32 : index
    %c0_10 = arith.constant 0 : index
    %14 = vector.load %arg7[%c32, %c0_10] : memref<112x128xf32, #tpu.memory_space<vmem>>, vector<1x16xf32>
    %15 = vector.broadcast %14 : vector<1x16xf32> to vector<8x16xf32>
    %16 = arith.addf %13, %15 : vector<8x16xf32>
    %cst_11 = arith.constant 0.000000e+00 : f32
    %17 = vector.broadcast %cst_11 : f32 to vector<8x16xf32>
    %18 = arith.maximumf %16, %17 : vector<8x16xf32>
    %c40 = arith.constant 40 : index
    %c0_12 = arith.constant 0 : index
    %19 = vector.load %arg7[%c40, %c0_12] : memref<112x128xf32, #tpu.memory_space<vmem>>, vector<16x6xf32>
    %cst_13 = arith.constant dense<0.000000e+00> : vector<8x6xf32>
    %20 = tpu.matmul %18, %19, %cst_13 {dimension_numbers = #tpu.dot_dimension_numbers<[1], [0], [0], [1], [0, 0, 1, 1], [], []>} : vector<8x16xf32>, vector<16x6xf32>, vector<8x6xf32> -> vector<8x6xf32>
    %c56 = arith.constant 56 : index
    %c0_14 = arith.constant 0 : index
    %21 = vector.load %arg7[%c56, %c0_14] : memref<112x128xf32, #tpu.memory_space<vmem>>, vector<1x6xf32>
    %22 = vector.broadcast %21 : vector<1x6xf32> to vector<8x6xf32>
    %23 = arith.addf %20, %22 : vector<8x6xf32>
    %c0_15 = arith.constant 0 : index
    %c0_16 = arith.constant 0 : index
    %c0_17 = arith.constant 0 : index
    %24 = vector.load %arg3[%c0_15, %c0_16, %c0_17] : memref<1x8x6xf32, #tpu.memory_space<vmem>>, vector<1x8x6xf32>
    %25 = vector.shape_cast %24 : vector<1x8x6xf32> to vector<8x6xf32>
    %26 = arith.addf %23, %25 : vector<8x6xf32>
    %27 = vector.broadcast %1 : vector<8x1xf32> to vector<8x6xf32>
    %28 = arith.mulf %26, %27 : vector<8x6xf32>
    %c64 = arith.constant 64 : index
    %c0_18 = arith.constant 0 : index
    %29 = vector.load %arg7[%c64, %c0_18] : memref<112x128xf32, #tpu.memory_space<vmem>>, vector<16x16xf32>
    %cst_19 = arith.constant dense<0.000000e+00> : vector<1x16xf32>
    %30 = tpu.matmul %11, %29, %cst_19 {dimension_numbers = #tpu.dot_dimension_numbers<[1], [0], [0], [1], [0, 0, 1, 1], [], []>} : vector<1x16xf32>, vector<16x16xf32>, vector<1x16xf32> -> vector<1x16xf32>
    %c80 = arith.constant 80 : index
    %c0_20 = arith.constant 0 : index
    %31 = vector.load %arg7[%c80, %c0_20] : memref<112x128xf32, #tpu.memory_space<vmem>>, vector<1x16xf32>
    %32 = arith.addf %30, %31 : vector<1x16xf32>
    %cst_21 = arith.constant 0.000000e+00 : f32
    %33 = vector.broadcast %cst_21 : f32 to vector<1x16xf32>
    %34 = arith.maximumf %32, %33 : vector<1x16xf32>
    %c88 = arith.constant 88 : index
    %c0_22 = arith.constant 0 : index
    %35 = vector.load %arg7[%c88, %c0_22] : memref<112x128xf32, #tpu.memory_space<vmem>>, vector<16x4xf32>
    %cst_23 = arith.constant dense<0.000000e+00> : vector<1x4xf32>
    %36 = tpu.matmul %34, %35, %cst_23 {dimension_numbers = #tpu.dot_dimension_numbers<[1], [0], [0], [1], [0, 0, 1, 1], [], []>} : vector<1x16xf32>, vector<16x4xf32>, vector<1x4xf32> -> vector<1x4xf32>
    %c104 = arith.constant 104 : index
    %c0_24 = arith.constant 0 : index
    %37 = vector.load %arg7[%c104, %c0_24] : memref<112x128xf32, #tpu.memory_space<vmem>>, vector<1x4xf32>
    %38 = arith.addf %36, %37 : vector<1x4xf32>
    %c0_25 = arith.constant 0 : index
    %c0_26 = arith.constant 0 : index
    %c0_27 = arith.constant 0 : index
    %39 = vector.load %arg4[%c0_25, %c0_26, %c0_27] : memref<1x1x4xf32, #tpu.memory_space<vmem>>, vector<1x1x4xf32>
    %40 = vector.shape_cast %39 : vector<1x1x4xf32> to vector<1x4xf32>
    %41 = arith.addf %38, %40 : vector<1x4xf32>
    %c0_28 = arith.constant 0 : index
    %c0_29 = arith.constant 0 : index
    %c0_30 = arith.constant 0 : index
    %42 = vector.load %arg5[%c0_28, %c0_29, %c0_30] : memref<1x64x5xf32, #tpu.memory_space<vmem>>, vector<1x64x5xf32>
    %43 = vector.shape_cast %42 : vector<1x64x5xf32> to vector<64x5xf32>
    %44 = vector.broadcast %7 : vector<64x1xf32> to vector<64x5xf32>
    %45 = arith.mulf %43, %44 : vector<64x5xf32>
    %c0_31 = arith.constant 0 : index
    %c0_32 = arith.constant 0 : index
    %c0_33 = arith.constant 0 : index
    %46 = vector.load %arg8[%c0_31, %c0_32, %c0_33] : memref<1x8x6xf32, #tpu.memory_space<vmem>>, vector<1x8x6xf32>
    %47 = vector.shape_cast %46 : vector<1x8x6xf32> to vector<8x6xf32>
    %48 = vector.shape_cast %28 : vector<8x6xf32> to vector<1x8x6xf32>
    tpu.vector_store %arg8[%c0_31, %c0_32, %c0_33], %48 {strides = array<i32>} : memref<1x8x6xf32, #tpu.memory_space<vmem>>, vector<1x8x6xf32>,
    %c0_34 = arith.constant 0 : index
    %c0_35 = arith.constant 0 : index
    %c0_36 = arith.constant 0 : index
    %49 = vector.load %arg9[%c0_34, %c0_35, %c0_36] : memref<1x64x5xf32, #tpu.memory_space<vmem>>, vector<1x64x5xf32>
    %50 = vector.shape_cast %49 : vector<1x64x5xf32> to vector<64x5xf32>
    %51 = vector.shape_cast %45 : vector<64x5xf32> to vector<1x64x5xf32>
    tpu.vector_store %arg9[%c0_34, %c0_35, %c0_36], %51 {strides = array<i32>} : memref<1x64x5xf32, #tpu.memory_space<vmem>>, vector<1x64x5xf32>,
    %c0_37 = arith.constant 0 : index
    %c0_38 = arith.constant 0 : index
    %c0_39 = arith.constant 0 : index
    %52 = vector.load %arg10[%c0_37, %c0_38, %c0_39] : memref<1x1x4xf32, #tpu.memory_space<vmem>>, vector<1x1x4xf32>
    %53 = vector.shape_cast %52 : vector<1x1x4xf32> to vector<1x4xf32>
    %54 = vector.shape_cast %41 : vector<1x4xf32> to vector<1x1x4xf32>
    tpu.vector_store %arg10[%c0_37, %c0_38, %c0_39], %54 {strides = array<i32>} : memref<1x1x4xf32, #tpu.memory_space<vmem>>, vector<1x1x4xf32>,
    return
  }
  func.func @transform_0(%arg0: i32) -> (i32, i32, i32) {
    %c0_i32 = arith.constant 0 : i32
    %c0_i32_0 = arith.constant 0 : i32
    %c0_i32_1 = arith.constant 0 : i32
    return %arg0, %c0_i32, %c0_i32_0 : i32, i32, i32
  }
  func.func @transform_1(%arg0: i32) -> (i32, i32, i32) {
    %c0_i32 = arith.constant 0 : i32
    %c0_i32_0 = arith.constant 0 : i32
    %c0_i32_1 = arith.constant 0 : i32
    return %arg0, %c0_i32, %c0_i32_0 : i32, i32, i32
  }
  func.func @transform_2(%arg0: i32) -> (i32, i32, i32) {
    %c0_i32 = arith.constant 0 : i32
    %c0_i32_0 = arith.constant 0 : i32
    %c0_i32_1 = arith.constant 0 : i32
    return %arg0, %c0_i32, %c0_i32_0 : i32, i32, i32
  }
  func.func @transform_3(%arg0: i32) -> (i32, i32, i32) {
    %c0_i32 = arith.constant 0 : i32
    %c0_i32_0 = arith.constant 0 : i32
    %c0_i32_1 = arith.constant 0 : i32
    return %arg0, %c0_i32, %c0_i32_0 : i32, i32, i32
  }
  func.func @transform_4(%arg0: i32) -> (i32, i32, i32) {
    %c0_i32 = arith.constant 0 : i32
    %c0_i32_0 = arith.constant 0 : i32
    %c0_i32_1 = arith.constant 0 : i32
    return %arg0, %c0_i32, %c0_i32_0 : i32, i32, i32
  }
  func.func @transform_5(%arg0: i32) -> (i32, i32, i32) {
    %c0_i32 = arith.constant 0 : i32
    %c0_i32_0 = arith.constant 0 : i32
    %c0_i32_1 = arith.constant 0 : i32
    return %arg0, %c0_i32, %c0_i32_0 : i32, i32, i32
  }
  func.func @transform_6(%arg0: i32) -> (i32, i32) {
    %c0_i32 = arith.constant 0 : i32
    %c0_i32_0 = arith.constant 0 : i32
    %c0_i32_1 = arith.constant 0 : i32
    return %c0_i32, %c0_i32_0 : i32, i32
  }
  func.func @transform_7(%arg0: i32) -> (i32, i32, i32) {
    %c0_i32 = arith.constant 0 : i32
    %c0_i32_0 = arith.constant 0 : i32
    %c0_i32_1 = arith.constant 0 : i32
    return %arg0, %c0_i32, %c0_i32_0 : i32, i32, i32
  }
  func.func @transform_8(%arg0: i32) -> (i32, i32, i32) {
    %c0_i32 = arith.constant 0 : i32
    %c0_i32_0 = arith.constant 0 : i32
    %c0_i32_1 = arith.constant 0 : i32
    return %arg0, %c0_i32, %c0_i32_0 : i32, i32, i32
  }
  func.func @transform_9(%arg0: i32) -> (i32, i32, i32) {
    %c0_i32 = arith.constant 0 : i32
    %c0_i32_0 = arith.constant 0 : i32
    %c0_i32_1 = arith.constant 0 : i32
    return %arg0, %c0_i32, %c0_i32_0 : i32, i32, i32
  }
}

module attributes {stable_mosaic.version = 11 : i64} {
  func.func @_layers_kernel(%arg0: i32, %arg1: memref<1x8x32xf32, #tpu.memory_space<vmem>>, %arg2: memref<1x64x16xf32, #tpu.memory_space<vmem>>, %arg3: memref<1x1x16xf32, #tpu.memory_space<vmem>>, %arg4: memref<1x8x1xf32, #tpu.memory_space<vmem>>, %arg5: memref<1536x128xf32, #tpu.memory_space<vmem>>, %arg6: memref<1x8x32xf32, #tpu.memory_space<vmem>>, %arg7: memref<1x64x16xf32, #tpu.memory_space<vmem>>, %arg8: memref<1x1x16xf32, #tpu.memory_space<vmem>>) attributes {dimension_semantics = [#tpu.dimension_semantics<parallel>], iteration_bounds = array<i64: 2>, scalar_prefetch = 0 : i64, scratch_operands = 0 : i64, tpu.core_type = #tpu.core_type<tc>, window_params = [{transform_indices = @transform_0, window_bounds = array<i64: 1, 8, 32>}, {transform_indices = @transform_1, window_bounds = array<i64: 1, 64, 16>}, {transform_indices = @transform_2, window_bounds = array<i64: 1, 1, 16>}, {transform_indices = @transform_3, window_bounds = array<i64: 1, 8, 1>}, {pipeline_mode = #tpu.pipeline_mode<synchronous>, transform_indices = @transform_4, window_bounds = array<i64: 1536, 128>}, {transform_indices = @transform_5, window_bounds = array<i64: 1, 8, 32>}, {transform_indices = @transform_6, window_bounds = array<i64: 1, 64, 16>}, {transform_indices = @transform_7, window_bounds = array<i64: 1, 1, 16>}]} {
    %c0 = arith.constant 0 : index
    %c0_0 = arith.constant 0 : index
    %c0_1 = arith.constant 0 : index
    %0 = vector.load %arg1[%c0, %c0_0, %c0_1] : memref<1x8x32xf32, #tpu.memory_space<vmem>>, vector<1x8x32xf32>
    %1 = vector.shape_cast %0 : vector<1x8x32xf32> to vector<8x32xf32>
    %c0_2 = arith.constant 0 : index
    %c0_3 = arith.constant 0 : index
    %c0_4 = arith.constant 0 : index
    %2 = vector.load %arg2[%c0_2, %c0_3, %c0_4] : memref<1x64x16xf32, #tpu.memory_space<vmem>>, vector<1x64x16xf32>
    %3 = vector.shape_cast %2 : vector<1x64x16xf32> to vector<64x16xf32>
    %c0_5 = arith.constant 0 : index
    %c0_6 = arith.constant 0 : index
    %c0_7 = arith.constant 0 : index
    %4 = vector.load %arg3[%c0_5, %c0_6, %c0_7] : memref<1x1x16xf32, #tpu.memory_space<vmem>>, vector<1x1x16xf32>
    %5 = vector.shape_cast %4 : vector<1x1x16xf32> to vector<1x16xf32>
    %c0_8 = arith.constant 0 : index
    %c0_9 = arith.constant 0 : index
    %c0_10 = arith.constant 0 : index
    %6 = vector.load %arg4[%c0_8, %c0_9, %c0_10] : memref<1x8x1xf32, #tpu.memory_space<vmem>>, vector<1x8x1xf32>
    %7 = vector.shape_cast %6 : vector<1x8x1xf32> to vector<8x1xf32>
    %8 = vector.shape_cast %7 : vector<8x1xf32> to vector<8x1x1xf32>
    %9 = vector.shape_cast %7 : vector<8x1xf32> to vector<1x8x1xf32>
    %10 = vector.broadcast %8 : vector<8x1x1xf32> to vector<8x8x1xf32>
    %11 = vector.broadcast %9 : vector<1x8x1xf32> to vector<8x8x1xf32>
    %12 = arith.mulf %10, %11 : vector<8x8x1xf32>
    %13 = vector.shape_cast %12 : vector<8x8x1xf32> to vector<64x1xf32>
    %14 = vector.shape_cast %7 : vector<8x1xf32> to vector<1x8x1xf32>
    %cst = arith.constant 0.000000e+00 : f32
    %15 = vector.broadcast %cst : f32 to vector<1x8x1xf32>
    %16 = arith.cmpf ogt, %14, %15 : vector<1x8x1xf32>
    %c0_11 = arith.constant 0 : index
    %c0_12 = arith.constant 0 : index
    %17 = vector.load %arg5[%c0_11, %c0_12] : memref<1536x128xf32, #tpu.memory_space<vmem>>, vector<32x96xf32>
    %cst_13 = arith.constant dense<0.000000e+00> : vector<8x96xf32>
    %18 = tpu.matmul %1, %17, %cst_13 {dimension_numbers = #tpu.dot_dimension_numbers<[1], [0], [0], [1], [0, 0, 1, 1], [], []>} : vector<8x32xf32>, vector<32x96xf32>, vector<8x96xf32> -> vector<8x96xf32>
    %c32 = arith.constant 32 : index
    %c0_14 = arith.constant 0 : index
    %19 = vector.load %arg5[%c32, %c0_14] : memref<1536x128xf32, #tpu.memory_space<vmem>>, vector<1x96xf32>
    %20 = vector.broadcast %19 : vector<1x96xf32> to vector<8x96xf32>
    %21 = arith.addf %18, %20 : vector<8x96xf32>
    %22 = vector.broadcast %7 : vector<8x1xf32> to vector<8x96xf32>
    %23 = arith.mulf %21, %22 : vector<8x96xf32>
    %24 = vector.extract_strided_slice %23 {offsets = [0, 0], sizes = [8, 32], strides = [1, 1]} : vector<8x96xf32> to vector<8x32xf32>
    %25 = vector.extract_strided_slice %23 {offsets = [0, 32], sizes = [8, 32], strides = [1, 1]} : vector<8x96xf32> to vector<8x32xf32>
    %26 = vector.extract_strided_slice %23 {offsets = [0, 64], sizes = [8, 32], strides = [1, 1]} : vector<8x96xf32> to vector<8x32xf32>
    %c40 = arith.constant 40 : index
    %c0_15 = arith.constant 0 : index
    %27 = vector.load %arg5[%c40, %c0_15] : memref<1536x128xf32, #tpu.memory_space<vmem>>, vector<16x64xf32>
    %cst_16 = arith.constant dense<0.000000e+00> : vector<64x64xf32>
    %28 = tpu.matmul %3, %27, %cst_16 {dimension_numbers = #tpu.dot_dimension_numbers<[1], [0], [0], [1], [0, 0, 1, 1], [], []>} : vector<64x16xf32>, vector<16x64xf32>, vector<64x64xf32> -> vector<64x64xf32>
    %c56 = arith.constant 56 : index
    %c0_17 = arith.constant 0 : index
    %29 = vector.load %arg5[%c56, %c0_17] : memref<1536x128xf32, #tpu.memory_space<vmem>>, vector<1x64xf32>
    %30 = vector.broadcast %29 : vector<1x64xf32> to vector<64x64xf32>
    %31 = arith.addf %28, %30 : vector<64x64xf32>
    %32 = vector.broadcast %13 : vector<64x1xf32> to vector<64x64xf32>
    %33 = arith.mulf %31, %32 : vector<64x64xf32>
    %34 = vector.extract_strided_slice %33 {offsets = [0, 0], sizes = [64, 32], strides = [1, 1]} : vector<64x64xf32> to vector<64x32xf32>
    %35 = vector.shape_cast %34 : vector<64x32xf32> to vector<8x8x32xf32>
    %36 = vector.extract_strided_slice %33 {offsets = [0, 32], sizes = [64, 32], strides = [1, 1]} : vector<64x64xf32> to vector<64x32xf32>
    %37 = vector.shape_cast %36 : vector<64x32xf32> to vector<8x8x32xf32>
    %c64 = arith.constant 64 : index
    %c0_18 = arith.constant 0 : index
    %38 = vector.load %arg5[%c64, %c0_18] : memref<1536x128xf32, #tpu.memory_space<vmem>>, vector<16x128xf32>
    %cst_19 = arith.constant dense<0.000000e+00> : vector<1x128xf32>
    %39 = tpu.matmul %5, %38, %cst_19 {dimension_numbers = #tpu.dot_dimension_numbers<[1], [0], [0], [1], [0, 0, 1, 1], [], []>} : vector<1x16xf32>, vector<16x128xf32>, vector<1x128xf32> -> vector<1x128xf32>
    %c80 = arith.constant 80 : index
    %c0_20 = arith.constant 0 : index
    %40 = vector.load %arg5[%c80, %c0_20] : memref<1536x128xf32, #tpu.memory_space<vmem>>, vector<1x128xf32>
    %41 = arith.addf %39, %40 : vector<1x128xf32>
    %42 = vector.extract_strided_slice %41 {offsets = [0, 0], sizes = [1, 32], strides = [1, 1]} : vector<1x128xf32> to vector<1x32xf32>
    %43 = vector.shape_cast %42 : vector<1x32xf32> to vector<1x1x32xf32>
    %44 = vector.extract_strided_slice %41 {offsets = [0, 32], sizes = [1, 32], strides = [1, 1]} : vector<1x128xf32> to vector<1x32xf32>
    %45 = vector.shape_cast %44 : vector<1x32xf32> to vector<1x1x32xf32>
    %46 = vector.extract_strided_slice %41 {offsets = [0, 64], sizes = [1, 32], strides = [1, 1]} : vector<1x128xf32> to vector<1x32xf32>
    %47 = vector.extract_strided_slice %41 {offsets = [0, 96], sizes = [1, 32], strides = [1, 1]} : vector<1x128xf32> to vector<1x32xf32>
    %48 = vector.shape_cast %24 : vector<8x32xf32> to vector<8x1x32xf32>
    %49 = vector.shape_cast %25 : vector<8x32xf32> to vector<1x8x32xf32>
    %50 = vector.broadcast %48 : vector<8x1x32xf32> to vector<8x8x32xf32>
    %51 = vector.broadcast %49 : vector<1x8x32xf32> to vector<8x8x32xf32>
    %52 = arith.mulf %50, %51 : vector<8x8x32xf32>
    %cst_21 = arith.constant 0.353553385 : f32
    %53 = vector.broadcast %cst_21 : f32 to vector<8x8x32xf32>
    %54 = arith.mulf %52, %53 : vector<8x8x32xf32>
    %cst_22 = arith.constant 1.000000e+00 : f32
    %55 = vector.broadcast %cst_22 : f32 to vector<8x8x32xf32>
    %56 = arith.addf %35, %55 : vector<8x8x32xf32>
    %57 = arith.mulf %54, %56 : vector<8x8x32xf32>
    %58 = arith.addf %57, %37 : vector<8x8x32xf32>
    %cst_23 = arith.constant 1.000000e+00 : f32
    %59 = vector.broadcast %cst_23 : f32 to vector<1x1x32xf32>
    %60 = arith.addf %45, %59 : vector<1x1x32xf32>
    %61 = vector.broadcast %60 : vector<1x1x32xf32> to vector<8x8x32xf32>
    %62 = arith.mulf %61, %58 : vector<8x8x32xf32>
    %63 = vector.broadcast %43 : vector<1x1x32xf32> to vector<8x8x32xf32>
    %64 = arith.addf %63, %62 : vector<8x8x32xf32>
    %65 = vector.shape_cast %64 : vector<8x8x32xf32> to vector<64x32xf32>
    %c88 = arith.constant 88 : index
    %c0_24 = arith.constant 0 : index
    %66 = vector.load %arg5[%c88, %c0_24] : memref<1536x128xf32, #tpu.memory_space<vmem>>, vector<32x16xf32>
    %cst_25 = arith.constant dense<0.000000e+00> : vector<64x16xf32>
    %67 = tpu.matmul %65, %66, %cst_25 {dimension_numbers = #tpu.dot_dimension_numbers<[1], [0], [0], [1], [0, 0, 1, 1], [], []>} : vector<64x32xf32>, vector<32x16xf32>, vector<64x16xf32> -> vector<64x16xf32>
    %c120 = arith.constant 120 : index
    %c0_26 = arith.constant 0 : index
    %68 = vector.load %arg5[%c120, %c0_26] : memref<1536x128xf32, #tpu.memory_space<vmem>>, vector<1x16xf32>
    %69 = vector.broadcast %68 : vector<1x16xf32> to vector<64x16xf32>
    %70 = arith.addf %67, %69 : vector<64x16xf32>
    %71 = vector.broadcast %13 : vector<64x1xf32> to vector<64x16xf32>
    %72 = arith.mulf %70, %71 : vector<64x16xf32>
    %cst_27 = arith.constant -1.000000e+30 : f32
    %73 = vector.shape_cast %16 : vector<1x8x1xi1> to vector<1x8x1xi1>
    %74 = vector.broadcast %73 : vector<1x8x1xi1> to vector<8x8x32xi1>
    %75 = vector.broadcast %cst_27 : f32 to vector<8x8x32xf32>
    %76 = arith.select %74, %58, %75 : vector<8x8x32xi1>, vector<8x8x32xf32>
    %cst_28 = arith.constant dense<0xFF800000> : vector<8x32xf32>
    %77 = vector.multi_reduction <maximumf>, %76, %cst_28 [1] : vector<8x8x32xf32> to vector<8x32xf32>
    %78 = vector.shape_cast %77 : vector<8x32xf32> to vector<8x1x32xf32>
    %79 = vector.broadcast %78 : vector<8x1x32xf32> to vector<8x8x32xf32>
    %80 = arith.subf %76, %79 : vector<8x8x32xf32>
    %81 = math.exp %80 : vector<8x8x32xf32>
    %cst_29 = arith.constant 0.000000e+00 : f32
    %82 = vector.shape_cast %16 : vector<1x8x1xi1> to vector<1x8x1xi1>
    %83 = vector.broadcast %82 : vector<1x8x1xi1> to vector<8x8x32xi1>
    %84 = vector.broadcast %cst_29 : f32 to vector<8x8x32xf32>
    %85 = arith.select %83, %81, %84 : vector<8x8x32xi1>, vector<8x8x32xf32>
    %cst_30 = arith.constant dense<0.000000e+00> : vector<8x32xf32>
    %86 = vector.multi_reduction <add>, %85, %cst_30 [1] : vector<8x8x32xf32> to vector<8x32xf32>
    %87 = vector.shape_cast %86 : vector<8x32xf32> to vector<8x1x32xf32>
    %cst_31 = arith.constant 1.000000e-30 : f32
    %88 = vector.broadcast %cst_31 : f32 to vector<8x1x32xf32>
    %89 = arith.maximumf %87, %88 : vector<8x1x32xf32>
    %90 = vector.broadcast %89 : vector<8x1x32xf32> to vector<8x8x32xf32>
    %91 = arith.divf %85, %90 : vector<8x8x32xf32>
    %92 = vector.shape_cast %26 : vector<8x32xf32> to vector<1x8x32xf32>
    %93 = vector.broadcast %92 : vector<1x8x32xf32> to vector<8x8x32xf32>
    %94 = arith.mulf %91, %93 : vector<8x8x32xf32>
    %cst_32 = arith.constant dense<0.000000e+00> : vector<8x32xf32>
    %95 = vector.multi_reduction <add>, %94, %cst_32 [1] : vector<8x8x32xf32> to vector<8x32xf32>
    %cst_33 = arith.constant 1.000000e+00 : f32
    %96 = vector.broadcast %cst_33 : f32 to vector<1x32xf32>
    %97 = arith.addf %47, %96 : vector<1x32xf32>
    %98 = vector.broadcast %97 : vector<1x32xf32> to vector<8x32xf32>
    %99 = arith.mulf %98, %95 : vector<8x32xf32>
    %100 = vector.broadcast %46 : vector<1x32xf32> to vector<8x32xf32>
    %101 = arith.addf %100, %99 : vector<8x32xf32>
    %c128 = arith.constant 128 : index
    %c0_34 = arith.constant 0 : index
    %102 = vector.load %arg5[%c128, %c0_34] : memref<1536x128xf32, #tpu.memory_space<vmem>>, vector<32x32xf32>
    %cst_35 = arith.constant dense<0.000000e+00> : vector<8x32xf32>
    %103 = tpu.matmul %101, %102, %cst_35 {dimension_numbers = #tpu.dot_dimension_numbers<[1], [0], [0], [1], [0, 0, 1, 1], [], []>} : vector<8x32xf32>, vector<32x32xf32>, vector<8x32xf32> -> vector<8x32xf32>
    %c160 = arith.constant 160 : index
    %c0_36 = arith.constant 0 : index
    %104 = vector.load %arg5[%c160, %c0_36] : memref<1536x128xf32, #tpu.memory_space<vmem>>, vector<1x32xf32>
    %105 = vector.broadcast %104 : vector<1x32xf32> to vector<8x32xf32>
    %106 = arith.addf %103, %105 : vector<8x32xf32>
    %107 = vector.broadcast %7 : vector<8x1xf32> to vector<8x32xf32>
    %108 = arith.mulf %106, %107 : vector<8x32xf32>
    %c168 = arith.constant 168 : index
    %c0_37 = arith.constant 0 : index
    %109 = vector.load %arg5[%c168, %c0_37] : memref<1536x128xf32, #tpu.memory_space<vmem>>, vector<16x16xf32>
    %cst_38 = arith.constant dense<0.000000e+00> : vector<1x16xf32>
    %110 = tpu.matmul %5, %109, %cst_38 {dimension_numbers = #tpu.dot_dimension_numbers<[1], [0], [0], [1], [0, 0, 1, 1], [], []>} : vector<1x16xf32>, vector<16x16xf32>, vector<1x16xf32> -> vector<1x16xf32>
    %c376 = arith.constant 376 : index
    %c0_39 = arith.constant 0 : index
    %111 = vector.load %arg5[%c376, %c0_39] : memref<1536x128xf32, #tpu.memory_space<vmem>>, vector<1x16xf32>
    %112 = arith.addf %110, %111 : vector<1x16xf32>
    %cst_40 = arith.constant dense<0.000000e+00> : vector<32xf32>
    %113 = vector.multi_reduction <add>, %1, %cst_40 [0] : vector<8x32xf32> to vector<32xf32>
    %114 = vector.shape_cast %113 : vector<32xf32> to vector<1x32xf32>
    %cst_41 = arith.constant 8.000000e+00 : f32
    %115 = vector.broadcast %cst_41 : f32 to vector<1x32xf32>
    %116 = arith.divf %114, %115 : vector<1x32xf32>
    %cst_42 = arith.constant dense<0x7F800000> : vector<32xf32>
    %117 = vector.multi_reduction <minimumf>, %1, %cst_42 [0] : vector<8x32xf32> to vector<32xf32>
    %118 = vector.shape_cast %117 : vector<32xf32> to vector<1x32xf32>
    %cst_43 = arith.constant dense<0xFF800000> : vector<32xf32>
    %119 = vector.multi_reduction <maximumf>, %1, %cst_43 [0] : vector<8x32xf32> to vector<32xf32>
    %120 = vector.shape_cast %119 : vector<32xf32> to vector<1x32xf32>
    %121 = vector.broadcast %116 : vector<1x32xf32> to vector<8x32xf32>
    %122 = arith.subf %1, %121 : vector<8x32xf32>
    %123 = arith.mulf %122, %122 : vector<8x32xf32>
    %cst_44 = arith.constant dense<0.000000e+00> : vector<32xf32>
    %124 = vector.multi_reduction <add>, %123, %cst_44 [0] : vector<8x32xf32> to vector<32xf32>
    %125 = vector.shape_cast %124 : vector<32xf32> to vector<1x32xf32>
    %cst_45 = arith.constant 7.000000e+00 : f32
    %126 = vector.broadcast %cst_45 : f32 to vector<1x32xf32>
    %127 = arith.divf %125, %126 : vector<1x32xf32>
    %128 = math.sqrt %127 : vector<1x32xf32>
    %c184 = arith.constant 184 : index
    %c0_46 = arith.constant 0 : index
    %129 = vector.load %arg5[%c184, %c0_46] : memref<1536x128xf32, #tpu.memory_space<vmem>>, vector<32x16xf32>
    %cst_47 = arith.constant dense<0.000000e+00> : vector<1x16xf32>
    %130 = tpu.matmul %116, %129, %cst_47 {dimension_numbers = #tpu.dot_dimension_numbers<[1], [0], [0], [1], [0, 0, 1, 1], [], []>} : vector<1x32xf32>, vector<32x16xf32>, vector<1x16xf32> -> vector<1x16xf32>
    %131 = arith.addf %112, %130 : vector<1x16xf32>
    %c232 = arith.constant 232 : index
    %c0_48 = arith.constant 0 : index
    %132 = vector.load %arg5[%c232, %c0_48] : memref<1536x128xf32, #tpu.memory_space<vmem>>, vector<32x16xf32>
    %cst_49 = arith.constant dense<0.000000e+00> : vector<1x16xf32>
    %133 = tpu.matmul %118, %132, %cst_49 {dimension_numbers = #tpu.dot_dimension_numbers<[1], [0], [0], [1], [0, 0, 1, 1], [], []>} : vector<1x32xf32>, vector<32x16xf32>, vector<1x16xf32> -> vector<1x16xf32>
    %134 = arith.addf %131, %133 : vector<1x16xf32>
    %c280 = arith.constant 280 : index
    %c0_50 = arith.constant 0 : index
    %135 = vector.load %arg5[%c280, %c0_50] : memref<1536x128xf32, #tpu.memory_space<vmem>>, vector<32x16xf32>
    %cst_51 = arith.constant dense<0.000000e+00> : vector<1x16xf32>
    %136 = tpu.matmul %120, %135, %cst_51 {dimension_numbers = #tpu.dot_dimension_numbers<[1], [0], [0], [1], [0, 0, 1, 1], [], []>} : vector<1x32xf32>, vector<32x16xf32>, vector<1x16xf32> -> vector<1x16xf32>
    %137 = arith.addf %134, %136 : vector<1x16xf32>
    %c328 = arith.constant 328 : index
    %c0_52 = arith.constant 0 : index
    %138 = vector.load %arg5[%c328, %c0_52] : memref<1536x128xf32, #tpu.memory_space<vmem>>, vector<32x16xf32>
    %cst_53 = arith.constant dense<0.000000e+00> : vector<1x16xf32>
    %139 = tpu.matmul %128, %138, %cst_53 {dimension_numbers = #tpu.dot_dimension_numbers<[1], [0], [0], [1], [0, 0, 1, 1], [], []>} : vector<1x32xf32>, vector<32x16xf32>, vector<1x16xf32> -> vector<1x16xf32>
    %140 = arith.addf %137, %139 : vector<1x16xf32>
    %cst_54 = arith.constant dense<0.000000e+00> : vector<16xf32>
    %141 = vector.multi_reduction <add>, %3, %cst_54 [0] : vector<64x16xf32> to vector<16xf32>
    %142 = vector.shape_cast %141 : vector<16xf32> to vector<1x16xf32>
    %cst_55 = arith.constant 6.400000e+01 : f32
    %143 = vector.broadcast %cst_55 : f32 to vector<1x16xf32>
    %144 = arith.divf %142, %143 : vector<1x16xf32>
    %cst_56 = arith.constant dense<0x7F800000> : vector<16xf32>
    %145 = vector.multi_reduction <minimumf>, %3, %cst_56 [0] : vector<64x16xf32> to vector<16xf32>
    %146 = vector.shape_cast %145 : vector<16xf32> to vector<1x16xf32>
    %cst_57 = arith.constant dense<0xFF800000> : vector<16xf32>
    %147 = vector.multi_reduction <maximumf>, %3, %cst_57 [0] : vector<64x16xf32> to vector<16xf32>
    %148 = vector.shape_cast %147 : vector<16xf32> to vector<1x16xf32>
    %149 = vector.broadcast %144 : vector<1x16xf32> to vector<64x16xf32>
    %150 = arith.subf %3, %149 : vector<64x16xf32>
    %151 = arith.mulf %150, %150 : vector<64x16xf32>
    %cst_58 = arith.constant dense<0.000000e+00> : vector<16xf32>
    %152 = vector.multi_reduction <add>, %151, %cst_58 [0] : vector<64x16xf32> to vector<16xf32>
    %153 = vector.shape_cast %152 : vector<16xf32> to vector<1x16xf32>
    %cst_59 = arith.constant 6.300000e+01 : f32
    %154 = vector.broadcast %cst_59 : f32 to vector<1x16xf32>
    %155 = arith.divf %153, %154 : vector<1x16xf32>
    %156 = math.sqrt %155 : vector<1x16xf32>
    %c216 = arith.constant 216 : index
    %c0_60 = arith.constant 0 : index
    %157 = vector.load %arg5[%c216, %c0_60] : memref<1536x128xf32, #tpu.memory_space<vmem>>, vector<16x16xf32>
    %cst_61 = arith.constant dense<0.000000e+00> : vector<1x16xf32>
    %158 = tpu.matmul %144, %157, %cst_61 {dimension_numbers = #tpu.dot_dimension_numbers<[1], [0], [0], [1], [0, 0, 1, 1], [], []>} : vector<1x16xf32>, vector<16x16xf32>, vector<1x16xf32> -> vector<1x16xf32>
    %159 = arith.addf %140, %158 : vector<1x16xf32>
    %c264 = arith.constant 264 : index
    %c0_62 = arith.constant 0 : index
    %160 = vector.load %arg5[%c264, %c0_62] : memref<1536x128xf32, #tpu.memory_space<vmem>>, vector<16x16xf32>
    %cst_63 = arith.constant dense<0.000000e+00> : vector<1x16xf32>
    %161 = tpu.matmul %146, %160, %cst_63 {dimension_numbers = #tpu.dot_dimension_numbers<[1], [0], [0], [1], [0, 0, 1, 1], [], []>} : vector<1x16xf32>, vector<16x16xf32>, vector<1x16xf32> -> vector<1x16xf32>
    %162 = arith.addf %159, %161 : vector<1x16xf32>
    %c312 = arith.constant 312 : index
    %c0_64 = arith.constant 0 : index
    %163 = vector.load %arg5[%c312, %c0_64] : memref<1536x128xf32, #tpu.memory_space<vmem>>, vector<16x16xf32>
    %cst_65 = arith.constant dense<0.000000e+00> : vector<1x16xf32>
    %164 = tpu.matmul %148, %163, %cst_65 {dimension_numbers = #tpu.dot_dimension_numbers<[1], [0], [0], [1], [0, 0, 1, 1], [], []>} : vector<1x16xf32>, vector<16x16xf32>, vector<1x16xf32> -> vector<1x16xf32>
    %165 = arith.addf %162, %164 : vector<1x16xf32>
    %c360 = arith.constant 360 : index
    %c0_66 = arith.constant 0 : index
    %166 = vector.load %arg5[%c360, %c0_66] : memref<1536x128xf32, #tpu.memory_space<vmem>>, vector<16x16xf32>
    %cst_67 = arith.constant dense<0.000000e+00> : vector<1x16xf32>
    %167 = tpu.matmul %156, %166, %cst_67 {dimension_numbers = #tpu.dot_dimension_numbers<[1], [0], [0], [1], [0, 0, 1, 1], [], []>} : vector<1x16xf32>, vector<16x16xf32>, vector<1x16xf32> -> vector<1x16xf32>
    %168 = arith.addf %165, %167 : vector<1x16xf32>
    %c384 = arith.constant 384 : index
    %c0_68 = arith.constant 0 : index
    %169 = vector.load %arg5[%c384, %c0_68] : memref<1536x128xf32, #tpu.memory_space<vmem>>, vector<16x16xf32>
    %cst_69 = arith.constant dense<0.000000e+00> : vector<1x16xf32>
    %170 = tpu.matmul %168, %169, %cst_69 {dimension_numbers = #tpu.dot_dimension_numbers<[1], [0], [0], [1], [0, 0, 1, 1], [], []>} : vector<1x16xf32>, vector<16x16xf32>, vector<1x16xf32> -> vector<1x16xf32>
    %c400 = arith.constant 400 : index
    %c0_70 = arith.constant 0 : index
    %171 = vector.load %arg5[%c400, %c0_70] : memref<1536x128xf32, #tpu.memory_space<vmem>>, vector<1x16xf32>
    %172 = arith.addf %170, %171 : vector<1x16xf32>
    %cst_71 = arith.constant 0.000000e+00 : f32
    %173 = vector.broadcast %cst_71 : f32 to vector<1x16xf32>
    %174 = arith.maximumf %172, %173 : vector<1x16xf32>
    %c408 = arith.constant 408 : index
    %c0_72 = arith.constant 0 : index
    %175 = vector.load %arg5[%c408, %c0_72] : memref<1536x128xf32, #tpu.memory_space<vmem>>, vector<16x16xf32>
    %cst_73 = arith.constant dense<0.000000e+00> : vector<1x16xf32>
    %176 = tpu.matmul %174, %175, %cst_73 {dimension_numbers = #tpu.dot_dimension_numbers<[1], [0], [0], [1], [0, 0, 1, 1], [], []>} : vector<1x16xf32>, vector<16x16xf32>, vector<1x16xf32> -> vector<1x16xf32>
    %c424 = arith.constant 424 : index
    %c0_74 = arith.constant 0 : index
    %177 = vector.load %arg5[%c424, %c0_74] : memref<1536x128xf32, #tpu.memory_space<vmem>>, vector<1x16xf32>
    %178 = arith.addf %176, %177 : vector<1x16xf32>
    %179 = arith.addf %1, %108 : vector<8x32xf32>
    %c432 = arith.constant 432 : index
    %c0_75 = arith.constant 0 : index
    %180 = vector.load %arg5[%c432, %c0_75] : memref<1536x128xf32, #tpu.memory_space<vmem>>, vector<1x32xf32>
    %c440 = arith.constant 440 : index
    %c0_76 = arith.constant 0 : index
    %181 = vector.load %arg5[%c440, %c0_76] : memref<1536x128xf32, #tpu.memory_space<vmem>>, vector<1x32xf32>
    %cst_77 = arith.constant dense<0.000000e+00> : vector<8xf32>
    %182 = vector.multi_reduction <add>, %179, %cst_77 [1] : vector<8x32xf32> to vector<8xf32>
    %183 = vector.shape_cast %182 : vector<8xf32> to vector<8x1xf32>
    %cst_78 = arith.constant 3.200000e+01 : f32
    %184 = vector.broadcast %cst_78 : f32 to vector<8x1xf32>
    %185 = arith.divf %183, %184 : vector<8x1xf32>
    %186 = vector.broadcast %185 : vector<8x1xf32> to vector<8x32xf32>
    %187 = arith.subf %179, %186 : vector<8x32xf32>
    %188 = arith.mulf %187, %187 : vector<8x32xf32>
    %cst_79 = arith.constant dense<0.000000e+00> : vector<8xf32>
    %189 = vector.multi_reduction <add>, %188, %cst_79 [1] : vector<8x32xf32> to vector<8xf32>
    %190 = vector.shape_cast %189 : vector<8xf32> to vector<8x1xf32>
    %cst_80 = arith.constant 3.200000e+01 : f32
    %191 = vector.broadcast %cst_80 : f32 to vector<8x1xf32>
    %192 = arith.divf %190, %191 : vector<8x1xf32>
    %193 = vector.broadcast %185 : vector<8x1xf32> to vector<8x32xf32>
    %194 = arith.subf %179, %193 : vector<8x32xf32>
    %cst_81 = arith.constant 9.99999974E-6 : f32
    %195 = vector.broadcast %cst_81 : f32 to vector<8x1xf32>
    %196 = arith.addf %192, %195 : vector<8x1xf32>
    %197 = math.rsqrt %196 : vector<8x1xf32>
    %198 = vector.broadcast %197 : vector<8x1xf32> to vector<8x32xf32>
    %199 = arith.mulf %194, %198 : vector<8x32xf32>
    %200 = vector.broadcast %180 : vector<1x32xf32> to vector<8x32xf32>
    %201 = arith.mulf %199, %200 : vector<8x32xf32>
    %202 = vector.broadcast %181 : vector<1x32xf32> to vector<8x32xf32>
    %203 = arith.addf %201, %202 : vector<8x32xf32>
    %c448 = arith.constant 448 : index
    %c0_82 = arith.constant 0 : index
    %204 = vector.load %arg5[%c448, %c0_82] : memref<1536x128xf32, #tpu.memory_space<vmem>>, vector<32x64xf32>
    %cst_83 = arith.constant dense<0.000000e+00> : vector<8x64xf32>
    %205 = tpu.matmul %203, %204, %cst_83 {dimension_numbers = #tpu.dot_dimension_numbers<[1], [0], [0], [1], [0, 0, 1, 1], [], []>} : vector<8x32xf32>, vector<32x64xf32>, vector<8x64xf32> -> vector<8x64xf32>
    %c480 = arith.constant 480 : index
    %c0_84 = arith.constant 0 : index
    %206 = vector.load %arg5[%c480, %c0_84] : memref<1536x128xf32, #tpu.memory_space<vmem>>, vector<1x64xf32>
    %207 = vector.broadcast %206 : vector<1x64xf32> to vector<8x64xf32>
    %208 = arith.addf %205, %207 : vector<8x64xf32>
    %cst_85 = arith.constant 0.000000e+00 : f32
    %209 = vector.broadcast %cst_85 : f32 to vector<8x64xf32>
    %210 = arith.maximumf %208, %209 : vector<8x64xf32>
    %c488 = arith.constant 488 : index
    %c0_86 = arith.constant 0 : index
    %211 = vector.load %arg5[%c488, %c0_86] : memref<1536x128xf32, #tpu.memory_space<vmem>>, vector<64x32xf32>
    %cst_87 = arith.constant dense<0.000000e+00> : vector<8x32xf32>
    %212 = tpu.matmul %210, %211, %cst_87 {dimension_numbers = #tpu.dot_dimension_numbers<[1], [0], [0], [1], [0, 0, 1, 1], [], []>} : vector<8x64xf32>, vector<64x32xf32>, vector<8x32xf32> -> vector<8x32xf32>
    %213 = arith.addf %203, %212 : vector<8x32xf32>
    %c552 = arith.constant 552 : index
    %c0_88 = arith.constant 0 : index
    %214 = vector.load %arg5[%c552, %c0_88] : memref<1536x128xf32, #tpu.memory_space<vmem>>, vector<1x32xf32>
    %215 = vector.broadcast %214 : vector<1x32xf32> to vector<8x32xf32>
    %216 = arith.addf %213, %215 : vector<8x32xf32>
    %c560 = arith.constant 560 : index
    %c0_89 = arith.constant 0 : index
    %217 = vector.load %arg5[%c560, %c0_89] : memref<1536x128xf32, #tpu.memory_space<vmem>>, vector<1x32xf32>
    %c568 = arith.constant 568 : index
    %c0_90 = arith.constant 0 : index
    %218 = vector.load %arg5[%c568, %c0_90] : memref<1536x128xf32, #tpu.memory_space<vmem>>, vector<1x32xf32>
    %cst_91 = arith.constant dense<0.000000e+00> : vector<8xf32>
    %219 = vector.multi_reduction <add>, %216, %cst_91 [1] : vector<8x32xf32> to vector<8xf32>
    %220 = vector.shape_cast %219 : vector<8xf32> to vector<8x1xf32>
    %cst_92 = arith.constant 3.200000e+01 : f32
    %221 = vector.broadcast %cst_92 : f32 to vector<8x1xf32>
    %222 = arith.divf %220, %221 : vector<8x1xf32>
    %223 = vector.broadcast %222 : vector<8x1xf32> to vector<8x32xf32>
    %224 = arith.subf %216, %223 : vector<8x32xf32>
    %225 = arith.mulf %224, %224 : vector<8x32xf32>
    %cst_93 = arith.constant dense<0.000000e+00> : vector<8xf32>
    %226 = vector.multi_reduction <add>, %225, %cst_93 [1] : vector<8x32xf32> to vector<8xf32>
    %227 = vector.shape_cast %226 : vector<8xf32> to vector<8x1xf32>
    %cst_94 = arith.constant 3.200000e+01 : f32
    %228 = vector.broadcast %cst_94 : f32 to vector<8x1xf32>
    %229 = arith.divf %227, %228 : vector<8x1xf32>
    %230 = vector.broadcast %222 : vector<8x1xf32> to vector<8x32xf32>
    %231 = arith.subf %216, %230 : vector<8x32xf32>
    %cst_95 = arith.constant 9.99999974E-6 : f32
    %232 = vector.broadcast %cst_95 : f32 to vector<8x1xf32>
    %233 = arith.addf %229, %232 : vector<8x1xf32>
    %234 = math.rsqrt %233 : vector<8x1xf32>
    %235 = vector.broadcast %234 : vector<8x1xf32> to vector<8x32xf32>
    %236 = arith.mulf %231, %235 : vector<8x32xf32>
    %237 = vector.broadcast %217 : vector<1x32xf32> to vector<8x32xf32>
    %238 = arith.mulf %236, %237 : vector<8x32xf32>
    %239 = vector.broadcast %218 : vector<1x32xf32> to vector<8x32xf32>
    %240 = arith.addf %238, %239 : vector<8x32xf32>
    %241 = arith.addf %3, %72 : vector<64x16xf32>
    %c576 = arith.constant 576 : index
    %c0_96 = arith.constant 0 : index
    %242 = vector.load %arg5[%c576, %c0_96] : memref<1536x128xf32, #tpu.memory_space<vmem>>, vector<1x16xf32>
    %c584 = arith.constant 584 : index
    %c0_97 = arith.constant 0 : index
    %243 = vector.load %arg5[%c584, %c0_97] : memref<1536x128xf32, #tpu.memory_space<vmem>>, vector<1x16xf32>
    %cst_98 = arith.constant dense<0.000000e+00> : vector<64xf32>
    %244 = vector.multi_reduction <add>, %241, %cst_98 [1] : vector<64x16xf32> to vector<64xf32>
    %245 = vector.shape_cast %244 : vector<64xf32> to vector<64x1xf32>
    %cst_99 = arith.constant 1.600000e+01 : f32
    %246 = vector.broadcast %cst_99 : f32 to vector<64x1xf32>
    %247 = arith.divf %245, %246 : vector<64x1xf32>
    %248 = vector.broadcast %247 : vector<64x1xf32> to vector<64x16xf32>
    %249 = arith.subf %241, %248 : vector<64x16xf32>
    %250 = arith.mulf %249, %249 : vector<64x16xf32>
    %cst_100 = arith.constant dense<0.000000e+00> : vector<64xf32>
    %251 = vector.multi_reduction <add>, %250, %cst_100 [1] : vector<64x16xf32> to vector<64xf32>
    %252 = vector.shape_cast %251 : vector<64xf32> to vector<64x1xf32>
    %cst_101 = arith.constant 1.600000e+01 : f32
    %253 = vector.broadcast %cst_101 : f32 to vector<64x1xf32>
    %254 = arith.divf %252, %253 : vector<64x1xf32>
    %255 = vector.broadcast %247 : vector<64x1xf32> to vector<64x16xf32>
    %256 = arith.subf %241, %255 : vector<64x16xf32>
    %cst_102 = arith.constant 9.99999974E-6 : f32
    %257 = vector.broadcast %cst_102 : f32 to vector<64x1xf32>
    %258 = arith.addf %254, %257 : vector<64x1xf32>
    %259 = math.rsqrt %258 : vector<64x1xf32>
    %260 = vector.broadcast %259 : vector<64x1xf32> to vector<64x16xf32>
    %261 = arith.mulf %256, %260 : vector<64x16xf32>
    %262 = vector.broadcast %242 : vector<1x16xf32> to vector<64x16xf32>
    %263 = arith.mulf %261, %262 : vector<64x16xf32>
    %264 = vector.broadcast %243 : vector<1x16xf32> to vector<64x16xf32>
    %265 = arith.addf %263, %264 : vector<64x16xf32>
    %c592 = arith.constant 592 : index
    %c0_103 = arith.constant 0 : index
    %266 = vector.load %arg5[%c592, %c0_103] : memref<1536x128xf32, #tpu.memory_space<vmem>>, vector<16x32xf32>
    %cst_104 = arith.constant dense<0.000000e+00> : vector<64x32xf32>
    %267 = tpu.matmul %265, %266, %cst_104 {dimension_numbers = #tpu.dot_dimension_numbers<[1], [0], [0], [1], [0, 0, 1, 1], [], []>} : vector<64x16xf32>, vector<16x32xf32>, vector<64x32xf32> -> vector<64x32xf32>
    %c608 = arith.constant 608 : index
    %c0_105 = arith.constant 0 : index
    %268 = vector.load %arg5[%c608, %c0_105] : memref<1536x128xf32, #tpu.memory_space<vmem>>, vector<1x32xf32>
    %269 = vector.broadcast %268 : vector<1x32xf32> to vector<64x32xf32>
    %270 = arith.addf %267, %269 : vector<64x32xf32>
    %cst_106 = arith.constant 0.000000e+00 : f32
    %271 = vector.broadcast %cst_106 : f32 to vector<64x32xf32>
    %272 = arith.maximumf %270, %271 : vector<64x32xf32>
    %c616 = arith.constant 616 : index
    %c0_107 = arith.constant 0 : index
    %273 = vector.load %arg5[%c616, %c0_107] : memref<1536x128xf32, #tpu.memory_space<vmem>>, vector<32x16xf32>
    %cst_108 = arith.constant dense<0.000000e+00> : vector<64x16xf32>
    %274 = tpu.matmul %272, %273, %cst_108 {dimension_numbers = #tpu.dot_dimension_numbers<[1], [0], [0], [1], [0, 0, 1, 1], [], []>} : vector<64x32xf32>, vector<32x16xf32>, vector<64x16xf32> -> vector<64x16xf32>
    %275 = arith.addf %265, %274 : vector<64x16xf32>
    %c648 = arith.constant 648 : index
    %c0_109 = arith.constant 0 : index
    %276 = vector.load %arg5[%c648, %c0_109] : memref<1536x128xf32, #tpu.memory_space<vmem>>, vector<1x16xf32>
    %277 = vector.broadcast %276 : vector<1x16xf32> to vector<64x16xf32>
    %278 = arith.addf %275, %277 : vector<64x16xf32>
    %c656 = arith.constant 656 : index
    %c0_110 = arith.constant 0 : index
    %279 = vector.load %arg5[%c656, %c0_110] : memref<1536x128xf32, #tpu.memory_space<vmem>>, vector<1x16xf32>
    %c664 = arith.constant 664 : index
    %c0_111 = arith.constant 0 : index
    %280 = vector.load %arg5[%c664, %c0_111] : memref<1536x128xf32, #tpu.memory_space<vmem>>, vector<1x16xf32>
    %cst_112 = arith.constant dense<0.000000e+00> : vector<64xf32>
    %281 = vector.multi_reduction <add>, %278, %cst_112 [1] : vector<64x16xf32> to vector<64xf32>
    %282 = vector.shape_cast %281 : vector<64xf32> to vector<64x1xf32>
    %cst_113 = arith.constant 1.600000e+01 : f32
    %283 = vector.broadcast %cst_113 : f32 to vector<64x1xf32>
    %284 = arith.divf %282, %283 : vector<64x1xf32>
    %285 = vector.broadcast %284 : vector<64x1xf32> to vector<64x16xf32>
    %286 = arith.subf %278, %285 : vector<64x16xf32>
    %287 = arith.mulf %286, %286 : vector<64x16xf32>
    %cst_114 = arith.constant dense<0.000000e+00> : vector<64xf32>
    %288 = vector.multi_reduction <add>, %287, %cst_114 [1] : vector<64x16xf32> to vector<64xf32>
    %289 = vector.shape_cast %288 : vector<64xf32> to vector<64x1xf32>
    %cst_115 = arith.constant 1.600000e+01 : f32
    %290 = vector.broadcast %cst_115 : f32 to vector<64x1xf32>
    %291 = arith.divf %289, %290 : vector<64x1xf32>
    %292 = vector.broadcast %284 : vector<64x1xf32> to vector<64x16xf32>
    %293 = arith.subf %278, %292 : vector<64x16xf32>
    %cst_116 = arith.constant 9.99999974E-6 : f32
    %294 = vector.broadcast %cst_116 : f32 to vector<64x1xf32>
    %295 = arith.addf %291, %294 : vector<64x1xf32>
    %296 = math.rsqrt %295 : vector<64x1xf32>
    %297 = vector.broadcast %296 : vector<64x1xf32> to vector<64x16xf32>
    %298 = arith.mulf %293, %297 : vector<64x16xf32>
    %299 = vector.broadcast %279 : vector<1x16xf32> to vector<64x16xf32>
    %300 = arith.mulf %298, %299 : vector<64x16xf32>
    %301 = vector.broadcast %280 : vector<1x16xf32> to vector<64x16xf32>
    %302 = arith.addf %300, %301 : vector<64x16xf32>
    %303 = arith.addf %5, %178 : vector<1x16xf32>
    %c672 = arith.constant 672 : index
    %c0_117 = arith.constant 0 : index
    %304 = vector.load %arg5[%c672, %c0_117] : memref<1536x128xf32, #tpu.memory_space<vmem>>, vector<1x16xf32>
    %c680 = arith.constant 680 : index
    %c0_118 = arith.constant 0 : index
    %305 = vector.load %arg5[%c680, %c0_118] : memref<1536x128xf32, #tpu.memory_space<vmem>>, vector<1x16xf32>
    %cst_119 = arith.constant dense<0.000000e+00> : vector<1xf32>
    %306 = vector.multi_reduction <add>, %303, %cst_119 [1] : vector<1x16xf32> to vector<1xf32>
    %307 = vector.shape_cast %306 : vector<1xf32> to vector<1x1xf32>
    %cst_120 = arith.constant 1.600000e+01 : f32
    %308 = vector.broadcast %cst_120 : f32 to vector<1x1xf32>
    %309 = arith.divf %307, %308 : vector<1x1xf32>
    %310 = vector.broadcast %309 : vector<1x1xf32> to vector<1x16xf32>
    %311 = arith.subf %303, %310 : vector<1x16xf32>
    %312 = arith.mulf %311, %311 : vector<1x16xf32>
    %cst_121 = arith.constant dense<0.000000e+00> : vector<1xf32>
    %313 = vector.multi_reduction <add>, %312, %cst_121 [1] : vector<1x16xf32> to vector<1xf32>
    %314 = vector.shape_cast %313 : vector<1xf32> to vector<1x1xf32>
    %cst_122 = arith.constant 1.600000e+01 : f32
    %315 = vector.broadcast %cst_122 : f32 to vector<1x1xf32>
    %316 = arith.divf %314, %315 : vector<1x1xf32>
    %317 = vector.broadcast %309 : vector<1x1xf32> to vector<1x16xf32>
    %318 = arith.subf %303, %317 : vector<1x16xf32>
    %cst_123 = arith.constant 9.99999974E-6 : f32
    %319 = vector.broadcast %cst_123 : f32 to vector<1x1xf32>
    %320 = arith.addf %316, %319 : vector<1x1xf32>
    %321 = math.rsqrt %320 : vector<1x1xf32>
    %322 = vector.broadcast %321 : vector<1x1xf32> to vector<1x16xf32>
    %323 = arith.mulf %318, %322 : vector<1x16xf32>
    %324 = arith.mulf %323, %304 : vector<1x16xf32>
    %325 = arith.addf %324, %305 : vector<1x16xf32>
    %c688 = arith.constant 688 : index
    %c0_124 = arith.constant 0 : index
    %326 = vector.load %arg5[%c688, %c0_124] : memref<1536x128xf32, #tpu.memory_space<vmem>>, vector<16x32xf32>
    %cst_125 = arith.constant dense<0.000000e+00> : vector<1x32xf32>
    %327 = tpu.matmul %325, %326, %cst_125 {dimension_numbers = #tpu.dot_dimension_numbers<[1], [0], [0], [1], [0, 0, 1, 1], [], []>} : vector<1x16xf32>, vector<16x32xf32>, vector<1x32xf32> -> vector<1x32xf32>
    %c704 = arith.constant 704 : index
    %c0_126 = arith.constant 0 : index
    %328 = vector.load %arg5[%c704, %c0_126] : memref<1536x128xf32, #tpu.memory_space<vmem>>, vector<1x32xf32>
    %329 = arith.addf %327, %328 : vector<1x32xf32>
    %cst_127 = arith.constant 0.000000e+00 : f32
    %330 = vector.broadcast %cst_127 : f32 to vector<1x32xf32>
    %331 = arith.maximumf %329, %330 : vector<1x32xf32>
    %c712 = arith.constant 712 : index
    %c0_128 = arith.constant 0 : index
    %332 = vector.load %arg5[%c712, %c0_128] : memref<1536x128xf32, #tpu.memory_space<vmem>>, vector<32x16xf32>
    %cst_129 = arith.constant dense<0.000000e+00> : vector<1x16xf32>
    %333 = tpu.matmul %331, %332, %cst_129 {dimension_numbers = #tpu.dot_dimension_numbers<[1], [0], [0], [1], [0, 0, 1, 1], [], []>} : vector<1x32xf32>, vector<32x16xf32>, vector<1x16xf32> -> vector<1x16xf32>
    %334 = arith.addf %325, %333 : vector<1x16xf32>
    %c744 = arith.constant 744 : index
    %c0_130 = arith.constant 0 : index
    %335 = vector.load %arg5[%c744, %c0_130] : memref<1536x128xf32, #tpu.memory_space<vmem>>, vector<1x16xf32>
    %336 = arith.addf %334, %335 : vector<1x16xf32>
    %c752 = arith.constant 752 : index
    %c0_131 = arith.constant 0 : index
    %337 = vector.load %arg5[%c752, %c0_131] : memref<1536x128xf32, #tpu.memory_space<vmem>>, vector<1x16xf32>
    %c760 = arith.constant 760 : index
    %c0_132 = arith.constant 0 : index
    %338 = vector.load %arg5[%c760, %c0_132] : memref<1536x128xf32, #tpu.memory_space<vmem>>, vector<1x16xf32>
    %cst_133 = arith.constant dense<0.000000e+00> : vector<1xf32>
    %339 = vector.multi_reduction <add>, %336, %cst_133 [1] : vector<1x16xf32> to vector<1xf32>
    %340 = vector.shape_cast %339 : vector<1xf32> to vector<1x1xf32>
    %cst_134 = arith.constant 1.600000e+01 : f32
    %341 = vector.broadcast %cst_134 : f32 to vector<1x1xf32>
    %342 = arith.divf %340, %341 : vector<1x1xf32>
    %343 = vector.broadcast %342 : vector<1x1xf32> to vector<1x16xf32>
    %344 = arith.subf %336, %343 : vector<1x16xf32>
    %345 = arith.mulf %344, %344 : vector<1x16xf32>
    %cst_135 = arith.constant dense<0.000000e+00> : vector<1xf32>
    %346 = vector.multi_reduction <add>, %345, %cst_135 [1] : vector<1x16xf32> to vector<1xf32>
    %347 = vector.shape_cast %346 : vector<1xf32> to vector<1x1xf32>
    %cst_136 = arith.constant 1.600000e+01 : f32
    %348 = vector.broadcast %cst_136 : f32 to vector<1x1xf32>
    %349 = arith.divf %347, %348 : vector<1x1xf32>
    %350 = vector.broadcast %342 : vector<1x1xf32> to vector<1x16xf32>
    %351 = arith.subf %336, %350 : vector<1x16xf32>
    %cst_137 = arith.constant 9.99999974E-6 : f32
    %352 = vector.broadcast %cst_137 : f32 to vector<1x1xf32>
    %353 = arith.addf %349, %352 : vector<1x1xf32>
    %354 = math.rsqrt %353 : vector<1x1xf32>
    %355 = vector.broadcast %354 : vector<1x1xf32> to vector<1x16xf32>
    %356 = arith.mulf %351, %355 : vector<1x16xf32>
    %357 = arith.mulf %356, %337 : vector<1x16xf32>
    %358 = arith.addf %357, %338 : vector<1x16xf32>
    %c768 = arith.constant 768 : index
    %c0_138 = arith.constant 0 : index
    %359 = vector.load %arg5[%c768, %c0_138] : memref<1536x128xf32, #tpu.memory_space<vmem>>, vector<32x96xf32>
    %cst_139 = arith.constant dense<0.000000e+00> : vector<8x96xf32>
    %360 = tpu.matmul %240, %359, %cst_139 {dimension_numbers = #tpu.dot_dimension_numbers<[1], [0], [0], [1], [0, 0, 1, 1], [], []>} : vector<8x32xf32>, vector<32x96xf32>, vector<8x96xf32> -> vector<8x96xf32>
    %c800 = arith.constant 800 : index
    %c0_140 = arith.constant 0 : index
    %361 = vector.load %arg5[%c800, %c0_140] : memref<1536x128xf32, #tpu.memory_space<vmem>>, vector<1x96xf32>
    %362 = vector.broadcast %361 : vector<1x96xf32> to vector<8x96xf32>
    %363 = arith.addf %360, %362 : vector<8x96xf32>
    %364 = vector.broadcast %7 : vector<8x1xf32> to vector<8x96xf32>
    %365 = arith.mulf %363, %364 : vector<8x96xf32>
    %366 = vector.extract_strided_slice %365 {offsets = [0, 0], sizes = [8, 32], strides = [1, 1]} : vector<8x96xf32> to vector<8x32xf32>
    %367 = vector.extract_strided_slice %365 {offsets = [0, 32], sizes = [8, 32], strides = [1, 1]} : vector<8x96xf32> to vector<8x32xf32>
    %368 = vector.extract_strided_slice %365 {offsets = [0, 64], sizes = [8, 32], strides = [1, 1]} : vector<8x96xf32> to vector<8x32xf32>
    %c808 = arith.constant 808 : index
    %c0_141 = arith.constant 0 : index
    %369 = vector.load %arg5[%c808, %c0_141] : memref<1536x128xf32, #tpu.memory_space<vmem>>, vector<16x64xf32>
    %cst_142 = arith.constant dense<0.000000e+00> : vector<64x64xf32>
    %370 = tpu.matmul %302, %369, %cst_142 {dimension_numbers = #tpu.dot_dimension_numbers<[1], [0], [0], [1], [0, 0, 1, 1], [], []>} : vector<64x16xf32>, vector<16x64xf32>, vector<64x64xf32> -> vector<64x64xf32>
    %c824 = arith.constant 824 : index
    %c0_143 = arith.constant 0 : index
    %371 = vector.load %arg5[%c824, %c0_143] : memref<1536x128xf32, #tpu.memory_space<vmem>>, vector<1x64xf32>
    %372 = vector.broadcast %371 : vector<1x64xf32> to vector<64x64xf32>
    %373 = arith.addf %370, %372 : vector<64x64xf32>
    %374 = vector.broadcast %13 : vector<64x1xf32> to vector<64x64xf32>
    %375 = arith.mulf %373, %374 : vector<64x64xf32>
    %376 = vector.extract_strided_slice %375 {offsets = [0, 0], sizes = [64, 32], strides = [1, 1]} : vector<64x64xf32> to vector<64x32xf32>
    %377 = vector.shape_cast %376 : vector<64x32xf32> to vector<8x8x32xf32>
    %378 = vector.extract_strided_slice %375 {offsets = [0, 32], sizes = [64, 32], strides = [1, 1]} : vector<64x64xf32> to vector<64x32xf32>
    %379 = vector.shape_cast %378 : vector<64x32xf32> to vector<8x8x32xf32>
    %c832 = arith.constant 832 : index
    %c0_144 = arith.constant 0 : index
    %380 = vector.load %arg5[%c832, %c0_144] : memref<1536x128xf32, #tpu.memory_space<vmem>>, vector<16x128xf32>
    %cst_145 = arith.constant dense<0.000000e+00> : vector<1x128xf32>
    %381 = tpu.matmul %358, %380, %cst_145 {dimension_numbers = #tpu.dot_dimension_numbers<[1], [0], [0], [1], [0, 0, 1, 1], [], []>} : vector<1x16xf32>, vector<16x128xf32>, vector<1x128xf32> -> vector<1x128xf32>
    %c848 = arith.constant 848 : index
    %c0_146 = arith.constant 0 : index
    %382 = vector.load %arg5[%c848, %c0_146] : memref<1536x128xf32, #tpu.memory_space<vmem>>, vector<1x128xf32>
    %383 = arith.addf %381, %382 : vector<1x128xf32>
    %384 = vector.extract_strided_slice %383 {offsets = [0, 0], sizes = [1, 32], strides = [1, 1]} : vector<1x128xf32> to vector<1x32xf32>
    %385 = vector.shape_cast %384 : vector<1x32xf32> to vector<1x1x32xf32>
    %386 = vector.extract_strided_slice %383 {offsets = [0, 32], sizes = [1, 32], strides = [1, 1]} : vector<1x128xf32> to vector<1x32xf32>
    %387 = vector.shape_cast %386 : vector<1x32xf32> to vector<1x1x32xf32>
    %388 = vector.extract_strided_slice %383 {offsets = [0, 64], sizes = [1, 32], strides = [1, 1]} : vector<1x128xf32> to vector<1x32xf32>
    %389 = vector.extract_strided_slice %383 {offsets = [0, 96], sizes = [1, 32], strides = [1, 1]} : vector<1x128xf32> to vector<1x32xf32>
    %390 = vector.shape_cast %366 : vector<8x32xf32> to vector<8x1x32xf32>
    %391 = vector.shape_cast %367 : vector<8x32xf32> to vector<1x8x32xf32>
    %392 = vector.broadcast %390 : vector<8x1x32xf32> to vector<8x8x32xf32>
    %393 = vector.broadcast %391 : vector<1x8x32xf32> to vector<8x8x32xf32>
    %394 = arith.mulf %392, %393 : vector<8x8x32xf32>
    %cst_147 = arith.constant 0.353553385 : f32
    %395 = vector.broadcast %cst_147 : f32 to vector<8x8x32xf32>
    %396 = arith.mulf %394, %395 : vector<8x8x32xf32>
    %cst_148 = arith.constant 1.000000e+00 : f32
    %397 = vector.broadcast %cst_148 : f32 to vector<8x8x32xf32>
    %398 = arith.addf %377, %397 : vector<8x8x32xf32>
    %399 = arith.mulf %396, %398 : vector<8x8x32xf32>
    %400 = arith.addf %399, %379 : vector<8x8x32xf32>
    %cst_149 = arith.constant 1.000000e+00 : f32
    %401 = vector.broadcast %cst_149 : f32 to vector<1x1x32xf32>
    %402 = arith.addf %387, %401 : vector<1x1x32xf32>
    %403 = vector.broadcast %402 : vector<1x1x32xf32> to vector<8x8x32xf32>
    %404 = arith.mulf %403, %400 : vector<8x8x32xf32>
    %405 = vector.broadcast %385 : vector<1x1x32xf32> to vector<8x8x32xf32>
    %406 = arith.addf %405, %404 : vector<8x8x32xf32>
    %407 = vector.shape_cast %406 : vector<8x8x32xf32> to vector<64x32xf32>
    %c856 = arith.constant 856 : index
    %c0_150 = arith.constant 0 : index
    %408 = vector.load %arg5[%c856, %c0_150] : memref<1536x128xf32, #tpu.memory_space<vmem>>, vector<32x16xf32>
    %cst_151 = arith.constant dense<0.000000e+00> : vector<64x16xf32>
    %409 = tpu.matmul %407, %408, %cst_151 {dimension_numbers = #tpu.dot_dimension_numbers<[1], [0], [0], [1], [0, 0, 1, 1], [], []>} : vector<64x32xf32>, vector<32x16xf32>, vector<64x16xf32> -> vector<64x16xf32>
    %c888 = arith.constant 888 : index
    %c0_152 = arith.constant 0 : index
    %410 = vector.load %arg5[%c888, %c0_152] : memref<1536x128xf32, #tpu.memory_space<vmem>>, vector<1x16xf32>
    %411 = vector.broadcast %410 : vector<1x16xf32> to vector<64x16xf32>
    %412 = arith.addf %409, %411 : vector<64x16xf32>
    %413 = vector.broadcast %13 : vector<64x1xf32> to vector<64x16xf32>
    %414 = arith.mulf %412, %413 : vector<64x16xf32>
    %cst_153 = arith.constant -1.000000e+30 : f32
    %415 = vector.shape_cast %16 : vector<1x8x1xi1> to vector<1x8x1xi1>
    %416 = vector.broadcast %415 : vector<1x8x1xi1> to vector<8x8x32xi1>
    %417 = vector.broadcast %cst_153 : f32 to vector<8x8x32xf32>
    %418 = arith.select %416, %400, %417 : vector<8x8x32xi1>, vector<8x8x32xf32>
    %cst_154 = arith.constant dense<0xFF800000> : vector<8x32xf32>
    %419 = vector.multi_reduction <maximumf>, %418, %cst_154 [1] : vector<8x8x32xf32> to vector<8x32xf32>
    %420 = vector.shape_cast %419 : vector<8x32xf32> to vector<8x1x32xf32>
    %421 = vector.broadcast %420 : vector<8x1x32xf32> to vector<8x8x32xf32>
    %422 = arith.subf %418, %421 : vector<8x8x32xf32>
    %423 = math.exp %422 : vector<8x8x32xf32>
    %cst_155 = arith.constant 0.000000e+00 : f32
    %424 = vector.shape_cast %16 : vector<1x8x1xi1> to vector<1x8x1xi1>
    %425 = vector.broadcast %424 : vector<1x8x1xi1> to vector<8x8x32xi1>
    %426 = vector.broadcast %cst_155 : f32 to vector<8x8x32xf32>
    %427 = arith.select %425, %423, %426 : vector<8x8x32xi1>, vector<8x8x32xf32>
    %cst_156 = arith.constant dense<0.000000e+00> : vector<8x32xf32>
    %428 = vector.multi_reduction <add>, %427, %cst_156 [1] : vector<8x8x32xf32> to vector<8x32xf32>
    %429 = vector.shape_cast %428 : vector<8x32xf32> to vector<8x1x32xf32>
    %cst_157 = arith.constant 1.000000e-30 : f32
    %430 = vector.broadcast %cst_157 : f32 to vector<8x1x32xf32>
    %431 = arith.maximumf %429, %430 : vector<8x1x32xf32>
    %432 = vector.broadcast %431 : vector<8x1x32xf32> to vector<8x8x32xf32>
    %433 = arith.divf %427, %432 : vector<8x8x32xf32>
    %434 = vector.shape_cast %368 : vector<8x32xf32> to vector<1x8x32xf32>
    %435 = vector.broadcast %434 : vector<1x8x32xf32> to vector<8x8x32xf32>
    %436 = arith.mulf %433, %435 : vector<8x8x32xf32>
    %cst_158 = arith.constant dense<0.000000e+00> : vector<8x32xf32>
    %437 = vector.multi_reduction <add>, %436, %cst_158 [1] : vector<8x8x32xf32> to vector<8x32xf32>
    %cst_159 = arith.constant 1.000000e+00 : f32
    %438 = vector.broadcast %cst_159 : f32 to vector<1x32xf32>
    %439 = arith.addf %389, %438 : vector<1x32xf32>
    %440 = vector.broadcast %439 : vector<1x32xf32> to vector<8x32xf32>
    %441 = arith.mulf %440, %437 : vector<8x32xf32>
    %442 = vector.broadcast %388 : vector<1x32xf32> to vector<8x32xf32>
    %443 = arith.addf %442, %441 : vector<8x32xf32>
    %c896 = arith.constant 896 : index
    %c0_160 = arith.constant 0 : index
    %444 = vector.load %arg5[%c896, %c0_160] : memref<1536x128xf32, #tpu.memory_space<vmem>>, vector<32x32xf32>
    %cst_161 = arith.constant dense<0.000000e+00> : vector<8x32xf32>
    %445 = tpu.matmul %443, %444, %cst_161 {dimension_numbers = #tpu.dot_dimension_numbers<[1], [0], [0], [1], [0, 0, 1, 1], [], []>} : vector<8x32xf32>, vector<32x32xf32>, vector<8x32xf32> -> vector<8x32xf32>
    %c928 = arith.constant 928 : index
    %c0_162 = arith.constant 0 : index
    %446 = vector.load %arg5[%c928, %c0_162] : memref<1536x128xf32, #tpu.memory_space<vmem>>, vector<1x32xf32>
    %447 = vector.broadcast %446 : vector<1x32xf32> to vector<8x32xf32>
    %448 = arith.addf %445, %447 : vector<8x32xf32>
    %449 = vector.broadcast %7 : vector<8x1xf32> to vector<8x32xf32>
    %450 = arith.mulf %448, %449 : vector<8x32xf32>
    %c936 = arith.constant 936 : index
    %c0_163 = arith.constant 0 : index
    %451 = vector.load %arg5[%c936, %c0_163] : memref<1536x128xf32, #tpu.memory_space<vmem>>, vector<16x16xf32>
    %cst_164 = arith.constant dense<0.000000e+00> : vector<1x16xf32>
    %452 = tpu.matmul %358, %451, %cst_164 {dimension_numbers = #tpu.dot_dimension_numbers<[1], [0], [0], [1], [0, 0, 1, 1], [], []>} : vector<1x16xf32>, vector<16x16xf32>, vector<1x16xf32> -> vector<1x16xf32>
    %c1144 = arith.constant 1144 : index
    %c0_165 = arith.constant 0 : index
    %453 = vector.load %arg5[%c1144, %c0_165] : memref<1536x128xf32, #tpu.memory_space<vmem>>, vector<1x16xf32>
    %454 = arith.addf %452, %453 : vector<1x16xf32>
    %cst_166 = arith.constant dense<0.000000e+00> : vector<32xf32>
    %455 = vector.multi_reduction <add>, %240, %cst_166 [0] : vector<8x32xf32> to vector<32xf32>
    %456 = vector.shape_cast %455 : vector<32xf32> to vector<1x32xf32>
    %cst_167 = arith.constant 8.000000e+00 : f32
    %457 = vector.broadcast %cst_167 : f32 to vector<1x32xf32>
    %458 = arith.divf %456, %457 : vector<1x32xf32>
    %cst_168 = arith.constant dense<0x7F800000> : vector<32xf32>
    %459 = vector.multi_reduction <minimumf>, %240, %cst_168 [0] : vector<8x32xf32> to vector<32xf32>
    %460 = vector.shape_cast %459 : vector<32xf32> to vector<1x32xf32>
    %cst_169 = arith.constant dense<0xFF800000> : vector<32xf32>
    %461 = vector.multi_reduction <maximumf>, %240, %cst_169 [0] : vector<8x32xf32> to vector<32xf32>
    %462 = vector.shape_cast %461 : vector<32xf32> to vector<1x32xf32>
    %463 = vector.broadcast %458 : vector<1x32xf32> to vector<8x32xf32>
    %464 = arith.subf %240, %463 : vector<8x32xf32>
    %465 = arith.mulf %464, %464 : vector<8x32xf32>
    %cst_170 = arith.constant dense<0.000000e+00> : vector<32xf32>
    %466 = vector.multi_reduction <add>, %465, %cst_170 [0] : vector<8x32xf32> to vector<32xf32>
    %467 = vector.shape_cast %466 : vector<32xf32> to vector<1x32xf32>
    %cst_171 = arith.constant 7.000000e+00 : f32
    %468 = vector.broadcast %cst_171 : f32 to vector<1x32xf32>
    %469 = arith.divf %467, %468 : vector<1x32xf32>
    %470 = math.sqrt %469 : vector<1x32xf32>
    %c952 = arith.constant 952 : index
    %c0_172 = arith.constant 0 : index
    %471 = vector.load %arg5[%c952, %c0_172] : memref<1536x128xf32, #tpu.memory_space<vmem>>, vector<32x16xf32>
    %cst_173 = arith.constant dense<0.000000e+00> : vector<1x16xf32>
    %472 = tpu.matmul %458, %471, %cst_173 {dimension_numbers = #tpu.dot_dimension_numbers<[1], [0], [0], [1], [0, 0, 1, 1], [], []>} : vector<1x32xf32>, vector<32x16xf32>, vector<1x16xf32> -> vector<1x16xf32>
    %473 = arith.addf %454, %472 : vector<1x16xf32>
    %c1000 = arith.constant 1000 : index
    %c0_174 = arith.constant 0 : index
    %474 = vector.load %arg5[%c1000, %c0_174] : memref<1536x128xf32, #tpu.memory_space<vmem>>, vector<32x16xf32>
    %cst_175 = arith.constant dense<0.000000e+00> : vector<1x16xf32>
    %475 = tpu.matmul %460, %474, %cst_175 {dimension_numbers = #tpu.dot_dimension_numbers<[1], [0], [0], [1], [0, 0, 1, 1], [], []>} : vector<1x32xf32>, vector<32x16xf32>, vector<1x16xf32> -> vector<1x16xf32>
    %476 = arith.addf %473, %475 : vector<1x16xf32>
    %c1048 = arith.constant 1048 : index
    %c0_176 = arith.constant 0 : index
    %477 = vector.load %arg5[%c1048, %c0_176] : memref<1536x128xf32, #tpu.memory_space<vmem>>, vector<32x16xf32>
    %cst_177 = arith.constant dense<0.000000e+00> : vector<1x16xf32>
    %478 = tpu.matmul %462, %477, %cst_177 {dimension_numbers = #tpu.dot_dimension_numbers<[1], [0], [0], [1], [0, 0, 1, 1], [], []>} : vector<1x32xf32>, vector<32x16xf32>, vector<1x16xf32> -> vector<1x16xf32>
    %479 = arith.addf %476, %478 : vector<1x16xf32>
    %c1096 = arith.constant 1096 : index
    %c0_178 = arith.constant 0 : index
    %480 = vector.load %arg5[%c1096, %c0_178] : memref<1536x128xf32, #tpu.memory_space<vmem>>, vector<32x16xf32>
    %cst_179 = arith.constant dense<0.000000e+00> : vector<1x16xf32>
    %481 = tpu.matmul %470, %480, %cst_179 {dimension_numbers = #tpu.dot_dimension_numbers<[1], [0], [0], [1], [0, 0, 1, 1], [], []>} : vector<1x32xf32>, vector<32x16xf32>, vector<1x16xf32> -> vector<1x16xf32>
    %482 = arith.addf %479, %481 : vector<1x16xf32>
    %cst_180 = arith.constant dense<0.000000e+00> : vector<16xf32>
    %483 = vector.multi_reduction <add>, %302, %cst_180 [0] : vector<64x16xf32> to vector<16xf32>
    %484 = vector.shape_cast %483 : vector<16xf32> to vector<1x16xf32>
    %cst_181 = arith.constant 6.400000e+01 : f32
    %485 = vector.broadcast %cst_181 : f32 to vector<1x16xf32>
    %486 = arith.divf %484, %485 : vector<1x16xf32>
    %cst_182 = arith.constant dense<0x7F800000> : vector<16xf32>
    %487 = vector.multi_reduction <minimumf>, %302, %cst_182 [0] : vector<64x16xf32> to vector<16xf32>
    %488 = vector.shape_cast %487 : vector<16xf32> to vector<1x16xf32>
    %cst_183 = arith.constant dense<0xFF800000> : vector<16xf32>
    %489 = vector.multi_reduction <maximumf>, %302, %cst_183 [0] : vector<64x16xf32> to vector<16xf32>
    %490 = vector.shape_cast %489 : vector<16xf32> to vector<1x16xf32>
    %491 = vector.broadcast %486 : vector<1x16xf32> to vector<64x16xf32>
    %492 = arith.subf %302, %491 : vector<64x16xf32>
    %493 = arith.mulf %492, %492 : vector<64x16xf32>
    %cst_184 = arith.constant dense<0.000000e+00> : vector<16xf32>
    %494 = vector.multi_reduction <add>, %493, %cst_184 [0] : vector<64x16xf32> to vector<16xf32>
    %495 = vector.shape_cast %494 : vector<16xf32> to vector<1x16xf32>
    %cst_185 = arith.constant 6.300000e+01 : f32
    %496 = vector.broadcast %cst_185 : f32 to vector<1x16xf32>
    %497 = arith.divf %495, %496 : vector<1x16xf32>
    %498 = math.sqrt %497 : vector<1x16xf32>
    %c984 = arith.constant 984 : index
    %c0_186 = arith.constant 0 : index
    %499 = vector.load %arg5[%c984, %c0_186] : memref<1536x128xf32, #tpu.memory_space<vmem>>, vector<16x16xf32>
    %cst_187 = arith.constant dense<0.000000e+00> : vector<1x16xf32>
    %500 = tpu.matmul %486, %499, %cst_187 {dimension_numbers = #tpu.dot_dimension_numbers<[1], [0], [0], [1], [0, 0, 1, 1], [], []>} : vector<1x16xf32>, vector<16x16xf32>, vector<1x16xf32> -> vector<1x16xf32>
    %501 = arith.addf %482, %500 : vector<1x16xf32>
    %c1032 = arith.constant 1032 : index
    %c0_188 = arith.constant 0 : index
    %502 = vector.load %arg5[%c1032, %c0_188] : memref<1536x128xf32, #tpu.memory_space<vmem>>, vector<16x16xf32>
    %cst_189 = arith.constant dense<0.000000e+00> : vector<1x16xf32>
    %503 = tpu.matmul %488, %502, %cst_189 {dimension_numbers = #tpu.dot_dimension_numbers<[1], [0], [0], [1], [0, 0, 1, 1], [], []>} : vector<1x16xf32>, vector<16x16xf32>, vector<1x16xf32> -> vector<1x16xf32>
    %504 = arith.addf %501, %503 : vector<1x16xf32>
    %c1080 = arith.constant 1080 : index
    %c0_190 = arith.constant 0 : index
    %505 = vector.load %arg5[%c1080, %c0_190] : memref<1536x128xf32, #tpu.memory_space<vmem>>, vector<16x16xf32>
    %cst_191 = arith.constant dense<0.000000e+00> : vector<1x16xf32>
    %506 = tpu.matmul %490, %505, %cst_191 {dimension_numbers = #tpu.dot_dimension_numbers<[1], [0], [0], [1], [0, 0, 1, 1], [], []>} : vector<1x16xf32>, vector<16x16xf32>, vector<1x16xf32> -> vector<1x16xf32>
    %507 = arith.addf %504, %506 : vector<1x16xf32>
    %c1128 = arith.constant 1128 : index
    %c0_192 = arith.constant 0 : index
    %508 = vector.load %arg5[%c1128, %c0_192] : memref<1536x128xf32, #tpu.memory_space<vmem>>, vector<16x16xf32>
    %cst_193 = arith.constant dense<0.000000e+00> : vector<1x16xf32>
    %509 = tpu.matmul %498, %508, %cst_193 {dimension_numbers = #tpu.dot_dimension_numbers<[1], [0], [0], [1], [0, 0, 1, 1], [], []>} : vector<1x16xf32>, vector<16x16xf32>, vector<1x16xf32> -> vector<1x16xf32>
    %510 = arith.addf %507, %509 : vector<1x16xf32>
    %c1152 = arith.constant 1152 : index
    %c0_194 = arith.constant 0 : index
    %511 = vector.load %arg5[%c1152, %c0_194] : memref<1536x128xf32, #tpu.memory_space<vmem>>, vector<16x16xf32>
    %cst_195 = arith.constant dense<0.000000e+00> : vector<1x16xf32>
    %512 = tpu.matmul %510, %511, %cst_195 {dimension_numbers = #tpu.dot_dimension_numbers<[1], [0], [0], [1], [0, 0, 1, 1], [], []>} : vector<1x16xf32>, vector<16x16xf32>, vector<1x16xf32> -> vector<1x16xf32>
    %c1168 = arith.constant 1168 : index
    %c0_196 = arith.constant 0 : index
    %513 = vector.load %arg5[%c1168, %c0_196] : memref<1536x128xf32, #tpu.memory_space<vmem>>, vector<1x16xf32>
    %514 = arith.addf %512, %513 : vector<1x16xf32>
    %cst_197 = arith.constant 0.000000e+00 : f32
    %515 = vector.broadcast %cst_197 : f32 to vector<1x16xf32>
    %516 = arith.maximumf %514, %515 : vector<1x16xf32>
    %c1176 = arith.constant 1176 : index
    %c0_198 = arith.constant 0 : index
    %517 = vector.load %arg5[%c1176, %c0_198] : memref<1536x128xf32, #tpu.memory_space<vmem>>, vector<16x16xf32>
    %cst_199 = arith.constant dense<0.000000e+00> : vector<1x16xf32>
    %518 = tpu.matmul %516, %517, %cst_199 {dimension_numbers = #tpu.dot_dimension_numbers<[1], [0], [0], [1], [0, 0, 1, 1], [], []>} : vector<1x16xf32>, vector<16x16xf32>, vector<1x16xf32> -> vector<1x16xf32>
    %c1192 = arith.constant 1192 : index
    %c0_200 = arith.constant 0 : index
    %519 = vector.load %arg5[%c1192, %c0_200] : memref<1536x128xf32, #tpu.memory_space<vmem>>, vector<1x16xf32>
    %520 = arith.addf %518, %519 : vector<1x16xf32>
    %521 = arith.addf %240, %450 : vector<8x32xf32>
    %c1200 = arith.constant 1200 : index
    %c0_201 = arith.constant 0 : index
    %522 = vector.load %arg5[%c1200, %c0_201] : memref<1536x128xf32, #tpu.memory_space<vmem>>, vector<1x32xf32>
    %c1208 = arith.constant 1208 : index
    %c0_202 = arith.constant 0 : index
    %523 = vector.load %arg5[%c1208, %c0_202] : memref<1536x128xf32, #tpu.memory_space<vmem>>, vector<1x32xf32>
    %cst_203 = arith.constant dense<0.000000e+00> : vector<8xf32>
    %524 = vector.multi_reduction <add>, %521, %cst_203 [1] : vector<8x32xf32> to vector<8xf32>
    %525 = vector.shape_cast %524 : vector<8xf32> to vector<8x1xf32>
    %cst_204 = arith.constant 3.200000e+01 : f32
    %526 = vector.broadcast %cst_204 : f32 to vector<8x1xf32>
    %527 = arith.divf %525, %526 : vector<8x1xf32>
    %528 = vector.broadcast %527 : vector<8x1xf32> to vector<8x32xf32>
    %529 = arith.subf %521, %528 : vector<8x32xf32>
    %530 = arith.mulf %529, %529 : vector<8x32xf32>
    %cst_205 = arith.constant dense<0.000000e+00> : vector<8xf32>
    %531 = vector.multi_reduction <add>, %530, %cst_205 [1] : vector<8x32xf32> to vector<8xf32>
    %532 = vector.shape_cast %531 : vector<8xf32> to vector<8x1xf32>
    %cst_206 = arith.constant 3.200000e+01 : f32
    %533 = vector.broadcast %cst_206 : f32 to vector<8x1xf32>
    %534 = arith.divf %532, %533 : vector<8x1xf32>
    %535 = vector.broadcast %527 : vector<8x1xf32> to vector<8x32xf32>
    %536 = arith.subf %521, %535 : vector<8x32xf32>
    %cst_207 = arith.constant 9.99999974E-6 : f32
    %537 = vector.broadcast %cst_207 : f32 to vector<8x1xf32>
    %538 = arith.addf %534, %537 : vector<8x1xf32>
    %539 = math.rsqrt %538 : vector<8x1xf32>
    %540 = vector.broadcast %539 : vector<8x1xf32> to vector<8x32xf32>
    %541 = arith.mulf %536, %540 : vector<8x32xf32>
    %542 = vector.broadcast %522 : vector<1x32xf32> to vector<8x32xf32>
    %543 = arith.mulf %541, %542 : vector<8x32xf32>
    %544 = vector.broadcast %523 : vector<1x32xf32> to vector<8x32xf32>
    %545 = arith.addf %543, %544 : vector<8x32xf32>
    %c1216 = arith.constant 1216 : index
    %c0_208 = arith.constant 0 : index
    %546 = vector.load %arg5[%c1216, %c0_208] : memref<1536x128xf32, #tpu.memory_space<vmem>>, vector<32x64xf32>
    %cst_209 = arith.constant dense<0.000000e+00> : vector<8x64xf32>
    %547 = tpu.matmul %545, %546, %cst_209 {dimension_numbers = #tpu.dot_dimension_numbers<[1], [0], [0], [1], [0, 0, 1, 1], [], []>} : vector<8x32xf32>, vector<32x64xf32>, vector<8x64xf32> -> vector<8x64xf32>
    %c1248 = arith.constant 1248 : index
    %c0_210 = arith.constant 0 : index
    %548 = vector.load %arg5[%c1248, %c0_210] : memref<1536x128xf32, #tpu.memory_space<vmem>>, vector<1x64xf32>
    %549 = vector.broadcast %548 : vector<1x64xf32> to vector<8x64xf32>
    %550 = arith.addf %547, %549 : vector<8x64xf32>
    %cst_211 = arith.constant 0.000000e+00 : f32
    %551 = vector.broadcast %cst_211 : f32 to vector<8x64xf32>
    %552 = arith.maximumf %550, %551 : vector<8x64xf32>
    %c1256 = arith.constant 1256 : index
    %c0_212 = arith.constant 0 : index
    %553 = vector.load %arg5[%c1256, %c0_212] : memref<1536x128xf32, #tpu.memory_space<vmem>>, vector<64x32xf32>
    %cst_213 = arith.constant dense<0.000000e+00> : vector<8x32xf32>
    %554 = tpu.matmul %552, %553, %cst_213 {dimension_numbers = #tpu.dot_dimension_numbers<[1], [0], [0], [1], [0, 0, 1, 1], [], []>} : vector<8x64xf32>, vector<64x32xf32>, vector<8x32xf32> -> vector<8x32xf32>
    %555 = arith.addf %545, %554 : vector<8x32xf32>
    %c1320 = arith.constant 1320 : index
    %c0_214 = arith.constant 0 : index
    %556 = vector.load %arg5[%c1320, %c0_214] : memref<1536x128xf32, #tpu.memory_space<vmem>>, vector<1x32xf32>
    %557 = vector.broadcast %556 : vector<1x32xf32> to vector<8x32xf32>
    %558 = arith.addf %555, %557 : vector<8x32xf32>
    %c1328 = arith.constant 1328 : index
    %c0_215 = arith.constant 0 : index
    %559 = vector.load %arg5[%c1328, %c0_215] : memref<1536x128xf32, #tpu.memory_space<vmem>>, vector<1x32xf32>
    %c1336 = arith.constant 1336 : index
    %c0_216 = arith.constant 0 : index
    %560 = vector.load %arg5[%c1336, %c0_216] : memref<1536x128xf32, #tpu.memory_space<vmem>>, vector<1x32xf32>
    %cst_217 = arith.constant dense<0.000000e+00> : vector<8xf32>
    %561 = vector.multi_reduction <add>, %558, %cst_217 [1] : vector<8x32xf32> to vector<8xf32>
    %562 = vector.shape_cast %561 : vector<8xf32> to vector<8x1xf32>
    %cst_218 = arith.constant 3.200000e+01 : f32
    %563 = vector.broadcast %cst_218 : f32 to vector<8x1xf32>
    %564 = arith.divf %562, %563 : vector<8x1xf32>
    %565 = vector.broadcast %564 : vector<8x1xf32> to vector<8x32xf32>
    %566 = arith.subf %558, %565 : vector<8x32xf32>
    %567 = arith.mulf %566, %566 : vector<8x32xf32>
    %cst_219 = arith.constant dense<0.000000e+00> : vector<8xf32>
    %568 = vector.multi_reduction <add>, %567, %cst_219 [1] : vector<8x32xf32> to vector<8xf32>
    %569 = vector.shape_cast %568 : vector<8xf32> to vector<8x1xf32>
    %cst_220 = arith.constant 3.200000e+01 : f32
    %570 = vector.broadcast %cst_220 : f32 to vector<8x1xf32>
    %571 = arith.divf %569, %570 : vector<8x1xf32>
    %572 = vector.broadcast %564 : vector<8x1xf32> to vector<8x32xf32>
    %573 = arith.subf %558, %572 : vector<8x32xf32>
    %cst_221 = arith.constant 9.99999974E-6 : f32
    %574 = vector.broadcast %cst_221 : f32 to vector<8x1xf32>
    %575 = arith.addf %571, %574 : vector<8x1xf32>
    %576 = math.rsqrt %575 : vector<8x1xf32>
    %577 = vector.broadcast %576 : vector<8x1xf32> to vector<8x32xf32>
    %578 = arith.mulf %573, %577 : vector<8x32xf32>
    %579 = vector.broadcast %559 : vector<1x32xf32> to vector<8x32xf32>
    %580 = arith.mulf %578, %579 : vector<8x32xf32>
    %581 = vector.broadcast %560 : vector<1x32xf32> to vector<8x32xf32>
    %582 = arith.addf %580, %581 : vector<8x32xf32>
    %583 = arith.addf %302, %414 : vector<64x16xf32>
    %c1344 = arith.constant 1344 : index
    %c0_222 = arith.constant 0 : index
    %584 = vector.load %arg5[%c1344, %c0_222] : memref<1536x128xf32, #tpu.memory_space<vmem>>, vector<1x16xf32>
    %c1352 = arith.constant 1352 : index
    %c0_223 = arith.constant 0 : index
    %585 = vector.load %arg5[%c1352, %c0_223] : memref<1536x128xf32, #tpu.memory_space<vmem>>, vector<1x16xf32>
    %cst_224 = arith.constant dense<0.000000e+00> : vector<64xf32>
    %586 = vector.multi_reduction <add>, %583, %cst_224 [1] : vector<64x16xf32> to vector<64xf32>
    %587 = vector.shape_cast %586 : vector<64xf32> to vector<64x1xf32>
    %cst_225 = arith.constant 1.600000e+01 : f32
    %588 = vector.broadcast %cst_225 : f32 to vector<64x1xf32>
    %589 = arith.divf %587, %588 : vector<64x1xf32>
    %590 = vector.broadcast %589 : vector<64x1xf32> to vector<64x16xf32>
    %591 = arith.subf %583, %590 : vector<64x16xf32>
    %592 = arith.mulf %591, %591 : vector<64x16xf32>
    %cst_226 = arith.constant dense<0.000000e+00> : vector<64xf32>
    %593 = vector.multi_reduction <add>, %592, %cst_226 [1] : vector<64x16xf32> to vector<64xf32>
    %594 = vector.shape_cast %593 : vector<64xf32> to vector<64x1xf32>
    %cst_227 = arith.constant 1.600000e+01 : f32
    %595 = vector.broadcast %cst_227 : f32 to vector<64x1xf32>
    %596 = arith.divf %594, %595 : vector<64x1xf32>
    %597 = vector.broadcast %589 : vector<64x1xf32> to vector<64x16xf32>
    %598 = arith.subf %583, %597 : vector<64x16xf32>
    %cst_228 = arith.constant 9.99999974E-6 : f32
    %599 = vector.broadcast %cst_228 : f32 to vector<64x1xf32>
    %600 = arith.addf %596, %599 : vector<64x1xf32>
    %601 = math.rsqrt %600 : vector<64x1xf32>
    %602 = vector.broadcast %601 : vector<64x1xf32> to vector<64x16xf32>
    %603 = arith.mulf %598, %602 : vector<64x16xf32>
    %604 = vector.broadcast %584 : vector<1x16xf32> to vector<64x16xf32>
    %605 = arith.mulf %603, %604 : vector<64x16xf32>
    %606 = vector.broadcast %585 : vector<1x16xf32> to vector<64x16xf32>
    %607 = arith.addf %605, %606 : vector<64x16xf32>
    %c1360 = arith.constant 1360 : index
    %c0_229 = arith.constant 0 : index
    %608 = vector.load %arg5[%c1360, %c0_229] : memref<1536x128xf32, #tpu.memory_space<vmem>>, vector<16x32xf32>
    %cst_230 = arith.constant dense<0.000000e+00> : vector<64x32xf32>
    %609 = tpu.matmul %607, %608, %cst_230 {dimension_numbers = #tpu.dot_dimension_numbers<[1], [0], [0], [1], [0, 0, 1, 1], [], []>} : vector<64x16xf32>, vector<16x32xf32>, vector<64x32xf32> -> vector<64x32xf32>
    %c1376 = arith.constant 1376 : index
    %c0_231 = arith.constant 0 : index
    %610 = vector.load %arg5[%c1376, %c0_231] : memref<1536x128xf32, #tpu.memory_space<vmem>>, vector<1x32xf32>
    %611 = vector.broadcast %610 : vector<1x32xf32> to vector<64x32xf32>
    %612 = arith.addf %609, %611 : vector<64x32xf32>
    %cst_232 = arith.constant 0.000000e+00 : f32
    %613 = vector.broadcast %cst_232 : f32 to vector<64x32xf32>
    %614 = arith.maximumf %612, %613 : vector<64x32xf32>
    %c1384 = arith.constant 1384 : index
    %c0_233 = arith.constant 0 : index
    %615 = vector.load %arg5[%c1384, %c0_233] : memref<1536x128xf32, #tpu.memory_space<vmem>>, vector<32x16xf32>
    %cst_234 = arith.constant dense<0.000000e+00> : vector<64x16xf32>
    %616 = tpu.matmul %614, %615, %cst_234 {dimension_numbers = #tpu.dot_dimension_numbers<[1], [0], [0], [1], [0, 0, 1, 1], [], []>} : vector<64x32xf32>, vector<32x16xf32>, vector<64x16xf32> -> vector<64x16xf32>
    %617 = arith.addf %607, %616 : vector<64x16xf32>
    %c1416 = arith.constant 1416 : index
    %c0_235 = arith.constant 0 : index
    %618 = vector.load %arg5[%c1416, %c0_235] : memref<1536x128xf32, #tpu.memory_space<vmem>>, vector<1x16xf32>
    %619 = vector.broadcast %618 : vector<1x16xf32> to vector<64x16xf32>
    %620 = arith.addf %617, %619 : vector<64x16xf32>
    %c1424 = arith.constant 1424 : index
    %c0_236 = arith.constant 0 : index
    %621 = vector.load %arg5[%c1424, %c0_236] : memref<1536x128xf32, #tpu.memory_space<vmem>>, vector<1x16xf32>
    %c1432 = arith.constant 1432 : index
    %c0_237 = arith.constant 0 : index
    %622 = vector.load %arg5[%c1432, %c0_237] : memref<1536x128xf32, #tpu.memory_space<vmem>>, vector<1x16xf32>
    %cst_238 = arith.constant dense<0.000000e+00> : vector<64xf32>
    %623 = vector.multi_reduction <add>, %620, %cst_238 [1] : vector<64x16xf32> to vector<64xf32>
    %624 = vector.shape_cast %623 : vector<64xf32> to vector<64x1xf32>
    %cst_239 = arith.constant 1.600000e+01 : f32
    %625 = vector.broadcast %cst_239 : f32 to vector<64x1xf32>
    %626 = arith.divf %624, %625 : vector<64x1xf32>
    %627 = vector.broadcast %626 : vector<64x1xf32> to vector<64x16xf32>
    %628 = arith.subf %620, %627 : vector<64x16xf32>
    %629 = arith.mulf %628, %628 : vector<64x16xf32>
    %cst_240 = arith.constant dense<0.000000e+00> : vector<64xf32>
    %630 = vector.multi_reduction <add>, %629, %cst_240 [1] : vector<64x16xf32> to vector<64xf32>
    %631 = vector.shape_cast %630 : vector<64xf32> to vector<64x1xf32>
    %cst_241 = arith.constant 1.600000e+01 : f32
    %632 = vector.broadcast %cst_241 : f32 to vector<64x1xf32>
    %633 = arith.divf %631, %632 : vector<64x1xf32>
    %634 = vector.broadcast %626 : vector<64x1xf32> to vector<64x16xf32>
    %635 = arith.subf %620, %634 : vector<64x16xf32>
    %cst_242 = arith.constant 9.99999974E-6 : f32
    %636 = vector.broadcast %cst_242 : f32 to vector<64x1xf32>
    %637 = arith.addf %633, %636 : vector<64x1xf32>
    %638 = math.rsqrt %637 : vector<64x1xf32>
    %639 = vector.broadcast %638 : vector<64x1xf32> to vector<64x16xf32>
    %640 = arith.mulf %635, %639 : vector<64x16xf32>
    %641 = vector.broadcast %621 : vector<1x16xf32> to vector<64x16xf32>
    %642 = arith.mulf %640, %641 : vector<64x16xf32>
    %643 = vector.broadcast %622 : vector<1x16xf32> to vector<64x16xf32>
    %644 = arith.addf %642, %643 : vector<64x16xf32>
    %645 = arith.addf %358, %520 : vector<1x16xf32>
    %c1440 = arith.constant 1440 : index
    %c0_243 = arith.constant 0 : index
    %646 = vector.load %arg5[%c1440, %c0_243] : memref<1536x128xf32, #tpu.memory_space<vmem>>, vector<1x16xf32>
    %c1448 = arith.constant 1448 : index
    %c0_244 = arith.constant 0 : index
    %647 = vector.load %arg5[%c1448, %c0_244] : memref<1536x128xf32, #tpu.memory_space<vmem>>, vector<1x16xf32>
    %cst_245 = arith.constant dense<0.000000e+00> : vector<1xf32>
    %648 = vector.multi_reduction <add>, %645, %cst_245 [1] : vector<1x16xf32> to vector<1xf32>
    %649 = vector.shape_cast %648 : vector<1xf32> to vector<1x1xf32>
    %cst_246 = arith.constant 1.600000e+01 : f32
    %650 = vector.broadcast %cst_246 : f32 to vector<1x1xf32>
    %651 = arith.divf %649, %650 : vector<1x1xf32>
    %652 = vector.broadcast %651 : vector<1x1xf32> to vector<1x16xf32>
    %653 = arith.subf %645, %652 : vector<1x16xf32>
    %654 = arith.mulf %653, %653 : vector<1x16xf32>
    %cst_247 = arith.constant dense<0.000000e+00> : vector<1xf32>
    %655 = vector.multi_reduction <add>, %654, %cst_247 [1] : vector<1x16xf32> to vector<1xf32>
    %656 = vector.shape_cast %655 : vector<1xf32> to vector<1x1xf32>
    %cst_248 = arith.constant 1.600000e+01 : f32
    %657 = vector.broadcast %cst_248 : f32 to vector<1x1xf32>
    %658 = arith.divf %656, %657 : vector<1x1xf32>
    %659 = vector.broadcast %651 : vector<1x1xf32> to vector<1x16xf32>
    %660 = arith.subf %645, %659 : vector<1x16xf32>
    %cst_249 = arith.constant 9.99999974E-6 : f32
    %661 = vector.broadcast %cst_249 : f32 to vector<1x1xf32>
    %662 = arith.addf %658, %661 : vector<1x1xf32>
    %663 = math.rsqrt %662 : vector<1x1xf32>
    %664 = vector.broadcast %663 : vector<1x1xf32> to vector<1x16xf32>
    %665 = arith.mulf %660, %664 : vector<1x16xf32>
    %666 = arith.mulf %665, %646 : vector<1x16xf32>
    %667 = arith.addf %666, %647 : vector<1x16xf32>
    %c1456 = arith.constant 1456 : index
    %c0_250 = arith.constant 0 : index
    %668 = vector.load %arg5[%c1456, %c0_250] : memref<1536x128xf32, #tpu.memory_space<vmem>>, vector<16x32xf32>
    %cst_251 = arith.constant dense<0.000000e+00> : vector<1x32xf32>
    %669 = tpu.matmul %667, %668, %cst_251 {dimension_numbers = #tpu.dot_dimension_numbers<[1], [0], [0], [1], [0, 0, 1, 1], [], []>} : vector<1x16xf32>, vector<16x32xf32>, vector<1x32xf32> -> vector<1x32xf32>
    %c1472 = arith.constant 1472 : index
    %c0_252 = arith.constant 0 : index
    %670 = vector.load %arg5[%c1472, %c0_252] : memref<1536x128xf32, #tpu.memory_space<vmem>>, vector<1x32xf32>
    %671 = arith.addf %669, %670 : vector<1x32xf32>
    %cst_253 = arith.constant 0.000000e+00 : f32
    %672 = vector.broadcast %cst_253 : f32 to vector<1x32xf32>
    %673 = arith.maximumf %671, %672 : vector<1x32xf32>
    %c1480 = arith.constant 1480 : index
    %c0_254 = arith.constant 0 : index
    %674 = vector.load %arg5[%c1480, %c0_254] : memref<1536x128xf32, #tpu.memory_space<vmem>>, vector<32x16xf32>
    %cst_255 = arith.constant dense<0.000000e+00> : vector<1x16xf32>
    %675 = tpu.matmul %673, %674, %cst_255 {dimension_numbers = #tpu.dot_dimension_numbers<[1], [0], [0], [1], [0, 0, 1, 1], [], []>} : vector<1x32xf32>, vector<32x16xf32>, vector<1x16xf32> -> vector<1x16xf32>
    %676 = arith.addf %667, %675 : vector<1x16xf32>
    %c1512 = arith.constant 1512 : index
    %c0_256 = arith.constant 0 : index
    %677 = vector.load %arg5[%c1512, %c0_256] : memref<1536x128xf32, #tpu.memory_space<vmem>>, vector<1x16xf32>
    %678 = arith.addf %676, %677 : vector<1x16xf32>
    %c1520 = arith.constant 1520 : index
    %c0_257 = arith.constant 0 : index
    %679 = vector.load %arg5[%c1520, %c0_257] : memref<1536x128xf32, #tpu.memory_space<vmem>>, vector<1x16xf32>
    %c1528 = arith.constant 1528 : index
    %c0_258 = arith.constant 0 : index
    %680 = vector.load %arg5[%c1528, %c0_258] : memref<1536x128xf32, #tpu.memory_space<vmem>>, vector<1x16xf32>
    %cst_259 = arith.constant dense<0.000000e+00> : vector<1xf32>
    %681 = vector.multi_reduction <add>, %678, %cst_259 [1] : vector<1x16xf32> to vector<1xf32>
    %682 = vector.shape_cast %681 : vector<1xf32> to vector<1x1xf32>
    %cst_260 = arith.constant 1.600000e+01 : f32
    %683 = vector.broadcast %cst_260 : f32 to vector<1x1xf32>
    %684 = arith.divf %682, %683 : vector<1x1xf32>
    %685 = vector.broadcast %684 : vector<1x1xf32> to vector<1x16xf32>
    %686 = arith.subf %678, %685 : vector<1x16xf32>
    %687 = arith.mulf %686, %686 : vector<1x16xf32>
    %cst_261 = arith.constant dense<0.000000e+00> : vector<1xf32>
    %688 = vector.multi_reduction <add>, %687, %cst_261 [1] : vector<1x16xf32> to vector<1xf32>
    %689 = vector.shape_cast %688 : vector<1xf32> to vector<1x1xf32>
    %cst_262 = arith.constant 1.600000e+01 : f32
    %690 = vector.broadcast %cst_262 : f32 to vector<1x1xf32>
    %691 = arith.divf %689, %690 : vector<1x1xf32>
    %692 = vector.broadcast %684 : vector<1x1xf32> to vector<1x16xf32>
    %693 = arith.subf %678, %692 : vector<1x16xf32>
    %cst_263 = arith.constant 9.99999974E-6 : f32
    %694 = vector.broadcast %cst_263 : f32 to vector<1x1xf32>
    %695 = arith.addf %691, %694 : vector<1x1xf32>
    %696 = math.rsqrt %695 : vector<1x1xf32>
    %697 = vector.broadcast %696 : vector<1x1xf32> to vector<1x16xf32>
    %698 = arith.mulf %693, %697 : vector<1x16xf32>
    %699 = arith.mulf %698, %679 : vector<1x16xf32>
    %700 = arith.addf %699, %680 : vector<1x16xf32>
    %c0_264 = arith.constant 0 : index
    %c0_265 = arith.constant 0 : index
    %c0_266 = arith.constant 0 : index
    %701 = vector.load %arg6[%c0_264, %c0_265, %c0_266] : memref<1x8x32xf32, #tpu.memory_space<vmem>>, vector<1x8x32xf32>
    %702 = vector.shape_cast %701 : vector<1x8x32xf32> to vector<8x32xf32>
    %703 = vector.shape_cast %582 : vector<8x32xf32> to vector<1x8x32xf32>
    tpu.vector_store %arg6[%c0_264, %c0_265, %c0_266], %703 {strides = array<i32>} : memref<1x8x32xf32, #tpu.memory_space<vmem>>, vector<1x8x32xf32>,
    %c0_267 = arith.constant 0 : index
    %c0_268 = arith.constant 0 : index
    %c0_269 = arith.constant 0 : index
    %704 = vector.load %arg7[%c0_267, %c0_268, %c0_269] : memref<1x64x16xf32, #tpu.memory_space<vmem>>, vector<1x64x16xf32>
    %705 = vector.shape_cast %704 : vector<1x64x16xf32> to vector<64x16xf32>
    %706 = vector.shape_cast %644 : vector<64x16xf32> to vector<1x64x16xf32>
    tpu.vector_store %arg7[%c0_267, %c0_268, %c0_269], %706 {strides = array<i32>} : memref<1x64x16xf32, #tpu.memory_space<vmem>>, vector<1x64x16xf32>,
    %c0_270 = arith.constant 0 : index
    %c0_271 = arith.constant 0 : index
    %c0_272 = arith.constant 0 : index
    %707 = vector.load %arg8[%c0_270, %c0_271, %c0_272] : memref<1x1x16xf32, #tpu.memory_space<vmem>>, vector<1x1x16xf32>
    %708 = vector.shape_cast %707 : vector<1x1x16xf32> to vector<1x16xf32>
    %709 = vector.shape_cast %700 : vector<1x16xf32> to vector<1x1x16xf32>
    tpu.vector_store %arg8[%c0_270, %c0_271, %c0_272], %709 {strides = array<i32>} : memref<1x1x16xf32, #tpu.memory_space<vmem>>, vector<1x1x16xf32>,
    return
  }
  func.func @transform_0(%arg0: i32) -> (i32, i32, i32) {
    %c0_i32 = arith.constant 0 : i32
    %c0_i32_0 = arith.constant 0 : i32
    %c0_i32_1 = arith.constant 0 : i32
    return %arg0, %c0_i32, %c0_i32_0 : i32, i32, i32
  }
  func.func @transform_1(%arg0: i32) -> (i32, i32, i32) {
    %c0_i32 = arith.constant 0 : i32
    %c0_i32_0 = arith.constant 0 : i32
    %c0_i32_1 = arith.constant 0 : i32
    return %arg0, %c0_i32, %c0_i32_0 : i32, i32, i32
  }
  func.func @transform_2(%arg0: i32) -> (i32, i32, i32) {
    %c0_i32 = arith.constant 0 : i32
    %c0_i32_0 = arith.constant 0 : i32
    %c0_i32_1 = arith.constant 0 : i32
    return %arg0, %c0_i32, %c0_i32_0 : i32, i32, i32
  }
  func.func @transform_3(%arg0: i32) -> (i32, i32, i32) {
    %c0_i32 = arith.constant 0 : i32
    %c0_i32_0 = arith.constant 0 : i32
    %c0_i32_1 = arith.constant 0 : i32
    return %arg0, %c0_i32, %c0_i32_0 : i32, i32, i32
  }
  func.func @transform_4(%arg0: i32) -> (i32, i32) {
    %c0_i32 = arith.constant 0 : i32
    %c0_i32_0 = arith.constant 0 : i32
    %c0_i32_1 = arith.constant 0 : i32
    return %c0_i32, %c0_i32_0 : i32, i32
  }
  func.func @transform_5(%arg0: i32) -> (i32, i32, i32) {
    %c0_i32 = arith.constant 0 : i32
    %c0_i32_0 = arith.constant 0 : i32
    %c0_i32_1 = arith.constant 0 : i32
    return %arg0, %c0_i32, %c0_i32_0 : i32, i32, i32
  }
  func.func @transform_6(%arg0: i32) -> (i32, i32, i32) {
    %c0_i32 = arith.constant 0 : i32
    %c0_i32_0 = arith.constant 0 : i32
    %c0_i32_1 = arith.constant 0 : i32
    return %arg0, %c0_i32, %c0_i32_0 : i32, i32, i32
  }
  func.func @transform_7(%arg0: i32) -> (i32, i32, i32) {
    %c0_i32 = arith.constant 0 : i32
    %c0_i32_0 = arith.constant 0 : i32
    %c0_i32_1 = arith.constant 0 : i32
    return %arg0, %c0_i32, %c0_i32_0 : i32, i32, i32
  }
}

</mosaic_0001>

<llo_original>
// kernel: forward.5
$region0: #{forward.5}
  #allocation0 [shape = 'u32[]', space=smem, size = 0x4, offset = 0x4, fixed_abs, tag = 'smem constant byte address 0x4 - core index']
  #allocation1 [shape = 'u32[144,128]{1,0:T(1,128)}', space=vmem, size = 0x12000, scoped, tag = 'internal scratch']
  %s0 = inlined_call_operand.vmem [shape: f32[2,8,32], index: 0, kind: input, shape index: {}]
  %s1 = inlined_call_operand.vmem [shape: f32[2,1,16], index: 1, kind: input, shape index: {}]
  %s2 = inlined_call_operand.vmem [shape: f32[2,8,6], index: 2, kind: input, shape index: {}]
  %s3 = inlined_call_operand.vmem [shape: f32[2,1,4], index: 3, kind: input, shape index: {}]
  %s4 = inlined_call_operand.vmem [shape: f32[2,64,5], index: 4, kind: input, shape index: {}]
  %s5 = inlined_call_operand.vmem [shape: f32[2,8,1], index: 5, kind: input, shape index: {}]
  %s6 = inlined_call_operand.vmem [shape: f32[112,128], index: 6, kind: input, shape index: {}]
  %s7 = inlined_call_operand.vmem [shape: f32[2,8,6], index: 7, kind: output, shape index: {0}]
  %s8 = inlined_call_operand.vmem [shape: f32[2,64,5], index: 8, kind: output, shape index: {1}]
  %s9 = inlined_call_operand.hbm [shape: f32[2,1,4], index: 9, kind: output, shape index: {2}]
  %10 = xla_tuple %s7, %s8, %s9
  %s11 = sld [smem:[#allocation0]]
  $region77: #{forward.5} parent=0
    _
  %s13 = ssub.s32 1, %s11
  %s14 = scalar_select 0, %s13, %s11
  $region1: #{forward.5} parent=0
    #allocation2 [shape = 'u8[1024]{0}', space=vmem, size = 0x400, scoped, tag = 'output window, operand 2']
    #allocation3 [shape = 's32[2]{0}', space=sflag, size = 0x8, scoped, tag = 'scoped memory for forward.5']
    %15 = vsyncpa [#allocation3], 0
    %s16 = scalar_lea.sflag [#allocation3], 1
    %17 = vsyncpa %s16, 0
    loop: start=0, step=1, limit=4
    $region2: #{forward.5} parent=1 // loop_pre_header
      _
    $region3: #{forward.5} parent=1 // loop_header
      %s19 = sphi 0, %s23
      %p20 = scmp.ge.s32.totalorder %s19, 4
      %s29 = sphi 0, %s31
      %s32 = sphi 0, %s29
      %s33 = sphi 0, %s32
      %s49 = sphi 0, %s33
      %s55 = sphi 0, %s57
      %s58 = sphi 0, %s55
      %s59 = sphi 0, %s58
      %s75 = sphi 0, %s59
      %s81 = sphi 0, %s83
      %s84 = sphi 0, %s81
      %s85 = sphi 0, %s84
      %s101 = sphi 0, %s85
      %s107 = sphi 0, %s109
      %s110 = sphi 0, %s107
      %s111 = sphi 0, %s110
      %s127 = sphi 0, %s111
      %s133 = sphi 0, %s135
      %s136 = sphi 0, %s133
      %s137 = sphi 0, %s136
      %s153 = sphi 0, %s137
      %s159 = sphi 0, %s161
      %s162 = sphi 0, %s159
      %s163 = sphi 0, %s162
      %s179 = sphi 0, %s163
      %s183 = sphi 0, %s183
      %s185 = sphi 0, %s183
      %s186 = sphi 0, %s185
      %s200 = sphi 0, %s186
      %s206 = sphi 0, %s208
      %s209 = sphi 0, %s206
      %s210 = sphi 0, %s209
      %s226 = sphi 0, %s210
      %s232 = sphi 0, %s234
      %s235 = sphi 0, %s232
      %s236 = sphi 0, %s235
      %s252 = sphi 0, %s236
      %s258 = sphi 0, %s260
      %s261 = sphi 0, %s258
      %s262 = sphi 0, %s261
      %s278 = sphi 0, %s262
    $region4: #{forward.5} parent=1 // loop_header_branch
      %22 = sbr.rel (%p20) target = $region8
    $region5: #{forward.5} parent=1 // loop_body
      %s24 = ssub.s32 %s19, 1
      %s25 = ssub.s32 %s19, 2
      %s26 = sadd.s32 %s19, 1
      %s27 = ssub.s32 %s19, %s26
      %p28 = scmp.eq.s32.totalorder %s27, 0
      %s30 = sadd.s32 %s29, 1
      %s31 = scalar_select %p28, %s29, %s30
      %p34 = pneg %p28
      %p35 = scmp.eq.s32.totalorder %s19, 1
      %p36 = por %p34, %p35
      %p37 = scmp.ne.s32.totalorder %s29, %s32
      %p38 = scmp.eq.s32.totalorder %s19, 0
      %p39 = por %p37, %p38
      %p40 = scmp.ne.s32.totalorder %s29, %s32
      %p41 = scmp.eq.s32.totalorder %s24, 1
      %p42 = por %p40, %p41
      %p43 = scmp.ne.s32.totalorder %s32, %s33
      %p44 = scmp.eq.s32.totalorder %s24, 0
      %p45 = por %p43, %p44
      %p46 = scmp.ne.s32.totalorder %s32, %s33
      %p47 = scmp.eq.s32.totalorder %s25, 1
      %p48 = por %p46, %p47
      %p50 = scmp.ne.s32.totalorder %s33, %s49
      %p51 = scmp.eq.s32.totalorder %s25, 0
      %p52 = por %p50, %p51
      %s53 = ssub.s32 %s19, %s26
      %p54 = scmp.eq.s32.totalorder %s53, 0
      %s56 = sadd.s32 %s55, 1
      %s57 = scalar_select %p54, %s55, %s56
      %p60 = pneg %p54
      %p61 = scmp.eq.s32.totalorder %s19, 1
      %p62 = por %p60, %p61
      %p63 = scmp.ne.s32.totalorder %s55, %s58
      %p64 = scmp.eq.s32.totalorder %s19, 0
      %p65 = por %p63, %p64
      %p66 = scmp.ne.s32.totalorder %s55, %s58
      %p67 = scmp.eq.s32.totalorder %s24, 1
      %p68 = por %p66, %p67
      %p69 = scmp.ne.s32.totalorder %s58, %s59
      %p70 = scmp.eq.s32.totalorder %s24, 0
      %p71 = por %p69, %p70
      %p72 = scmp.ne.s32.totalorder %s58, %s59
      %p73 = scmp.eq.s32.totalorder %s25, 1
      %p74 = por %p72, %p73
      %p76 = scmp.ne.s32.totalorder %s59, %s75
      %p77 = scmp.eq.s32.totalorder %s25, 0
      %p78 = por %p76, %p77
      %s79 = ssub.s32 %s19, %s26
      %p80 = scmp.eq.s32.totalorder %s79, 0
      %s82 = sadd.s32 %s81, 1
      %s83 = scalar_select %p80, %s81, %s82
      %p86 = pneg %p80
      %p87 = scmp.eq.s32.totalorder %s19, 1
      %p88 = por %p86, %p87
      %p89 = scmp.ne.s32.totalorder %s81, %s84
      %p90 = scmp.eq.s32.totalorder %s19, 0
      %p91 = por %p89, %p90
      %p92 = scmp.ne.s32.totalorder %s81, %s84
      %p93 = scmp.eq.s32.totalorder %s24, 1
      %p94 = por %p92, %p93
      %p95 = scmp.ne.s32.totalorder %s84, %s85
      %p96 = scmp.eq.s32.totalorder %s24, 0
      %p97 = por %p95, %p96
      %p98 = scmp.ne.s32.totalorder %s84, %s85
      %p99 = scmp.eq.s32.totalorder %s25, 1
      %p100 = por %p98, %p99
      %p102 = scmp.ne.s32.totalorder %s85, %s101
      %p103 = scmp.eq.s32.totalorder %s25, 0
      %p104 = por %p102, %p103
      %s105 = ssub.s32 %s19, %s26
      %p106 = scmp.eq.s32.totalorder %s105, 0
      %s108 = sadd.s32 %s107, 1
      %s109 = scalar_select %p106, %s107, %s108
      %p112 = pneg %p106
      %p113 = scmp.eq.s32.totalorder %s19, 1
      %p114 = por %p112, %p113
      %p115 = scmp.ne.s32.totalorder %s107, %s110
      %p116 = scmp.eq.s32.totalorder %s19, 0
      %p117 = por %p115, %p116
      %p118 = scmp.ne.s32.totalorder %s107, %s110
      %p119 = scmp.eq.s32.totalorder %s24, 1
      %p120 = por %p118, %p119
      %p121 = scmp.ne.s32.totalorder %s110, %s111
      %p122 = scmp.eq.s32.totalorder %s24, 0
      %p123 = por %p121, %p122
      %p124 = scmp.ne.s32.totalorder %s110, %s111
      %p125 = scmp.eq.s32.totalorder %s25, 1
      %p126 = por %p124, %p125
      %p128 = scmp.ne.s32.totalorder %s111, %s127
      %p129 = scmp.eq.s32.totalorder %s25, 0
      %p130 = por %p128, %p129
      %s131 = ssub.s32 %s19, %s26
      %p132 = scmp.eq.s32.totalorder %s131, 0
      %s134 = sadd.s32 %s133, 1
      %s135 = scalar_select %p132, %s133, %s134
      %p138 = pneg %p132
      %p139 = scmp.eq.s32.totalorder %s19, 1
      %p140 = por %p138, %p139
      %p141 = scmp.ne.s32.totalorder %s133, %s136
      %p142 = scmp.eq.s32.totalorder %s19, 0
      %p143 = por %p141, %p142
      %p144 = scmp.ne.s32.totalorder %s133, %s136
      %p145 = scmp.eq.s32.totalorder %s24, 1
      %p146 = por %p144, %p145
      %p147 = scmp.ne.s32.totalorder %s136, %s137
      %p148 = scmp.eq.s32.totalorder %s24, 0
      %p149 = por %p147, %p148
      %p150 = scmp.ne.s32.totalorder %s136, %s137
      %p151 = scmp.eq.s32.totalorder %s25, 1
      %p152 = por %p150, %p151
      %p154 = scmp.ne.s32.totalorder %s137, %s153
      %p155 = scmp.eq.s32.totalorder %s25, 0
      %p156 = por %p154, %p155
      %s157 = ssub.s32 %s19, %s26
      %p158 = scmp.eq.s32.totalorder %s157, 0
      %s160 = sadd.s32 %s159, 1
      %s161 = scalar_select %p158, %s159, %s160
      %p164 = pneg %p158
      %p165 = scmp.eq.s32.totalorder %s19, 1
      %p166 = por %p164, %p165
      %p167 = scmp.ne.s32.totalorder %s159, %s162
      %p168 = scmp.eq.s32.totalorder %s19, 0
      %p169 = por %p167, %p168
      %p170 = scmp.ne.s32.totalorder %s159, %s162
      %p171 = scmp.eq.s32.totalorder %s24, 1
      %p172 = por %p170, %p171
      %p173 = scmp.ne.s32.totalorder %s162, %s163
      %p174 = scmp.eq.s32.totalorder %s24, 0
      %p175 = por %p173, %p174
      %p176 = scmp.ne.s32.totalorder %s162, %s163
      %p177 = scmp.eq.s32.totalorder %s25, 1
      %p178 = por %p176, %p177
      %p180 = scmp.ne.s32.totalorder %s163, %s179
      %p181 = scmp.eq.s32.totalorder %s25, 0
      %p182 = por %p180, %p181
      %s184 = sadd.s32 %s183, 1
      %p187 = scmp.eq.s32.totalorder %s19, 1
      %p188 = scmp.ne.s32.totalorder %s183, %s185
      %p189 = scmp.eq.s32.totalorder %s19, 0
      %p190 = por %p188, %p189
      %p191 = scmp.ne.s32.totalorder %s183, %s185
      %p192 = scmp.eq.s32.totalorder %s24, 1
      %p193 = por %p191, %p192
      %p194 = scmp.ne.s32.totalorder %s185, %s186
      %p195 = scmp.eq.s32.totalorder %s24, 0
      %p196 = por %p194, %p195
      %p197 = scmp.ne.s32.totalorder %s185, %s186
      %p198 = scmp.eq.s32.totalorder %s25, 1
      %p199 = por %p197, %p198
      %p201 = scmp.ne.s32.totalorder %s186, %s200
      %p202 = scmp.eq.s32.totalorder %s25, 0
      %p203 = por %p201, %p202
      %s204 = ssub.s32 %s19, %s26
      %p205 = scmp.eq.s32.totalorder %s204, 0
      %s207 = sadd.s32 %s206, 1
      %s208 = scalar_select %p205, %s206, %s207
      %p211 = pneg %p205
      %p212 = scmp.eq.s32.totalorder %s19, 1
      %p213 = por %p211, %p212
      %p214 = scmp.ne.s32.totalorder %s206, %s209
      %p215 = scmp.eq.s32.totalorder %s19, 0
      %p216 = por %p214, %p215
      %p217 = scmp.ne.s32.totalorder %s206, %s209
      %p218 = scmp.eq.s32.totalorder %s24, 1
      %p219 = por %p217, %p218
      %p220 = scmp.ne.s32.totalorder %s209, %s210
      %p221 = scmp.eq.s32.totalorder %s24, 0
      %p222 = por %p220, %p221
      %p223 = scmp.ne.s32.totalorder %s209, %s210
      %p224 = scmp.eq.s32.totalorder %s25, 1
      %p225 = por %p223, %p224
      %p227 = scmp.ne.s32.totalorder %s210, %s226
      %p228 = scmp.eq.s32.totalorder %s25, 0
      %p229 = por %p227, %p228
      %s230 = ssub.s32 %s19, %s26
      %p231 = scmp.eq.s32.totalorder %s230, 0
      %s233 = sadd.s32 %s232, 1
      %s234 = scalar_select %p231, %s232, %s233
      %p237 = pneg %p231
      %p238 = scmp.eq.s32.totalorder %s19, 1
      %p239 = por %p237, %p238
      %p240 = scmp.ne.s32.totalorder %s232, %s235
      %p241 = scmp.eq.s32.totalorder %s19, 0
      %p242 = por %p240, %p241
      %p243 = scmp.ne.s32.totalorder %s232, %s235
      %p244 = scmp.eq.s32.totalorder %s24, 1
      %p245 = por %p243, %p244
      %p246 = scmp.ne.s32.totalorder %s235, %s236
      %p247 = scmp.eq.s32.totalorder %s24, 0
      %p248 = por %p246, %p247
      %p249 = scmp.ne.s32.totalorder %s235, %s236
      %p250 = scmp.eq.s32.totalorder %s25, 1
      %p251 = por %p249, %p250
      %p253 = scmp.ne.s32.totalorder %s236, %s252
      %p254 = scmp.eq.s32.totalorder %s25, 0
      %p255 = por %p253, %p254
      %s256 = ssub.s32 %s19, %s26
      %p257 = scmp.eq.s32.totalorder %s256, 0
      %s259 = sadd.s32 %s258, 1
      %s260 = scalar_select %p257, %s258, %s259
      %p263 = pneg %p257
      %p264 = scmp.eq.s32.totalorder %s19, 1
      %p265 = por %p263, %p264
      %p266 = scmp.ne.s32.totalorder %s258, %s261
      %p267 = scmp.eq.s32.totalorder %s19, 0
      %p268 = por %p266, %p267
      %p269 = scmp.ne.s32.totalorder %s258, %s261
      %p270 = scmp.eq.s32.totalorder %s24, 1
      %p271 = por %p269, %p270
      %p272 = scmp.ne.s32.totalorder %s261, %s262
      %p273 = scmp.eq.s32.totalorder %s24, 0
      %p274 = por %p272, %p273
      %p275 = scmp.ne.s32.totalorder %s261, %s262
      %p276 = scmp.eq.s32.totalorder %s25, 1
      %p277 = por %p275, %p276
      %p279 = scmp.ne.s32.totalorder %s262, %s278
      %p280 = scmp.eq.s32.totalorder %s25, 0
      %p281 = por %p279, %p280
      %p282 = scmp.le.s32.totalorder 1, %s19
      %p283 = scmp.lt.s32.totalorder %s19, 3
      %p284 = pnand %p282, %p283
      %p285 = pneg %p284
      // Predicated region
      $region9: #{forward.5} parent=5 // pred_check
        _
      $region10: #{forward.5} parent=5 // pred_check_branch
        %287 = sbr.rel (%p284) target = $region12
      $region11: #{forward.5} parent=5 // pred_region
        %s288 = ssub.s32 %s19, 1
        // Predicated region
        $region13: #{forward.5} parent=11 // pred_check
          %p289 = pneg %p196
        $region14: #{forward.5} parent=11 // pred_check_branch
          %291 = sbr.rel (%p289) target = $region16
        $region15: #{forward.5} parent=11 // pred_region
          _
        $region16: #{forward.5} parent=11 // pred_fallthru
          _
      $region12: #{forward.5} parent=5 // pred_fallthru
        _
      %p292 = scmp.lt.s32.totalorder %s19, 2
      // Predicated region
      $region17: #{forward.5} parent=5 // pred_check
        %p293 = pneg %p292
      $region18: #{forward.5} parent=5 // pred_check_branch
        %295 = sbr.rel (%p293) target = $region20
      $region19: #{forward.5} parent=5 // pred_region
        // Predicated region
        $region21: #{forward.5} parent=19 // pred_check
          %p296 = pneg %p39
        $region22: #{forward.5} parent=19 // pred_check_branch
          %298 = sbr.rel (%p296) target = $region24
        $region23: #{forward.5} parent=19 // pred_region
          %p299 = scmp.lt.s32.totalorder %s19, 1
          %s300 = scalar_select %p299, %s19, 1
          %s301 = smul.addr %s300, 8
          %s302 = scalar_lea.vmem %s0, %s301
        $region24: #{forward.5} parent=19 // pred_fallthru
          _
        // Predicated region
        $region25: #{forward.5} parent=19 // pred_check
          %p303 = pneg %p65
        $region26: #{forward.5} parent=19 // pred_check_branch
          %305 = sbr.rel (%p303) target = $region28
        $region27: #{forward.5} parent=19 // pred_region
          %p306 = scmp.lt.s32.totalorder %s19, 1
          %s307 = scalar_select %p306, %s19, 1
          %s308 = scalar_lea.vmem %s1, %s307
        $region28: #{forward.5} parent=19 // pred_fallthru
          _
        // Predicated region
        $region29: #{forward.5} parent=19 // pred_check
          %p309 = pneg %p91
        $region30: #{forward.5} parent=19 // pred_check_branch
          %311 = sbr.rel (%p309) target = $region32
        $region31: #{forward.5} parent=19 // pred_region
          %p312 = scmp.lt.s32.totalorder %s19, 1
          %s313 = scalar_select %p312, %s19, 1
          %s314 = smul.addr %s313, 8
          %s315 = scalar_lea.vmem %s2, %s314
        $region32: #{forward.5} parent=19 // pred_fallthru
          _
        // Predicated region
        $region33: #{forward.5} parent=19 // pred_check
          %p316 = pneg %p117
        $region34: #{forward.5} parent=19 // pred_check_branch
          %318 = sbr.rel (%p316) target = $region36
        $region35: #{forward.5} parent=19 // pred_region
          %p319 = scmp.lt.s32.totalorder %s19, 1
          %s320 = scalar_select %p319, %s19, 1
          %s321 = scalar_lea.vmem %s3, %s320
        $region36: #{forward.5} parent=19 // pred_fallthru
          _
        // Predicated region
        $region37: #{forward.5} parent=19 // pred_check
          %p322 = pneg %p143
        $region38: #{forward.5} parent=19 // pred_check_branch
          %324 = sbr.rel (%p322) target = $region40
        $region39: #{forward.5} parent=19 // pred_region
          %p325 = scmp.lt.s32.totalorder %s19, 1
          %s326 = scalar_select %p325, %s19, 1
          %s327 = smul.addr %s326, 8
          %s328 = smul.addr %s327, 8
          %s329 = scalar_lea.vmem %s4, %s328
        $region40: #{forward.5} parent=19 // pred_fallthru
          _
        // Predicated region
        $region41: #{forward.5} parent=19 // pred_check
          %p330 = pneg %p169
        $region42: #{forward.5} parent=19 // pred_check_branch
          %332 = sbr.rel (%p330) target = $region44
        $region43: #{forward.5} parent=19 // pred_region
          %p333 = scmp.lt.s32.totalorder %s19, 1
          %s334 = scalar_select %p333, %s19, 1
          %s335 = smul.addr %s334, 8
          %s336 = scalar_lea.vmem %s5, %s335
        $region44: #{forward.5} parent=19 // pred_fallthru
          _
      $region20: #{forward.5} parent=5 // pred_fallthru
        _
      %p337 = scmp.le.s32.totalorder 1, %s19
      %p338 = scmp.lt.s32.totalorder %s19, 3
      %p339 = pnand %p337, %p338
      %p340 = pneg %p339
      // Predicated region
      $region45: #{forward.5} parent=5 // pred_check
        _
      $region46: #{forward.5} parent=5 // pred_check_branch
        %342 = sbr.rel (%p339) target = $region48
      $region47: #{forward.5} parent=5 // pred_region
        %s343 = ssub.s32 %s19, 1
        %p344 = scmp.lt.s32.totalorder %s24, 1
        %s345 = scalar_select %p344, %s24, 1
        %s346 = smul.addr %s345, 8
        %s347 = scalar_lea.vmem %s0, %s346
        %p348 = pneg %p45
        %p349 = pneg %p42
        %p350 = scmp.lt.s32.totalorder %s24, 1
        %s351 = scalar_select %p350, %s24, 1
        %s352 = scalar_lea.vmem %s1, %s351
        %p353 = pneg %p71
        %p354 = pneg %p68
        %p355 = scmp.lt.s32.totalorder %s24, 1
        %s356 = scalar_select %p355, %s24, 1
        %s357 = smul.addr %s356, 8
        %s358 = scalar_lea.vmem %s2, %s357
        %p359 = pneg %p97
        %p360 = pneg %p94
        %p361 = scmp.lt.s32.totalorder %s24, 1
        %s362 = scalar_select %p361, %s24, 1
        %s363 = scalar_lea.vmem %s3, %s362
        %p364 = pneg %p123
        %p365 = pneg %p120
        %p366 = scmp.lt.s32.totalorder %s24, 1
        %s367 = scalar_select %p366, %s24, 1
        %s368 = smul.addr %s367, 8
        %s369 = smul.addr %s368, 8
        %s370 = scalar_lea.vmem %s4, %s369
        %p371 = pneg %p149
        %p372 = pneg %p146
        %p373 = scmp.lt.s32.totalorder %s24, 1
        %s374 = scalar_select %p373, %s24, 1
        %s375 = smul.addr %s374, 8
        %s376 = scalar_lea.vmem %s5, %s375
        %p377 = pneg %p175
        %p378 = pneg %p172
        %p379 = pneg %p196
        %p380 = pneg %p193
        %p381 = pneg %p222
        %p382 = pneg %p219
        %p383 = scmp.lt.s32.totalorder %s24, 1
        %s384 = scalar_select %p383, %s24, 1
        %s385 = smul.addr %s384, 8
        %s386 = scalar_lea.vmem %s7, %s385
        %p387 = pneg %p248
        %p388 = pneg %p245
        %p389 = scmp.lt.s32.totalorder %s24, 1
        %s390 = scalar_select %p389, %s24, 1
        %s391 = smul.addr %s390, 8
        %s392 = smul.addr %s391, 8
        %s393 = scalar_lea.vmem %s8, %s392
        %p394 = pneg %p274
        %p395 = pneg %p271
        %s396 = sand.u32 %s261, 1
        %s397 = scalar_lea.sflag [#allocation3], %s396
        %s398 = sand.u32 %s261, 1
        %s399 = scalar_lea.vmem [#allocation2], %s398
        %p400 = scmp.lt.s32.totalorder %s24, 1
        %s401 = scalar_select %p400, %s24, 1
        %s402 = smul.addr %s401, 8
        %s403 = scalar_lea.vmem %s0, %s402
        %p404 = scmp.lt.s32.totalorder %s24, 1
        %s405 = scalar_select %p404, %s24, 1
        %s406 = scalar_lea.vmem %s1, %s405
        %p407 = scmp.lt.s32.totalorder %s24, 1
        %s408 = scalar_select %p407, %s24, 1
        %s409 = smul.addr %s408, 8
        %s410 = scalar_lea.vmem %s2, %s409
        %p411 = scmp.lt.s32.totalorder %s24, 1
        %s412 = scalar_select %p411, %s24, 1
        %s413 = scalar_lea.vmem %s3, %s412
        %p414 = scmp.lt.s32.totalorder %s24, 1
        %s415 = scalar_select %p414, %s24, 1
        %s416 = smul.addr %s415, 8
        %s417 = smul.addr %s416, 8
        %s418 = scalar_lea.vmem %s4, %s417
        %p419 = scmp.lt.s32.totalorder %s24, 1
        %s420 = scalar_select %p419, %s24, 1
        %s421 = smul.addr %s420, 8
        %s422 = scalar_lea.vmem %s5, %s421
        %p423 = scmp.lt.s32.totalorder %s24, 1
        %s424 = scalar_select %p423, %s24, 1
        %s425 = smul.addr %s424, 8
        %s426 = scalar_lea.vmem %s7, %s425
        %p427 = scmp.lt.s32.totalorder %s24, 1
        %s428 = scalar_select %p427, %s24, 1
        %s429 = smul.addr %s428, 8
        %s430 = smul.addr %s429, 8
        %s431 = scalar_lea.vmem %s8, %s430
        %v432 = vld [vmem:[%s422] sm:$0xff]
        %v434 = vcombine.high %v432, %v432
        %v436 = vunpack.c.l.s4 1966171168
        %v437 = vunpack.c.0.s8 %v436
        %v438 = vlaneseq
        %v439 = vshrl.u32 %v438, 7
        %v440 = vsub.s32 %v437, %v439
        %v441 = vrot.slane %v432, %v440
        %v443 = vunpack.c.l.s4 1966171168
        %v444 = vunpack.c.0.s8 %v443
        %v445 = vlaneseq
        %v446 = vshrl.u32 %v445, 7
        %v447 = vsub.s32 %v444, %v446
        %v448 = vrot.slane %v434, %v447
        %v449 = vcombine.high %v441, %v441
        %v450 = vcombine.high %v448, %v448
        %v452 = vunpack.c.l.s4 1966171168
        %v453 = vunpack.c.0.s8 %v452
        %v454 = vlaneseq
        %v455 = vshrl.u32 %v454, 7
        %v456 = vsub.s32 %v453, %v455
        %v457 = vrot.slane %v441, %v456
        %v459 = vunpack.c.l.s4 1966171168
        %v460 = vunpack.c.0.s8 %v459
        %v461 = vlaneseq
        %v462 = vshrl.u32 %v461, 7
        %v463 = vsub.s32 %v460, %v462
        %v464 = vrot.slane %v448, %v463
        %v466 = vunpack.c.l.s4 1966171168
        %v467 = vunpack.c.0.s8 %v466
        %v468 = vlaneseq
        %v469 = vshrl.u32 %v468, 7
        %v470 = vsub.s32 %v467, %v469
        %v471 = vrot.slane %v449, %v470
        %v473 = vunpack.c.l.s4 1966171168
        %v474 = vunpack.c.0.s8 %v473
        %v475 = vlaneseq
        %v476 = vshrl.u32 %v475, 7
        %v477 = vsub.s32 %v474, %v476
        %v478 = vrot.slane %v450, %v477
        %v479 = vcombine.high %v457, %v457
        %v480 = vcombine.high %v464, %v464
        %v481 = vcombine.high %v471, %v471
        %v482 = vcombine.high %v478, %v478
        %v483 = vlaneseq
        %v484 = vshrl.u32 %v483, 7
        %v485 = vsub.s32 0, %v484
        %v486 = vrot.slane %v457, %v485
        %v487 = vlaneseq
        %v488 = vshrl.u32 %v487, 7
        %v489 = vsub.s32 0, %v488
        %v490 = vrot.slane %v471, %v489
        %v491 = vlaneseq
        %v492 = vshrl.u32 %v491, 7
        %v493 = vsub.s32 0, %v492
        %v494 = vrot.slane %v479, %v493
        %v495 = vlaneseq
        %v496 = vshrl.u32 %v495, 7
        %v497 = vsub.s32 0, %v496
        %v498 = vrot.slane %v481, %v497
        %v499 = vlaneseq
        %v500 = vshrl.u32 %v499, 7
        %v501 = vsub.s32 0, %v500
        %v502 = vrot.slane %v464, %v501
        %v503 = vlaneseq
        %v504 = vshrl.u32 %v503, 7
        %v505 = vsub.s32 0, %v504
        %v506 = vrot.slane %v478, %v505
        %v507 = vlaneseq
        %v508 = vshrl.u32 %v507, 7
        %v509 = vsub.s32 0, %v508
        %v510 = vrot.slane %v480, %v509
        %v511 = vlaneseq
        %v512 = vshrl.u32 %v511, 7
        %v513 = vsub.s32 0, %v512
        %v514 = vrot.slane %v482, %v513
        %v523 = vmul.f32 %v486, %v432
        %v524 = vmul.f32 %v490, %v432
        %v525 = vmul.f32 %v494, %v432
        %v526 = vmul.f32 %v498, %v432
        %v527 = vmul.f32 %v502, %v432
        %v528 = vmul.f32 %v506, %v432
        %v529 = vmul.f32 %v510, %v432
        %v530 = vmul.f32 %v514, %v432
        %v531 = vld [vmem:[%s403] sm:$0xff]
        %v532 = vld [vmem:[%s406] sm:$0x1]
        %v533 = vld [vmem:[%s6] sm:$0xff]
        %v534 = vld [vmem:[%s6 + $0x8] sm:$0xff]
        %v535 = vld [vmem:[%s6 + $0x10] sm:$0xff]
        %v536 = vld [vmem:[%s6 + $0x18] sm:$0xff]
        %v537 = vld [vmem:[%s6 + $0x20] sm:$0x1]
        %v538 = vlaneseq
        %v539 = vshrl.u32 %v538, 7
        %v540 = vsub.s32 0, %v539
        %v541 = vrot.slane %v537, %v540
        %vm542 = vcmask 261120
        %v544 = vsel %vm542, %v531, 0
        %546 = vmatprep.subr.mxu0 0.0
        %547 = vmatpush1.msra.mxu0 %v533
        %548 = vmatprep.subr.mxu0 0.0
        %549 = vmatpush1.msra.mxu0 %v534
        %550 = vmatprep.subr.mxu0 0.0
        %551 = vmatpush1.msra.mxu0 %v535
        %552 = vmatprep.subr.mxu0 0.0
        %553 = vmatpush1.msra.mxu0 %v536
        %554 = vmatprep.subr.mxu0 0.0
        %555 = vmatpush1.msra.mxu0 0.0
        %556 = vmatprep.subr.mxu0 0.0
        %557 = vmatpush1.msra.mxu0 0.0
        %558 = vmatprep.subr.mxu0 0.0
        %559 = vmatpush1.msra.mxu0 0.0
        %560 = vmatprep.subr.mxu0 0.0
        %561 = vmatpush1.msra.mxu0 0.0
        %562 = vmatprep.subr.mxu0 0.0
        %563 = vmatpush1.msra.mxu0 0.0
        %564 = vmatprep.subr.mxu0 0.0
        %565 = vmatpush1.msra.mxu0 0.0
        %566 = vmatprep.subr.mxu0 0.0
        %567 = vmatpush1.msra.mxu0 0.0
        %568 = vmatprep.subr.mxu0 0.0
        %569 = vmatpush1.msra.mxu0 0.0
        %570 = vmatprep.subr.mxu0 0.0
        %571 = vmatpush1.msra.mxu0 0.0
        %572 = vmatprep.subr.mxu0 0.0
        %573 = vmatpush1.msra.mxu0 0.0
        %574 = vmatprep.subr.mxu0 0.0
        %575 = vmatpush1.msra.mxu0 0.0
        %576 = vmatprep.subr.mxu0 0.0
        %577 = vmatpush1.msra.mxu0 0.0
        %578 = vmatprep.subr.mxu0 0.0
        %579 = vmatpush1.msra.mxu0 0.0
        %580 = vmatprep.subr.mxu0 0.0
        %581 = vmatpush1.msra.mxu0 0.0
        %582 = vmatprep.subr.mxu0 0.0
        %583 = vmatpush1.msra.mxu0 0.0
        %584 = vmatprep.subr.mxu0 0.0
        %585 = vmatpush1.msra.mxu0 0.0
        %586 = vmatprep.subr.mxu0 0.0
        %587 = vmatpush1.msra.mxu0 0.0
        %588 = vmatprep.subr.mxu0 0.0
        %589 = vmatpush1.msra.mxu0 0.0
        %590 = vmatprep.subr.mxu0 0.0
        %591 = vmatpush1.msra.mxu0 0.0
        %592 = vmatprep.subr.mxu0 0.0
        %593 = vmatpush1.msra.mxu0 0.0
        %594 = vmatprep.subr.mxu0 0.0
        %595 = vmatpush1.msra.mxu0 0.0
        %596 = vmatprep.subr.mxu0 0.0
        %597 = vmatpush1.msra.mxu0 0.0
        %598 = vmatprep.subr.mxu0 0.0
        %599 = vmatpush1.msra.mxu0 0.0
        %600 = vmatprep.subr.mxu0 0.0
        %601 = vmatpush1.msra.mxu0 0.0
        %602 = vmatprep.subr.mxu0 0.0
        %603 = vmatpush1.msra.mxu0 0.0
        %604 = vmatprep.subr.mxu0 0.0
        %605 = vmatpush1.msra.mxu0 0.0
        %606 = vmatprep.subr.mxu0 0.0
        %607 = vmatpush1.msra.mxu0 0.0
        %608 = vmatprep.subr.mxu0 0.0
        %609 = vmatpush1.msra.mxu0 0.0
        %610 = vmatprep.mubr.f32.mxu0 0.0
        %611 = vmatmul.mubr.f32.gmra.mrb[0].mxu0 %v544
        %v612 = vpop.f32.mrb[0].mxu0
        %v613 = vadd.f32 %v541, %v612
        %v614 = vpop.f32.mrb[0].mxu0
        %615 = vdwg.mxu0
        %v616 = vmax.f32 %v613, 0.0
        %v617 = vld [vmem:[%s6 + $0x28] sm:$0xff]
        %v618 = vld [vmem:[%s6 + $0x30] sm:$0xff]
        %v619 = vld [vmem:[%s6 + $0x38] sm:$0x1]
        %v620 = vlaneseq
        %v621 = vshrl.u32 %v620, 7
        %v622 = vsub.s32 0, %v621
        %v623 = vrot.slane %v619, %v622
        %vm624 = vcmask 130048
        %v626 = vsel %vm624, %v616, 0
        %628 = vmatprep.subr.mxu0 0.0
        %629 = vmatpush1.msra.mxu0 %v617
        %630 = vmatprep.subr.mxu0 0.0
        %631 = vmatpush1.msra.mxu0 %v618
        %632 = vmatprep.subr.mxu0 0.0
        %633 = vmatpush1.msra.mxu0 0.0
        %634 = vmatprep.subr.mxu0 0.0
        %635 = vmatpush1.msra.mxu0 0.0
        %636 = vmatprep.subr.mxu0 0.0
        %637 = vmatpush1.msra.mxu0 0.0
        %638 = vmatprep.subr.mxu0 0.0
        %639 = vmatpush1.msra.mxu0 0.0
        %640 = vmatprep.subr.mxu0 0.0
        %641 = vmatpush1.msra.mxu0 0.0
        %642 = vmatprep.subr.mxu0 0.0
        %643 = vmatpush1.msra.mxu0 0.0
        %644 = vmatprep.subr.mxu0 0.0
        %645 = vmatpush1.msra.mxu0 0.0
        %646 = vmatprep.subr.mxu0 0.0
        %647 = vmatpush1.msra.mxu0 0.0
        %648 = vmatprep.subr.mxu0 0.0
        %649 = vmatpush1.msra.mxu0 0.0
        %650 = vmatprep.subr.mxu0 0.0
        %651 = vmatpush1.msra.mxu0 0.0
        %652 = vmatprep.subr.mxu0 0.0
        %653 = vmatpush1.msra.mxu0 0.0
        %654 = vmatprep.subr.mxu0 0.0
        %655 = vmatpush1.msra.mxu0 0.0
        %656 = vmatprep.subr.mxu0 0.0
        %657 = vmatpush1.msra.mxu0 0.0
        %658 = vmatprep.subr.mxu0 0.0
        %659 = vmatpush1.msra.mxu0 0.0
        %660 = vmatprep.subr.mxu0 0.0
        %661 = vmatpush1.msra.mxu0 0.0
        %662 = vmatprep.subr.mxu0 0.0
        %663 = vmatpush1.msra.mxu0 0.0
        %664 = vmatprep.subr.mxu0 0.0
        %665 = vmatpush1.msra.mxu0 0.0
        %666 = vmatprep.subr.mxu0 0.0
        %667 = vmatpush1.msra.mxu0 0.0
        %668 = vmatprep.subr.mxu0 0.0
        %669 = vmatpush1.msra.mxu0 0.0
        %670 = vmatprep.subr.mxu0 0.0
        %671 = vmatpush1.msra.mxu0 0.0
        %672 = vmatprep.subr.mxu0 0.0
        %673 = vmatpush1.msra.mxu0 0.0
        %674 = vmatprep.subr.mxu0 0.0
        %675 = vmatpush1.msra.mxu0 0.0
        %676 = vmatprep.subr.mxu0 0.0
        %677 = vmatpush1.msra.mxu0 0.0
        %678 = vmatprep.subr.mxu0 0.0
        %679 = vmatpush1.msra.mxu0 0.0
        %680 = vmatprep.subr.mxu0 0.0
        %681 = vmatpush1.msra.mxu0 0.0
        %682 = vmatprep.subr.mxu0 0.0
        %683 = vmatpush1.msra.mxu0 0.0
        %684 = vmatprep.subr.mxu0 0.0
        %685 = vmatpush1.msra.mxu0 0.0
        %686 = vmatprep.subr.mxu0 0.0
        %687 = vmatpush1.msra.mxu0 0.0
        %688 = vmatprep.subr.mxu0 0.0
        %689 = vmatpush1.msra.mxu0 0.0
        %690 = vmatprep.subr.mxu0 0.0
        %691 = vmatpush1.msra.mxu0 0.0
        %692 = vmatprep.mubr.f32.mxu0 0.0
        %693 = vmatmul.mubr.f32.gmra.mrb[0].mxu0 %v626
        %v694 = vpop.f32.mrb[0].mxu0
        %v695 = vadd.f32 %v623, %v694
        %v696 = vpop.f32.mrb[0].mxu0
        %697 = vdwg.mxu0
        %v698 = vld [vmem:[%s410] sm:$0xff]
        %v699 = vadd.f32 %v695, %v698
        %700 = vset.pattern.permute.xlu0 0
        %701 = vperm.xlu0 %700, %v432
        %v702 = vpop.permute.xlu0 %701
        %v704 = vmul.f32 %v699, %v702
        %v705 = vld [vmem:[%s6 + $0x40] sm:$0xff]
        %v706 = vld [vmem:[%s6 + $0x48] sm:$0xff]
        %v707 = vld [vmem:[%s6 + $0x50] sm:$0x1]
        %v709 = vsel %vm624, %v532, 0
        %711 = vmatprep.subr.mxu0 0.0
        %712 = vmatpush1.msra.mxu0 %v705
        %713 = vmatprep.subr.mxu0 0.0
        %714 = vmatpush1.msra.mxu0 %v706
        %715 = vmatprep.subr.mxu0 0.0
        %716 = vmatpush1.msra.mxu0 0.0
        %717 = vmatprep.subr.mxu0 0.0
        %718 = vmatpush1.msra.mxu0 0.0
        %719 = vmatprep.subr.mxu0 0.0
        %720 = vmatpush1.msra.mxu0 0.0
        %721 = vmatprep.subr.mxu0 0.0
        %722 = vmatpush1.msra.mxu0 0.0
        %723 = vmatprep.subr.mxu0 0.0
        %724 = vmatpush1.msra.mxu0 0.0
        %725 = vmatprep.subr.mxu0 0.0
        %726 = vmatpush1.msra.mxu0 0.0
        %727 = vmatprep.subr.mxu0 0.0
        %728 = vmatpush1.msra.mxu0 0.0
        %729 = vmatprep.subr.mxu0 0.0
        %730 = vmatpush1.msra.mxu0 0.0
        %731 = vmatprep.subr.mxu0 0.0
        %732 = vmatpush1.msra.mxu0 0.0
        %733 = vmatprep.subr.mxu0 0.0
        %734 = vmatpush1.msra.mxu0 0.0
        %735 = vmatprep.subr.mxu0 0.0
        %736 = vmatpush1.msra.mxu0 0.0
        %737 = vmatprep.subr.mxu0 0.0
        %738 = vmatpush1.msra.mxu0 0.0
        %739 = vmatprep.subr.mxu0 0.0
        %740 = vmatpush1.msra.mxu0 0.0
        %741 = vmatprep.subr.mxu0 0.0
        %742 = vmatpush1.msra.mxu0 0.0
        %743 = vmatprep.subr.mxu0 0.0
        %744 = vmatpush1.msra.mxu0 0.0
        %745 = vmatprep.subr.mxu0 0.0
        %746 = vmatpush1.msra.mxu0 0.0
        %747 = vmatprep.subr.mxu0 0.0
        %748 = vmatpush1.msra.mxu0 0.0
        %749 = vmatprep.subr.mxu0 0.0
        %750 = vmatpush1.msra.mxu0 0.0
        %751 = vmatprep.subr.mxu0 0.0
        %752 = vmatpush1.msra.mxu0 0.0
        %753 = vmatprep.subr.mxu0 0.0
        %754 = vmatpush1.msra.mxu0 0.0
        %755 = vmatprep.subr.mxu0 0.0
        %756 = vmatpush1.msra.mxu0 0.0
        %757 = vmatprep.subr.mxu0 0.0
        %758 = vmatpush1.msra.mxu0 0.0
        %759 = vmatprep.subr.mxu0 0.0
        %760 = vmatpush1.msra.mxu0 0.0
        %761 = vmatprep.subr.mxu0 0.0
        %762 = vmatpush1.msra.mxu0 0.0
        %763 = vmatprep.subr.mxu0 0.0
        %764 = vmatpush1.msra.mxu0 0.0
        %765 = vmatprep.subr.mxu0 0.0
        %766 = vmatpush1.msra.mxu0 0.0
        %767 = vmatprep.subr.mxu0 0.0
        %768 = vmatpush1.msra.mxu0 0.0
        %769 = vmatprep.subr.mxu0 0.0
        %770 = vmatpush1.msra.mxu0 0.0
        %771 = vmatprep.subr.mxu0 0.0
        %772 = vmatpush1.msra.mxu0 0.0
        %773 = vmatprep.subr.mxu0 0.0
        %774 = vmatpush1.msra.mxu0 0.0
        %775 = vmatprep.mubr.f32.mxu0 0.0
        %776 = vmatmul.mubr.f32.gmra.mrb[0].mxu0 %v709
        %v777 = vpop.f32.mrb[0].mxu0
        %v778 = vadd.f32 %v707, %v777
        %v779 = vpop.f32.mrb[0].mxu0
        %780 = vdwg.mxu0
        %v781 = vmax.f32 %v778, 0.0
        %v782 = vld [vmem:[%s6 + $0x58] sm:$0xff]
        %v783 = vld [vmem:[%s6 + $0x60] sm:$0xff]
        %v784 = vld [vmem:[%s6 + $0x68] sm:$0x1]
        %v786 = vsel %vm624, %v781, 0
        %788 = vmatprep.subr.mxu0 0.0
        %789 = vmatpush1.msra.mxu0 %v782
        %790 = vmatprep.subr.mxu0 0.0
        %791 = vmatpush1.msra.mxu0 %v783
        %792 = vmatprep.subr.mxu0 0.0
        %793 = vmatpush1.msra.mxu0 0.0
        %794 = vmatprep.subr.mxu0 0.0
        %795 = vmatpush1.msra.mxu0 0.0
        %796 = vmatprep.subr.mxu0 0.0
        %797 = vmatpush1.msra.mxu0 0.0
        %798 = vmatprep.subr.mxu0 0.0
        %799 = vmatpush1.msra.mxu0 0.0
        %800 = vmatprep.subr.mxu0 0.0
        %801 = vmatpush1.msra.mxu0 0.0
        %802 = vmatprep.subr.mxu0 0.0
        %803 = vmatpush1.msra.mxu0 0.0
        %804 = vmatprep.subr.mxu0 0.0
        %805 = vmatpush1.msra.mxu0 0.0
        %806 = vmatprep.subr.mxu0 0.0
        %807 = vmatpush1.msra.mxu0 0.0
        %808 = vmatprep.subr.mxu0 0.0
        %809 = vmatpush1.msra.mxu0 0.0
        %810 = vmatprep.subr.mxu0 0.0
        %811 = vmatpush1.msra.mxu0 0.0
        %812 = vmatprep.subr.mxu0 0.0
        %813 = vmatpush1.msra.mxu0 0.0
        %814 = vmatprep.subr.mxu0 0.0
        %815 = vmatpush1.msra.mxu0 0.0
        %816 = vmatprep.subr.mxu0 0.0
        %817 = vmatpush1.msra.mxu0 0.0
        %818 = vmatprep.subr.mxu0 0.0
        %819 = vmatpush1.msra.mxu0 0.0
        %820 = vmatprep.subr.mxu0 0.0
        %821 = vmatpush1.msra.mxu0 0.0
        %822 = vmatprep.subr.mxu0 0.0
        %823 = vmatpush1.msra.mxu0 0.0
        %824 = vmatprep.subr.mxu0 0.0
        %825 = vmatpush1.msra.mxu0 0.0
        %826 = vmatprep.subr.mxu0 0.0
        %827 = vmatpush1.msra.mxu0 0.0
        %828 = vmatprep.subr.mxu0 0.0
        %829 = vmatpush1.msra.mxu0 0.0
        %830 = vmatprep.subr.mxu0 0.0
        %831 = vmatpush1.msra.mxu0 0.0
        %832 = vmatprep.subr.mxu0 0.0
        %833 = vmatpush1.msra.mxu0 0.0
        %834 = vmatprep.subr.mxu0 0.0
        %835 = vmatpush1.msra.mxu0 0.0
        %836 = vmatprep.subr.mxu0 0.0
        %837 = vmatpush1.msra.mxu0 0.0
        %838 = vmatprep.subr.mxu0 0.0
        %839 = vmatpush1.msra.mxu0 0.0
        %840 = vmatprep.subr.mxu0 0.0
        %841 = vmatpush1.msra.mxu0 0.0
        %842 = vmatprep.subr.mxu0 0.0
        %843 = vmatpush1.msra.mxu0 0.0
        %844 = vmatprep.subr.mxu0 0.0
        %845 = vmatpush1.msra.mxu0 0.0
        %846 = vmatprep.subr.mxu0 0.0
        %847 = vmatpush1.msra.mxu0 0.0
        %848 = vmatprep.subr.mxu0 0.0
        %849 = vmatpush1.msra.mxu0 0.0
        %850 = vmatprep.subr.mxu0 0.0
        %851 = vmatpush1.msra.mxu0 0.0
        %852 = vmatprep.mubr.f32.mxu0 0.0
        %853 = vmatmul.mubr.f32.gmra.mrb[0].mxu0 %v786
        %v854 = vpop.f32.mrb[0].mxu0
        %v855 = vadd.f32 %v784, %v854
        %v856 = vpop.f32.mrb[0].mxu0
        %857 = vdwg.mxu0
        %v858 = vld [vmem:[%s413] sm:$0x1]
        %v859 = vadd.f32 %v855, %v858
        %v860 = vld [vmem:[%s418] sm:$0xff]
        %v861 = vld [vmem:[%s418 + $0x8] sm:$0xff]
        %v862 = vld [vmem:[%s418 + $0x10] sm:$0xff]
        %v863 = vld [vmem:[%s418 + $0x18] sm:$0xff]
        %v864 = vld [vmem:[%s418 + $0x20] sm:$0xff]
        %v865 = vld [vmem:[%s418 + $0x28] sm:$0xff]
        %v866 = vld [vmem:[%s418 + $0x30] sm:$0xff]
        %v867 = vld [vmem:[%s418 + $0x38] sm:$0xff]
        %869 = vset.pattern.permute.xlu0 0
        %870 = vperm.xlu0 %869, %v523
        %v871 = vpop.permute.xlu0 %870
        %874 = vset.pattern.permute.xlu0 0
        %875 = vperm.xlu0 %874, %v524
        %v876 = vpop.permute.xlu0 %875
        %879 = vset.pattern.permute.xlu0 0
        %880 = vperm.xlu0 %879, %v525
        %v881 = vpop.permute.xlu0 %880
        %884 = vset.pattern.permute.xlu0 0
        %885 = vperm.xlu0 %884, %v526
        %v886 = vpop.permute.xlu0 %885
        %889 = vset.pattern.permute.xlu0 0
        %890 = vperm.xlu0 %889, %v527
        %v891 = vpop.permute.xlu0 %890
        %894 = vset.pattern.permute.xlu0 0
        %895 = vperm.xlu0 %894, %v528
        %v896 = vpop.permute.xlu0 %895
        %899 = vset.pattern.permute.xlu0 0
        %900 = vperm.xlu0 %899, %v529
        %v901 = vpop.permute.xlu0 %900
        %904 = vset.pattern.permute.xlu0 0
        %905 = vperm.xlu0 %904, %v530
        %v906 = vpop.permute.xlu0 %905
        %v908 = vmul.f32 %v860, %v871
        %v909 = vmul.f32 %v861, %v876
        %v910 = vmul.f32 %v862, %v881
        %v911 = vmul.f32 %v863, %v886
        %v912 = vmul.f32 %v864, %v891
        %v913 = vmul.f32 %v865, %v896
        %v914 = vmul.f32 %v866, %v901
        %v915 = vmul.f32 %v867, %v906
        %vm916 = vcmask 48128
        %917 = vst.msk [vmem:[%s426] sm:$0xff] %vm916, %v704
        %vm918 = vcmask 39936
        %919 = vst.msk [vmem:[%s431] sm:$0xff] %vm918, %v908
        %920 = vst.msk [vmem:[%s431 + $0x8] sm:$0xff] %vm918, %v909
        %921 = vst.msk [vmem:[%s431 + $0x10] sm:$0xff] %vm918, %v910
        %922 = vst.msk [vmem:[%s431 + $0x18] sm:$0xff] %vm918, %v911
        %923 = vst.msk [vmem:[%s431 + $0x20] sm:$0xff] %vm918, %v912
        %924 = vst.msk [vmem:[%s431 + $0x28] sm:$0xff] %vm918, %v913
        %925 = vst.msk [vmem:[%s431 + $0x30] sm:$0xff] %vm918, %v914
        %926 = vst.msk [vmem:[%s431 + $0x38] sm:$0xff] %vm918, %v915
        %vm927 = vcmask 24576
        %928 = vst.msk [vmem:[%s399] sm:$0x1] %vm927, %v859
        %p929 = scmp.lt.s32.totalorder %s24, 1
        %s930 = scalar_select %p929, %s24, 1
        %s931 = smul.addr %s930, 8
        %s932 = scalar_lea.vmem %s7, %s931
        %p933 = scmp.lt.s32.totalorder %s24, 1
        %s934 = scalar_select %p933, %s24, 1
        %s935 = smul.addr %s934, 8
        %s936 = smul.addr %s935, 8
        %s937 = scalar_lea.vmem %s8, %s936
        %s938 = sand.u32 %s261, 1
        %s939 = scalar_lea.sflag [#allocation3], %s938
        %s940 = sand.u32 %s261, 1
        %s941 = scalar_lea.vmem [#allocation2], %s940
        // Predicated region
        $region49: #{forward.5} parent=47 // pred_check
          %p942 = pneg %p219
        $region50: #{forward.5} parent=47 // pred_check_branch
          %944 = sbr.rel (%p942) target = $region52
        $region51: #{forward.5} parent=47 // pred_region
          _
        $region52: #{forward.5} parent=47 // pred_fallthru
          _
        // Predicated region
        $region53: #{forward.5} parent=47 // pred_check
          %p945 = pneg %p245
        $region54: #{forward.5} parent=47 // pred_check_branch
          %947 = sbr.rel (%p945) target = $region56
        $region55: #{forward.5} parent=47 // pred_region
          _
        $region56: #{forward.5} parent=47 // pred_fallthru
          _
        // Predicated region
        $region57: #{forward.5} parent=47 // pred_check
          %p948 = pneg %p271
        $region58: #{forward.5} parent=47 // pred_check_branch
          %950 = sbr.rel (%p948) target = $region60
        $region59: #{forward.5} parent=47 // pred_region
          %s952 = ssub.s32 16, 16
          %953 = vsyncadd %s939, %s952
          %s954 = smul.addr %s24, 16
          %s955 = scalar_lea.hbm %s9, %s954
          %s957 = sshll.u32 %s941, 4
          %s958 = int_to_ptr.vmem [resolvable:$true] %s957
          %960 = dma.vmem_to_hbm [thread:$0]  %s958, 16, %s955, %s939
        $region60: #{forward.5} parent=47 // pred_fallthru
          _
      $region48: #{forward.5} parent=5 // pred_fallthru
        _
      %p961 = scmp.le.s32.totalorder 2, %s19
      // Predicated region
      $region61: #{forward.5} parent=5 // pred_check
        %p962 = pneg %p961
      $region62: #{forward.5} parent=5 // pred_check_branch
        %964 = sbr.rel (%p962) target = $region64
      $region63: #{forward.5} parent=5 // pred_region
        %s965 = ssub.s32 %s19, 2
        // Predicated region
        $region65: #{forward.5} parent=63 // pred_check
          %p966 = pneg %p225
        $region66: #{forward.5} parent=63 // pred_check_branch
          %968 = sbr.rel (%p966) target = $region68
        $region67: #{forward.5} parent=63 // pred_region
          %p969 = scmp.lt.s32.totalorder %s25, 1
          %s970 = scalar_select %p969, %s25, 1
          %s971 = smul.addr %s970, 8
          %s972 = scalar_lea.vmem %s7, %s971
        $region68: #{forward.5} parent=63 // pred_fallthru
          _
        // Predicated region
        $region69: #{forward.5} parent=63 // pred_check
          %p973 = pneg %p251
        $region70: #{forward.5} parent=63 // pred_check_branch
          %975 = sbr.rel (%p973) target = $region72
        $region71: #{forward.5} parent=63 // pred_region
          %p976 = scmp.lt.s32.totalorder %s25, 1
          %s977 = scalar_select %p976, %s25, 1
          %s978 = smul.addr %s977, 8
          %s979 = smul.addr %s978, 8
          %s980 = scalar_lea.vmem %s8, %s979
        $region72: #{forward.5} parent=63 // pred_fallthru
          _
        // Predicated region
        $region73: #{forward.5} parent=63 // pred_check
          %p981 = pneg %p277
        $region74: #{forward.5} parent=63 // pred_check_branch
          %983 = sbr.rel (%p981) target = $region76
        $region75: #{forward.5} parent=63 // pred_region
          %s984 = sand.u32 %s262, 1
          %s985 = scalar_lea.sflag [#allocation3], %s984
          %s986 = sand.u32 %s262, 1
          %s987 = scalar_lea.vmem [#allocation2], %s986
          %988 = dma.done %s985, 16
        $region76: #{forward.5} parent=63 // pred_fallthru
          _
      $region64: #{forward.5} parent=5 // pred_fallthru
        _
    $region6: #{forward.5} parent=1 // loop_footer
      %s23 = sadd.s32 1, %s19
    $region7: #{forward.5} parent=1 // loop_footer_branch
      %18 = sbr.rel target = $region3
    $region8: #{forward.5} parent=1 // loop_exit
      _
    %989 = vsyncpa [#allocation3], 1
    %s990 = scalar_lea.sflag [#allocation3], 1
    %991 = vsyncpa %s990, 1

// kernel: forward.3
$region0: #{forward.3}
  #allocation0 [shape = 'u32[]', space=smem, size = 0x4, offset = 0x4, fixed_abs, tag = 'smem constant byte address 0x4 - core index']
  #allocation1 [shape = 'u32[144,128]{1,0:T(1,128)}', space=vmem, size = 0x12000, scoped, tag = 'internal scratch']
  %s0 = inlined_call_operand.vmem [shape: f32[2,8,14], index: 0, kind: input, shape index: {}]
  %s1 = inlined_call_operand.vmem [shape: f32[2,64,5], index: 1, kind: input, shape index: {}]
  %s2 = inlined_call_operand.vmem [shape: f32[2,1,4], index: 2, kind: input, shape index: {}]
  %s3 = inlined_call_operand.vmem [shape: f32[2,8,1], index: 3, kind: input, shape index: {}]
  %s4 = inlined_call_operand.vmem [shape: f32[136,128], index: 4, kind: input, shape index: {}]
  %s5 = inlined_call_operand.vmem [shape: f32[2,8,32], index: 5, kind: output, shape index: {0}]
  %s6 = inlined_call_operand.vmem [shape: f32[2,64,16], index: 6, kind: output, shape index: {1}]
  %s7 = inlined_call_operand.vmem [shape: f32[2,1,16], index: 7, kind: output, shape index: {2}]
  %8 = xla_tuple %s5, %s6, %s7
  %s9 = sld [smem:[#allocation0]]
  $region69: #{forward.3} parent=0
    _
  %s11 = ssub.s32 1, %s9
  %s12 = scalar_select 0, %s11, %s9
  loop: start=0, step=1, limit=4
  $region2: #{forward.3} parent=0 // loop_pre_header
    _
  $region3: #{forward.3} parent=0 // loop_header
    %s14 = sphi 0, %s18
    %p15 = scmp.ge.s32.totalorder %s14, 4
    %s24 = sphi 0, %s26
    %s27 = sphi 0, %s24
    %s28 = sphi 0, %s27
    %s44 = sphi 0, %s28
    %s50 = sphi 0, %s52
    %s53 = sphi 0, %s50
    %s54 = sphi 0, %s53
    %s70 = sphi 0, %s54
    %s76 = sphi 0, %s78
    %s79 = sphi 0, %s76
    %s80 = sphi 0, %s79
    %s96 = sphi 0, %s80
    %s102 = sphi 0, %s104
    %s105 = sphi 0, %s102
    %s106 = sphi 0, %s105
    %s122 = sphi 0, %s106
    %s126 = sphi 0, %s126
    %s128 = sphi 0, %s126
    %s129 = sphi 0, %s128
    %s143 = sphi 0, %s129
    %s149 = sphi 0, %s151
    %s152 = sphi 0, %s149
    %s153 = sphi 0, %s152
    %s169 = sphi 0, %s153
    %s175 = sphi 0, %s177
    %s178 = sphi 0, %s175
    %s179 = sphi 0, %s178
    %s195 = sphi 0, %s179
    %s201 = sphi 0, %s203
    %s204 = sphi 0, %s201
    %s205 = sphi 0, %s204
    %s221 = sphi 0, %s205
  $region4: #{forward.3} parent=0 // loop_header_branch
    %17 = sbr.rel (%p15) target = $region8
  $region5: #{forward.3} parent=0 // loop_body
    %s19 = ssub.s32 %s14, 1
    %s20 = ssub.s32 %s14, 2
    %s21 = sadd.s32 %s14, 1
    %s22 = ssub.s32 %s14, %s21
    %p23 = scmp.eq.s32.totalorder %s22, 0
    %s25 = sadd.s32 %s24, 1
    %s26 = scalar_select %p23, %s24, %s25
    %p29 = pneg %p23
    %p30 = scmp.eq.s32.totalorder %s14, 1
    %p31 = por %p29, %p30
    %p32 = scmp.ne.s32.totalorder %s24, %s27
    %p33 = scmp.eq.s32.totalorder %s14, 0
    %p34 = por %p32, %p33
    %p35 = scmp.ne.s32.totalorder %s24, %s27
    %p36 = scmp.eq.s32.totalorder %s19, 1
    %p37 = por %p35, %p36
    %p38 = scmp.ne.s32.totalorder %s27, %s28
    %p39 = scmp.eq.s32.totalorder %s19, 0
    %p40 = por %p38, %p39
    %p41 = scmp.ne.s32.totalorder %s27, %s28
    %p42 = scmp.eq.s32.totalorder %s20, 1
    %p43 = por %p41, %p42
    %p45 = scmp.ne.s32.totalorder %s28, %s44
    %p46 = scmp.eq.s32.totalorder %s20, 0
    %p47 = por %p45, %p46
    %s48 = ssub.s32 %s14, %s21
    %p49 = scmp.eq.s32.totalorder %s48, 0
    %s51 = sadd.s32 %s50, 1
    %s52 = scalar_select %p49, %s50, %s51
    %p55 = pneg %p49
    %p56 = scmp.eq.s32.totalorder %s14, 1
    %p57 = por %p55, %p56
    %p58 = scmp.ne.s32.totalorder %s50, %s53
    %p59 = scmp.eq.s32.totalorder %s14, 0
    %p60 = por %p58, %p59
    %p61 = scmp.ne.s32.totalorder %s50, %s53
    %p62 = scmp.eq.s32.totalorder %s19, 1
    %p63 = por %p61, %p62
    %p64 = scmp.ne.s32.totalorder %s53, %s54
    %p65 = scmp.eq.s32.totalorder %s19, 0
    %p66 = por %p64, %p65
    %p67 = scmp.ne.s32.totalorder %s53, %s54
    %p68 = scmp.eq.s32.totalorder %s20, 1
    %p69 = por %p67, %p68
    %p71 = scmp.ne.s32.totalorder %s54, %s70
    %p72 = scmp.eq.s32.totalorder %s20, 0
    %p73 = por %p71, %p72
    %s74 = ssub.s32 %s14, %s21
    %p75 = scmp.eq.s32.totalorder %s74, 0
    %s77 = sadd.s32 %s76, 1
    %s78 = scalar_select %p75, %s76, %s77
    %p81 = pneg %p75
    %p82 = scmp.eq.s32.totalorder %s14, 1
    %p83 = por %p81, %p82
    %p84 = scmp.ne.s32.totalorder %s76, %s79
    %p85 = scmp.eq.s32.totalorder %s14, 0
    %p86 = por %p84, %p85
    %p87 = scmp.ne.s32.totalorder %s76, %s79
    %p88 = scmp.eq.s32.totalorder %s19, 1
    %p89 = por %p87, %p88
    %p90 = scmp.ne.s32.totalorder %s79, %s80
    %p91 = scmp.eq.s32.totalorder %s19, 0
    %p92 = por %p90, %p91
    %p93 = scmp.ne.s32.totalorder %s79, %s80
    %p94 = scmp.eq.s32.totalorder %s20, 1
    %p95 = por %p93, %p94
    %p97 = scmp.ne.s32.totalorder %s80, %s96
    %p98 = scmp.eq.s32.totalorder %s20, 0
    %p99 = por %p97, %p98
    %s100 = ssub.s32 %s14, %s21
    %p101 = scmp.eq.s32.totalorder %s100, 0
    %s103 = sadd.s32 %s102, 1
    %s104 = scalar_select %p101, %s102, %s103
    %p107 = pneg %p101
    %p108 = scmp.eq.s32.totalorder %s14, 1
    %p109 = por %p107, %p108
    %p110 = scmp.ne.s32.totalorder %s102, %s105
    %p111 = scmp.eq.s32.totalorder %s14, 0
    %p112 = por %p110, %p111
    %p113 = scmp.ne.s32.totalorder %s102, %s105
    %p114 = scmp.eq.s32.totalorder %s19, 1
    %p115 = por %p113, %p114
    %p116 = scmp.ne.s32.totalorder %s105, %s106
    %p117 = scmp.eq.s32.totalorder %s19, 0
    %p118 = por %p116, %p117
    %p119 = scmp.ne.s32.totalorder %s105, %s106
    %p120 = scmp.eq.s32.totalorder %s20, 1
    %p121 = por %p119, %p120
    %p123 = scmp.ne.s32.totalorder %s106, %s122
    %p124 = scmp.eq.s32.totalorder %s20, 0
    %p125 = por %p123, %p124
    %s127 = sadd.s32 %s126, 1
    %p130 = scmp.eq.s32.totalorder %s14, 1
    %p131 = scmp.ne.s32.totalorder %s126, %s128
    %p132 = scmp.eq.s32.totalorder %s14, 0
    %p133 = por %p131, %p132
    %p134 = scmp.ne.s32.totalorder %s126, %s128
    %p135 = scmp.eq.s32.totalorder %s19, 1
    %p136 = por %p134, %p135
    %p137 = scmp.ne.s32.totalorder %s128, %s129
    %p138 = scmp.eq.s32.totalorder %s19, 0
    %p139 = por %p137, %p138
    %p140 = scmp.ne.s32.totalorder %s128, %s129
    %p141 = scmp.eq.s32.totalorder %s20, 1
    %p142 = por %p140, %p141
    %p144 = scmp.ne.s32.totalorder %s129, %s143
    %p145 = scmp.eq.s32.totalorder %s20, 0
    %p146 = por %p144, %p145
    %s147 = ssub.s32 %s14, %s21
    %p148 = scmp.eq.s32.totalorder %s147, 0
    %s150 = sadd.s32 %s149, 1
    %s151 = scalar_select %p148, %s149, %s150
    %p154 = pneg %p148
    %p155 = scmp.eq.s32.totalorder %s14, 1
    %p156 = por %p154, %p155
    %p157 = scmp.ne.s32.totalorder %s149, %s152
    %p158 = scmp.eq.s32.totalorder %s14, 0
    %p159 = por %p157, %p158
    %p160 = scmp.ne.s32.totalorder %s149, %s152
    %p161 = scmp.eq.s32.totalorder %s19, 1
    %p162 = por %p160, %p161
    %p163 = scmp.ne.s32.totalorder %s152, %s153
    %p164 = scmp.eq.s32.totalorder %s19, 0
    %p165 = por %p163, %p164
    %p166 = scmp.ne.s32.totalorder %s152, %s153
    %p167 = scmp.eq.s32.totalorder %s20, 1
    %p168 = por %p166, %p167
    %p170 = scmp.ne.s32.totalorder %s153, %s169
    %p171 = scmp.eq.s32.totalorder %s20, 0
    %p172 = por %p170, %p171
    %s173 = ssub.s32 %s14, %s21
    %p174 = scmp.eq.s32.totalorder %s173, 0
    %s176 = sadd.s32 %s175, 1
    %s177 = scalar_select %p174, %s175, %s176
    %p180 = pneg %p174
    %p181 = scmp.eq.s32.totalorder %s14, 1
    %p182 = por %p180, %p181
    %p183 = scmp.ne.s32.totalorder %s175, %s178
    %p184 = scmp.eq.s32.totalorder %s14, 0
    %p185 = por %p183, %p184
    %p186 = scmp.ne.s32.totalorder %s175, %s178
    %p187 = scmp.eq.s32.totalorder %s19, 1
    %p188 = por %p186, %p187
    %p189 = scmp.ne.s32.totalorder %s178, %s179
    %p190 = scmp.eq.s32.totalorder %s19, 0
    %p191 = por %p189, %p190
    %p192 = scmp.ne.s32.totalorder %s178, %s179
    %p193 = scmp.eq.s32.totalorder %s20, 1
    %p194 = por %p192, %p193
    %p196 = scmp.ne.s32.totalorder %s179, %s195
    %p197 = scmp.eq.s32.totalorder %s20, 0
    %p198 = por %p196, %p197
    %s199 = ssub.s32 %s14, %s21
    %p200 = scmp.eq.s32.totalorder %s199, 0
    %s202 = sadd.s32 %s201, 1
    %s203 = scalar_select %p200, %s201, %s202
    %p206 = pneg %p200
    %p207 = scmp.eq.s32.totalorder %s14, 1
    %p208 = por %p206, %p207
    %p209 = scmp.ne.s32.totalorder %s201, %s204
    %p210 = scmp.eq.s32.totalorder %s14, 0
    %p211 = por %p209, %p210
    %p212 = scmp.ne.s32.totalorder %s201, %s204
    %p213 = scmp.eq.s32.totalorder %s19, 1
    %p214 = por %p212, %p213
    %p215 = scmp.ne.s32.totalorder %s204, %s205
    %p216 = scmp.eq.s32.totalorder %s19, 0
    %p217 = por %p215, %p216
    %p218 = scmp.ne.s32.totalorder %s204, %s205
    %p219 = scmp.eq.s32.totalorder %s20, 1
    %p220 = por %p218, %p219
    %p222 = scmp.ne.s32.totalorder %s205, %s221
    %p223 = scmp.eq.s32.totalorder %s20, 0
    %p224 = por %p222, %p223
    %p225 = scmp.le.s32.totalorder 1, %s14
    %p226 = scmp.lt.s32.totalorder %s14, 3
    %p227 = pnand %p225, %p226
    %p228 = pneg %p227
    // Predicated region
    $region9: #{forward.3} parent=5 // pred_check
      _
    $region10: #{forward.3} parent=5 // pred_check_branch
      %230 = sbr.rel (%p227) target = $region12
    $region11: #{forward.3} parent=5 // pred_region
      %s231 = ssub.s32 %s14, 1
      // Predicated region
      $region13: #{forward.3} parent=11 // pred_check
        %p232 = pneg %p139
      $region14: #{forward.3} parent=11 // pred_check_branch
        %234 = sbr.rel (%p232) target = $region16
      $region15: #{forward.3} parent=11 // pred_region
        _
      $region16: #{forward.3} parent=11 // pred_fallthru
        _
    $region12: #{forward.3} parent=5 // pred_fallthru
      _
    %p235 = scmp.lt.s32.totalorder %s14, 2
    // Predicated region
    $region17: #{forward.3} parent=5 // pred_check
      %p236 = pneg %p235
    $region18: #{forward.3} parent=5 // pred_check_branch
      %238 = sbr.rel (%p236) target = $region20
    $region19: #{forward.3} parent=5 // pred_region
      // Predicated region
      $region21: #{forward.3} parent=19 // pred_check
        %p239 = pneg %p34
      $region22: #{forward.3} parent=19 // pred_check_branch
        %241 = sbr.rel (%p239) target = $region24
      $region23: #{forward.3} parent=19 // pred_region
        %p242 = scmp.lt.s32.totalorder %s14, 1
        %s243 = scalar_select %p242, %s14, 1
        %s244 = smul.addr %s243, 8
        %s245 = scalar_lea.vmem %s0, %s244
      $region24: #{forward.3} parent=19 // pred_fallthru
        _
      // Predicated region
      $region25: #{forward.3} parent=19 // pred_check
        %p246 = pneg %p60
      $region26: #{forward.3} parent=19 // pred_check_branch
        %248 = sbr.rel (%p246) target = $region28
      $region27: #{forward.3} parent=19 // pred_region
        %p249 = scmp.lt.s32.totalorder %s14, 1
        %s250 = scalar_select %p249, %s14, 1
        %s251 = smul.addr %s250, 8
        %s252 = smul.addr %s251, 8
        %s253 = scalar_lea.vmem %s1, %s252
      $region28: #{forward.3} parent=19 // pred_fallthru
        _
      // Predicated region
      $region29: #{forward.3} parent=19 // pred_check
        %p254 = pneg %p86
      $region30: #{forward.3} parent=19 // pred_check_branch
        %256 = sbr.rel (%p254) target = $region32
      $region31: #{forward.3} parent=19 // pred_region
        %p257 = scmp.lt.s32.totalorder %s14, 1
        %s258 = scalar_select %p257, %s14, 1
        %s259 = scalar_lea.vmem %s2, %s258
      $region32: #{forward.3} parent=19 // pred_fallthru
        _
      // Predicated region
      $region33: #{forward.3} parent=19 // pred_check
        %p260 = pneg %p112
      $region34: #{forward.3} parent=19 // pred_check_branch
        %262 = sbr.rel (%p260) target = $region36
      $region35: #{forward.3} parent=19 // pred_region
        %p263 = scmp.lt.s32.totalorder %s14, 1
        %s264 = scalar_select %p263, %s14, 1
        %s265 = smul.addr %s264, 8
        %s266 = scalar_lea.vmem %s3, %s265
      $region36: #{forward.3} parent=19 // pred_fallthru
        _
    $region20: #{forward.3} parent=5 // pred_fallthru
      _
    %p267 = scmp.le.s32.totalorder 1, %s14
    %p268 = scmp.lt.s32.totalorder %s14, 3
    %p269 = pnand %p267, %p268
    %p270 = pneg %p269
    // Predicated region
    $region37: #{forward.3} parent=5 // pred_check
      _
    $region38: #{forward.3} parent=5 // pred_check_branch
      %272 = sbr.rel (%p269) target = $region40
    $region39: #{forward.3} parent=5 // pred_region
      %s273 = ssub.s32 %s14, 1
      %p274 = scmp.lt.s32.totalorder %s19, 1
      %s275 = scalar_select %p274, %s19, 1
      %s276 = smul.addr %s275, 8
      %s277 = scalar_lea.vmem %s0, %s276
      %p278 = pneg %p40
      %p279 = pneg %p37
      %p280 = scmp.lt.s32.totalorder %s19, 1
      %s281 = scalar_select %p280, %s19, 1
      %s282 = smul.addr %s281, 8
      %s283 = smul.addr %s282, 8
      %s284 = scalar_lea.vmem %s1, %s283
      %p285 = pneg %p66
      %p286 = pneg %p63
      %p287 = scmp.lt.s32.totalorder %s19, 1
      %s288 = scalar_select %p287, %s19, 1
      %s289 = scalar_lea.vmem %s2, %s288
      %p290 = pneg %p92
      %p291 = pneg %p89
      %p292 = scmp.lt.s32.totalorder %s19, 1
      %s293 = scalar_select %p292, %s19, 1
      %s294 = smul.addr %s293, 8
      %s295 = scalar_lea.vmem %s3, %s294
      %p296 = pneg %p118
      %p297 = pneg %p115
      %p298 = pneg %p139
      %p299 = pneg %p136
      %p300 = pneg %p165
      %p301 = pneg %p162
      %p302 = scmp.lt.s32.totalorder %s19, 1
      %s303 = scalar_select %p302, %s19, 1
      %s304 = smul.addr %s303, 8
      %s305 = scalar_lea.vmem %s5, %s304
      %p306 = pneg %p191
      %p307 = pneg %p188
      %p308 = scmp.lt.s32.totalorder %s19, 1
      %s309 = scalar_select %p308, %s19, 1
      %s310 = smul.addr %s309, 8
      %s311 = smul.addr %s310, 8
      %s312 = scalar_lea.vmem %s6, %s311
      %p313 = pneg %p217
      %p314 = pneg %p214
      %p315 = scmp.lt.s32.totalorder %s19, 1
      %s316 = scalar_select %p315, %s19, 1
      %s317 = scalar_lea.vmem %s7, %s316
      %p318 = scmp.lt.s32.totalorder %s19, 1
      %s319 = scalar_select %p318, %s19, 1
      %s320 = smul.addr %s319, 8
      %s321 = scalar_lea.vmem %s0, %s320
      %p322 = scmp.lt.s32.totalorder %s19, 1
      %s323 = scalar_select %p322, %s19, 1
      %s324 = smul.addr %s323, 8
      %s325 = smul.addr %s324, 8
      %s326 = scalar_lea.vmem %s1, %s325
      %p327 = scmp.lt.s32.totalorder %s19, 1
      %s328 = scalar_select %p327, %s19, 1
      %s329 = scalar_lea.vmem %s2, %s328
      %p330 = scmp.lt.s32.totalorder %s19, 1
      %s331 = scalar_select %p330, %s19, 1
      %s332 = smul.addr %s331, 8
      %s333 = scalar_lea.vmem %s3, %s332
      %p334 = scmp.lt.s32.totalorder %s19, 1
      %s335 = scalar_select %p334, %s19, 1
      %s336 = smul.addr %s335, 8
      %s337 = scalar_lea.vmem %s5, %s336
      %p338 = scmp.lt.s32.totalorder %s19, 1
      %s339 = scalar_select %p338, %s19, 1
      %s340 = smul.addr %s339, 8
      %s341 = smul.addr %s340, 8
      %s342 = scalar_lea.vmem %s6, %s341
      %p343 = scmp.lt.s32.totalorder %s19, 1
      %s344 = scalar_select %p343, %s19, 1
      %s345 = scalar_lea.vmem %s7, %s344
      %v346 = vld [vmem:[%s321] sm:$0xff]
      %v347 = vld [vmem:[%s326] sm:$0xff]
      %v348 = vld [vmem:[%s326 + $0x8] sm:$0xff]
      %v349 = vld [vmem:[%s326 + $0x10] sm:$0xff]
      %v350 = vld [vmem:[%s326 + $0x18] sm:$0xff]
      %v351 = vld [vmem:[%s326 + $0x20] sm:$0xff]
      %v352 = vld [vmem:[%s326 + $0x28] sm:$0xff]
      %v353 = vld [vmem:[%s326 + $0x30] sm:$0xff]
      %v354 = vld [vmem:[%s326 + $0x38] sm:$0xff]
      %v355 = vld [vmem:[%s329] sm:$0x1]
      %v356 = vld [vmem:[%s333] sm:$0xff]
      %v358 = vcombine.high %v356, %v356
      %v360 = vunpack.c.l.s4 1966171168
      %v361 = vunpack.c.0.s8 %v360
      %v362 = vlaneseq
      %v363 = vshrl.u32 %v362, 7
      %v364 = vsub.s32 %v361, %v363
      %v365 = vrot.slane %v356, %v364
      %v367 = vunpack.c.l.s4 1966171168
      %v368 = vunpack.c.0.s8 %v367
      %v369 = vlaneseq
      %v370 = vshrl.u32 %v369, 7
      %v371 = vsub.s32 %v368, %v370
      %v372 = vrot.slane %v358, %v371
      %v373 = vcombine.high %v365, %v365
      %v374 = vcombine.high %v372, %v372
      %v376 = vunpack.c.l.s4 1966171168
      %v377 = vunpack.c.0.s8 %v376
      %v378 = vlaneseq
      %v379 = vshrl.u32 %v378, 7
      %v380 = vsub.s32 %v377, %v379
      %v381 = vrot.slane %v365, %v380
      %v383 = vunpack.c.l.s4 1966171168
      %v384 = vunpack.c.0.s8 %v383
      %v385 = vlaneseq
      %v386 = vshrl.u32 %v385, 7
      %v387 = vsub.s32 %v384, %v386
      %v388 = vrot.slane %v372, %v387
      %v390 = vunpack.c.l.s4 1966171168
      %v391 = vunpack.c.0.s8 %v390
      %v392 = vlaneseq
      %v393 = vshrl.u32 %v392, 7
      %v394 = vsub.s32 %v391, %v393
      %v395 = vrot.slane %v373, %v394
      %v397 = vunpack.c.l.s4 1966171168
      %v398 = vunpack.c.0.s8 %v397
      %v399 = vlaneseq
      %v400 = vshrl.u32 %v399, 7
      %v401 = vsub.s32 %v398, %v400
      %v402 = vrot.slane %v374, %v401
      %v403 = vcombine.high %v381, %v381
      %v404 = vcombine.high %v388, %v388
      %v405 = vcombine.high %v395, %v395
      %v406 = vcombine.high %v402, %v402
      %v407 = vlaneseq
      %v408 = vshrl.u32 %v407, 7
      %v409 = vsub.s32 0, %v408
      %v410 = vrot.slane %v381, %v409
      %v411 = vlaneseq
      %v412 = vshrl.u32 %v411, 7
      %v413 = vsub.s32 0, %v412
      %v414 = vrot.slane %v395, %v413
      %v415 = vlaneseq
      %v416 = vshrl.u32 %v415, 7
      %v417 = vsub.s32 0, %v416
      %v418 = vrot.slane %v403, %v417
      %v419 = vlaneseq
      %v420 = vshrl.u32 %v419, 7
      %v421 = vsub.s32 0, %v420
      %v422 = vrot.slane %v405, %v421
      %v423 = vlaneseq
      %v424 = vshrl.u32 %v423, 7
      %v425 = vsub.s32 0, %v424
      %v426 = vrot.slane %v388, %v425
      %v427 = vlaneseq
      %v428 = vshrl.u32 %v427, 7
      %v429 = vsub.s32 0, %v428
      %v430 = vrot.slane %v402, %v429
      %v431 = vlaneseq
      %v432 = vshrl.u32 %v431, 7
      %v433 = vsub.s32 0, %v432
      %v434 = vrot.slane %v404, %v433
      %v435 = vlaneseq
      %v436 = vshrl.u32 %v435, 7
      %v437 = vsub.s32 0, %v436
      %v438 = vrot.slane %v406, %v437
      %v447 = vmul.f32 %v410, %v356
      %v448 = vmul.f32 %v414, %v356
      %v449 = vmul.f32 %v418, %v356
      %v450 = vmul.f32 %v422, %v356
      %v451 = vmul.f32 %v426, %v356
      %v452 = vmul.f32 %v430, %v356
      %v453 = vmul.f32 %v434, %v356
      %v454 = vmul.f32 %v438, %v356
      %v455 = vld [vmem:[%s4] sm:$0xff]
      %v456 = vld [vmem:[%s4 + $0x8] sm:$0x3f]
      %v457 = vld [vmem:[%s4 + $0x10] sm:$0x1]
      %v458 = vlaneseq
      %v459 = vshrl.u32 %v458, 7
      %v460 = vsub.s32 0, %v459
      %v461 = vrot.slane %v457, %v460
      %vm462 = vcmask 113664
      %v464 = vsel %vm462, %v346, 0
      %vm466 = vcmask 1045504
      %v468 = vsel %vm466, %v456, 0
      %470 = vmatprep.subr.mxu0 0.0
      %471 = vmatpush1.msra.mxu0 %v455
      %472 = vmatprep.subr.mxu0 0.0
      %473 = vmatpush1.msra.mxu0 %v468
      %474 = vmatprep.subr.mxu0 0.0
      %475 = vmatpush1.msra.mxu0 0.0
      %476 = vmatprep.subr.mxu0 0.0
      %477 = vmatpush1.msra.mxu0 0.0
      %478 = vmatprep.subr.mxu0 0.0
      %479 = vmatpush1.msra.mxu0 0.0
      %480 = vmatprep.subr.mxu0 0.0
      %481 = vmatpush1.msra.mxu0 0.0
      %482 = vmatprep.subr.mxu0 0.0
      %483 = vmatpush1.msra.mxu0 0.0
      %484 = vmatprep.subr.mxu0 0.0
      %485 = vmatpush1.msra.mxu0 0.0
      %486 = vmatprep.subr.mxu0 0.0
      %487 = vmatpush1.msra.mxu0 0.0
      %488 = vmatprep.subr.mxu0 0.0
      %489 = vmatpush1.msra.mxu0 0.0
      %490 = vmatprep.subr.mxu0 0.0
      %491 = vmatpush1.msra.mxu0 0.0
      %492 = vmatprep.subr.mxu0 0.0
      %493 = vmatpush1.msra.mxu0 0.0
      %494 = vmatprep.subr.mxu0 0.0
      %495 = vmatpush1.msra.mxu0 0.0
      %496 = vmatprep.subr.mxu0 0.0
      %497 = vmatpush1.msra.mxu0 0.0
      %498 = vmatprep.subr.mxu0 0.0
      %499 = vmatpush1.msra.mxu0 0.0
      %500 = vmatprep.subr.mxu0 0.0
      %501 = vmatpush1.msra.mxu0 0.0
      %502 = vmatprep.subr.mxu0 0.0
      %503 = vmatpush1.msra.mxu0 0.0
      %504 = vmatprep.subr.mxu0 0.0
      %505 = vmatpush1.msra.mxu0 0.0
      %506 = vmatprep.subr.mxu0 0.0
      %507 = vmatpush1.msra.mxu0 0.0
      %508 = vmatprep.subr.mxu0 0.0
      %509 = vmatpush1.msra.mxu0 0.0
      %510 = vmatprep.subr.mxu0 0.0
      %511 = vmatpush1.msra.mxu0 0.0
      %512 = vmatprep.subr.mxu0 0.0
      %513 = vmatpush1.msra.mxu0 0.0
      %514 = vmatprep.subr.mxu0 0.0
      %515 = vmatpush1.msra.mxu0 0.0
      %516 = vmatprep.subr.mxu0 0.0
      %517 = vmatpush1.msra.mxu0 0.0
      %518 = vmatprep.subr.mxu0 0.0
      %519 = vmatpush1.msra.mxu0 0.0
      %520 = vmatprep.subr.mxu0 0.0
      %521 = vmatpush1.msra.mxu0 0.0
      %522 = vmatprep.subr.mxu0 0.0
      %523 = vmatpush1.msra.mxu0 0.0
      %524 = vmatprep.subr.mxu0 0.0
      %525 = vmatpush1.msra.mxu0 0.0
      %526 = vmatprep.subr.mxu0 0.0
      %527 = vmatpush1.msra.mxu0 0.0
      %528 = vmatprep.subr.mxu0 0.0
      %529 = vmatpush1.msra.mxu0 0.0
      %530 = vmatprep.subr.mxu0 0.0
      %531 = vmatpush1.msra.mxu0 0.0
      %532 = vmatprep.subr.mxu0 0.0
      %533 = vmatpush1.msra.mxu0 0.0
      %534 = vmatprep.mubr.f32.mxu0 0.0
      %535 = vmatmul.mubr.f32.gmra.mrb[0].mxu0 %v464
      %v536 = vpop.f32.mrb[0].mxu0
      %v537 = vadd.f32 %v461, %v536
      %v538 = vpop.f32.mrb[0].mxu0
      %539 = vdwg.mxu0
      %v540 = vmax.f32 %v537, 0.0
      %v541 = vld [vmem:[%s4 + $0x18] sm:$0xff]
      %v542 = vld [vmem:[%s4 + $0x20] sm:$0xff]
      %v543 = vld [vmem:[%s4 + $0x28] sm:$0xff]
      %v544 = vld [vmem:[%s4 + $0x30] sm:$0x1]
      %v545 = vlaneseq
      %v546 = vshrl.u32 %v545, 7
      %v547 = vsub.s32 0, %v546
      %v548 = vrot.slane %v544, %v547
      %vm549 = vcmask 195584
      %v551 = vsel %vm549, %v540, 0
      %553 = vmatprep.subr.mxu0 0.0
      %554 = vmatpush1.msra.mxu0 %v541
      %555 = vmatprep.subr.mxu0 0.0
      %556 = vmatpush1.msra.mxu0 %v542
      %557 = vmatprep.subr.mxu0 0.0
      %558 = vmatpush1.msra.mxu0 %v543
      %559 = vmatprep.subr.mxu0 0.0
      %560 = vmatpush1.msra.mxu0 0.0
      %561 = vmatprep.subr.mxu0 0.0
      %562 = vmatpush1.msra.mxu0 0.0
      %563 = vmatprep.subr.mxu0 0.0
      %564 = vmatpush1.msra.mxu0 0.0
      %565 = vmatprep.subr.mxu0 0.0
      %566 = vmatpush1.msra.mxu0 0.0
      %567 = vmatprep.subr.mxu0 0.0
      %568 = vmatpush1.msra.mxu0 0.0
      %569 = vmatprep.subr.mxu0 0.0
      %570 = vmatpush1.msra.mxu0 0.0
      %571 = vmatprep.subr.mxu0 0.0
      %572 = vmatpush1.msra.mxu0 0.0
      %573 = vmatprep.subr.mxu0 0.0
      %574 = vmatpush1.msra.mxu0 0.0
      %575 = vmatprep.subr.mxu0 0.0
      %576 = vmatpush1.msra.mxu0 0.0
      %577 = vmatprep.subr.mxu0 0.0
      %578 = vmatpush1.msra.mxu0 0.0
      %579 = vmatprep.subr.mxu0 0.0
      %580 = vmatpush1.msra.mxu0 0.0
      %581 = vmatprep.subr.mxu0 0.0
      %582 = vmatpush1.msra.mxu0 0.0
      %583 = vmatprep.subr.mxu0 0.0
      %584 = vmatpush1.msra.mxu0 0.0
      %585 = vmatprep.subr.mxu0 0.0
      %586 = vmatpush1.msra.mxu0 0.0
      %587 = vmatprep.subr.mxu0 0.0
      %588 = vmatpush1.msra.mxu0 0.0
      %589 = vmatprep.subr.mxu0 0.0
      %590 = vmatpush1.msra.mxu0 0.0
      %591 = vmatprep.subr.mxu0 0.0
      %592 = vmatpush1.msra.mxu0 0.0
      %593 = vmatprep.subr.mxu0 0.0
      %594 = vmatpush1.msra.mxu0 0.0
      %595 = vmatprep.subr.mxu0 0.0
      %596 = vmatpush1.msra.mxu0 0.0
      %597 = vmatprep.subr.mxu0 0.0
      %598 = vmatpush1.msra.mxu0 0.0
      %599 = vmatprep.subr.mxu0 0.0
      %600 = vmatpush1.msra.mxu0 0.0
      %601 = vmatprep.subr.mxu0 0.0
      %602 = vmatpush1.msra.mxu0 0.0
      %603 = vmatprep.subr.mxu0 0.0
      %604 = vmatpush1.msra.mxu0 0.0
      %605 = vmatprep.subr.mxu0 0.0
      %606 = vmatpush1.msra.mxu0 0.0
      %607 = vmatprep.subr.mxu0 0.0
      %608 = vmatpush1.msra.mxu0 0.0
      %609 = vmatprep.subr.mxu0 0.0
      %610 = vmatpush1.msra.mxu0 0.0
      %611 = vmatprep.subr.mxu0 0.0
      %612 = vmatpush1.msra.mxu0 0.0
      %613 = vmatprep.subr.mxu0 0.0
      %614 = vmatpush1.msra.mxu0 0.0
      %615 = vmatprep.subr.mxu0 0.0
      %616 = vmatpush1.msra.mxu0 0.0
      %617 = vmatprep.mubr.f32.mxu0 0.0
      %618 = vmatmul.mubr.f32.gmra.mrb[0].mxu0 %v551
      %v619 = vpop.f32.mrb[0].mxu0
      %v620 = vadd.f32 %v548, %v619
      %v621 = vpop.f32.mrb[0].mxu0
      %622 = vdwg.mxu0
      %v623 = vmax.f32 %v620, 0.0
      %624 = vset.pattern.permute.xlu0 0
      %625 = vperm.xlu0 %624, %v356
      %v626 = vpop.permute.xlu0 %625
      %v628 = vmul.f32 %v623, %v626
      %v629 = vld [vmem:[%s4 + $0x38] sm:$0x1f]
      %v630 = vld [vmem:[%s4 + $0x40] sm:$0x1]
      %v631 = vlaneseq
      %v632 = vshrl.u32 %v631, 7
      %v633 = vsub.s32 0, %v632
      %v634 = vrot.slane %v630, %v633
      %vm635 = vcmask 39936
      %v637 = vsel %vm635, %v347, 0
      %v640 = vsel %vm635, %v348, 0
      %v643 = vsel %vm635, %v349, 0
      %v646 = vsel %vm635, %v350, 0
      %v649 = vsel %vm635, %v351, 0
      %v652 = vsel %vm635, %v352, 0
      %v655 = vsel %vm635, %v353, 0
      %v658 = vsel %vm635, %v354, 0
      %vm660 = vcmask 1044480
      %v662 = vsel %vm660, %v629, 0
      %664 = vmatprep.subr.mxu0 0.0
      %665 = vmatpush1.msra.mxu0 %v662
      %666 = vmatprep.subr.mxu0 0.0
      %667 = vmatpush1.msra.mxu0 0.0
      %668 = vmatprep.subr.mxu0 0.0
      %669 = vmatpush1.msra.mxu0 0.0
      %670 = vmatprep.subr.mxu0 0.0
      %671 = vmatpush1.msra.mxu0 0.0
      %672 = vmatprep.subr.mxu0 0.0
      %673 = vmatpush1.msra.mxu0 0.0
      %674 = vmatprep.subr.mxu0 0.0
      %675 = vmatpush1.msra.mxu0 0.0
      %676 = vmatprep.subr.mxu0 0.0
      %677 = vmatpush1.msra.mxu0 0.0
      %678 = vmatprep.subr.mxu0 0.0
      %679 = vmatpush1.msra.mxu0 0.0
      %680 = vmatprep.subr.mxu0 0.0
      %681 = vmatpush1.msra.mxu0 0.0
      %682 = vmatprep.subr.mxu0 0.0
      %683 = vmatpush1.msra.mxu0 0.0
      %684 = vmatprep.subr.mxu0 0.0
      %685 = vmatpush1.msra.mxu0 0.0
      %686 = vmatprep.subr.mxu0 0.0
      %687 = vmatpush1.msra.mxu0 0.0
      %688 = vmatprep.subr.mxu0 0.0
      %689 = vmatpush1.msra.mxu0 0.0
      %690 = vmatprep.subr.mxu0 0.0
      %691 = vmatpush1.msra.mxu0 0.0
      %692 = vmatprep.subr.mxu0 0.0
      %693 = vmatpush1.msra.mxu0 0.0
      %694 = vmatprep.subr.mxu0 0.0
      %695 = vmatpush1.msra.mxu0 0.0
      %696 = vmatprep.subr.mxu0 0.0
      %697 = vmatpush1.msra.mxu0 0.0
      %698 = vmatprep.subr.mxu0 0.0
      %699 = vmatpush1.msra.mxu0 0.0
      %700 = vmatprep.subr.mxu0 0.0
      %701 = vmatpush1.msra.mxu0 0.0
      %702 = vmatprep.subr.mxu0 0.0
      %703 = vmatpush1.msra.mxu0 0.0
      %704 = vmatprep.subr.mxu0 0.0
      %705 = vmatpush1.msra.mxu0 0.0
      %706 = vmatprep.subr.mxu0 0.0
      %707 = vmatpush1.msra.mxu0 0.0
      %708 = vmatprep.subr.mxu0 0.0
      %709 = vmatpush1.msra.mxu0 0.0
      %710 = vmatprep.subr.mxu0 0.0
      %711 = vmatpush1.msra.mxu0 0.0
      %712 = vmatprep.subr.mxu0 0.0
      %713 = vmatpush1.msra.mxu0 0.0
      %714 = vmatprep.subr.mxu0 0.0
      %715 = vmatpush1.msra.mxu0 0.0
      %716 = vmatprep.subr.mxu0 0.0
      %717 = vmatpush1.msra.mxu0 0.0
      %718 = vmatprep.subr.mxu0 0.0
      %719 = vmatpush1.msra.mxu0 0.0
      %720 = vmatprep.subr.mxu0 0.0
      %721 = vmatpush1.msra.mxu0 0.0
      %722 = vmatprep.subr.mxu0 0.0
      %723 = vmatpush1.msra.mxu0 0.0
      %724 = vmatprep.subr.mxu0 0.0
      %725 = vmatpush1.msra.mxu0 0.0
      %726 = vmatprep.subr.mxu0 0.0
      %727 = vmatpush1.msra.mxu0 0.0
      %728 = vmatprep.mubr.f32.mxu0 0.0
      %729 = vmatmul.mubr.f32.gmra.mrb[0].mxu0 %v637
      %v730 = vpop.f32.mrb[0].mxu0
      %v731 = vadd.f32 %v634, %v730
      %v732 = vpop.f32.mrb[0].mxu0
      %733 = vmatprep.mubr.f32.mxu0 0.0
      %734 = vmatmul.mubr.f32.gmra.mrb[0].mxu0 %v640
      %v735 = vpop.f32.mrb[0].mxu0
      %v736 = vadd.f32 %v634, %v735
      %v737 = vpop.f32.mrb[0].mxu0
      %738 = vmatprep.mubr.f32.mxu0 0.0
      %739 = vmatmul.mubr.f32.gmra.mrb[0].mxu0 %v643
      %v740 = vpop.f32.mrb[0].mxu0
      %v741 = vadd.f32 %v634, %v740
      %v742 = vpop.f32.mrb[0].mxu0
      %743 = vmatprep.mubr.f32.mxu0 0.0
      %744 = vmatmul.mubr.f32.gmra.mrb[0].mxu0 %v646
      %v745 = vpop.f32.mrb[0].mxu0
      %v746 = vadd.f32 %v634, %v745
      %v747 = vpop.f32.mrb[0].mxu0
      %748 = vmatprep.mubr.f32.mxu0 0.0
      %749 = vmatmul.mubr.f32.gmra.mrb[0].mxu0 %v649
      %v750 = vpop.f32.mrb[0].mxu0
      %v751 = vadd.f32 %v634, %v750
      %v752 = vpop.f32.mrb[0].mxu0
      %753 = vmatprep.mubr.f32.mxu0 0.0
      %754 = vmatmul.mubr.f32.gmra.mrb[0].mxu0 %v652
      %v755 = vpop.f32.mrb[0].mxu0
      %v756 = vadd.f32 %v634, %v755
      %v757 = vpop.f32.mrb[0].mxu0
      %758 = vmatprep.mubr.f32.mxu0 0.0
      %759 = vmatmul.mubr.f32.gmra.mrb[0].mxu0 %v655
      %v760 = vpop.f32.mrb[0].mxu0
      %v761 = vadd.f32 %v634, %v760
      %v762 = vpop.f32.mrb[0].mxu0
      %763 = vmatprep.mubr.f32.mxu0 0.0
      %764 = vmatmul.mubr.f32.gmra.mrb[0].mxu0 %v658
      %v765 = vpop.f32.mrb[0].mxu0
      %v766 = vadd.f32 %v634, %v765
      %v767 = vpop.f32.mrb[0].mxu0
      %768 = vdwg.mxu0
      %v769 = vmax.f32 %v731, 0.0
      %v770 = vmax.f32 %v736, 0.0
      %v771 = vmax.f32 %v741, 0.0
      %v772 = vmax.f32 %v746, 0.0
      %v773 = vmax.f32 %v751, 0.0
      %v774 = vmax.f32 %v756, 0.0
      %v775 = vmax.f32 %v761, 0.0
      %v776 = vmax.f32 %v766, 0.0
      %v777 = vld [vmem:[%s4 + $0x48] sm:$0xff]
      %v778 = vld [vmem:[%s4 + $0x50] sm:$0xff]
      %v779 = vld [vmem:[%s4 + $0x58] sm:$0x1]
      %v780 = vlaneseq
      %v781 = vshrl.u32 %v780, 7
      %v782 = vsub.s32 0, %v781
      %v783 = vrot.slane %v779, %v782
      %vm784 = vcmask 130048
      %v786 = vsel %vm784, %v769, 0
      %v789 = vsel %vm784, %v770, 0
      %v792 = vsel %vm784, %v771, 0
      %v795 = vsel %vm784, %v772, 0
      %v798 = vsel %vm784, %v773, 0
      %v801 = vsel %vm784, %v774, 0
      %v804 = vsel %vm784, %v775, 0
      %v807 = vsel %vm784, %v776, 0
      %809 = vmatprep.subr.mxu0 0.0
      %810 = vmatpush1.msra.mxu0 %v777
      %811 = vmatprep.subr.mxu0 0.0
      %812 = vmatpush1.msra.mxu0 %v778
      %813 = vmatprep.subr.mxu0 0.0
      %814 = vmatpush1.msra.mxu0 0.0
      %815 = vmatprep.subr.mxu0 0.0
      %816 = vmatpush1.msra.mxu0 0.0
      %817 = vmatprep.subr.mxu0 0.0
      %818 = vmatpush1.msra.mxu0 0.0
      %819 = vmatprep.subr.mxu0 0.0
      %820 = vmatpush1.msra.mxu0 0.0
      %821 = vmatprep.subr.mxu0 0.0
      %822 = vmatpush1.msra.mxu0 0.0
      %823 = vmatprep.subr.mxu0 0.0
      %824 = vmatpush1.msra.mxu0 0.0
      %825 = vmatprep.subr.mxu0 0.0
      %826 = vmatpush1.msra.mxu0 0.0
      %827 = vmatprep.subr.mxu0 0.0
      %828 = vmatpush1.msra.mxu0 0.0
      %829 = vmatprep.subr.mxu0 0.0
      %830 = vmatpush1.msra.mxu0 0.0
      %831 = vmatprep.subr.mxu0 0.0
      %832 = vmatpush1.msra.mxu0 0.0
      %833 = vmatprep.subr.mxu0 0.0
      %834 = vmatpush1.msra.mxu0 0.0
      %835 = vmatprep.subr.mxu0 0.0
      %836 = vmatpush1.msra.mxu0 0.0
      %837 = vmatprep.subr.mxu0 0.0
      %838 = vmatpush1.msra.mxu0 0.0
      %839 = vmatprep.subr.mxu0 0.0
      %840 = vmatpush1.msra.mxu0 0.0
      %841 = vmatprep.subr.mxu0 0.0
      %842 = vmatpush1.msra.mxu0 0.0
      %843 = vmatprep.subr.mxu0 0.0
      %844 = vmatpush1.msra.mxu0 0.0
      %845 = vmatprep.subr.mxu0 0.0
      %846 = vmatpush1.msra.mxu0 0.0
      %847 = vmatprep.subr.mxu0 0.0
      %848 = vmatpush1.msra.mxu0 0.0
      %849 = vmatprep.subr.mxu0 0.0
      %850 = vmatpush1.msra.mxu0 0.0
      %851 = vmatprep.subr.mxu0 0.0
      %852 = vmatpush1.msra.mxu0 0.0
      %853 = vmatprep.subr.mxu0 0.0
      %854 = vmatpush1.msra.mxu0 0.0
      %855 = vmatprep.subr.mxu0 0.0
      %856 = vmatpush1.msra.mxu0 0.0
      %857 = vmatprep.subr.mxu0 0.0
      %858 = vmatpush1.msra.mxu0 0.0
      %859 = vmatprep.subr.mxu0 0.0
      %860 = vmatpush1.msra.mxu0 0.0
      %861 = vmatprep.subr.mxu0 0.0
      %862 = vmatpush1.msra.mxu0 0.0
      %863 = vmatprep.subr.mxu0 0.0
      %864 = vmatpush1.msra.mxu0 0.0
      %865 = vmatprep.subr.mxu0 0.0
      %866 = vmatpush1.msra.mxu0 0.0
      %867 = vmatprep.subr.mxu0 0.0
      %868 = vmatpush1.msra.mxu0 0.0
      %869 = vmatprep.subr.mxu0 0.0
      %870 = vmatpush1.msra.mxu0 0.0
      %871 = vmatprep.subr.mxu0 0.0
      %872 = vmatpush1.msra.mxu0 0.0
      %873 = vmatprep.mubr.f32.mxu0 0.0
      %874 = vmatmul.mubr.f32.gmra.mrb[0].mxu0 %v786
      %v875 = vpop.f32.mrb[0].mxu0
      %v876 = vadd.f32 %v783, %v875
      %v877 = vpop.f32.mrb[0].mxu0
      %878 = vmatprep.mubr.f32.mxu0 0.0
      %879 = vmatmul.mubr.f32.gmra.mrb[0].mxu0 %v789
      %v880 = vpop.f32.mrb[0].mxu0
      %v881 = vadd.f32 %v783, %v880
      %v882 = vpop.f32.mrb[0].mxu0
      %883 = vmatprep.mubr.f32.mxu0 0.0
      %884 = vmatmul.mubr.f32.gmra.mrb[0].mxu0 %v792
      %v885 = vpop.f32.mrb[0].mxu0
      %v886 = vadd.f32 %v783, %v885
      %v887 = vpop.f32.mrb[0].mxu0
      %888 = vmatprep.mubr.f32.mxu0 0.0
      %889 = vmatmul.mubr.f32.gmra.mrb[0].mxu0 %v795
      %v890 = vpop.f32.mrb[0].mxu0
      %v891 = vadd.f32 %v783, %v890
      %v892 = vpop.f32.mrb[0].mxu0
      %893 = vmatprep.mubr.f32.mxu0 0.0
      %894 = vmatmul.mubr.f32.gmra.mrb[0].mxu0 %v798
      %v895 = vpop.f32.mrb[0].mxu0
      %v896 = vadd.f32 %v783, %v895
      %v897 = vpop.f32.mrb[0].mxu0
      %898 = vmatprep.mubr.f32.mxu0 0.0
      %899 = vmatmul.mubr.f32.gmra.mrb[0].mxu0 %v801
      %v900 = vpop.f32.mrb[0].mxu0
      %v901 = vadd.f32 %v783, %v900
      %v902 = vpop.f32.mrb[0].mxu0
      %903 = vmatprep.mubr.f32.mxu0 0.0
      %904 = vmatmul.mubr.f32.gmra.mrb[0].mxu0 %v804
      %v905 = vpop.f32.mrb[0].mxu0
      %v906 = vadd.f32 %v783, %v905
      %v907 = vpop.f32.mrb[0].mxu0
      %908 = vmatprep.mubr.f32.mxu0 0.0
      %909 = vmatmul.mubr.f32.gmra.mrb[0].mxu0 %v807
      %v910 = vpop.f32.mrb[0].mxu0
      %v911 = vadd.f32 %v783, %v910
      %v912 = vpop.f32.mrb[0].mxu0
      %913 = vdwg.mxu0
      %v914 = vmax.f32 %v876, 0.0
      %v915 = vmax.f32 %v881, 0.0
      %v916 = vmax.f32 %v886, 0.0
      %v917 = vmax.f32 %v891, 0.0
      %v918 = vmax.f32 %v896, 0.0
      %v919 = vmax.f32 %v901, 0.0
      %v920 = vmax.f32 %v906, 0.0
      %v921 = vmax.f32 %v911, 0.0
      %923 = vset.pattern.permute.xlu0 0
      %924 = vperm.xlu0 %923, %v447
      %v925 = vpop.permute.xlu0 %924
      %928 = vset.pattern.permute.xlu0 0
      %929 = vperm.xlu0 %928, %v448
      %v930 = vpop.permute.xlu0 %929
      %933 = vset.pattern.permute.xlu0 0
      %934 = vperm.xlu0 %933, %v449
      %v935 = vpop.permute.xlu0 %934
      %938 = vset.pattern.permute.xlu0 0
      %939 = vperm.xlu0 %938, %v450
      %v940 = vpop.permute.xlu0 %939
      %943 = vset.pattern.permute.xlu0 0
      %944 = vperm.xlu0 %943, %v451
      %v945 = vpop.permute.xlu0 %944
      %948 = vset.pattern.permute.xlu0 0
      %949 = vperm.xlu0 %948, %v452
      %v950 = vpop.permute.xlu0 %949
      %953 = vset.pattern.permute.xlu0 0
      %954 = vperm.xlu0 %953, %v453
      %v955 = vpop.permute.xlu0 %954
      %958 = vset.pattern.permute.xlu0 0
      %959 = vperm.xlu0 %958, %v454
      %v960 = vpop.permute.xlu0 %959
      %v962 = vmul.f32 %v914, %v925
      %v963 = vmul.f32 %v915, %v930
      %v964 = vmul.f32 %v916, %v935
      %v965 = vmul.f32 %v917, %v940
      %v966 = vmul.f32 %v918, %v945
      %v967 = vmul.f32 %v919, %v950
      %v968 = vmul.f32 %v920, %v955
      %v969 = vmul.f32 %v921, %v960
      %v970 = vld [vmem:[%s4 + $0x60] sm:$0xf]
      %v971 = vld [vmem:[%s4 + $0x68] sm:$0x1]
      %vm972 = vcmask 31744
      %v974 = vsel %vm972, %v355, 0
      %vm976 = vcmask 1043456
      %v978 = vsel %vm976, %v970, 0
      %980 = vmatprep.subr.mxu0 0.0
      %981 = vmatpush1.msra.mxu0 %v978
      %982 = vmatprep.subr.mxu0 0.0
      %983 = vmatpush1.msra.mxu0 0.0
      %984 = vmatprep.subr.mxu0 0.0
      %985 = vmatpush1.msra.mxu0 0.0
      %986 = vmatprep.subr.mxu0 0.0
      %987 = vmatpush1.msra.mxu0 0.0
      %988 = vmatprep.subr.mxu0 0.0
      %989 = vmatpush1.msra.mxu0 0.0
      %990 = vmatprep.subr.mxu0 0.0
      %991 = vmatpush1.msra.mxu0 0.0
      %992 = vmatprep.subr.mxu0 0.0
      %993 = vmatpush1.msra.mxu0 0.0
      %994 = vmatprep.subr.mxu0 0.0
      %995 = vmatpush1.msra.mxu0 0.0
      %996 = vmatprep.subr.mxu0 0.0
      %997 = vmatpush1.msra.mxu0 0.0
      %998 = vmatprep.subr.mxu0 0.0
      %999 = vmatpush1.msra.mxu0 0.0
      %1000 = vmatprep.subr.mxu0 0.0
      %1001 = vmatpush1.msra.mxu0 0.0
      %1002 = vmatprep.subr.mxu0 0.0
      %1003 = vmatpush1.msra.mxu0 0.0
      %1004 = vmatprep.subr.mxu0 0.0
      %1005 = vmatpush1.msra.mxu0 0.0
      %1006 = vmatprep.subr.mxu0 0.0
      %1007 = vmatpush1.msra.mxu0 0.0
      %1008 = vmatprep.subr.mxu0 0.0
      %1009 = vmatpush1.msra.mxu0 0.0
      %1010 = vmatprep.subr.mxu0 0.0
      %1011 = vmatpush1.msra.mxu0 0.0
      %1012 = vmatprep.subr.mxu0 0.0
      %1013 = vmatpush1.msra.mxu0 0.0
      %1014 = vmatprep.subr.mxu0 0.0
      %1015 = vmatpush1.msra.mxu0 0.0
      %1016 = vmatprep.subr.mxu0 0.0
      %1017 = vmatpush1.msra.mxu0 0.0
      %1018 = vmatprep.subr.mxu0 0.0
      %1019 = vmatpush1.msra.mxu0 0.0
      %1020 = vmatprep.subr.mxu0 0.0
      %1021 = vmatpush1.msra.mxu0 0.0
      %1022 = vmatprep.subr.mxu0 0.0
      %1023 = vmatpush1.msra.mxu0 0.0
      %1024 = vmatprep.subr.mxu0 0.0
      %1025 = vmatpush1.msra.mxu0 0.0
      %1026 = vmatprep.subr.mxu0 0.0
      %1027 = vmatpush1.msra.mxu0 0.0
      %1028 = vmatprep.subr.mxu0 0.0
      %1029 = vmatpush1.msra.mxu0 0.0
      %1030 = vmatprep.subr.mxu0 0.0
      %1031 = vmatpush1.msra.mxu0 0.0
      %1032 = vmatprep.subr.mxu0 0.0
      %1033 = vmatpush1.msra.mxu0 0.0
      %1034 = vmatprep.subr.mxu0 0.0
      %1035 = vmatpush1.msra.mxu0 0.0
      %1036 = vmatprep.subr.mxu0 0.0
      %1037 = vmatpush1.msra.mxu0 0.0
      %1038 = vmatprep.subr.mxu0 0.0
      %1039 = vmatpush1.msra.mxu0 0.0
      %1040 = vmatprep.subr.mxu0 0.0
      %1041 = vmatpush1.msra.mxu0 0.0
      %1042 = vmatprep.subr.mxu0 0.0
      %1043 = vmatpush1.msra.mxu0 0.0
      %1044 = vmatprep.mubr.f32.mxu0 0.0
      %1045 = vmatmul.mubr.f32.gmra.mrb[0].mxu0 %v974
      %v1046 = vpop.f32.mrb[0].mxu0
      %v1047 = vadd.f32 %v971, %v1046
      %v1048 = vpop.f32.mrb[0].mxu0
      %1049 = vdwg.mxu0
      %v1050 = vmax.f32 %v1047, 0.0
      %v1051 = vld [vmem:[%s4 + $0x70] sm:$0xff]
      %v1052 = vld [vmem:[%s4 + $0x78] sm:$0xff]
      %v1053 = vld [vmem:[%s4 + $0x80] sm:$0x1]
      %v1055 = vsel %vm784, %v1050, 0
      %1057 = vmatprep.subr.mxu0 0.0
      %1058 = vmatpush1.msra.mxu0 %v1051
      %1059 = vmatprep.subr.mxu0 0.0
      %1060 = vmatpush1.msra.mxu0 %v1052
      %1061 = vmatprep.subr.mxu0 0.0
      %1062 = vmatpush1.msra.mxu0 0.0
      %1063 = vmatprep.subr.mxu0 0.0
      %1064 = vmatpush1.msra.mxu0 0.0
      %1065 = vmatprep.subr.mxu0 0.0
      %1066 = vmatpush1.msra.mxu0 0.0
      %1067 = vmatprep.subr.mxu0 0.0
      %1068 = vmatpush1.msra.mxu0 0.0
      %1069 = vmatprep.subr.mxu0 0.0
      %1070 = vmatpush1.msra.mxu0 0.0
      %1071 = vmatprep.subr.mxu0 0.0
      %1072 = vmatpush1.msra.mxu0 0.0
      %1073 = vmatprep.subr.mxu0 0.0
      %1074 = vmatpush1.msra.mxu0 0.0
      %1075 = vmatprep.subr.mxu0 0.0
      %1076 = vmatpush1.msra.mxu0 0.0
      %1077 = vmatprep.subr.mxu0 0.0
      %1078 = vmatpush1.msra.mxu0 0.0
      %1079 = vmatprep.subr.mxu0 0.0
      %1080 = vmatpush1.msra.mxu0 0.0
      %1081 = vmatprep.subr.mxu0 0.0
      %1082 = vmatpush1.msra.mxu0 0.0
      %1083 = vmatprep.subr.mxu0 0.0
      %1084 = vmatpush1.msra.mxu0 0.0
      %1085 = vmatprep.subr.mxu0 0.0
      %1086 = vmatpush1.msra.mxu0 0.0
      %1087 = vmatprep.subr.mxu0 0.0
      %1088 = vmatpush1.msra.mxu0 0.0
      %1089 = vmatprep.subr.mxu0 0.0
      %1090 = vmatpush1.msra.mxu0 0.0
      %1091 = vmatprep.subr.mxu0 0.0
      %1092 = vmatpush1.msra.mxu0 0.0
      %1093 = vmatprep.subr.mxu0 0.0
      %1094 = vmatpush1.msra.mxu0 0.0
      %1095 = vmatprep.subr.mxu0 0.0
      %1096 = vmatpush1.msra.mxu0 0.0
      %1097 = vmatprep.subr.mxu0 0.0
      %1098 = vmatpush1.msra.mxu0 0.0
      %1099 = vmatprep.subr.mxu0 0.0
      %1100 = vmatpush1.msra.mxu0 0.0
      %1101 = vmatprep.subr.mxu0 0.0
      %1102 = vmatpush1.msra.mxu0 0.0
      %1103 = vmatprep.subr.mxu0 0.0
      %1104 = vmatpush1.msra.mxu0 0.0
      %1105 = vmatprep.subr.mxu0 0.0
      %1106 = vmatpush1.msra.mxu0 0.0
      %1107 = vmatprep.subr.mxu0 0.0
      %1108 = vmatpush1.msra.mxu0 0.0
      %1109 = vmatprep.subr.mxu0 0.0
      %1110 = vmatpush1.msra.mxu0 0.0
      %1111 = vmatprep.subr.mxu0 0.0
      %1112 = vmatpush1.msra.mxu0 0.0
      %1113 = vmatprep.subr.mxu0 0.0
      %1114 = vmatpush1.msra.mxu0 0.0
      %1115 = vmatprep.subr.mxu0 0.0
      %1116 = vmatpush1.msra.mxu0 0.0
      %1117 = vmatprep.subr.mxu0 0.0
      %1118 = vmatpush1.msra.mxu0 0.0
      %1119 = vmatprep.subr.mxu0 0.0
      %1120 = vmatpush1.msra.mxu0 0.0
      %1121 = vmatprep.mubr.f32.mxu0 0.0
      %1122 = vmatmul.mubr.f32.gmra.mrb[0].mxu0 %v1055
      %v1123 = vpop.f32.mrb[0].mxu0
      %v1124 = vadd.f32 %v1053, %v1123
      %v1125 = vpop.f32.mrb[0].mxu0
      %1126 = vdwg.mxu0
      %v1127 = vmax.f32 %v1124, 0.0
      %vm1128 = vcmask 261120
      %1129 = vst.msk [vmem:[%s337] sm:$0xff] %vm1128, %v628
      %1130 = vst.msk [vmem:[%s342] sm:$0xff] %vm784, %v962
      %1131 = vst.msk [vmem:[%s342 + $0x8] sm:$0xff] %vm784, %v963
      %1132 = vst.msk [vmem:[%s342 + $0x10] sm:$0xff] %vm784, %v964
      %1133 = vst.msk [vmem:[%s342 + $0x18] sm:$0xff] %vm784, %v965
      %1134 = vst.msk [vmem:[%s342 + $0x20] sm:$0xff] %vm784, %v966
      %1135 = vst.msk [vmem:[%s342 + $0x28] sm:$0xff] %vm784, %v967
      %1136 = vst.msk [vmem:[%s342 + $0x30] sm:$0xff] %vm784, %v968
      %1137 = vst.msk [vmem:[%s342 + $0x38] sm:$0xff] %vm784, %v969
      %vm1138 = vcmask 122880
      %1139 = vst.msk [vmem:[%s345] sm:$0x1] %vm1138, %v1127
      %p1140 = scmp.lt.s32.totalorder %s19, 1
      %s1141 = scalar_select %p1140, %s19, 1
      %s1142 = smul.addr %s1141, 8
      %s1143 = scalar_lea.vmem %s5, %s1142
      %p1144 = scmp.lt.s32.totalorder %s19, 1
      %s1145 = scalar_select %p1144, %s19, 1
      %s1146 = smul.addr %s1145, 8
      %s1147 = smul.addr %s1146, 8
      %s1148 = scalar_lea.vmem %s6, %s1147
      %p1149 = scmp.lt.s32.totalorder %s19, 1
      %s1150 = scalar_select %p1149, %s19, 1
      %s1151 = scalar_lea.vmem %s7, %s1150
      // Predicated region
      $region41: #{forward.3} parent=39 // pred_check
        %p1152 = pneg %p162
      $region42: #{forward.3} parent=39 // pred_check_branch
        %1154 = sbr.rel (%p1152) target = $region44
      $region43: #{forward.3} parent=39 // pred_region
        _
      $region44: #{forward.3} parent=39 // pred_fallthru
        _
      // Predicated region
      $region45: #{forward.3} parent=39 // pred_check
        %p1155 = pneg %p188
      $region46: #{forward.3} parent=39 // pred_check_branch
        %1157 = sbr.rel (%p1155) target = $region48
      $region47: #{forward.3} parent=39 // pred_region
        _
      $region48: #{forward.3} parent=39 // pred_fallthru
        _
      // Predicated region
      $region49: #{forward.3} parent=39 // pred_check
        %p1158 = pneg %p214
      $region50: #{forward.3} parent=39 // pred_check_branch
        %1160 = sbr.rel (%p1158) target = $region52
      $region51: #{forward.3} parent=39 // pred_region
        _
      $region52: #{forward.3} parent=39 // pred_fallthru
        _
    $region40: #{forward.3} parent=5 // pred_fallthru
      _
    %p1161 = scmp.le.s32.totalorder 2, %s14
    // Predicated region
    $region53: #{forward.3} parent=5 // pred_check
      %p1162 = pneg %p1161
    $region54: #{forward.3} parent=5 // pred_check_branch
      %1164 = sbr.rel (%p1162) target = $region56
    $region55: #{forward.3} parent=5 // pred_region
      %s1165 = ssub.s32 %s14, 2
      // Predicated region
      $region57: #{forward.3} parent=55 // pred_check
        %p1166 = pneg %p168
      $region58: #{forward.3} parent=55 // pred_check_branch
        %1168 = sbr.rel (%p1166) target = $region60
      $region59: #{forward.3} parent=55 // pred_region
        %p1169 = scmp.lt.s32.totalorder %s20, 1
        %s1170 = scalar_select %p1169, %s20, 1
        %s1171 = smul.addr %s1170, 8
        %s1172 = scalar_lea.vmem %s5, %s1171
      $region60: #{forward.3} parent=55 // pred_fallthru
        _
      // Predicated region
      $region61: #{forward.3} parent=55 // pred_check
        %p1173 = pneg %p194
      $region62: #{forward.3} parent=55 // pred_check_branch
        %1175 = sbr.rel (%p1173) target = $region64
      $region63: #{forward.3} parent=55 // pred_region
        %p1176 = scmp.lt.s32.totalorder %s20, 1
        %s1177 = scalar_select %p1176, %s20, 1
        %s1178 = smul.addr %s1177, 8
        %s1179 = smul.addr %s1178, 8
        %s1180 = scalar_lea.vmem %s6, %s1179
      $region64: #{forward.3} parent=55 // pred_fallthru
        _
      // Predicated region
      $region65: #{forward.3} parent=55 // pred_check
        %p1181 = pneg %p220
      $region66: #{forward.3} parent=55 // pred_check_branch
        %1183 = sbr.rel (%p1181) target = $region68
      $region67: #{forward.3} parent=55 // pred_region
        %p1184 = scmp.lt.s32.totalorder %s20, 1
        %s1185 = scalar_select %p1184, %s20, 1
        %s1186 = scalar_lea.vmem %s7, %s1185
      $region68: #{forward.3} parent=55 // pred_fallthru
        _
    $region56: #{forward.3} parent=5 // pred_fallthru
      _
  $region6: #{forward.3} parent=0 // loop_footer
    %s18 = sadd.s32 1, %s14
  $region7: #{forward.3} parent=0 // loop_footer_branch
    %13 = sbr.rel target = $region3
  $region8: #{forward.3} parent=0 // loop_exit
    _

// kernel: forward.4
$region0: #{forward.4}
  #allocation0 [shape = 'u32[]', space=smem, size = 0x4, offset = 0x4, fixed_abs, tag = 'smem constant byte address 0x4 - core index']
  #allocation1 [shape = 'u32[144,128]{1,0:T(1,128)}', space=vmem, size = 0x12000, scoped, tag = 'internal scratch']
  %s0 = inlined_call_operand.vmem [shape: f32[2,8,32], index: 0, kind: input, shape index: {}]
  %s1 = inlined_call_operand.vmem [shape: f32[2,64,16], index: 1, kind: input, shape index: {}]
  %s2 = inlined_call_operand.vmem [shape: f32[2,1,16], index: 2, kind: input, shape index: {}]
  %s3 = inlined_call_operand.vmem [shape: f32[2,8,1], index: 3, kind: input, shape index: {}]
  %s4 = inlined_call_operand.hbm [shape: f32[1536,128], index: 4, kind: input, shape index: {}]
  %s5 = inlined_call_operand.vmem [shape: f32[2,8,32], index: 5, kind: output, shape index: {0}]
  %s6 = inlined_call_operand.hbm [shape: f32[2,64,16], index: 6, kind: output, shape index: {1}]
  %s7 = inlined_call_operand.vmem [shape: f32[2,1,16], index: 7, kind: output, shape index: {2}]
  %8 = xla_tuple %s5, %s6, %s7
  %s9 = sld [smem:[#allocation0]]
  $region73: #{forward.4} parent=0
    _
  %s11 = ssub.s32 1, %s9
  %s12 = scalar_select 0, %s11, %s9
  $region1: #{forward.4} parent=0
    #allocation2 [shape = 'u8[786432]{0}', space=vmem, size = 0xc0000, scoped, tag = 'input window, operand 4, single buffered']
    #allocation3 [shape = 's32[2]{0}', space=sflag, size = 0x8, scoped, tag = 'scoped memory for forward.4']
    #allocation4 [shape = 's32[2]{0}', space=sflag, size = 0x8, scoped, tag = 'scoped memory for forward.4']
    #allocation5 [shape = 'u8[65536]{0}', space=vmem, size = 0x10000, scoped, tag = 'output window, operand 1']
    %13 = vsyncpa [#allocation3], 0
    %14 = vsyncpa [#allocation4], 0
    %s15 = scalar_lea.sflag [#allocation4], 1
    %16 = vsyncpa %s15, 0
    loop: start=0, step=1, limit=4
    $region2: #{forward.4} parent=1 // loop_pre_header
      _
    $region3: #{forward.4} parent=1 // loop_header
      %s18 = sphi 0, %s22
      %p19 = scmp.ge.s32.totalorder %s18, 4
      %s28 = sphi 0, %s30
      %s31 = sphi 0, %s28
      %s32 = sphi 0, %s31
      %s48 = sphi 0, %s32
      %s54 = sphi 0, %s56
      %s57 = sphi 0, %s54
      %s58 = sphi 0, %s57
      %s74 = sphi 0, %s58
      %s80 = sphi 0, %s82
      %s83 = sphi 0, %s80
      %s84 = sphi 0, %s83
      %s100 = sphi 0, %s84
      %s106 = sphi 0, %s108
      %s109 = sphi 0, %s106
      %s110 = sphi 0, %s109
      %s126 = sphi 0, %s110
      %s130 = sphi 0, %s130
      %s132 = sphi 0, %s130
      %s133 = sphi 0, %s132
      %s147 = sphi 0, %s133
      %s153 = sphi 0, %s155
      %s156 = sphi 0, %s153
      %s157 = sphi 0, %s156
      %s173 = sphi 0, %s157
      %s179 = sphi 0, %s181
      %s182 = sphi 0, %s179
      %s183 = sphi 0, %s182
      %s199 = sphi 0, %s183
      %s205 = sphi 0, %s207
      %s208 = sphi 0, %s205
      %s209 = sphi 0, %s208
      %s225 = sphi 0, %s209
    $region4: #{forward.4} parent=1 // loop_header_branch
      %21 = sbr.rel (%p19) target = $region8
    $region5: #{forward.4} parent=1 // loop_body
      %s23 = ssub.s32 %s18, 1
      %s24 = ssub.s32 %s18, 2
      %s25 = sadd.s32 %s18, 1
      %s26 = ssub.s32 %s18, %s25
      %p27 = scmp.eq.s32.totalorder %s26, 0
      %s29 = sadd.s32 %s28, 1
      %s30 = scalar_select %p27, %s28, %s29
      %p33 = pneg %p27
      %p34 = scmp.eq.s32.totalorder %s18, 1
      %p35 = por %p33, %p34
      %p36 = scmp.ne.s32.totalorder %s28, %s31
      %p37 = scmp.eq.s32.totalorder %s18, 0
      %p38 = por %p36, %p37
      %p39 = scmp.ne.s32.totalorder %s28, %s31
      %p40 = scmp.eq.s32.totalorder %s23, 1
      %p41 = por %p39, %p40
      %p42 = scmp.ne.s32.totalorder %s31, %s32
      %p43 = scmp.eq.s32.totalorder %s23, 0
      %p44 = por %p42, %p43
      %p45 = scmp.ne.s32.totalorder %s31, %s32
      %p46 = scmp.eq.s32.totalorder %s24, 1
      %p47 = por %p45, %p46
      %p49 = scmp.ne.s32.totalorder %s32, %s48
      %p50 = scmp.eq.s32.totalorder %s24, 0
      %p51 = por %p49, %p50
      %s52 = ssub.s32 %s18, %s25
      %p53 = scmp.eq.s32.totalorder %s52, 0
      %s55 = sadd.s32 %s54, 1
      %s56 = scalar_select %p53, %s54, %s55
      %p59 = pneg %p53
      %p60 = scmp.eq.s32.totalorder %s18, 1
      %p61 = por %p59, %p60
      %p62 = scmp.ne.s32.totalorder %s54, %s57
      %p63 = scmp.eq.s32.totalorder %s18, 0
      %p64 = por %p62, %p63
      %p65 = scmp.ne.s32.totalorder %s54, %s57
      %p66 = scmp.eq.s32.totalorder %s23, 1
      %p67 = por %p65, %p66
      %p68 = scmp.ne.s32.totalorder %s57, %s58
      %p69 = scmp.eq.s32.totalorder %s23, 0
      %p70 = por %p68, %p69
      %p71 = scmp.ne.s32.totalorder %s57, %s58
      %p72 = scmp.eq.s32.totalorder %s24, 1
      %p73 = por %p71, %p72
      %p75 = scmp.ne.s32.totalorder %s58, %s74
      %p76 = scmp.eq.s32.totalorder %s24, 0
      %p77 = por %p75, %p76
      %s78 = ssub.s32 %s18, %s25
      %p79 = scmp.eq.s32.totalorder %s78, 0
      %s81 = sadd.s32 %s80, 1
      %s82 = scalar_select %p79, %s80, %s81
      %p85 = pneg %p79
      %p86 = scmp.eq.s32.totalorder %s18, 1
      %p87 = por %p85, %p86
      %p88 = scmp.ne.s32.totalorder %s80, %s83
      %p89 = scmp.eq.s32.totalorder %s18, 0
      %p90 = por %p88, %p89
      %p91 = scmp.ne.s32.totalorder %s80, %s83
      %p92 = scmp.eq.s32.totalorder %s23, 1
      %p93 = por %p91, %p92
      %p94 = scmp.ne.s32.totalorder %s83, %s84
      %p95 = scmp.eq.s32.totalorder %s23, 0
      %p96 = por %p94, %p95
      %p97 = scmp.ne.s32.totalorder %s83, %s84
      %p98 = scmp.eq.s32.totalorder %s24, 1
      %p99 = por %p97, %p98
      %p101 = scmp.ne.s32.totalorder %s84, %s100
      %p102 = scmp.eq.s32.totalorder %s24, 0
      %p103 = por %p101, %p102
      %s104 = ssub.s32 %s18, %s25
      %p105 = scmp.eq.s32.totalorder %s104, 0
      %s107 = sadd.s32 %s106, 1
      %s108 = scalar_select %p105, %s106, %s107
      %p111 = pneg %p105
      %p112 = scmp.eq.s32.totalorder %s18, 1
      %p113 = por %p111, %p112
      %p114 = scmp.ne.s32.totalorder %s106, %s109
      %p115 = scmp.eq.s32.totalorder %s18, 0
      %p116 = por %p114, %p115
      %p117 = scmp.ne.s32.totalorder %s106, %s109
      %p118 = scmp.eq.s32.totalorder %s23, 1
      %p119 = por %p117, %p118
      %p120 = scmp.ne.s32.totalorder %s109, %s110
      %p121 = scmp.eq.s32.totalorder %s23, 0
      %p122 = por %p120, %p121
      %p123 = scmp.ne.s32.totalorder %s109, %s110
      %p124 = scmp.eq.s32.totalorder %s24, 1
      %p125 = por %p123, %p124
      %p127 = scmp.ne.s32.totalorder %s110, %s126
      %p128 = scmp.eq.s32.totalorder %s24, 0
      %p129 = por %p127, %p128
      %s131 = sadd.s32 %s130, 1
      %p134 = scmp.eq.s32.totalorder %s18, 1
      %p135 = scmp.ne.s32.totalorder %s130, %s132
      %p136 = scmp.eq.s32.totalorder %s18, 0
      %p137 = por %p135, %p136
      %p138 = scmp.ne.s32.totalorder %s130, %s132
      %p139 = scmp.eq.s32.totalorder %s23, 1
      %p140 = por %p138, %p139
      %p141 = scmp.ne.s32.totalorder %s132, %s133
      %p142 = scmp.eq.s32.totalorder %s23, 0
      %p143 = por %p141, %p142
      %p144 = scmp.ne.s32.totalorder %s132, %s133
      %p145 = scmp.eq.s32.totalorder %s24, 1
      %p146 = por %p144, %p145
      %p148 = scmp.ne.s32.totalorder %s133, %s147
      %p149 = scmp.eq.s32.totalorder %s24, 0
      %p150 = por %p148, %p149
      %s151 = ssub.s32 %s18, %s25
      %p152 = scmp.eq.s32.totalorder %s151, 0
      %s154 = sadd.s32 %s153, 1
      %s155 = scalar_select %p152, %s153, %s154
      %p158 = pneg %p152
      %p159 = scmp.eq.s32.totalorder %s18, 1
      %p160 = por %p158, %p159
      %p161 = scmp.ne.s32.totalorder %s153, %s156
      %p162 = scmp.eq.s32.totalorder %s18, 0
      %p163 = por %p161, %p162
      %p164 = scmp.ne.s32.totalorder %s153, %s156
      %p165 = scmp.eq.s32.totalorder %s23, 1
      %p166 = por %p164, %p165
      %p167 = scmp.ne.s32.totalorder %s156, %s157
      %p168 = scmp.eq.s32.totalorder %s23, 0
      %p169 = por %p167, %p168
      %p170 = scmp.ne.s32.totalorder %s156, %s157
      %p171 = scmp.eq.s32.totalorder %s24, 1
      %p172 = por %p170, %p171
      %p174 = scmp.ne.s32.totalorder %s157, %s173
      %p175 = scmp.eq.s32.totalorder %s24, 0
      %p176 = por %p174, %p175
      %s177 = ssub.s32 %s18, %s25
      %p178 = scmp.eq.s32.totalorder %s177, 0
      %s180 = sadd.s32 %s179, 1
      %s181 = scalar_select %p178, %s179, %s180
      %p184 = pneg %p178
      %p185 = scmp.eq.s32.totalorder %s18, 1
      %p186 = por %p184, %p185
      %p187 = scmp.ne.s32.totalorder %s179, %s182
      %p188 = scmp.eq.s32.totalorder %s18, 0
      %p189 = por %p187, %p188
      %p190 = scmp.ne.s32.totalorder %s179, %s182
      %p191 = scmp.eq.s32.totalorder %s23, 1
      %p192 = por %p190, %p191
      %p193 = scmp.ne.s32.totalorder %s182, %s183
      %p194 = scmp.eq.s32.totalorder %s23, 0
      %p195 = por %p193, %p194
      %p196 = scmp.ne.s32.totalorder %s182, %s183
      %p197 = scmp.eq.s32.totalorder %s24, 1
      %p198 = por %p196, %p197
      %p200 = scmp.ne.s32.totalorder %s183, %s199
      %p201 = scmp.eq.s32.totalorder %s24, 0
      %p202 = por %p200, %p201
      %s203 = ssub.s32 %s18, %s25
      %p204 = scmp.eq.s32.totalorder %s203, 0
      %s206 = sadd.s32 %s205, 1
      %s207 = scalar_select %p204, %s205, %s206
      %p210 = pneg %p204
      %p211 = scmp.eq.s32.totalorder %s18, 1
      %p212 = por %p210, %p211
      %p213 = scmp.ne.s32.totalorder %s205, %s208
      %p214 = scmp.eq.s32.totalorder %s18, 0
      %p215 = por %p213, %p214
      %p216 = scmp.ne.s32.totalorder %s205, %s208
      %p217 = scmp.eq.s32.totalorder %s23, 1
      %p218 = por %p216, %p217
      %p219 = scmp.ne.s32.totalorder %s208, %s209
      %p220 = scmp.eq.s32.totalorder %s23, 0
      %p221 = por %p219, %p220
      %p222 = scmp.ne.s32.totalorder %s208, %s209
      %p223 = scmp.eq.s32.totalorder %s24, 1
      %p224 = por %p222, %p223
      %p226 = scmp.ne.s32.totalorder %s209, %s225
      %p227 = scmp.eq.s32.totalorder %s24, 0
      %p228 = por %p226, %p227
      %p229 = scmp.le.s32.totalorder 1, %s18
      %p230 = scmp.lt.s32.totalorder %s18, 3
      %p231 = pnand %p229, %p230
      %p232 = pneg %p231
      // Predicated region
      $region9: #{forward.4} parent=5 // pred_check
        _
      $region10: #{forward.4} parent=5 // pred_check_branch
        %234 = sbr.rel (%p231) target = $region12
      $region11: #{forward.4} parent=5 // pred_region
        %s235 = ssub.s32 %s18, 1
        // Predicated region
        $region13: #{forward.4} parent=11 // pred_check
          %p236 = pneg %p143
        $region14: #{forward.4} parent=11 // pred_check_branch
          %238 = sbr.rel (%p236) target = $region16
        $region15: #{forward.4} parent=11 // pred_region
          %s240 = ssub.s32 24576, 24576
          %241 = vsyncadd [#allocation3], %s240
          %s242 = sshll.u32 [#allocation2], 4
          %s243 = int_to_ptr.vmem [resolvable:$true] %s242
          %248 = dma.hbm_to_vmem [thread:$0]  %s4, 24576, %s243, [#allocation3], 128, 128, 8
        $region16: #{forward.4} parent=11 // pred_fallthru
          _
      $region12: #{forward.4} parent=5 // pred_fallthru
        _
      %p249 = scmp.lt.s32.totalorder %s18, 2
      // Predicated region
      $region17: #{forward.4} parent=5 // pred_check
        %p250 = pneg %p249
      $region18: #{forward.4} parent=5 // pred_check_branch
        %252 = sbr.rel (%p250) target = $region20
      $region19: #{forward.4} parent=5 // pred_region
        // Predicated region
        $region21: #{forward.4} parent=19 // pred_check
          %p253 = pneg %p38
        $region22: #{forward.4} parent=19 // pred_check_branch
          %255 = sbr.rel (%p253) target = $region24
        $region23: #{forward.4} parent=19 // pred_region
          %p256 = scmp.lt.s32.totalorder %s18, 1
          %s257 = scalar_select %p256, %s18, 1
          %s258 = smul.addr %s257, 8
          %s259 = scalar_lea.vmem %s0, %s258
        $region24: #{forward.4} parent=19 // pred_fallthru
          _
        // Predicated region
        $region25: #{forward.4} parent=19 // pred_check
          %p260 = pneg %p64
        $region26: #{forward.4} parent=19 // pred_check_branch
          %262 = sbr.rel (%p260) target = $region28
        $region27: #{forward.4} parent=19 // pred_region
          %p263 = scmp.lt.s32.totalorder %s18, 1
          %s264 = scalar_select %p263, %s18, 1
          %s265 = smul.addr %s264, 8
          %s266 = smul.addr %s265, 8
          %s267 = scalar_lea.vmem %s1, %s266
        $region28: #{forward.4} parent=19 // pred_fallthru
          _
        // Predicated region
        $region29: #{forward.4} parent=19 // pred_check
          %p268 = pneg %p90
        $region30: #{forward.4} parent=19 // pred_check_branch
          %270 = sbr.rel (%p268) target = $region32
        $region31: #{forward.4} parent=19 // pred_region
          %p271 = scmp.lt.s32.totalorder %s18, 1
          %s272 = scalar_select %p271, %s18, 1
          %s273 = scalar_lea.vmem %s2, %s272
        $region32: #{forward.4} parent=19 // pred_fallthru
          _
        // Predicated region
        $region33: #{forward.4} parent=19 // pred_check
          %p274 = pneg %p116
        $region34: #{forward.4} parent=19 // pred_check_branch
          %276 = sbr.rel (%p274) target = $region36
        $region35: #{forward.4} parent=19 // pred_region
          %p277 = scmp.lt.s32.totalorder %s18, 1
          %s278 = scalar_select %p277, %s18, 1
          %s279 = smul.addr %s278, 8
          %s280 = scalar_lea.vmem %s3, %s279
        $region36: #{forward.4} parent=19 // pred_fallthru
          _
      $region20: #{forward.4} parent=5 // pred_fallthru
        _
      %p281 = scmp.le.s32.totalorder 1, %s18
      %p282 = scmp.lt.s32.totalorder %s18, 3
      %p283 = pnand %p281, %p282
      %p284 = pneg %p283
      // Predicated region
      $region37: #{forward.4} parent=5 // pred_check
        _
      $region38: #{forward.4} parent=5 // pred_check_branch
        %286 = sbr.rel (%p283) target = $region40
      $region39: #{forward.4} parent=5 // pred_region
        %s287 = ssub.s32 %s18, 1
        // Predicated region
        $region41: #{forward.4} parent=39 // pred_check
          %p288 = pneg %p143
        $region42: #{forward.4} parent=39 // pred_check_branch
          %290 = sbr.rel (%p288) target = $region44
        $region43: #{forward.4} parent=39 // pred_region
          %291 = dma.done [#allocation3], 24576
        $region44: #{forward.4} parent=39 // pred_fallthru
          _
        %p292 = scmp.lt.s32.totalorder %s23, 1
        %s293 = scalar_select %p292, %s23, 1
        %s294 = smul.addr %s293, 8
        %s295 = scalar_lea.vmem %s0, %s294
        %p296 = pneg %p44
        %p297 = pneg %p41
        %p298 = scmp.lt.s32.totalorder %s23, 1
        %s299 = scalar_select %p298, %s23, 1
        %s300 = smul.addr %s299, 8
        %s301 = smul.addr %s300, 8
        %s302 = scalar_lea.vmem %s1, %s301
        %p303 = pneg %p70
        %p304 = pneg %p67
        %p305 = scmp.lt.s32.totalorder %s23, 1
        %s306 = scalar_select %p305, %s23, 1
        %s307 = scalar_lea.vmem %s2, %s306
        %p308 = pneg %p96
        %p309 = pneg %p93
        %p310 = scmp.lt.s32.totalorder %s23, 1
        %s311 = scalar_select %p310, %s23, 1
        %s312 = smul.addr %s311, 8
        %s313 = scalar_lea.vmem %s3, %s312
        %p314 = pneg %p122
        %p315 = pneg %p119
        %p316 = pneg %p143
        %p317 = pneg %p140
        %p318 = pneg %p169
        %p319 = pneg %p166
        %p320 = scmp.lt.s32.totalorder %s23, 1
        %s321 = scalar_select %p320, %s23, 1
        %s322 = smul.addr %s321, 8
        %s323 = scalar_lea.vmem %s5, %s322
        %p324 = pneg %p195
        %p325 = pneg %p192
        %s326 = sand.u32 %s182, 1
        %s327 = scalar_lea.sflag [#allocation4], %s326
        %s328 = sand.u32 %s182, 1
        %s329 = smul.addr %s328, 64
        %s330 = scalar_lea.vmem [#allocation5], %s329
        %p331 = pneg %p221
        %p332 = pneg %p218
        %p333 = scmp.lt.s32.totalorder %s23, 1
        %s334 = scalar_select %p333, %s23, 1
        %s335 = scalar_lea.vmem %s7, %s334
        %p336 = scmp.lt.s32.totalorder %s23, 1
        %s337 = scalar_select %p336, %s23, 1
        %s338 = smul.addr %s337, 8
        %s339 = scalar_lea.vmem %s0, %s338
        %p340 = scmp.lt.s32.totalorder %s23, 1
        %s341 = scalar_select %p340, %s23, 1
        %s342 = smul.addr %s341, 8
        %s343 = smul.addr %s342, 8
        %s344 = scalar_lea.vmem %s1, %s343
        %p345 = scmp.lt.s32.totalorder %s23, 1
        %s346 = scalar_select %p345, %s23, 1
        %s347 = scalar_lea.vmem %s2, %s346
        %p348 = scmp.lt.s32.totalorder %s23, 1
        %s349 = scalar_select %p348, %s23, 1
        %s350 = smul.addr %s349, 8
        %s351 = scalar_lea.vmem %s3, %s350
        %p352 = scmp.lt.s32.totalorder %s23, 1
        %s353 = scalar_select %p352, %s23, 1
        %s354 = smul.addr %s353, 8
        %s355 = scalar_lea.vmem %s5, %s354
        %p356 = scmp.lt.s32.totalorder %s23, 1
        %s357 = scalar_select %p356, %s23, 1
        %s358 = scalar_lea.vmem %s7, %s357
        %v359 = vld [vmem:[%s339] sm:$0xff]
        %v360 = vld [vmem:[%s344] sm:$0xff]
        %v361 = vld [vmem:[%s344 + $0x8] sm:$0xff]
        %v362 = vld [vmem:[%s344 + $0x10] sm:$0xff]
        %v363 = vld [vmem:[%s344 + $0x18] sm:$0xff]
        %v364 = vld [vmem:[%s344 + $0x20] sm:$0xff]
        %v365 = vld [vmem:[%s344 + $0x28] sm:$0xff]
        %v366 = vld [vmem:[%s344 + $0x30] sm:$0xff]
        %v367 = vld [vmem:[%s344 + $0x38] sm:$0xff]
        %v368 = vld [vmem:[%s347] sm:$0x1]
        %v369 = vld [vmem:[%s351] sm:$0xff]
        %v371 = vcombine.high %v369, %v369
        %v373 = vunpack.c.l.s4 1966171168
        %v374 = vunpack.c.0.s8 %v373
        %v375 = vlaneseq
        %v376 = vshrl.u32 %v375, 7
        %v377 = vsub.s32 %v374, %v376
        %v378 = vrot.slane %v369, %v377
        %v380 = vunpack.c.l.s4 1966171168
        %v381 = vunpack.c.0.s8 %v380
        %v382 = vlaneseq
        %v383 = vshrl.u32 %v382, 7
        %v384 = vsub.s32 %v381, %v383
        %v385 = vrot.slane %v371, %v384
        %v386 = vcombine.high %v378, %v378
        %v387 = vcombine.high %v385, %v385
        %v389 = vunpack.c.l.s4 1966171168
        %v390 = vunpack.c.0.s8 %v389
        %v391 = vlaneseq
        %v392 = vshrl.u32 %v391, 7
        %v393 = vsub.s32 %v390, %v392
        %v394 = vrot.slane %v378, %v393
        %v396 = vunpack.c.l.s4 1966171168
        %v397 = vunpack.c.0.s8 %v396
        %v398 = vlaneseq
        %v399 = vshrl.u32 %v398, 7
        %v400 = vsub.s32 %v397, %v399
        %v401 = vrot.slane %v385, %v400
        %v403 = vunpack.c.l.s4 1966171168
        %v404 = vunpack.c.0.s8 %v403
        %v405 = vlaneseq
        %v406 = vshrl.u32 %v405, 7
        %v407 = vsub.s32 %v404, %v406
        %v408 = vrot.slane %v386, %v407
        %v410 = vunpack.c.l.s4 1966171168
        %v411 = vunpack.c.0.s8 %v410
        %v412 = vlaneseq
        %v413 = vshrl.u32 %v412, 7
        %v414 = vsub.s32 %v411, %v413
        %v415 = vrot.slane %v387, %v414
        %v416 = vcombine.high %v394, %v394
        %v417 = vcombine.high %v401, %v401
        %v418 = vcombine.high %v408, %v408
        %v419 = vcombine.high %v415, %v415
        %v420 = vlaneseq
        %v421 = vshrl.u32 %v420, 7
        %v422 = vsub.s32 0, %v421
        %v423 = vrot.slane %v394, %v422
        %v424 = vlaneseq
        %v425 = vshrl.u32 %v424, 7
        %v426 = vsub.s32 0, %v425
        %v427 = vrot.slane %v408, %v426
        %v428 = vlaneseq
        %v429 = vshrl.u32 %v428, 7
        %v430 = vsub.s32 0, %v429
        %v431 = vrot.slane %v416, %v430
        %v432 = vlaneseq
        %v433 = vshrl.u32 %v432, 7
        %v434 = vsub.s32 0, %v433
        %v435 = vrot.slane %v418, %v434
        %v436 = vlaneseq
        %v437 = vshrl.u32 %v436, 7
        %v438 = vsub.s32 0, %v437
        %v439 = vrot.slane %v401, %v438
        %v440 = vlaneseq
        %v441 = vshrl.u32 %v440, 7
        %v442 = vsub.s32 0, %v441
        %v443 = vrot.slane %v415, %v442
        %v444 = vlaneseq
        %v445 = vshrl.u32 %v444, 7
        %v446 = vsub.s32 0, %v445
        %v447 = vrot.slane %v417, %v446
        %v448 = vlaneseq
        %v449 = vshrl.u32 %v448, 7
        %v450 = vsub.s32 0, %v449
        %v451 = vrot.slane %v419, %v450
        %v460 = vmul.f32 %v423, %v369
        %v461 = vmul.f32 %v427, %v369
        %v462 = vmul.f32 %v431, %v369
        %v463 = vmul.f32 %v435, %v369
        %v464 = vmul.f32 %v439, %v369
        %v465 = vmul.f32 %v443, %v369
        %v466 = vmul.f32 %v447, %v369
        %v467 = vmul.f32 %v451, %v369
        %vm468 = vcmp.gt.f32.partialorder %v369, 0.0
        %v469 = vld [vmem:[#allocation2] sm:$0xff]
        %v470 = vld [vmem:[#allocation2 + $0x8] sm:$0xff]
        %v471 = vld [vmem:[#allocation2 + $0x10] sm:$0xff]
        %v472 = vld [vmem:[#allocation2 + $0x18] sm:$0xff]
        %v473 = vld [vmem:[#allocation2 + $0x20] sm:$0x1]
        %v474 = vlaneseq
        %v475 = vshrl.u32 %v474, 7
        %v476 = vsub.s32 0, %v475
        %v477 = vrot.slane %v473, %v476
        %vm478 = vcmask 261120
        %v480 = vsel %vm478, %v359, 0
        %482 = vmatprep.subr.mxu0 0.0
        %483 = vmatpush1.msra.mxu0 %v469
        %484 = vmatprep.subr.mxu0 0.0
        %485 = vmatpush1.msra.mxu0 %v470
        %486 = vmatprep.subr.mxu0 0.0
        %487 = vmatpush1.msra.mxu0 %v471
        %488 = vmatprep.subr.mxu0 0.0
        %489 = vmatpush1.msra.mxu0 %v472
        %490 = vmatprep.subr.mxu0 0.0
        %491 = vmatpush1.msra.mxu0 0.0
        %492 = vmatprep.subr.mxu0 0.0
        %493 = vmatpush1.msra.mxu0 0.0
        %494 = vmatprep.subr.mxu0 0.0
        %495 = vmatpush1.msra.mxu0 0.0
        %496 = vmatprep.subr.mxu0 0.0
        %497 = vmatpush1.msra.mxu0 0.0
        %498 = vmatprep.subr.mxu0 0.0
        %499 = vmatpush1.msra.mxu0 0.0
        %500 = vmatprep.subr.mxu0 0.0
        %501 = vmatpush1.msra.mxu0 0.0
        %502 = vmatprep.subr.mxu0 0.0
        %503 = vmatpush1.msra.mxu0 0.0
        %504 = vmatprep.subr.mxu0 0.0
        %505 = vmatpush1.msra.mxu0 0.0
        %506 = vmatprep.subr.mxu0 0.0
        %507 = vmatpush1.msra.mxu0 0.0
        %508 = vmatprep.subr.mxu0 0.0
        %509 = vmatpush1.msra.mxu0 0.0
        %510 = vmatprep.subr.mxu0 0.0
        %511 = vmatpush1.msra.mxu0 0.0
        %512 = vmatprep.subr.mxu0 0.0
        %513 = vmatpush1.msra.mxu0 0.0
        %514 = vmatprep.subr.mxu0 0.0
        %515 = vmatpush1.msra.mxu0 0.0
        %516 = vmatprep.subr.mxu0 0.0
        %517 = vmatpush1.msra.mxu0 0.0
        %518 = vmatprep.subr.mxu0 0.0
        %519 = vmatpush1.msra.mxu0 0.0
        %520 = vmatprep.subr.mxu0 0.0
        %521 = vmatpush1.msra.mxu0 0.0
        %522 = vmatprep.subr.mxu0 0.0
        %523 = vmatpush1.msra.mxu0 0.0
        %524 = vmatprep.subr.mxu0 0.0
        %525 = vmatpush1.msra.mxu0 0.0
        %526 = vmatprep.subr.mxu0 0.0
        %527 = vmatpush1.msra.mxu0 0.0
        %528 = vmatprep.subr.mxu0 0.0
        %529 = vmatpush1.msra.mxu0 0.0
        %530 = vmatprep.subr.mxu0 0.0
        %531 = vmatpush1.msra.mxu0 0.0
        %532 = vmatprep.subr.mxu0 0.0
        %533 = vmatpush1.msra.mxu0 0.0
        %534 = vmatprep.subr.mxu0 0.0
        %535 = vmatpush1.msra.mxu0 0.0
        %536 = vmatprep.subr.mxu0 0.0
        %537 = vmatpush1.msra.mxu0 0.0
        %538 = vmatprep.subr.mxu0 0.0
        %539 = vmatpush1.msra.mxu0 0.0
        %540 = vmatprep.subr.mxu0 0.0
        %541 = vmatpush1.msra.mxu0 0.0
        %542 = vmatprep.subr.mxu0 0.0
        %543 = vmatpush1.msra.mxu0 0.0
        %544 = vmatprep.subr.mxu0 0.0
        %545 = vmatpush1.msra.mxu0 0.0
        %546 = vmatprep.mubr.f32.mxu0 0.0
        %547 = vmatmul.mubr.f32.gmra.mrb[0].mxu0 %v480
        %v548 = vpop.f32.mrb[0].mxu0
        %v549 = vadd.f32 %v477, %v548
        %v550 = vpop.f32.mrb[0].mxu0
        %551 = vdwg.mxu0
        %552 = vset.pattern.permute.xlu0 0
        %553 = vperm.xlu0 %552, %v369
        %v554 = vpop.permute.xlu0 %553
        %v556 = vmul.f32 %v549, %v554
        %v557 = vld [vmem:[#allocation2 + $0x28] sm:$0xff]
        %v558 = vld [vmem:[#allocation2 + $0x30] sm:$0xff]
        %v559 = vld [vmem:[#allocation2 + $0x38] sm:$0x1]
        %v560 = vlaneseq
        %v561 = vshrl.u32 %v560, 7
        %v562 = vsub.s32 0, %v561
        %v563 = vrot.slane %v559, %v562
        %vm564 = vcmask 130048
        %v566 = vsel %vm564, %v360, 0
        %v569 = vsel %vm564, %v361, 0
        %v572 = vsel %vm564, %v362, 0
        %v575 = vsel %vm564, %v363, 0
        %v578 = vsel %vm564, %v364, 0
        %v581 = vsel %vm564, %v365, 0
        %v584 = vsel %vm564, %v366, 0
        %v587 = vsel %vm564, %v367, 0
        %589 = vmatprep.subr.mxu0 0.0
        %590 = vmatpush1.msra.mxu0 %v557
        %591 = vmatprep.subr.mxu0 0.0
        %592 = vmatpush1.msra.mxu0 %v558
        %593 = vmatprep.subr.mxu0 0.0
        %594 = vmatpush1.msra.mxu0 0.0
        %595 = vmatprep.subr.mxu0 0.0
        %596 = vmatpush1.msra.mxu0 0.0
        %597 = vmatprep.subr.mxu0 0.0
        %598 = vmatpush1.msra.mxu0 0.0
        %599 = vmatprep.subr.mxu0 0.0
        %600 = vmatpush1.msra.mxu0 0.0
        %601 = vmatprep.subr.mxu0 0.0
        %602 = vmatpush1.msra.mxu0 0.0
        %603 = vmatprep.subr.mxu0 0.0
        %604 = vmatpush1.msra.mxu0 0.0
        %605 = vmatprep.subr.mxu0 0.0
        %606 = vmatpush1.msra.mxu0 0.0
        %607 = vmatprep.subr.mxu0 0.0
        %608 = vmatpush1.msra.mxu0 0.0
        %609 = vmatprep.subr.mxu0 0.0
        %610 = vmatpush1.msra.mxu0 0.0
        %611 = vmatprep.subr.mxu0 0.0
        %612 = vmatpush1.msra.mxu0 0.0
        %613 = vmatprep.subr.mxu0 0.0
        %614 = vmatpush1.msra.mxu0 0.0
        %615 = vmatprep.subr.mxu0 0.0
        %616 = vmatpush1.msra.mxu0 0.0
        %617 = vmatprep.subr.mxu0 0.0
        %618 = vmatpush1.msra.mxu0 0.0
        %619 = vmatprep.subr.mxu0 0.0
        %620 = vmatpush1.msra.mxu0 0.0
        %621 = vmatprep.subr.mxu0 0.0
        %622 = vmatpush1.msra.mxu0 0.0
        %623 = vmatprep.subr.mxu0 0.0
        %624 = vmatpush1.msra.mxu0 0.0
        %625 = vmatprep.subr.mxu0 0.0
        %626 = vmatpush1.msra.mxu0 0.0
        %627 = vmatprep.subr.mxu0 0.0
        %628 = vmatpush1.msra.mxu0 0.0
        %629 = vmatprep.subr.mxu0 0.0
        %630 = vmatpush1.msra.mxu0 0.0
        %631 = vmatprep.subr.mxu0 0.0
        %632 = vmatpush1.msra.mxu0 0.0
        %633 = vmatprep.subr.mxu0 0.0
        %634 = vmatpush1.msra.mxu0 0.0
        %635 = vmatprep.subr.mxu0 0.0
        %636 = vmatpush1.msra.mxu0 0.0
        %637 = vmatprep.subr.mxu0 0.0
        %638 = vmatpush1.msra.mxu0 0.0
        %639 = vmatprep.subr.mxu0 0.0
        %640 = vmatpush1.msra.mxu0 0.0
        %641 = vmatprep.subr.mxu0 0.0
        %642 = vmatpush1.msra.mxu0 0.0
        %643 = vmatprep.subr.mxu0 0.0
        %644 = vmatpush1.msra.mxu0 0.0
        %645 = vmatprep.subr.mxu0 0.0
        %646 = vmatpush1.msra.mxu0 0.0
        %647 = vmatprep.subr.mxu0 0.0
        %648 = vmatpush1.msra.mxu0 0.0
        %649 = vmatprep.subr.mxu0 0.0
        %650 = vmatpush1.msra.mxu0 0.0
        %651 = vmatprep.subr.mxu0 0.0
        %652 = vmatpush1.msra.mxu0 0.0
        %653 = vmatprep.mubr.f32.mxu0 0.0
        %654 = vmatmul.mubr.f32.gmra.mrb[0].mxu0 %v566
        %v655 = vpop.f32.mrb[0].mxu0
        %v656 = vadd.f32 %v563, %v655
        %v657 = vpop.f32.mrb[0].mxu0
        %658 = vmatprep.mubr.f32.mxu0 0.0
        %659 = vmatmul.mubr.f32.gmra.mrb[0].mxu0 %v569
        %v660 = vpop.f32.mrb[0].mxu0
        %v661 = vadd.f32 %v563, %v660
        %v662 = vpop.f32.mrb[0].mxu0
        %663 = vmatprep.mubr.f32.mxu0 0.0
        %664 = vmatmul.mubr.f32.gmra.mrb[0].mxu0 %v572
        %v665 = vpop.f32.mrb[0].mxu0
        %v666 = vadd.f32 %v563, %v665
        %v667 = vpop.f32.mrb[0].mxu0
        %668 = vmatprep.mubr.f32.mxu0 0.0
        %669 = vmatmul.mubr.f32.gmra.mrb[0].mxu0 %v575
        %v670 = vpop.f32.mrb[0].mxu0
        %v671 = vadd.f32 %v563, %v670
        %v672 = vpop.f32.mrb[0].mxu0
        %673 = vmatprep.mubr.f32.mxu0 0.0
        %674 = vmatmul.mubr.f32.gmra.mrb[0].mxu0 %v578
        %v675 = vpop.f32.mrb[0].mxu0
        %v676 = vadd.f32 %v563, %v675
        %v677 = vpop.f32.mrb[0].mxu0
        %678 = vmatprep.mubr.f32.mxu0 0.0
        %679 = vmatmul.mubr.f32.gmra.mrb[0].mxu0 %v581
        %v680 = vpop.f32.mrb[0].mxu0
        %v681 = vadd.f32 %v563, %v680
        %v682 = vpop.f32.mrb[0].mxu0
        %683 = vmatprep.mubr.f32.mxu0 0.0
        %684 = vmatmul.mubr.f32.gmra.mrb[0].mxu0 %v584
        %v685 = vpop.f32.mrb[0].mxu0
        %v686 = vadd.f32 %v563, %v685
        %v687 = vpop.f32.mrb[0].mxu0
        %688 = vmatprep.mubr.f32.mxu0 0.0
        %689 = vmatmul.mubr.f32.gmra.mrb[0].mxu0 %v587
        %v690 = vpop.f32.mrb[0].mxu0
        %v691 = vadd.f32 %v563, %v690
        %v692 = vpop.f32.mrb[0].mxu0
        %693 = vdwg.mxu0
        %695 = vset.pattern.permute.xlu0 0
        %696 = vperm.xlu0 %695, %v460
        %v697 = vpop.permute.xlu0 %696
        %700 = vset.pattern.permute.xlu0 0
        %701 = vperm.xlu0 %700, %v461
        %v702 = vpop.permute.xlu0 %701
        %705 = vset.pattern.permute.xlu0 0
        %706 = vperm.xlu0 %705, %v462
        %v707 = vpop.permute.xlu0 %706
        %710 = vset.pattern.permute.xlu0 0
        %711 = vperm.xlu0 %710, %v463
        %v712 = vpop.permute.xlu0 %711
        %715 = vset.pattern.permute.xlu0 0
        %716 = vperm.xlu0 %715, %v464
        %v717 = vpop.permute.xlu0 %716
        %720 = vset.pattern.permute.xlu0 0
        %721 = vperm.xlu0 %720, %v465
        %v722 = vpop.permute.xlu0 %721
        %725 = vset.pattern.permute.xlu0 0
        %726 = vperm.xlu0 %725, %v466
        %v727 = vpop.permute.xlu0 %726
        %730 = vset.pattern.permute.xlu0 0
        %731 = vperm.xlu0 %730, %v467
        %v732 = vpop.permute.xlu0 %731
        %v734 = vmul.f32 %v656, %v697
        %v735 = vmul.f32 %v661, %v702
        %v736 = vmul.f32 %v666, %v707
        %v737 = vmul.f32 %v671, %v712
        %v738 = vmul.f32 %v676, %v717
        %v739 = vmul.f32 %v681, %v722
        %v740 = vmul.f32 %v686, %v727
        %v741 = vmul.f32 %v691, %v732
        %v742 = vld [vmem:[#allocation2 + $0x40] sm:$0xff]
        %v743 = vld [vmem:[#allocation2 + $0x48] sm:$0xff]
        %v744 = vld [vmem:[#allocation2 + $0x50] sm:$0x1]
        %v746 = vsel %vm564, %v368, 0
        %748 = vmatprep.subr.mxu0 0.0
        %749 = vmatpush1.msra.mxu0 %v742
        %750 = vmatprep.subr.mxu0 0.0
        %751 = vmatpush1.msra.mxu0 %v743
        %752 = vmatprep.subr.mxu0 0.0
        %753 = vmatpush1.msra.mxu0 0.0
        %754 = vmatprep.subr.mxu0 0.0
        %755 = vmatpush1.msra.mxu0 0.0
        %756 = vmatprep.subr.mxu0 0.0
        %757 = vmatpush1.msra.mxu0 0.0
        %758 = vmatprep.subr.mxu0 0.0
        %759 = vmatpush1.msra.mxu0 0.0
        %760 = vmatprep.subr.mxu0 0.0
        %761 = vmatpush1.msra.mxu0 0.0
        %762 = vmatprep.subr.mxu0 0.0
        %763 = vmatpush1.msra.mxu0 0.0
        %764 = vmatprep.subr.mxu0 0.0
        %765 = vmatpush1.msra.mxu0 0.0
        %766 = vmatprep.subr.mxu0 0.0
        %767 = vmatpush1.msra.mxu0 0.0
        %768 = vmatprep.subr.mxu0 0.0
        %769 = vmatpush1.msra.mxu0 0.0
        %770 = vmatprep.subr.mxu0 0.0
        %771 = vmatpush1.msra.mxu0 0.0
        %772 = vmatprep.subr.mxu0 0.0
        %773 = vmatpush1.msra.mxu0 0.0
        %774 = vmatprep.subr.mxu0 0.0
        %775 = vmatpush1.msra.mxu0 0.0
        %776 = vmatprep.subr.mxu0 0.0
        %777 = vmatpush1.msra.mxu0 0.0
        %778 = vmatprep.subr.mxu0 0.0
        %779 = vmatpush1.msra.mxu0 0.0
        %780 = vmatprep.subr.mxu0 0.0
        %781 = vmatpush1.msra.mxu0 0.0
        %782 = vmatprep.subr.mxu0 0.0
        %783 = vmatpush1.msra.mxu0 0.0
        %784 = vmatprep.subr.mxu0 0.0
        %785 = vmatpush1.msra.mxu0 0.0
        %786 = vmatprep.subr.mxu0 0.0
        %787 = vmatpush1.msra.mxu0 0.0
        %788 = vmatprep.subr.mxu0 0.0
        %789 = vmatpush1.msra.mxu0 0.0
        %790 = vmatprep.subr.mxu0 0.0
        %791 = vmatpush1.msra.mxu0 0.0
        %792 = vmatprep.subr.mxu0 0.0
        %793 = vmatpush1.msra.mxu0 0.0
        %794 = vmatprep.subr.mxu0 0.0
        %795 = vmatpush1.msra.mxu0 0.0
        %796 = vmatprep.subr.mxu0 0.0
        %797 = vmatpush1.msra.mxu0 0.0
        %798 = vmatprep.subr.mxu0 0.0
        %799 = vmatpush1.msra.mxu0 0.0
        %800 = vmatprep.subr.mxu0 0.0
        %801 = vmatpush1.msra.mxu0 0.0
        %802 = vmatprep.subr.mxu0 0.0
        %803 = vmatpush1.msra.mxu0 0.0
        %804 = vmatprep.subr.mxu0 0.0
        %805 = vmatpush1.msra.mxu0 0.0
        %806 = vmatprep.subr.mxu0 0.0
        %807 = vmatpush1.msra.mxu0 0.0
        %808 = vmatprep.subr.mxu0 0.0
        %809 = vmatpush1.msra.mxu0 0.0
        %810 = vmatprep.subr.mxu0 0.0
        %811 = vmatpush1.msra.mxu0 0.0
        %812 = vmatprep.mubr.f32.mxu0 0.0
        %813 = vmatmul.mubr.f32.gmra.mrb[0].mxu0 %v746
        %v814 = vpop.f32.mrb[0].mxu0
        %v815 = vadd.f32 %v744, %v814
        %v816 = vpop.f32.mrb[0].mxu0
        %817 = vdwg.mxu0
        %v819 = vcombine.high %v556, %v556
        %v821 = vunpack.c.l.s4 1966171168
        %v822 = vunpack.c.0.s8 %v821
        %v823 = vlaneseq
        %v824 = vshrl.u32 %v823, 7
        %v825 = vsub.s32 %v822, %v824
        %v826 = vrot.slane %v556, %v825
        %v828 = vunpack.c.l.s4 1966171168
        %v829 = vunpack.c.0.s8 %v828
        %v830 = vlaneseq
        %v831 = vshrl.u32 %v830, 7
        %v832 = vsub.s32 %v829, %v831
        %v833 = vrot.slane %v819, %v832
        %v834 = vcombine.high %v826, %v826
        %v835 = vcombine.high %v833, %v833
        %v837 = vunpack.c.l.s4 1966171168
        %v838 = vunpack.c.0.s8 %v837
        %v839 = vlaneseq
        %v840 = vshrl.u32 %v839, 7
        %v841 = vsub.s32 %v838, %v840
        %v842 = vrot.slane %v826, %v841
        %v844 = vunpack.c.l.s4 1966171168
        %v845 = vunpack.c.0.s8 %v844
        %v846 = vlaneseq
        %v847 = vshrl.u32 %v846, 7
        %v848 = vsub.s32 %v845, %v847
        %v849 = vrot.slane %v833, %v848
        %v851 = vunpack.c.l.s4 1966171168
        %v852 = vunpack.c.0.s8 %v851
        %v853 = vlaneseq
        %v854 = vshrl.u32 %v853, 7
        %v855 = vsub.s32 %v852, %v854
        %v856 = vrot.slane %v834, %v855
        %v858 = vunpack.c.l.s4 1966171168
        %v859 = vunpack.c.0.s8 %v858
        %v860 = vlaneseq
        %v861 = vshrl.u32 %v860, 7
        %v862 = vsub.s32 %v859, %v861
        %v863 = vrot.slane %v835, %v862
        %v864 = vcombine.high %v842, %v842
        %v865 = vcombine.high %v849, %v849
        %v866 = vcombine.high %v856, %v856
        %v867 = vcombine.high %v863, %v863
        %v868 = vlaneseq
        %v869 = vshrl.u32 %v868, 7
        %v870 = vsub.s32 0, %v869
        %v871 = vrot.slane %v842, %v870
        %v872 = vlaneseq
        %v873 = vshrl.u32 %v872, 7
        %v874 = vsub.s32 0, %v873
        %v875 = vrot.slane %v856, %v874
        %v876 = vlaneseq
        %v877 = vshrl.u32 %v876, 7
        %v878 = vsub.s32 0, %v877
        %v879 = vrot.slane %v864, %v878
        %v880 = vlaneseq
        %v881 = vshrl.u32 %v880, 7
        %v882 = vsub.s32 0, %v881
        %v883 = vrot.slane %v866, %v882
        %v884 = vlaneseq
        %v885 = vshrl.u32 %v884, 7
        %v886 = vsub.s32 0, %v885
        %v887 = vrot.slane %v849, %v886
        %v888 = vlaneseq
        %v889 = vshrl.u32 %v888, 7
        %v890 = vsub.s32 0, %v889
        %v891 = vrot.slane %v863, %v890
        %v892 = vlaneseq
        %v893 = vshrl.u32 %v892, 7
        %v894 = vsub.s32 0, %v893
        %v895 = vrot.slane %v865, %v894
        %v896 = vlaneseq
        %v897 = vshrl.u32 %v896, 7
        %v898 = vsub.s32 0, %v897
        %v899 = vrot.slane %v867, %v898
        %908 = vrot.lane.b32.xlu0 %v556, 96
        %v909 = vpop.permute.xlu0 %908
        %v911 = vmul.f32 %v871, %v909
        %v912 = vmul.f32 %v875, %v909
        %v913 = vmul.f32 %v879, %v909
        %v914 = vmul.f32 %v883, %v909
        %v915 = vmul.f32 %v887, %v909
        %v916 = vmul.f32 %v891, %v909
        %v917 = vmul.f32 %v895, %v909
        %v918 = vmul.f32 %v899, %v909
        %v919 = vmul.f32 %v911, 0.35355338
        %v920 = vmul.f32 %v912, 0.35355338
        %v921 = vmul.f32 %v913, 0.35355338
        %v922 = vmul.f32 %v914, 0.35355338
        %v923 = vmul.f32 %v915, 0.35355338
        %v924 = vmul.f32 %v916, 0.35355338
        %v925 = vmul.f32 %v917, 0.35355338
        %v926 = vmul.f32 %v918, 0.35355338
        %v927 = vadd.f32 %v734, 1.0
        %v928 = vadd.f32 %v735, 1.0
        %v929 = vadd.f32 %v736, 1.0
        %v930 = vadd.f32 %v737, 1.0
        %v931 = vadd.f32 %v738, 1.0
        %v932 = vadd.f32 %v739, 1.0
        %v933 = vadd.f32 %v740, 1.0
        %v934 = vadd.f32 %v741, 1.0
        %v935 = vmul.f32 %v919, %v927
        %v936 = vmul.f32 %v920, %v928
        %v937 = vmul.f32 %v921, %v929
        %v938 = vmul.f32 %v922, %v930
        %v939 = vmul.f32 %v923, %v931
        %v940 = vmul.f32 %v924, %v932
        %v941 = vmul.f32 %v925, %v933
        %v942 = vmul.f32 %v926, %v934
        %951 = vrot.lane.b32.xlu0 %v734, 96
        %v952 = vpop.permute.xlu0 %951
        %953 = vrot.lane.b32.xlu0 %v735, 96
        %v954 = vpop.permute.xlu0 %953
        %955 = vrot.lane.b32.xlu0 %v736, 96
        %v956 = vpop.permute.xlu0 %955
        %957 = vrot.lane.b32.xlu0 %v737, 96
        %v958 = vpop.permute.xlu0 %957
        %959 = vrot.lane.b32.xlu0 %v738, 96
        %v960 = vpop.permute.xlu0 %959
        %961 = vrot.lane.b32.xlu0 %v739, 96
        %v962 = vpop.permute.xlu0 %961
        %963 = vrot.lane.b32.xlu0 %v740, 96
        %v964 = vpop.permute.xlu0 %963
        %965 = vrot.lane.b32.xlu0 %v741, 96
        %v966 = vpop.permute.xlu0 %965
        %v975 = vadd.f32 %v935, %v952
        %v976 = vadd.f32 %v936, %v954
        %v977 = vadd.f32 %v937, %v956
        %v978 = vadd.f32 %v938, %v958
        %v979 = vadd.f32 %v939, %v960
        %v980 = vadd.f32 %v940, %v962
        %v981 = vadd.f32 %v941, %v964
        %v982 = vadd.f32 %v942, %v966
        %v983 = vadd.f32 %v815, 1.0
        %v984 = vlaneseq
        %v985 = vshrl.u32 %v984, 7
        %v986 = vsub.s32 0, %v985
        %v987 = vrot.slane %v983, %v986
        %996 = vrot.lane.b32.xlu0 %v975, 32
        %v997 = vpop.permute.xlu0 %996
        %998 = vrot.lane.b32.xlu0 %v976, 32
        %v999 = vpop.permute.xlu0 %998
        %1000 = vrot.lane.b32.xlu0 %v977, 32
        %v1001 = vpop.permute.xlu0 %1000
        %1002 = vrot.lane.b32.xlu0 %v978, 32
        %v1003 = vpop.permute.xlu0 %1002
        %1004 = vrot.lane.b32.xlu0 %v979, 32
        %v1005 = vpop.permute.xlu0 %1004
        %1006 = vrot.lane.b32.xlu0 %v980, 32
        %v1007 = vpop.permute.xlu0 %1006
        %1008 = vrot.lane.b32.xlu0 %v981, 32
        %v1009 = vpop.permute.xlu0 %1008
        %1010 = vrot.lane.b32.xlu0 %v982, 32
        %v1011 = vpop.permute.xlu0 %1010
        %v1020 = vmul.f32 %v987, %v997
        %v1021 = vmul.f32 %v987, %v999
        %v1022 = vmul.f32 %v987, %v1001
        %v1023 = vmul.f32 %v987, %v1003
        %v1024 = vmul.f32 %v987, %v1005
        %v1025 = vmul.f32 %v987, %v1007
        %v1026 = vmul.f32 %v987, %v1009
        %v1027 = vmul.f32 %v987, %v1011
        %v1028 = vlaneseq
        %v1029 = vshrl.u32 %v1028, 7
        %v1030 = vsub.s32 0, %v1029
        %v1031 = vrot.slane %v815, %v1030
        %1040 = vrot.lane.b32.xlu0 %v1020, 96
        %v1041 = vpop.permute.xlu0 %1040
        %1042 = vrot.lane.b32.xlu0 %v1021, 96
        %v1043 = vpop.permute.xlu0 %1042
        %1044 = vrot.lane.b32.xlu0 %v1022, 96
        %v1045 = vpop.permute.xlu0 %1044
        %1046 = vrot.lane.b32.xlu0 %v1023, 96
        %v1047 = vpop.permute.xlu0 %1046
        %1048 = vrot.lane.b32.xlu0 %v1024, 96
        %v1049 = vpop.permute.xlu0 %1048
        %1050 = vrot.lane.b32.xlu0 %v1025, 96
        %v1051 = vpop.permute.xlu0 %1050
        %1052 = vrot.lane.b32.xlu0 %v1026, 96
        %v1053 = vpop.permute.xlu0 %1052
        %1054 = vrot.lane.b32.xlu0 %v1027, 96
        %v1055 = vpop.permute.xlu0 %1054
        %v1064 = vadd.f32 %v1031, %v1041
        %v1065 = vadd.f32 %v1031, %v1043
        %v1066 = vadd.f32 %v1031, %v1045
        %v1067 = vadd.f32 %v1031, %v1047
        %v1068 = vadd.f32 %v1031, %v1049
        %v1069 = vadd.f32 %v1031, %v1051
        %v1070 = vadd.f32 %v1031, %v1053
        %v1071 = vadd.f32 %v1031, %v1055
        %v1072 = vld [vmem:[#allocation2 + $0x58] sm:$0xff]
        %v1073 = vld [vmem:[#allocation2 + $0x60] sm:$0xff]
        %v1074 = vld [vmem:[#allocation2 + $0x68] sm:$0xff]
        %v1075 = vld [vmem:[#allocation2 + $0x70] sm:$0xff]
        %v1076 = vld [vmem:[#allocation2 + $0x78] sm:$0x1]
        %v1077 = vlaneseq
        %v1078 = vshrl.u32 %v1077, 7
        %v1079 = vsub.s32 0, %v1078
        %v1080 = vrot.slane %v1076, %v1079
        %v1082 = vsel %vm478, %v1064, 0
        %v1085 = vsel %vm478, %v1065, 0
        %v1088 = vsel %vm478, %v1066, 0
        %v1091 = vsel %vm478, %v1067, 0
        %v1094 = vsel %vm478, %v1068, 0
        %v1097 = vsel %vm478, %v1069, 0
        %v1100 = vsel %vm478, %v1070, 0
        %v1103 = vsel %vm478, %v1071, 0
        %1105 = vmatprep.subr.mxu0 0.0
        %1106 = vmatpush1.msra.mxu0 %v1072
        %1107 = vmatprep.subr.mxu0 0.0
        %1108 = vmatpush1.msra.mxu0 %v1073
        %1109 = vmatprep.subr.mxu0 0.0
        %1110 = vmatpush1.msra.mxu0 %v1074
        %1111 = vmatprep.subr.mxu0 0.0
        %1112 = vmatpush1.msra.mxu0 %v1075
        %1113 = vmatprep.subr.mxu0 0.0
        %1114 = vmatpush1.msra.mxu0 0.0
        %1115 = vmatprep.subr.mxu0 0.0
        %1116 = vmatpush1.msra.mxu0 0.0
        %1117 = vmatprep.subr.mxu0 0.0
        %1118 = vmatpush1.msra.mxu0 0.0
        %1119 = vmatprep.subr.mxu0 0.0
        %1120 = vmatpush1.msra.mxu0 0.0
        %1121 = vmatprep.subr.mxu0 0.0
        %1122 = vmatpush1.msra.mxu0 0.0
        %1123 = vmatprep.subr.mxu0 0.0
        %1124 = vmatpush1.msra.mxu0 0.0
        %1125 = vmatprep.subr.mxu0 0.0
        %1126 = vmatpush1.msra.mxu0 0.0
        %1127 = vmatprep.subr.mxu0 0.0
        %1128 = vmatpush1.msra.mxu0 0.0
        %1129 = vmatprep.subr.mxu0 0.0
        %1130 = vmatpush1.msra.mxu0 0.0
        %1131 = vmatprep.subr.mxu0 0.0
        %1132 = vmatpush1.msra.mxu0 0.0
        %1133 = vmatprep.subr.mxu0 0.0
        %1134 = vmatpush1.msra.mxu0 0.0
        %1135 = vmatprep.subr.mxu0 0.0
        %1136 = vmatpush1.msra.mxu0 0.0
        %1137 = vmatprep.subr.mxu0 0.0
        %1138 = vmatpush1.msra.mxu0 0.0
        %1139 = vmatprep.subr.mxu0 0.0
        %1140 = vmatpush1.msra.mxu0 0.0
        %1141 = vmatprep.subr.mxu0 0.0
        %1142 = vmatpush1.msra.mxu0 0.0
        %1143 = vmatprep.subr.mxu0 0.0
        %1144 = vmatpush1.msra.mxu0 0.0
        %1145 = vmatprep.subr.mxu0 0.0
        %1146 = vmatpush1.msra.mxu0 0.0
        %1147 = vmatprep.subr.mxu0 0.0
        %1148 = vmatpush1.msra.mxu0 0.0
        %1149 = vmatprep.subr.mxu0 0.0
        %1150 = vmatpush1.msra.mxu0 0.0
        %1151 = vmatprep.subr.mxu0 0.0
        %1152 = vmatpush1.msra.mxu0 0.0
        %1153 = vmatprep.subr.mxu0 0.0
        %1154 = vmatpush1.msra.mxu0 0.0
        %1155 = vmatprep.subr.mxu0 0.0
        %1156 = vmatpush1.msra.mxu0 0.0
        %1157 = vmatprep.subr.mxu0 0.0
        %1158 = vmatpush1.msra.mxu0 0.0
        %1159 = vmatprep.subr.mxu0 0.0
        %1160 = vmatpush1.msra.mxu0 0.0
        %1161 = vmatprep.subr.mxu0 0.0
        %1162 = vmatpush1.msra.mxu0 0.0
        %1163 = vmatprep.subr.mxu0 0.0
        %1164 = vmatpush1.msra.mxu0 0.0
        %1165 = vmatprep.subr.mxu0 0.0
        %1166 = vmatpush1.msra.mxu0 0.0
        %1167 = vmatprep.subr.mxu0 0.0
        %1168 = vmatpush1.msra.mxu0 0.0
        %1169 = vmatprep.mubr.f32.mxu0 0.0
        %1170 = vmatmul.mubr.f32.gmra.mrb[0].mxu0 %v1082
        %v1171 = vpop.f32.mrb[0].mxu0
        %v1172 = vadd.f32 %v1080, %v1171
        %v1173 = vpop.f32.mrb[0].mxu0
        %1174 = vmatprep.mubr.f32.mxu0 0.0
        %1175 = vmatmul.mubr.f32.gmra.mrb[0].mxu0 %v1085
        %v1176 = vpop.f32.mrb[0].mxu0
        %v1177 = vadd.f32 %v1080, %v1176
        %v1178 = vpop.f32.mrb[0].mxu0
        %1179 = vmatprep.mubr.f32.mxu0 0.0
        %1180 = vmatmul.mubr.f32.gmra.mrb[0].mxu0 %v1088
        %v1181 = vpop.f32.mrb[0].mxu0
        %v1182 = vadd.f32 %v1080, %v1181
        %v1183 = vpop.f32.mrb[0].mxu0
        %1184 = vmatprep.mubr.f32.mxu0 0.0
        %1185 = vmatmul.mubr.f32.gmra.mrb[0].mxu0 %v1091
        %v1186 = vpop.f32.mrb[0].mxu0
        %v1187 = vadd.f32 %v1080, %v1186
        %v1188 = vpop.f32.mrb[0].mxu0
        %1189 = vmatprep.mubr.f32.mxu0 0.0
        %1190 = vmatmul.mubr.f32.gmra.mrb[0].mxu0 %v1094
        %v1191 = vpop.f32.mrb[0].mxu0
        %v1192 = vadd.f32 %v1080, %v1191
        %v1193 = vpop.f32.mrb[0].mxu0
        %1194 = vmatprep.mubr.f32.mxu0 0.0
        %1195 = vmatmul.mubr.f32.gmra.mrb[0].mxu0 %v1097
        %v1196 = vpop.f32.mrb[0].mxu0
        %v1197 = vadd.f32 %v1080, %v1196
        %v1198 = vpop.f32.mrb[0].mxu0
        %1199 = vmatprep.mubr.f32.mxu0 0.0
        %1200 = vmatmul.mubr.f32.gmra.mrb[0].mxu0 %v1100
        %v1201 = vpop.f32.mrb[0].mxu0
        %v1202 = vadd.f32 %v1080, %v1201
        %v1203 = vpop.f32.mrb[0].mxu0
        %1204 = vmatprep.mubr.f32.mxu0 0.0
        %1205 = vmatmul.mubr.f32.gmra.mrb[0].mxu0 %v1103
        %v1206 = vpop.f32.mrb[0].mxu0
        %v1207 = vadd.f32 %v1080, %v1206
        %v1208 = vpop.f32.mrb[0].mxu0
        %1209 = vdwg.mxu0
        %v1210 = vmul.f32 %v1172, %v697
        %v1211 = vmul.f32 %v1177, %v702
        %v1212 = vmul.f32 %v1182, %v707
        %v1213 = vmul.f32 %v1187, %v712
        %v1214 = vmul.f32 %v1192, %v717
        %v1215 = vmul.f32 %v1197, %v722
        %v1216 = vmul.f32 %v1202, %v727
        %v1217 = vmul.f32 %v1207, %v732
        %v1218 = vsel %vm468, 1, 0
        %1219 = vset.pattern.permute.xlu0 0
        %1220 = vperm.xlu0 %1219, %v1218
        %v1221 = vpop.permute.xlu0 %1220
        %vm1222 = vcmp.eq.s32.totalorder %v1221, 1
        %v1223 = vsel %vm1222, %v975, -1e+30
        %v1224 = vsel %vm1222, %v976, -1e+30
        %v1225 = vsel %vm1222, %v977, -1e+30
        %v1226 = vsel %vm1222, %v978, -1e+30
        %v1227 = vsel %vm1222, %v979, -1e+30
        %v1228 = vsel %vm1222, %v980, -1e+30
        %v1229 = vsel %vm1222, %v981, -1e+30
        %v1230 = vsel %vm1222, %v982, -1e+30
        %v1231 = vsel %vm478, %v1223, -inf
        %v1232 = vrot.slane %v1231, 4
        %v1233 = vmax.f32 %v1231, %v1232
        %v1234 = vrot.slane %v1233, 2
        %v1235 = vmax.f32 %v1233, %v1234
        %v1236 = vrot.slane %v1235, 1
        %v1237 = vmax.f32 %v1235, %v1236
        %v1238 = vsel %vm478, %v1224, -inf
        %v1239 = vrot.slane %v1238, 4
        %v1240 = vmax.f32 %v1238, %v1239
        %v1241 = vrot.slane %v1240, 2
        %v1242 = vmax.f32 %v1240, %v1241
        %v1243 = vrot.slane %v1242, 1
        %v1244 = vmax.f32 %v1242, %v1243
        %v1245 = vsel %vm478, %v1225, -inf
        %v1246 = vrot.slane %v1245, 4
        %v1247 = vmax.f32 %v1245, %v1246
        %v1248 = vrot.slane %v1247, 2
        %v1249 = vmax.f32 %v1247, %v1248
        %v1250 = vrot.slane %v1249, 1
        %v1251 = vmax.f32 %v1249, %v1250
        %v1252 = vsel %vm478, %v1226, -inf
        %v1253 = vrot.slane %v1252, 4
        %v1254 = vmax.f32 %v1252, %v1253
        %v1255 = vrot.slane %v1254, 2
        %v1256 = vmax.f32 %v1254, %v1255
        %v1257 = vrot.slane %v1256, 1
        %v1258 = vmax.f32 %v1256, %v1257
        %v1259 = vsel %vm478, %v1227, -inf
        %v1260 = vrot.slane %v1259, 4
        %v1261 = vmax.f32 %v1259, %v1260
        %v1262 = vrot.slane %v1261, 2
        %v1263 = vmax.f32 %v1261, %v1262
        %v1264 = vrot.slane %v1263, 1
        %v1265 = vmax.f32 %v1263, %v1264
        %v1266 = vsel %vm478, %v1228, -inf
        %v1267 = vrot.slane %v1266, 4
        %v1268 = vmax.f32 %v1266, %v1267
        %v1269 = vrot.slane %v1268, 2
        %v1270 = vmax.f32 %v1268, %v1269
        %v1271 = vrot.slane %v1270, 1
        %v1272 = vmax.f32 %v1270, %v1271
        %v1273 = vsel %vm478, %v1229, -inf
        %v1274 = vrot.slane %v1273, 4
        %v1275 = vmax.f32 %v1273, %v1274
        %v1276 = vrot.slane %v1275, 2
        %v1277 = vmax.f32 %v1275, %v1276
        %v1278 = vrot.slane %v1277, 1
        %v1279 = vmax.f32 %v1277, %v1278
        %v1280 = vsel %vm478, %v1230, -inf
        %v1281 = vrot.slane %v1280, 4
        %v1282 = vmax.f32 %v1280, %v1281
        %v1283 = vrot.slane %v1282, 2
        %v1284 = vmax.f32 %v1282, %v1283
        %v1285 = vrot.slane %v1284, 1
        %v1286 = vmax.f32 %v1284, %v1285
        %v1287 = vsub.f32 %v1223, %v1237
        %v1288 = vsub.f32 %v1224, %v1244
        %v1289 = vsub.f32 %v1225, %v1251
        %v1290 = vsub.f32 %v1226, %v1258
        %v1291 = vsub.f32 %v1227, %v1265
        %v1292 = vsub.f32 %v1228, %v1272
        %v1293 = vsub.f32 %v1229, %v1279
        %v1294 = vsub.f32 %v1230, %v1286
        %v1295 = vmul.f32 %v1287, 1.442695
        %v1296 = vpow.pop %v1295
        %v1297 = vmul.f32 %v1288, 1.442695
        %v1298 = vpow.pop %v1297
        %v1299 = vmul.f32 %v1289, 1.442695
        %v1300 = vpow.pop %v1299
        %v1301 = vmul.f32 %v1290, 1.442695
        %v1302 = vpow.pop %v1301
        %v1303 = vmul.f32 %v1291, 1.442695
        %v1304 = vpow.pop %v1303
        %v1305 = vmul.f32 %v1292, 1.442695
        %v1306 = vpow.pop %v1305
        %v1307 = vmul.f32 %v1293, 1.442695
        %v1308 = vpow.pop %v1307
        %v1309 = vmul.f32 %v1294, 1.442695
        %v1310 = vpow.pop %v1309
        %v1311 = vsel %vm1222, %v1296, 0.0
        %v1312 = vsel %vm1222, %v1298, 0.0
        %v1313 = vsel %vm1222, %v1300, 0.0
        %v1314 = vsel %vm1222, %v1302, 0.0
        %v1315 = vsel %vm1222, %v1304, 0.0
        %v1316 = vsel %vm1222, %v1306, 0.0
        %v1317 = vsel %vm1222, %v1308, 0.0
        %v1318 = vsel %vm1222, %v1310, 0.0
        %v1319 = vsel %vm478, %v1311, 0.0
        %v1320 = vrot.slane %v1319, 4
        %v1321 = vadd.f32 %v1319, %v1320
        %v1322 = vrot.slane %v1321, 2
        %v1323 = vadd.f32 %v1321, %v1322
        %v1324 = vrot.slane %v1323, 1
        %v1325 = vadd.f32 %v1323, %v1324
        %v1326 = vsel %vm478, %v1312, 0.0
        %v1327 = vrot.slane %v1326, 4
        %v1328 = vadd.f32 %v1326, %v1327
        %v1329 = vrot.slane %v1328, 2
        %v1330 = vadd.f32 %v1328, %v1329
        %v1331 = vrot.slane %v1330, 1
        %v1332 = vadd.f32 %v1330, %v1331
        %v1333 = vsel %vm478, %v1313, 0.0
        %v1334 = vrot.slane %v1333, 4
        %v1335 = vadd.f32 %v1333, %v1334
        %v1336 = vrot.slane %v1335, 2
        %v1337 = vadd.f32 %v1335, %v1336
        %v1338 = vrot.slane %v1337, 1
        %v1339 = vadd.f32 %v1337, %v1338
        %v1340 = vsel %vm478, %v1314, 0.0
        %v1341 = vrot.slane %v1340, 4
        %v1342 = vadd.f32 %v1340, %v1341
        %v1343 = vrot.slane %v1342, 2
        %v1344 = vadd.f32 %v1342, %v1343
        %v1345 = vrot.slane %v1344, 1
        %v1346 = vadd.f32 %v1344, %v1345
        %v1347 = vsel %vm478, %v1315, 0.0
        %v1348 = vrot.slane %v1347, 4
        %v1349 = vadd.f32 %v1347, %v1348
        %v1350 = vrot.slane %v1349, 2
        %v1351 = vadd.f32 %v1349, %v1350
        %v1352 = vrot.slane %v1351, 1
        %v1353 = vadd.f32 %v1351, %v1352
        %v1354 = vsel %vm478, %v1316, 0.0
        %v1355 = vrot.slane %v1354, 4
        %v1356 = vadd.f32 %v1354, %v1355
        %v1357 = vrot.slane %v1356, 2
        %v1358 = vadd.f32 %v1356, %v1357
        %v1359 = vrot.slane %v1358, 1
        %v1360 = vadd.f32 %v1358, %v1359
        %v1361 = vsel %vm478, %v1317, 0.0
        %v1362 = vrot.slane %v1361, 4
        %v1363 = vadd.f32 %v1361, %v1362
        %v1364 = vrot.slane %v1363, 2
        %v1365 = vadd.f32 %v1363, %v1364
        %v1366 = vrot.slane %v1365, 1
        %v1367 = vadd.f32 %v1365, %v1366
        %v1368 = vsel %vm478, %v1318, 0.0
        %v1369 = vrot.slane %v1368, 4
        %v1370 = vadd.f32 %v1368, %v1369
        %v1371 = vrot.slane %v1370, 2
        %v1372 = vadd.f32 %v1370, %v1371
        %v1373 = vrot.slane %v1372, 1
        %v1374 = vadd.f32 %v1372, %v1373
        %v1375 = vmax.f32 %v1325, 1e-30
        %v1376 = vmax.f32 %v1332, 1e-30
        %v1377 = vmax.f32 %v1339, 1e-30
        %v1378 = vmax.f32 %v1346, 1e-30
        %v1379 = vmax.f32 %v1353, 1e-30
        %v1380 = vmax.f32 %v1360, 1e-30
        %v1381 = vmax.f32 %v1367, 1e-30
        %v1382 = vmax.f32 %v1374, 1e-30
        %v1383 = vrcp.pop %v1375
        %v1384 = vmul.f32 %v1311, %v1383
        %v1385 = vrcp.pop %v1376
        %v1386 = vmul.f32 %v1312, %v1385
        %v1387 = vrcp.pop %v1377
        %v1388 = vmul.f32 %v1313, %v1387
        %v1389 = vrcp.pop %v1378
        %v1390 = vmul.f32 %v1314, %v1389
        %v1391 = vrcp.pop %v1379
        %v1392 = vmul.f32 %v1315, %v1391
        %v1393 = vrcp.pop %v1380
        %v1394 = vmul.f32 %v1316, %v1393
        %v1395 = vrcp.pop %v1381
        %v1396 = vmul.f32 %v1317, %v1395
        %v1397 = vrcp.pop %v1382
        %v1398 = vmul.f32 %v1318, %v1397
        %1399 = vrot.lane.b32.xlu0 %v556, 64
        %v1400 = vpop.permute.xlu0 %1399
        %v1402 = vmul.f32 %v1384, %v1400
        %v1403 = vmul.f32 %v1386, %v1400
        %v1404 = vmul.f32 %v1388, %v1400
        %v1405 = vmul.f32 %v1390, %v1400
        %v1406 = vmul.f32 %v1392, %v1400
        %v1407 = vmul.f32 %v1394, %v1400
        %v1408 = vmul.f32 %v1396, %v1400
        %v1409 = vmul.f32 %v1398, %v1400
        %v1410 = vsel %vm478, %v1402, 0.0
        %v1411 = vrot.slane %v1410, 4
        %v1412 = vadd.f32 %v1410, %v1411
        %v1413 = vrot.slane %v1412, 2
        %v1414 = vadd.f32 %v1412, %v1413
        %v1415 = vrot.slane %v1414, 1
        %v1416 = vadd.f32 %v1414, %v1415
        %v1417 = vsel %vm478, %v1403, 0.0
        %v1418 = vrot.slane %v1417, 4
        %v1419 = vadd.f32 %v1417, %v1418
        %v1420 = vrot.slane %v1419, 2
        %v1421 = vadd.f32 %v1419, %v1420
        %v1422 = vrot.slane %v1421, 1
        %v1423 = vadd.f32 %v1421, %v1422
        %v1424 = vsel %vm478, %v1404, 0.0
        %v1425 = vrot.slane %v1424, 4
        %v1426 = vadd.f32 %v1424, %v1425
        %v1427 = vrot.slane %v1426, 2
        %v1428 = vadd.f32 %v1426, %v1427
        %v1429 = vrot.slane %v1428, 1
        %v1430 = vadd.f32 %v1428, %v1429
        %v1431 = vsel %vm478, %v1405, 0.0
        %v1432 = vrot.slane %v1431, 4
        %v1433 = vadd.f32 %v1431, %v1432
        %v1434 = vrot.slane %v1433, 2
        %v1435 = vadd.f32 %v1433, %v1434
        %v1436 = vrot.slane %v1435, 1
        %v1437 = vadd.f32 %v1435, %v1436
        %v1438 = vsel %vm478, %v1406, 0.0
        %v1439 = vrot.slane %v1438, 4
        %v1440 = vadd.f32 %v1438, %v1439
        %v1441 = vrot.slane %v1440, 2
        %v1442 = vadd.f32 %v1440, %v1441
        %v1443 = vrot.slane %v1442, 1
        %v1444 = vadd.f32 %v1442, %v1443
        %v1445 = vsel %vm478, %v1407, 0.0
        %v1446 = vrot.slane %v1445, 4
        %v1447 = vadd.f32 %v1445, %v1446
        %v1448 = vrot.slane %v1447, 2
        %v1449 = vadd.f32 %v1447, %v1448
        %v1450 = vrot.slane %v1449, 1
        %v1451 = vadd.f32 %v1449, %v1450
        %v1452 = vsel %vm478, %v1408, 0.0
        %v1453 = vrot.slane %v1452, 4
        %v1454 = vadd.f32 %v1452, %v1453
        %v1455 = vrot.slane %v1454, 2
        %v1456 = vadd.f32 %v1454, %v1455
        %v1457 = vrot.slane %v1456, 1
        %v1458 = vadd.f32 %v1456, %v1457
        %v1459 = vsel %vm478, %v1409, 0.0
        %v1460 = vrot.slane %v1459, 4
        %v1461 = vadd.f32 %v1459, %v1460
        %v1462 = vrot.slane %v1461, 2
        %v1463 = vadd.f32 %v1461, %v1462
        %v1464 = vrot.slane %v1463, 1
        %v1465 = vadd.f32 %v1463, %v1464
        %vm1474 = vcmask 1041409
        %v1475 = vsel %vm1474, %v1423, %v1416
        %vm1476 = vcmask 1042434
        %v1477 = vsel %vm1476, %v1430, %v1475
        %vm1478 = vcmask 1043459
        %v1479 = vsel %vm1478, %v1437, %v1477
        %vm1480 = vcmask 1044484
        %v1481 = vsel %vm1480, %v1444, %v1479
        %vm1482 = vcmask 1045509
        %v1483 = vsel %vm1482, %v1451, %v1481
        %vm1484 = vcmask 1046534
        %v1485 = vsel %vm1484, %v1458, %v1483
        %vm1486 = vcmask 1047559
        %v1487 = vsel %vm1486, %v1465, %v1485
        %1488 = vrot.lane.b32.xlu0 %v1487, 96
        %v1489 = vpop.permute.xlu0 %1488
        %v1491 = vmul.f32 %v987, %v1489
        %1493 = vrot.lane.b32.xlu0 %v1491, 96
        %v1494 = vpop.permute.xlu0 %1493
        %v1496 = vadd.f32 %v1031, %v1494
        %v1497 = vld [vmem:[#allocation2 + $0x80] sm:$0xff]
        %v1498 = vld [vmem:[#allocation2 + $0x88] sm:$0xff]
        %v1499 = vld [vmem:[#allocation2 + $0x90] sm:$0xff]
        %v1500 = vld [vmem:[#allocation2 + $0x98] sm:$0xff]
        %v1501 = vld [vmem:[#allocation2 + $0xa0] sm:$0x1]
        %v1502 = vlaneseq
        %v1503 = vshrl.u32 %v1502, 7
        %v1504 = vsub.s32 0, %v1503
        %v1505 = vrot.slane %v1501, %v1504
        %1507 = vrot.lane.b32.xlu0 %v1496, 64
        %v1508 = vpop.permute.xlu0 %1507
        %v1509 = vsel %vm478, %v1508, 0
        %1511 = vmatprep.subr.mxu0 0.0
        %1512 = vmatpush1.msra.mxu0 %v1497
        %1513 = vmatprep.subr.mxu0 0.0
        %1514 = vmatpush1.msra.mxu0 %v1498
        %1515 = vmatprep.subr.mxu0 0.0
        %1516 = vmatpush1.msra.mxu0 %v1499
        %1517 = vmatprep.subr.mxu0 0.0
        %1518 = vmatpush1.msra.mxu0 %v1500
        %1519 = vmatprep.subr.mxu0 0.0
        %1520 = vmatpush1.msra.mxu0 0.0
        %1521 = vmatprep.subr.mxu0 0.0
        %1522 = vmatpush1.msra.mxu0 0.0
        %1523 = vmatprep.subr.mxu0 0.0
        %1524 = vmatpush1.msra.mxu0 0.0
        %1525 = vmatprep.subr.mxu0 0.0
        %1526 = vmatpush1.msra.mxu0 0.0
        %1527 = vmatprep.subr.mxu0 0.0
        %1528 = vmatpush1.msra.mxu0 0.0
        %1529 = vmatprep.subr.mxu0 0.0
        %1530 = vmatpush1.msra.mxu0 0.0
        %1531 = vmatprep.subr.mxu0 0.0
        %1532 = vmatpush1.msra.mxu0 0.0
        %1533 = vmatprep.subr.mxu0 0.0
        %1534 = vmatpush1.msra.mxu0 0.0
        %1535 = vmatprep.subr.mxu0 0.0
        %1536 = vmatpush1.msra.mxu0 0.0
        %1537 = vmatprep.subr.mxu0 0.0
        %1538 = vmatpush1.msra.mxu0 0.0
        %1539 = vmatprep.subr.mxu0 0.0
        %1540 = vmatpush1.msra.mxu0 0.0
        %1541 = vmatprep.subr.mxu0 0.0
        %1542 = vmatpush1.msra.mxu0 0.0
        %1543 = vmatprep.subr.mxu0 0.0
        %1544 = vmatpush1.msra.mxu0 0.0
        %1545 = vmatprep.subr.mxu0 0.0
        %1546 = vmatpush1.msra.mxu0 0.0
        %1547 = vmatprep.subr.mxu0 0.0
        %1548 = vmatpush1.msra.mxu0 0.0
        %1549 = vmatprep.subr.mxu0 0.0
        %1550 = vmatpush1.msra.mxu0 0.0
        %1551 = vmatprep.subr.mxu0 0.0
        %1552 = vmatpush1.msra.mxu0 0.0
        %1553 = vmatprep.subr.mxu0 0.0
        %1554 = vmatpush1.msra.mxu0 0.0
        %1555 = vmatprep.subr.mxu0 0.0
        %1556 = vmatpush1.msra.mxu0 0.0
        %1557 = vmatprep.subr.mxu0 0.0
        %1558 = vmatpush1.msra.mxu0 0.0
        %1559 = vmatprep.subr.mxu0 0.0
        %1560 = vmatpush1.msra.mxu0 0.0
        %1561 = vmatprep.subr.mxu0 0.0
        %1562 = vmatpush1.msra.mxu0 0.0
        %1563 = vmatprep.subr.mxu0 0.0
        %1564 = vmatpush1.msra.mxu0 0.0
        %1565 = vmatprep.subr.mxu0 0.0
        %1566 = vmatpush1.msra.mxu0 0.0
        %1567 = vmatprep.subr.mxu0 0.0
        %1568 = vmatpush1.msra.mxu0 0.0
        %1569 = vmatprep.subr.mxu0 0.0
        %1570 = vmatpush1.msra.mxu0 0.0
        %1571 = vmatprep.subr.mxu0 0.0
        %1572 = vmatpush1.msra.mxu0 0.0
        %1573 = vmatprep.subr.mxu0 0.0
        %1574 = vmatpush1.msra.mxu0 0.0
        %1575 = vmatprep.mubr.f32.mxu0 0.0
        %1576 = vmatmul.mubr.f32.gmra.mrb[0].mxu0 %v1509
        %v1577 = vpop.f32.mrb[0].mxu0
        %v1578 = vadd.f32 %v1505, %v1577
        %v1579 = vpop.f32.mrb[0].mxu0
        %1580 = vdwg.mxu0
        %v1581 = vmul.f32 %v1578, %v554
        %v1582 = vld [vmem:[#allocation2 + $0xa8] sm:$0xff]
        %v1583 = vld [vmem:[#allocation2 + $0xb0] sm:$0xff]
        %v1584 = vld [vmem:[#allocation2 + $0x178] sm:$0x1]
        %1585 = vmatprep.subr.mxu0 0.0
        %1586 = vmatpush1.msra.mxu0 %v1582
        %1587 = vmatprep.subr.mxu0 0.0
        %1588 = vmatpush1.msra.mxu0 %v1583
        %1589 = vmatprep.subr.mxu0 0.0
        %1590 = vmatpush1.msra.mxu0 0.0
        %1591 = vmatprep.subr.mxu0 0.0
        %1592 = vmatpush1.msra.mxu0 0.0
        %1593 = vmatprep.subr.mxu0 0.0
        %1594 = vmatpush1.msra.mxu0 0.0
        %1595 = vmatprep.subr.mxu0 0.0
        %1596 = vmatpush1.msra.mxu0 0.0
        %1597 = vmatprep.subr.mxu0 0.0
        %1598 = vmatpush1.msra.mxu0 0.0
        %1599 = vmatprep.subr.mxu0 0.0
        %1600 = vmatpush1.msra.mxu0 0.0
        %1601 = vmatprep.subr.mxu0 0.0
        %1602 = vmatpush1.msra.mxu0 0.0
        %1603 = vmatprep.subr.mxu0 0.0
        %1604 = vmatpush1.msra.mxu0 0.0
        %1605 = vmatprep.subr.mxu0 0.0
        %1606 = vmatpush1.msra.mxu0 0.0
        %1607 = vmatprep.subr.mxu0 0.0
        %1608 = vmatpush1.msra.mxu0 0.0
        %1609 = vmatprep.subr.mxu0 0.0
        %1610 = vmatpush1.msra.mxu0 0.0
        %1611 = vmatprep.subr.mxu0 0.0
        %1612 = vmatpush1.msra.mxu0 0.0
        %1613 = vmatprep.subr.mxu0 0.0
        %1614 = vmatpush1.msra.mxu0 0.0
        %1615 = vmatprep.subr.mxu0 0.0
        %1616 = vmatpush1.msra.mxu0 0.0
        %1617 = vmatprep.subr.mxu0 0.0
        %1618 = vmatpush1.msra.mxu0 0.0
        %1619 = vmatprep.subr.mxu0 0.0
        %1620 = vmatpush1.msra.mxu0 0.0
        %1621 = vmatprep.subr.mxu0 0.0
        %1622 = vmatpush1.msra.mxu0 0.0
        %1623 = vmatprep.subr.mxu0 0.0
        %1624 = vmatpush1.msra.mxu0 0.0
        %1625 = vmatprep.subr.mxu0 0.0
        %1626 = vmatpush1.msra.mxu0 0.0
        %1627 = vmatprep.subr.mxu0 0.0
        %1628 = vmatpush1.msra.mxu0 0.0
        %1629 = vmatprep.subr.mxu0 0.0
        %1630 = vmatpush1.msra.mxu0 0.0
        %1631 = vmatprep.subr.mxu0 0.0
        %1632 = vmatpush1.msra.mxu0 0.0
        %1633 = vmatprep.subr.mxu0 0.0
        %1634 = vmatpush1.msra.mxu0 0.0
        %1635 = vmatprep.subr.mxu0 0.0
        %1636 = vmatpush1.msra.mxu0 0.0
        %1637 = vmatprep.subr.mxu0 0.0
        %1638 = vmatpush1.msra.mxu0 0.0
        %1639 = vmatprep.subr.mxu0 0.0
        %1640 = vmatpush1.msra.mxu0 0.0
        %1641 = vmatprep.subr.mxu0 0.0
        %1642 = vmatpush1.msra.mxu0 0.0
        %1643 = vmatprep.subr.mxu0 0.0
        %1644 = vmatpush1.msra.mxu0 0.0
        %1645 = vmatprep.subr.mxu0 0.0
        %1646 = vmatpush1.msra.mxu0 0.0
        %1647 = vmatprep.subr.mxu0 0.0
        %1648 = vmatpush1.msra.mxu0 0.0
        %1649 = vmatprep.mubr.f32.mxu0 0.0
        %1650 = vmatmul.mubr.f32.gmra.mrb[0].mxu0 %v746
        %v1651 = vpop.f32.mrb[0].mxu0
        %v1652 = vadd.f32 %v1584, %v1651
        %v1653 = vpop.f32.mrb[0].mxu0
        %1654 = vdwg.mxu0
        %v1655 = vsel %vm478, %v359, 0.0
        %v1656 = vrot.slane %v1655, 4
        %v1657 = vadd.f32 %v1655, %v1656
        %v1658 = vrot.slane %v1657, 2
        %v1659 = vadd.f32 %v1657, %v1658
        %v1660 = vrot.slane %v1659, 1
        %v1661 = vadd.f32 %v1659, %v1660
        %v1662 = vrcp.pop 8.0
        %v1663 = vmul.f32 %v1661, %v1662
        %v1664 = vsel %vm478, %v359, inf
        %v1665 = vrot.slane %v1664, 4
        %v1666 = vmin.f32 %v1664, %v1665
        %v1667 = vrot.slane %v1666, 2
        %v1668 = vmin.f32 %v1666, %v1667
        %v1669 = vrot.slane %v1668, 1
        %v1670 = vmin.f32 %v1668, %v1669
        %v1671 = vsel %vm478, %v359, -inf
        %v1672 = vrot.slane %v1671, 4
        %v1673 = vmax.f32 %v1671, %v1672
        %v1674 = vrot.slane %v1673, 2
        %v1675 = vmax.f32 %v1673, %v1674
        %v1676 = vrot.slane %v1675, 1
        %v1677 = vmax.f32 %v1675, %v1676
        %v1678 = vsub.f32 %v359, %v1663
        %v1679 = vmul.f32 %v1678, %v1678
        %v1680 = vsel %vm478, %v1679, 0.0
        %v1681 = vrot.slane %v1680, 4
        %v1682 = vadd.f32 %v1680, %v1681
        %v1683 = vrot.slane %v1682, 2
        %v1684 = vadd.f32 %v1682, %v1683
        %v1685 = vrot.slane %v1684, 1
        %v1686 = vadd.f32 %v1684, %v1685
        %v1687 = vrcp.pop 7.0
        %v1688 = vmul.f32 %v1686, %v1687
        %v1689 = vrsqrt.pop %v1688
        %v1690 = vmul.f32 %v1688, %v1689
        %vm1691 = vcmp.eq.f32.partialorder %v1688, inf
        %v1692 = vsel %vm1691, %v1688, %v1690
        %vm1693 = vcmp.eq.f32.partialorder %v1688, 0.0
        %v1694 = vand.u32 %v1688, 2147483648
        %v1695 = vsel %vm1693, %v1694, %v1692
        %v1696 = vld [vmem:[#allocation2 + $0xb8] sm:$0xff]
        %v1697 = vld [vmem:[#allocation2 + $0xc0] sm:$0xff]
        %v1698 = vld [vmem:[#allocation2 + $0xc8] sm:$0xff]
        %v1699 = vld [vmem:[#allocation2 + $0xd0] sm:$0xff]
        %v1701 = vsel %vm478, %v1663, 0
        %1703 = vmatprep.subr.mxu0 0.0
        %1704 = vmatpush1.msra.mxu0 %v1696
        %1705 = vmatprep.subr.mxu0 0.0
        %1706 = vmatpush1.msra.mxu0 %v1697
        %1707 = vmatprep.subr.mxu0 0.0
        %1708 = vmatpush1.msra.mxu0 %v1698
        %1709 = vmatprep.subr.mxu0 0.0
        %1710 = vmatpush1.msra.mxu0 %v1699
        %1711 = vmatprep.subr.mxu0 0.0
        %1712 = vmatpush1.msra.mxu0 0.0
        %1713 = vmatprep.subr.mxu0 0.0
        %1714 = vmatpush1.msra.mxu0 0.0
        %1715 = vmatprep.subr.mxu0 0.0
        %1716 = vmatpush1.msra.mxu0 0.0
        %1717 = vmatprep.subr.mxu0 0.0
        %1718 = vmatpush1.msra.mxu0 0.0
        %1719 = vmatprep.subr.mxu0 0.0
        %1720 = vmatpush1.msra.mxu0 0.0
        %1721 = vmatprep.subr.mxu0 0.0
        %1722 = vmatpush1.msra.mxu0 0.0
        %1723 = vmatprep.subr.mxu0 0.0
        %1724 = vmatpush1.msra.mxu0 0.0
        %1725 = vmatprep.subr.mxu0 0.0
        %1726 = vmatpush1.msra.mxu0 0.0
        %1727 = vmatprep.subr.mxu0 0.0
        %1728 = vmatpush1.msra.mxu0 0.0
        %1729 = vmatprep.subr.mxu0 0.0
        %1730 = vmatpush1.msra.mxu0 0.0
        %1731 = vmatprep.subr.mxu0 0.0
        %1732 = vmatpush1.msra.mxu0 0.0
        %1733 = vmatprep.subr.mxu0 0.0
        %1734 = vmatpush1.msra.mxu0 0.0
        %1735 = vmatprep.subr.mxu0 0.0
        %1736 = vmatpush1.msra.mxu0 0.0
        %1737 = vmatprep.subr.mxu0 0.0
        %1738 = vmatpush1.msra.mxu0 0.0
        %1739 = vmatprep.subr.mxu0 0.0
        %1740 = vmatpush1.msra.mxu0 0.0
        %1741 = vmatprep.subr.mxu0 0.0
        %1742 = vmatpush1.msra.mxu0 0.0
        %1743 = vmatprep.subr.mxu0 0.0
        %1744 = vmatpush1.msra.mxu0 0.0
        %1745 = vmatprep.subr.mxu0 0.0
        %1746 = vmatpush1.msra.mxu0 0.0
        %1747 = vmatprep.subr.mxu0 0.0
        %1748 = vmatpush1.msra.mxu0 0.0
        %1749 = vmatprep.subr.mxu0 0.0
        %1750 = vmatpush1.msra.mxu0 0.0
        %1751 = vmatprep.subr.mxu0 0.0
        %1752 = vmatpush1.msra.mxu0 0.0
        %1753 = vmatprep.subr.mxu0 0.0
        %1754 = vmatpush1.msra.mxu0 0.0
        %1755 = vmatprep.subr.mxu0 0.0
        %1756 = vmatpush1.msra.mxu0 0.0
        %1757 = vmatprep.subr.mxu0 0.0
        %1758 = vmatpush1.msra.mxu0 0.0
        %1759 = vmatprep.subr.mxu0 0.0
        %1760 = vmatpush1.msra.mxu0 0.0
        %1761 = vmatprep.subr.mxu0 0.0
        %1762 = vmatpush1.msra.mxu0 0.0
        %1763 = vmatprep.subr.mxu0 0.0
        %1764 = vmatpush1.msra.mxu0 0.0
        %1765 = vmatprep.subr.mxu0 0.0
        %1766 = vmatpush1.msra.mxu0 0.0
        %1767 = vmatprep.mubr.f32.mxu0 0.0
        %1768 = vmatmul.mubr.f32.gmra.mrb[0].mxu0 %v1701
        %v1769 = vpop.f32.mrb[0].mxu0
        %v1770 = vadd.f32 0.0, %v1769
        %v1771 = vpop.f32.mrb[0].mxu0
        %1772 = vdwg.mxu0
        %v1773 = vadd.f32 %v1652, %v1770
        %v1774 = vld [vmem:[#allocation2 + $0xe8] sm:$0xff]
        %v1775 = vld [vmem:[#allocation2 + $0xf0] sm:$0xff]
        %v1776 = vld [vmem:[#allocation2 + $0xf8] sm:$0xff]
        %v1777 = vld [vmem:[#allocation2 + $0x100] sm:$0xff]
        %v1779 = vsel %vm478, %v1670, 0
        %1781 = vmatprep.subr.mxu0 0.0
        %1782 = vmatpush1.msra.mxu0 %v1774
        %1783 = vmatprep.subr.mxu0 0.0
        %1784 = vmatpush1.msra.mxu0 %v1775
        %1785 = vmatprep.subr.mxu0 0.0
        %1786 = vmatpush1.msra.mxu0 %v1776
        %1787 = vmatprep.subr.mxu0 0.0
        %1788 = vmatpush1.msra.mxu0 %v1777
        %1789 = vmatprep.subr.mxu0 0.0
        %1790 = vmatpush1.msra.mxu0 0.0
        %1791 = vmatprep.subr.mxu0 0.0
        %1792 = vmatpush1.msra.mxu0 0.0
        %1793 = vmatprep.subr.mxu0 0.0
        %1794 = vmatpush1.msra.mxu0 0.0
        %1795 = vmatprep.subr.mxu0 0.0
        %1796 = vmatpush1.msra.mxu0 0.0
        %1797 = vmatprep.subr.mxu0 0.0
        %1798 = vmatpush1.msra.mxu0 0.0
        %1799 = vmatprep.subr.mxu0 0.0
        %1800 = vmatpush1.msra.mxu0 0.0
        %1801 = vmatprep.subr.mxu0 0.0
        %1802 = vmatpush1.msra.mxu0 0.0
        %1803 = vmatprep.subr.mxu0 0.0
        %1804 = vmatpush1.msra.mxu0 0.0
        %1805 = vmatprep.subr.mxu0 0.0
        %1806 = vmatpush1.msra.mxu0 0.0
        %1807 = vmatprep.subr.mxu0 0.0
        %1808 = vmatpush1.msra.mxu0 0.0
        %1809 = vmatprep.subr.mxu0 0.0
        %1810 = vmatpush1.msra.mxu0 0.0
        %1811 = vmatprep.subr.mxu0 0.0
        %1812 = vmatpush1.msra.mxu0 0.0
        %1813 = vmatprep.subr.mxu0 0.0
        %1814 = vmatpush1.msra.mxu0 0.0
        %1815 = vmatprep.subr.mxu0 0.0
        %1816 = vmatpush1.msra.mxu0 0.0
        %1817 = vmatprep.subr.mxu0 0.0
        %1818 = vmatpush1.msra.mxu0 0.0
        %1819 = vmatprep.subr.mxu0 0.0
        %1820 = vmatpush1.msra.mxu0 0.0
        %1821 = vmatprep.subr.mxu0 0.0
        %1822 = vmatpush1.msra.mxu0 0.0
        %1823 = vmatprep.subr.mxu0 0.0
        %1824 = vmatpush1.msra.mxu0 0.0
        %1825 = vmatprep.subr.mxu0 0.0
        %1826 = vmatpush1.msra.mxu0 0.0
        %1827 = vmatprep.subr.mxu0 0.0
        %1828 = vmatpush1.msra.mxu0 0.0
        %1829 = vmatprep.subr.mxu0 0.0
        %1830 = vmatpush1.msra.mxu0 0.0
        %1831 = vmatprep.subr.mxu0 0.0
        %1832 = vmatpush1.msra.mxu0 0.0
        %1833 = vmatprep.subr.mxu0 0.0
        %1834 = vmatpush1.msra.mxu0 0.0
        %1835 = vmatprep.subr.mxu0 0.0
        %1836 = vmatpush1.msra.mxu0 0.0
        %1837 = vmatprep.subr.mxu0 0.0
        %1838 = vmatpush1.msra.mxu0 0.0
        %1839 = vmatprep.subr.mxu0 0.0
        %1840 = vmatpush1.msra.mxu0 0.0
        %1841 = vmatprep.subr.mxu0 0.0
        %1842 = vmatpush1.msra.mxu0 0.0
        %1843 = vmatprep.subr.mxu0 0.0
        %1844 = vmatpush1.msra.mxu0 0.0
        %1845 = vmatprep.mubr.f32.mxu0 0.0
        %1846 = vmatmul.mubr.f32.gmra.mrb[0].mxu0 %v1779
        %v1847 = vpop.f32.mrb[0].mxu0
        %v1848 = vadd.f32 0.0, %v1847
        %v1849 = vpop.f32.mrb[0].mxu0
        %1850 = vdwg.mxu0
        %v1851 = vadd.f32 %v1773, %v1848
        %v1852 = vld [vmem:[#allocation2 + $0x118] sm:$0xff]
        %v1853 = vld [vmem:[#allocation2 + $0x120] sm:$0xff]
        %v1854 = vld [vmem:[#allocation2 + $0x128] sm:$0xff]
        %v1855 = vld [vmem:[#allocation2 + $0x130] sm:$0xff]
        %v1857 = vsel %vm478, %v1677, 0
        %1859 = vmatprep.subr.mxu0 0.0
        %1860 = vmatpush1.msra.mxu0 %v1852
        %1861 = vmatprep.subr.mxu0 0.0
        %1862 = vmatpush1.msra.mxu0 %v1853
        %1863 = vmatprep.subr.mxu0 0.0
        %1864 = vmatpush1.msra.mxu0 %v1854
        %1865 = vmatprep.subr.mxu0 0.0
        %1866 = vmatpush1.msra.mxu0 %v1855
        %1867 = vmatprep.subr.mxu0 0.0
        %1868 = vmatpush1.msra.mxu0 0.0
        %1869 = vmatprep.subr.mxu0 0.0
        %1870 = vmatpush1.msra.mxu0 0.0
        %1871 = vmatprep.subr.mxu0 0.0
        %1872 = vmatpush1.msra.mxu0 0.0
        %1873 = vmatprep.subr.mxu0 0.0
        %1874 = vmatpush1.msra.mxu0 0.0
        %1875 = vmatprep.subr.mxu0 0.0
        %1876 = vmatpush1.msra.mxu0 0.0
        %1877 = vmatprep.subr.mxu0 0.0
        %1878 = vmatpush1.msra.mxu0 0.0
        %1879 = vmatprep.subr.mxu0 0.0
        %1880 = vmatpush1.msra.mxu0 0.0
        %1881 = vmatprep.subr.mxu0 0.0
        %1882 = vmatpush1.msra.mxu0 0.0
        %1883 = vmatprep.subr.mxu0 0.0
        %1884 = vmatpush1.msra.mxu0 0.0
        %1885 = vmatprep.subr.mxu0 0.0
        %1886 = vmatpush1.msra.mxu0 0.0
        %1887 = vmatprep.subr.mxu0 0.0
        %1888 = vmatpush1.msra.mxu0 0.0
        %1889 = vmatprep.subr.mxu0 0.0
        %1890 = vmatpush1.msra.mxu0 0.0
        %1891 = vmatprep.subr.mxu0 0.0
        %1892 = vmatpush1.msra.mxu0 0.0
        %1893 = vmatprep.subr.mxu0 0.0
        %1894 = vmatpush1.msra.mxu0 0.0
        %1895 = vmatprep.subr.mxu0 0.0
        %1896 = vmatpush1.msra.mxu0 0.0
        %1897 = vmatprep.subr.mxu0 0.0
        %1898 = vmatpush1.msra.mxu0 0.0
        %1899 = vmatprep.subr.mxu0 0.0
        %1900 = vmatpush1.msra.mxu0 0.0
        %1901 = vmatprep.subr.mxu0 0.0
        %1902 = vmatpush1.msra.mxu0 0.0
        %1903 = vmatprep.subr.mxu0 0.0
        %1904 = vmatpush1.msra.mxu0 0.0
        %1905 = vmatprep.subr.mxu0 0.0
        %1906 = vmatpush1.msra.mxu0 0.0
        %1907 = vmatprep.subr.mxu0 0.0
        %1908 = vmatpush1.msra.mxu0 0.0
        %1909 = vmatprep.subr.mxu0 0.0
        %1910 = vmatpush1.msra.mxu0 0.0
        %1911 = vmatprep.subr.mxu0 0.0
        %1912 = vmatpush1.msra.mxu0 0.0
        %1913 = vmatprep.subr.mxu0 0.0
        %1914 = vmatpush1.msra.mxu0 0.0
        %1915 = vmatprep.subr.mxu0 0.0
        %1916 = vmatpush1.msra.mxu0 0.0
        %1917 = vmatprep.subr.mxu0 0.0
        %1918 = vmatpush1.msra.mxu0 0.0
        %1919 = vmatprep.subr.mxu0 0.0
        %1920 = vmatpush1.msra.mxu0 0.0
        %1921 = vmatprep.subr.mxu0 0.0
        %1922 = vmatpush1.msra.mxu0 0.0
        %1923 = vmatprep.mubr.f32.mxu0 0.0
        %1924 = vmatmul.mubr.f32.gmra.mrb[0].mxu0 %v1857
        %v1925 = vpop.f32.mrb[0].mxu0
        %v1926 = vadd.f32 0.0, %v1925
        %v1927 = vpop.f32.mrb[0].mxu0
        %1928 = vdwg.mxu0
        %v1929 = vadd.f32 %v1851, %v1926
        %v1930 = vld [vmem:[#allocation2 + $0x148] sm:$0xff]
        %v1931 = vld [vmem:[#allocation2 + $0x150] sm:$0xff]
        %v1932 = vld [vmem:[#allocation2 + $0x158] sm:$0xff]
        %v1933 = vld [vmem:[#allocation2 + $0x160] sm:$0xff]
        %v1935 = vsel %vm478, %v1695, 0
        %1937 = vmatprep.subr.mxu0 0.0
        %1938 = vmatpush1.msra.mxu0 %v1930
        %1939 = vmatprep.subr.mxu0 0.0
        %1940 = vmatpush1.msra.mxu0 %v1931
        %1941 = vmatprep.subr.mxu0 0.0
        %1942 = vmatpush1.msra.mxu0 %v1932
        %1943 = vmatprep.subr.mxu0 0.0
        %1944 = vmatpush1.msra.mxu0 %v1933
        %1945 = vmatprep.subr.mxu0 0.0
        %1946 = vmatpush1.msra.mxu0 0.0
        %1947 = vmatprep.subr.mxu0 0.0
        %1948 = vmatpush1.msra.mxu0 0.0
        %1949 = vmatprep.subr.mxu0 0.0
        %1950 = vmatpush1.msra.mxu0 0.0
        %1951 = vmatprep.subr.mxu0 0.0
        %1952 = vmatpush1.msra.mxu0 0.0
        %1953 = vmatprep.subr.mxu0 0.0
        %1954 = vmatpush1.msra.mxu0 0.0
        %1955 = vmatprep.subr.mxu0 0.0
        %1956 = vmatpush1.msra.mxu0 0.0
        %1957 = vmatprep.subr.mxu0 0.0
        %1958 = vmatpush1.msra.mxu0 0.0
        %1959 = vmatprep.subr.mxu0 0.0
        %1960 = vmatpush1.msra.mxu0 0.0
        %1961 = vmatprep.subr.mxu0 0.0
        %1962 = vmatpush1.msra.mxu0 0.0
        %1963 = vmatprep.subr.mxu0 0.0
        %1964 = vmatpush1.msra.mxu0 0.0
        %1965 = vmatprep.subr.mxu0 0.0
        %1966 = vmatpush1.msra.mxu0 0.0
        %1967 = vmatprep.subr.mxu0 0.0
        %1968 = vmatpush1.msra.mxu0 0.0
        %1969 = vmatprep.subr.mxu0 0.0
        %1970 = vmatpush1.msra.mxu0 0.0
        %1971 = vmatprep.subr.mxu0 0.0
        %1972 = vmatpush1.msra.mxu0 0.0
        %1973 = vmatprep.subr.mxu0 0.0
        %1974 = vmatpush1.msra.mxu0 0.0
        %1975 = vmatprep.subr.mxu0 0.0
        %1976 = vmatpush1.msra.mxu0 0.0
        %1977 = vmatprep.subr.mxu0 0.0
        %1978 = vmatpush1.msra.mxu0 0.0
        %1979 = vmatprep.subr.mxu0 0.0
        %1980 = vmatpush1.msra.mxu0 0.0
        %1981 = vmatprep.subr.mxu0 0.0
        %1982 = vmatpush1.msra.mxu0 0.0
        %1983 = vmatprep.subr.mxu0 0.0
        %1984 = vmatpush1.msra.mxu0 0.0
        %1985 = vmatprep.subr.mxu0 0.0
        %1986 = vmatpush1.msra.mxu0 0.0
        %1987 = vmatprep.subr.mxu0 0.0
        %1988 = vmatpush1.msra.mxu0 0.0
        %1989 = vmatprep.subr.mxu0 0.0
        %1990 = vmatpush1.msra.mxu0 0.0
        %1991 = vmatprep.subr.mxu0 0.0
        %1992 = vmatpush1.msra.mxu0 0.0
        %1993 = vmatprep.subr.mxu0 0.0
        %1994 = vmatpush1.msra.mxu0 0.0
        %1995 = vmatprep.subr.mxu0 0.0
        %1996 = vmatpush1.msra.mxu0 0.0
        %1997 = vmatprep.subr.mxu0 0.0
        %1998 = vmatpush1.msra.mxu0 0.0
        %1999 = vmatprep.subr.mxu0 0.0
        %2000 = vmatpush1.msra.mxu0 0.0
        %2001 = vmatprep.mubr.f32.mxu0 0.0
        %2002 = vmatmul.mubr.f32.gmra.mrb[0].mxu0 %v1935
        %v2003 = vpop.f32.mrb[0].mxu0
        %v2004 = vadd.f32 0.0, %v2003
        %v2005 = vpop.f32.mrb[0].mxu0
        %2006 = vdwg.mxu0
        %v2007 = vadd.f32 %v1929, %v2004
        %v2008 = vsel %vm564, %v360, 0.0
        %v2009 = vsel %vm564, %v361, 0.0
        %v2010 = vadd.f32 %v2008, %v2009
        %v2011 = vsel %vm564, %v362, 0.0
        %v2012 = vadd.f32 %v2010, %v2011
        %v2013 = vsel %vm564, %v363, 0.0
        %v2014 = vadd.f32 %v2012, %v2013
        %v2015 = vsel %vm564, %v364, 0.0
        %v2016 = vadd.f32 %v2014, %v2015
        %v2017 = vsel %vm564, %v365, 0.0
        %v2018 = vadd.f32 %v2016, %v2017
        %v2019 = vsel %vm564, %v366, 0.0
        %v2020 = vadd.f32 %v2018, %v2019
        %v2021 = vsel %vm564, %v367, 0.0
        %v2022 = vadd.f32 %v2020, %v2021
        %v2023 = vrot.slane %v2022, 4
        %v2024 = vadd.f32 %v2022, %v2023
        %v2025 = vrot.slane %v2024, 2
        %v2026 = vadd.f32 %v2024, %v2025
        %v2027 = vrot.slane %v2026, 1
        %v2028 = vadd.f32 %v2026, %v2027
        %v2029 = vrcp.pop 64.0
        %v2030 = vmul.f32 %v2028, %v2029
        %v2031 = vsel %vm564, %v360, inf
        %v2032 = vsel %vm564, %v361, inf
        %v2033 = vsel %vm564, %v362, inf
        %v2034 = vsel %vm564, %v363, inf
        %v2035 = vsel %vm564, %v364, inf
        %v2036 = vmin.f32 %v2031, %v2035
        %v2037 = vsel %vm564, %v365, inf
        %v2038 = vmin.f32 %v2032, %v2037
        %v2039 = vsel %vm564, %v366, inf
        %v2040 = vmin.f32 %v2033, %v2039
        %v2041 = vsel %vm564, %v367, inf
        %v2042 = vmin.f32 %v2034, %v2041
        %v2043 = vmin.f32 %v2036, %v2038
        %v2044 = vmin.f32 %v2040, %v2042
        %v2045 = vmin.f32 %v2043, %v2044
        %v2046 = vrot.slane %v2045, 4
        %v2047 = vmin.f32 %v2045, %v2046
        %v2048 = vrot.slane %v2047, 2
        %v2049 = vmin.f32 %v2047, %v2048
        %v2050 = vrot.slane %v2049, 1
        %v2051 = vmin.f32 %v2049, %v2050
        %v2052 = vsel %vm564, %v360, -inf
        %v2053 = vsel %vm564, %v361, -inf
        %v2054 = vsel %vm564, %v362, -inf
        %v2055 = vsel %vm564, %v363, -inf
        %v2056 = vsel %vm564, %v364, -inf
        %v2057 = vmax.f32 %v2052, %v2056
        %v2058 = vsel %vm564, %v365, -inf
        %v2059 = vmax.f32 %v2053, %v2058
        %v2060 = vsel %vm564, %v366, -inf
        %v2061 = vmax.f32 %v2054, %v2060
        %v2062 = vsel %vm564, %v367, -inf
        %v2063 = vmax.f32 %v2055, %v2062
        %v2064 = vmax.f32 %v2057, %v2059
        %v2065 = vmax.f32 %v2061, %v2063
        %v2066 = vmax.f32 %v2064, %v2065
        %v2067 = vrot.slane %v2066, 4
        %v2068 = vmax.f32 %v2066, %v2067
        %v2069 = vrot.slane %v2068, 2
        %v2070 = vmax.f32 %v2068, %v2069
        %v2071 = vrot.slane %v2070, 1
        %v2072 = vmax.f32 %v2070, %v2071
        %v2073 = vsub.f32 %v360, %v2030
        %v2074 = vsub.f32 %v361, %v2030
        %v2075 = vsub.f32 %v362, %v2030
        %v2076 = vsub.f32 %v363, %v2030
        %v2077 = vsub.f32 %v364, %v2030
        %v2078 = vsub.f32 %v365, %v2030
        %v2079 = vsub.f32 %v366, %v2030
        %v2080 = vsub.f32 %v367, %v2030
        %v2081 = vmul.f32 %v2073, %v2073
        %v2082 = vmul.f32 %v2074, %v2074
        %v2083 = vmul.f32 %v2075, %v2075
        %v2084 = vmul.f32 %v2076, %v2076
        %v2085 = vmul.f32 %v2077, %v2077
        %v2086 = vmul.f32 %v2078, %v2078
        %v2087 = vmul.f32 %v2079, %v2079
        %v2088 = vmul.f32 %v2080, %v2080
        %v2089 = vsel %vm564, %v2081, 0.0
        %v2090 = vsel %vm564, %v2082, 0.0
        %v2091 = vadd.f32 %v2089, %v2090
        %v2092 = vsel %vm564, %v2083, 0.0
        %v2093 = vadd.f32 %v2091, %v2092
        %v2094 = vsel %vm564, %v2084, 0.0
        %v2095 = vadd.f32 %v2093, %v2094
        %v2096 = vsel %vm564, %v2085, 0.0
        %v2097 = vadd.f32 %v2095, %v2096
        %v2098 = vsel %vm564, %v2086, 0.0
        %v2099 = vadd.f32 %v2097, %v2098
        %v2100 = vsel %vm564, %v2087, 0.0
        %v2101 = vadd.f32 %v2099, %v2100
        %v2102 = vsel %vm564, %v2088, 0.0
        %v2103 = vadd.f32 %v2101, %v2102
        %v2104 = vrot.slane %v2103, 4
        %v2105 = vadd.f32 %v2103, %v2104
        %v2106 = vrot.slane %v2105, 2
        %v2107 = vadd.f32 %v2105, %v2106
        %v2108 = vrot.slane %v2107, 1
        %v2109 = vadd.f32 %v2107, %v2108
        %v2110 = vrcp.pop 63.0
        %v2111 = vmul.f32 %v2109, %v2110
        %v2112 = vrsqrt.pop %v2111
        %v2113 = vmul.f32 %v2111, %v2112
        %vm2114 = vcmp.eq.f32.partialorder %v2111, inf
        %v2115 = vsel %vm2114, %v2111, %v2113
        %vm2116 = vcmp.eq.f32.partialorder %v2111, 0.0
        %v2117 = vand.u32 %v2111, 2147483648
        %v2118 = vsel %vm2116, %v2117, %v2115
        %v2119 = vld [vmem:[#allocation2 + $0xd8] sm:$0xff]
        %v2120 = vld [vmem:[#allocation2 + $0xe0] sm:$0xff]
        %v2122 = vsel %vm564, %v2030, 0
        %2124 = vmatprep.subr.mxu0 0.0
        %2125 = vmatpush1.msra.mxu0 %v2119
        %2126 = vmatprep.subr.mxu0 0.0
        %2127 = vmatpush1.msra.mxu0 %v2120
        %2128 = vmatprep.subr.mxu0 0.0
        %2129 = vmatpush1.msra.mxu0 0.0
        %2130 = vmatprep.subr.mxu0 0.0
        %2131 = vmatpush1.msra.mxu0 0.0
        %2132 = vmatprep.subr.mxu0 0.0
        %2133 = vmatpush1.msra.mxu0 0.0
        %2134 = vmatprep.subr.mxu0 0.0
        %2135 = vmatpush1.msra.mxu0 0.0
        %2136 = vmatprep.subr.mxu0 0.0
        %2137 = vmatpush1.msra.mxu0 0.0
        %2138 = vmatprep.subr.mxu0 0.0
        %2139 = vmatpush1.msra.mxu0 0.0
        %2140 = vmatprep.subr.mxu0 0.0
        %2141 = vmatpush1.msra.mxu0 0.0
        %2142 = vmatprep.subr.mxu0 0.0
        %2143 = vmatpush1.msra.mxu0 0.0
        %2144 = vmatprep.subr.mxu0 0.0
        %2145 = vmatpush1.msra.mxu0 0.0
        %2146 = vmatprep.subr.mxu0 0.0
        %2147 = vmatpush1.msra.mxu0 0.0
        %2148 = vmatprep.subr.mxu0 0.0
        %2149 = vmatpush1.msra.mxu0 0.0
        %2150 = vmatprep.subr.mxu0 0.0
        %2151 = vmatpush1.msra.mxu0 0.0
        %2152 = vmatprep.subr.mxu0 0.0
        %2153 = vmatpush1.msra.mxu0 0.0
        %2154 = vmatprep.subr.mxu0 0.0
        %2155 = vmatpush1.msra.mxu0 0.0
        %2156 = vmatprep.subr.mxu0 0.0
        %2157 = vmatpush1.msra.mxu0 0.0
        %2158 = vmatprep.subr.mxu0 0.0
        %2159 = vmatpush1.msra.mxu0 0.0
        %2160 = vmatprep.subr.mxu0 0.0
        %2161 = vmatpush1.msra.mxu0 0.0
        %2162 = vmatprep.subr.mxu0 0.0
        %2163 = vmatpush1.msra.mxu0 0.0
        %2164 = vmatprep.subr.mxu0 0.0
        %2165 = vmatpush1.msra.mxu0 0.0
        %2166 = vmatprep.subr.mxu0 0.0
        %2167 = vmatpush1.msra.mxu0 0.0
        %2168 = vmatprep.subr.mxu0 0.0
        %2169 = vmatpush1.msra.mxu0 0.0
        %2170 = vmatprep.subr.mxu0 0.0
        %2171 = vmatpush1.msra.mxu0 0.0
        %2172 = vmatprep.subr.mxu0 0.0
        %2173 = vmatpush1.msra.mxu0 0.0
        %2174 = vmatprep.subr.mxu0 0.0
        %2175 = vmatpush1.msra.mxu0 0.0
        %2176 = vmatprep.subr.mxu0 0.0
        %2177 = vmatpush1.msra.mxu0 0.0
        %2178 = vmatprep.subr.mxu0 0.0
        %2179 = vmatpush1.msra.mxu0 0.0
        %2180 = vmatprep.subr.mxu0 0.0
        %2181 = vmatpush1.msra.mxu0 0.0
        %2182 = vmatprep.subr.mxu0 0.0
        %2183 = vmatpush1.msra.mxu0 0.0
        %2184 = vmatprep.subr.mxu0 0.0
        %2185 = vmatpush1.msra.mxu0 0.0
        %2186 = vmatprep.subr.mxu0 0.0
        %2187 = vmatpush1.msra.mxu0 0.0
        %2188 = vmatprep.mubr.f32.mxu0 0.0
        %2189 = vmatmul.mubr.f32.gmra.mrb[0].mxu0 %v2122
        %v2190 = vpop.f32.mrb[0].mxu0
        %v2191 = vadd.f32 0.0, %v2190
        %v2192 = vpop.f32.mrb[0].mxu0
        %2193 = vdwg.mxu0
        %v2194 = vadd.f32 %v2007, %v2191
        %v2195 = vld [vmem:[#allocation2 + $0x108] sm:$0xff]
        %v2196 = vld [vmem:[#allocation2 + $0x110] sm:$0xff]
        %v2198 = vsel %vm564, %v2051, 0
        %2200 = vmatprep.subr.mxu0 0.0
        %2201 = vmatpush1.msra.mxu0 %v2195
        %2202 = vmatprep.subr.mxu0 0.0
        %2203 = vmatpush1.msra.mxu0 %v2196
        %2204 = vmatprep.subr.mxu0 0.0
        %2205 = vmatpush1.msra.mxu0 0.0
        %2206 = vmatprep.subr.mxu0 0.0
        %2207 = vmatpush1.msra.mxu0 0.0
        %2208 = vmatprep.subr.mxu0 0.0
        %2209 = vmatpush1.msra.mxu0 0.0
        %2210 = vmatprep.subr.mxu0 0.0
        %2211 = vmatpush1.msra.mxu0 0.0
        %2212 = vmatprep.subr.mxu0 0.0
        %2213 = vmatpush1.msra.mxu0 0.0
        %2214 = vmatprep.subr.mxu0 0.0
        %2215 = vmatpush1.msra.mxu0 0.0
        %2216 = vmatprep.subr.mxu0 0.0
        %2217 = vmatpush1.msra.mxu0 0.0
        %2218 = vmatprep.subr.mxu0 0.0
        %2219 = vmatpush1.msra.mxu0 0.0
        %2220 = vmatprep.subr.mxu0 0.0
        %2221 = vmatpush1.msra.mxu0 0.0
        %2222 = vmatprep.subr.mxu0 0.0
        %2223 = vmatpush1.msra.mxu0 0.0
        %2224 = vmatprep.subr.mxu0 0.0
        %2225 = vmatpush1.msra.mxu0 0.0
        %2226 = vmatprep.subr.mxu0 0.0
        %2227 = vmatpush1.msra.mxu0 0.0
        %2228 = vmatprep.subr.mxu0 0.0
        %2229 = vmatpush1.msra.mxu0 0.0
        %2230 = vmatprep.subr.mxu0 0.0
        %2231 = vmatpush1.msra.mxu0 0.0
        %2232 = vmatprep.subr.mxu0 0.0
        %2233 = vmatpush1.msra.mxu0 0.0
        %2234 = vmatprep.subr.mxu0 0.0
        %2235 = vmatpush1.msra.mxu0 0.0
        %2236 = vmatprep.subr.mxu0 0.0
        %2237 = vmatpush1.msra.mxu0 0.0
        %2238 = vmatprep.subr.mxu0 0.0
        %2239 = vmatpush1.msra.mxu0 0.0
        %2240 = vmatprep.subr.mxu0 0.0
        %2241 = vmatpush1.msra.mxu0 0.0
        %2242 = vmatprep.subr.mxu0 0.0
        %2243 = vmatpush1.msra.mxu0 0.0
        %2244 = vmatprep.subr.mxu0 0.0
        %2245 = vmatpush1.msra.mxu0 0.0
        %2246 = vmatprep.subr.mxu0 0.0
        %2247 = vmatpush1.msra.mxu0 0.0
        %2248 = vmatprep.subr.mxu0 0.0
        %2249 = vmatpush1.msra.mxu0 0.0
        %2250 = vmatprep.subr.mxu0 0.0
        %2251 = vmatpush1.msra.mxu0 0.0
        %2252 = vmatprep.subr.mxu0 0.0
        %2253 = vmatpush1.msra.mxu0 0.0
        %2254 = vmatprep.subr.mxu0 0.0
        %2255 = vmatpush1.msra.mxu0 0.0
        %2256 = vmatprep.subr.mxu0 0.0
        %2257 = vmatpush1.msra.mxu0 0.0
        %2258 = vmatprep.subr.mxu0 0.0
        %2259 = vmatpush1.msra.mxu0 0.0
        %2260 = vmatprep.subr.mxu0 0.0
        %2261 = vmatpush1.msra.mxu0 0.0
        %2262 = vmatprep.subr.mxu0 0.0
        %2263 = vmatpush1.msra.mxu0 0.0
        %2264 = vmatprep.mubr.f32.mxu0 0.0
        %2265 = vmatmul.mubr.f32.gmra.mrb[0].mxu0 %v2198
        %v2266 = vpop.f32.mrb[0].mxu0
        %v2267 = vadd.f32 0.0, %v2266
        %v2268 = vpop.f32.mrb[0].mxu0
        %2269 = vdwg.mxu0
        %v2270 = vadd.f32 %v2194, %v2267
        %v2271 = vld [vmem:[#allocation2 + $0x138] sm:$0xff]
        %v2272 = vld [vmem:[#allocation2 + $0x140] sm:$0xff]
        %v2274 = vsel %vm564, %v2072, 0
        %2276 = vmatprep.subr.mxu0 0.0
        %2277 = vmatpush1.msra.mxu0 %v2271
        %2278 = vmatprep.subr.mxu0 0.0
        %2279 = vmatpush1.msra.mxu0 %v2272
        %2280 = vmatprep.subr.mxu0 0.0
        %2281 = vmatpush1.msra.mxu0 0.0
        %2282 = vmatprep.subr.mxu0 0.0
        %2283 = vmatpush1.msra.mxu0 0.0
        %2284 = vmatprep.subr.mxu0 0.0
        %2285 = vmatpush1.msra.mxu0 0.0
        %2286 = vmatprep.subr.mxu0 0.0
        %2287 = vmatpush1.msra.mxu0 0.0
        %2288 = vmatprep.subr.mxu0 0.0
        %2289 = vmatpush1.msra.mxu0 0.0
        %2290 = vmatprep.subr.mxu0 0.0
        %2291 = vmatpush1.msra.mxu0 0.0
        %2292 = vmatprep.subr.mxu0 0.0
        %2293 = vmatpush1.msra.mxu0 0.0
        %2294 = vmatprep.subr.mxu0 0.0
        %2295 = vmatpush1.msra.mxu0 0.0
        %2296 = vmatprep.subr.mxu0 0.0
        %2297 = vmatpush1.msra.mxu0 0.0
        %2298 = vmatprep.subr.mxu0 0.0
        %2299 = vmatpush1.msra.mxu0 0.0
        %2300 = vmatprep.subr.mxu0 0.0
        %2301 = vmatpush1.msra.mxu0 0.0
        %2302 = vmatprep.subr.mxu0 0.0
        %2303 = vmatpush1.msra.mxu0 0.0
        %2304 = vmatprep.subr.mxu0 0.0
        %2305 = vmatpush1.msra.mxu0 0.0
        %2306 = vmatprep.subr.mxu0 0.0
        %2307 = vmatpush1.msra.mxu0 0.0
        %2308 = vmatprep.subr.mxu0 0.0
        %2309 = vmatpush1.msra.mxu0 0.0
        %2310 = vmatprep.subr.mxu0 0.0
        %2311 = vmatpush1.msra.mxu0 0.0
        %2312 = vmatprep.subr.mxu0 0.0
        %2313 = vmatpush1.msra.mxu0 0.0
        %2314 = vmatprep.subr.mxu0 0.0
        %2315 = vmatpush1.msra.mxu0 0.0
        %2316 = vmatprep.subr.mxu0 0.0
        %2317 = vmatpush1.msra.mxu0 0.0
        %2318 = vmatprep.subr.mxu0 0.0
        %2319 = vmatpush1.msra.mxu0 0.0
        %2320 = vmatprep.subr.mxu0 0.0
        %2321 = vmatpush1.msra.mxu0 0.0
        %2322 = vmatprep.subr.mxu0 0.0
        %2323 = vmatpush1.msra.mxu0 0.0
        %2324 = vmatprep.subr.mxu0 0.0
        %2325 = vmatpush1.msra.mxu0 0.0
        %2326 = vmatprep.subr.mxu0 0.0
        %2327 = vmatpush1.msra.mxu0 0.0
        %2328 = vmatprep.subr.mxu0 0.0
        %2329 = vmatpush1.msra.mxu0 0.0
        %2330 = vmatprep.subr.mxu0 0.0
        %2331 = vmatpush1.msra.mxu0 0.0
        %2332 = vmatprep.subr.mxu0 0.0
        %2333 = vmatpush1.msra.mxu0 0.0
        %2334 = vmatprep.subr.mxu0 0.0
        %2335 = vmatpush1.msra.mxu0 0.0
        %2336 = vmatprep.subr.mxu0 0.0
        %2337 = vmatpush1.msra.mxu0 0.0
        %2338 = vmatprep.subr.mxu0 0.0
        %2339 = vmatpush1.msra.mxu0 0.0
        %2340 = vmatprep.mubr.f32.mxu0 0.0
        %2341 = vmatmul.mubr.f32.gmra.mrb[0].mxu0 %v2274
        %v2342 = vpop.f32.mrb[0].mxu0
        %v2343 = vadd.f32 0.0, %v2342
        %v2344 = vpop.f32.mrb[0].mxu0
        %2345 = vdwg.mxu0
        %v2346 = vadd.f32 %v2270, %v2343
        %v2347 = vld [vmem:[#allocation2 + $0x168] sm:$0xff]
        %v2348 = vld [vmem:[#allocation2 + $0x170] sm:$0xff]
        %v2350 = vsel %vm564, %v2118, 0
        %2352 = vmatprep.subr.mxu0 0.0
        %2353 = vmatpush1.msra.mxu0 %v2347
        %2354 = vmatprep.subr.mxu0 0.0
        %2355 = vmatpush1.msra.mxu0 %v2348
        %2356 = vmatprep.subr.mxu0 0.0
        %2357 = vmatpush1.msra.mxu0 0.0
        %2358 = vmatprep.subr.mxu0 0.0
        %2359 = vmatpush1.msra.mxu0 0.0
        %2360 = vmatprep.subr.mxu0 0.0
        %2361 = vmatpush1.msra.mxu0 0.0
        %2362 = vmatprep.subr.mxu0 0.0
        %2363 = vmatpush1.msra.mxu0 0.0
        %2364 = vmatprep.subr.mxu0 0.0
        %2365 = vmatpush1.msra.mxu0 0.0
        %2366 = vmatprep.subr.mxu0 0.0
        %2367 = vmatpush1.msra.mxu0 0.0
        %2368 = vmatprep.subr.mxu0 0.0
        %2369 = vmatpush1.msra.mxu0 0.0
        %2370 = vmatprep.subr.mxu0 0.0
        %2371 = vmatpush1.msra.mxu0 0.0
        %2372 = vmatprep.subr.mxu0 0.0
        %2373 = vmatpush1.msra.mxu0 0.0
        %2374 = vmatprep.subr.mxu0 0.0
        %2375 = vmatpush1.msra.mxu0 0.0
        %2376 = vmatprep.subr.mxu0 0.0
        %2377 = vmatpush1.msra.mxu0 0.0
        %2378 = vmatprep.subr.mxu0 0.0
        %2379 = vmatpush1.msra.mxu0 0.0
        %2380 = vmatprep.subr.mxu0 0.0
        %2381 = vmatpush1.msra.mxu0 0.0
        %2382 = vmatprep.subr.mxu0 0.0
        %2383 = vmatpush1.msra.mxu0 0.0
        %2384 = vmatprep.subr.mxu0 0.0
        %2385 = vmatpush1.msra.mxu0 0.0
        %2386 = vmatprep.subr.mxu0 0.0
        %2387 = vmatpush1.msra.mxu0 0.0
        %2388 = vmatprep.subr.mxu0 0.0
        %2389 = vmatpush1.msra.mxu0 0.0
        %2390 = vmatprep.subr.mxu0 0.0
        %2391 = vmatpush1.msra.mxu0 0.0
        %2392 = vmatprep.subr.mxu0 0.0
        %2393 = vmatpush1.msra.mxu0 0.0
        %2394 = vmatprep.subr.mxu0 0.0
        %2395 = vmatpush1.msra.mxu0 0.0
        %2396 = vmatprep.subr.mxu0 0.0
        %2397 = vmatpush1.msra.mxu0 0.0
        %2398 = vmatprep.subr.mxu0 0.0
        %2399 = vmatpush1.msra.mxu0 0.0
        %2400 = vmatprep.subr.mxu0 0.0
        %2401 = vmatpush1.msra.mxu0 0.0
        %2402 = vmatprep.subr.mxu0 0.0
        %2403 = vmatpush1.msra.mxu0 0.0
        %2404 = vmatprep.subr.mxu0 0.0
        %2405 = vmatpush1.msra.mxu0 0.0
        %2406 = vmatprep.subr.mxu0 0.0
        %2407 = vmatpush1.msra.mxu0 0.0
        %2408 = vmatprep.subr.mxu0 0.0
        %2409 = vmatpush1.msra.mxu0 0.0
        %2410 = vmatprep.subr.mxu0 0.0
        %2411 = vmatpush1.msra.mxu0 0.0
        %2412 = vmatprep.subr.mxu0 0.0
        %2413 = vmatpush1.msra.mxu0 0.0
        %2414 = vmatprep.subr.mxu0 0.0
        %2415 = vmatpush1.msra.mxu0 0.0
        %2416 = vmatprep.mubr.f32.mxu0 0.0
        %2417 = vmatmul.mubr.f32.gmra.mrb[0].mxu0 %v2350
        %v2418 = vpop.f32.mrb[0].mxu0
        %v2419 = vadd.f32 0.0, %v2418
        %v2420 = vpop.f32.mrb[0].mxu0
        %2421 = vdwg.mxu0
        %v2422 = vadd.f32 %v2346, %v2419
        %v2423 = vld [vmem:[#allocation2 + $0x180] sm:$0xff]
        %v2424 = vld [vmem:[#allocation2 + $0x188] sm:$0xff]
        %v2425 = vld [vmem:[#allocation2 + $0x190] sm:$0x1]
        %v2427 = vsel %vm564, %v2422, 0
        %2429 = vmatprep.subr.mxu0 0.0
        %2430 = vmatpush1.msra.mxu0 %v2423
        %2431 = vmatprep.subr.mxu0 0.0
        %2432 = vmatpush1.msra.mxu0 %v2424
        %2433 = vmatprep.subr.mxu0 0.0
        %2434 = vmatpush1.msra.mxu0 0.0
        %2435 = vmatprep.subr.mxu0 0.0
        %2436 = vmatpush1.msra.mxu0 0.0
        %2437 = vmatprep.subr.mxu0 0.0
        %2438 = vmatpush1.msra.mxu0 0.0
        %2439 = vmatprep.subr.mxu0 0.0
        %2440 = vmatpush1.msra.mxu0 0.0
        %2441 = vmatprep.subr.mxu0 0.0
        %2442 = vmatpush1.msra.mxu0 0.0
        %2443 = vmatprep.subr.mxu0 0.0
        %2444 = vmatpush1.msra.mxu0 0.0
        %2445 = vmatprep.subr.mxu0 0.0
        %2446 = vmatpush1.msra.mxu0 0.0
        %2447 = vmatprep.subr.mxu0 0.0
        %2448 = vmatpush1.msra.mxu0 0.0
        %2449 = vmatprep.subr.mxu0 0.0
        %2450 = vmatpush1.msra.mxu0 0.0
        %2451 = vmatprep.subr.mxu0 0.0
        %2452 = vmatpush1.msra.mxu0 0.0
        %2453 = vmatprep.subr.mxu0 0.0
        %2454 = vmatpush1.msra.mxu0 0.0
        %2455 = vmatprep.subr.mxu0 0.0
        %2456 = vmatpush1.msra.mxu0 0.0
        %2457 = vmatprep.subr.mxu0 0.0
        %2458 = vmatpush1.msra.mxu0 0.0
        %2459 = vmatprep.subr.mxu0 0.0
        %2460 = vmatpush1.msra.mxu0 0.0
        %2461 = vmatprep.subr.mxu0 0.0
        %2462 = vmatpush1.msra.mxu0 0.0
        %2463 = vmatprep.subr.mxu0 0.0
        %2464 = vmatpush1.msra.mxu0 0.0
        %2465 = vmatprep.subr.mxu0 0.0
        %2466 = vmatpush1.msra.mxu0 0.0
        %2467 = vmatprep.subr.mxu0 0.0
        %2468 = vmatpush1.msra.mxu0 0.0
        %2469 = vmatprep.subr.mxu0 0.0
        %2470 = vmatpush1.msra.mxu0 0.0
        %2471 = vmatprep.subr.mxu0 0.0
        %2472 = vmatpush1.msra.mxu0 0.0
        %2473 = vmatprep.subr.mxu0 0.0
        %2474 = vmatpush1.msra.mxu0 0.0
        %2475 = vmatprep.subr.mxu0 0.0
        %2476 = vmatpush1.msra.mxu0 0.0
        %2477 = vmatprep.subr.mxu0 0.0
        %2478 = vmatpush1.msra.mxu0 0.0
        %2479 = vmatprep.subr.mxu0 0.0
        %2480 = vmatpush1.msra.mxu0 0.0
        %2481 = vmatprep.subr.mxu0 0.0
        %2482 = vmatpush1.msra.mxu0 0.0
        %2483 = vmatprep.subr.mxu0 0.0
        %2484 = vmatpush1.msra.mxu0 0.0
        %2485 = vmatprep.subr.mxu0 0.0
        %2486 = vmatpush1.msra.mxu0 0.0
        %2487 = vmatprep.subr.mxu0 0.0
        %2488 = vmatpush1.msra.mxu0 0.0
        %2489 = vmatprep.subr.mxu0 0.0
        %2490 = vmatpush1.msra.mxu0 0.0
        %2491 = vmatprep.subr.mxu0 0.0
        %2492 = vmatpush1.msra.mxu0 0.0
        %2493 = vmatprep.mubr.f32.mxu0 0.0
        %2494 = vmatmul.mubr.f32.gmra.mrb[0].mxu0 %v2427
        %v2495 = vpop.f32.mrb[0].mxu0
        %v2496 = vadd.f32 %v2425, %v2495
        %v2497 = vpop.f32.mrb[0].mxu0
        %2498 = vdwg.mxu0
        %v2499 = vmax.f32 %v2496, 0.0
        %v2500 = vld [vmem:[#allocation2 + $0x198] sm:$0xff]
        %v2501 = vld [vmem:[#allocation2 + $0x1a0] sm:$0xff]
        %v2502 = vld [vmem:[#allocation2 + $0x1a8] sm:$0x1]
        %v2504 = vsel %vm564, %v2499, 0
        %2506 = vmatprep.subr.mxu0 0.0
        %2507 = vmatpush1.msra.mxu0 %v2500
        %2508 = vmatprep.subr.mxu0 0.0
        %2509 = vmatpush1.msra.mxu0 %v2501
        %2510 = vmatprep.subr.mxu0 0.0
        %2511 = vmatpush1.msra.mxu0 0.0
        %2512 = vmatprep.subr.mxu0 0.0
        %2513 = vmatpush1.msra.mxu0 0.0
        %2514 = vmatprep.subr.mxu0 0.0
        %2515 = vmatpush1.msra.mxu0 0.0
        %2516 = vmatprep.subr.mxu0 0.0
        %2517 = vmatpush1.msra.mxu0 0.0
        %2518 = vmatprep.subr.mxu0 0.0
        %2519 = vmatpush1.msra.mxu0 0.0
        %2520 = vmatprep.subr.mxu0 0.0
        %2521 = vmatpush1.msra.mxu0 0.0
        %2522 = vmatprep.subr.mxu0 0.0
        %2523 = vmatpush1.msra.mxu0 0.0
        %2524 = vmatprep.subr.mxu0 0.0
        %2525 = vmatpush1.msra.mxu0 0.0
        %2526 = vmatprep.subr.mxu0 0.0
        %2527 = vmatpush1.msra.mxu0 0.0
        %2528 = vmatprep.subr.mxu0 0.0
        %2529 = vmatpush1.msra.mxu0 0.0
        %2530 = vmatprep.subr.mxu0 0.0
        %2531 = vmatpush1.msra.mxu0 0.0
        %2532 = vmatprep.subr.mxu0 0.0
        %2533 = vmatpush1.msra.mxu0 0.0
        %2534 = vmatprep.subr.mxu0 0.0
        %2535 = vmatpush1.msra.mxu0 0.0
        %2536 = vmatprep.subr.mxu0 0.0
        %2537 = vmatpush1.msra.mxu0 0.0
        %2538 = vmatprep.subr.mxu0 0.0
        %2539 = vmatpush1.msra.mxu0 0.0
        %2540 = vmatprep.subr.mxu0 0.0
        %2541 = vmatpush1.msra.mxu0 0.0
        %2542 = vmatprep.subr.mxu0 0.0
        %2543 = vmatpush1.msra.mxu0 0.0
        %2544 = vmatprep.subr.mxu0 0.0
        %2545 = vmatpush1.msra.mxu0 0.0
        %2546 = vmatprep.subr.mxu0 0.0
        %2547 = vmatpush1.msra.mxu0 0.0
        %2548 = vmatprep.subr.mxu0 0.0
        %2549 = vmatpush1.msra.mxu0 0.0
        %2550 = vmatprep.subr.mxu0 0.0
        %2551 = vmatpush1.msra.mxu0 0.0
        %2552 = vmatprep.subr.mxu0 0.0
        %2553 = vmatpush1.msra.mxu0 0.0
        %2554 = vmatprep.subr.mxu0 0.0
        %2555 = vmatpush1.msra.mxu0 0.0
        %2556 = vmatprep.subr.mxu0 0.0
        %2557 = vmatpush1.msra.mxu0 0.0
        %2558 = vmatprep.subr.mxu0 0.0
        %2559 = vmatpush1.msra.mxu0 0.0
        %2560 = vmatprep.subr.mxu0 0.0
        %2561 = vmatpush1.msra.mxu0 0.0
        %2562 = vmatprep.subr.mxu0 0.0
        %2563 = vmatpush1.msra.mxu0 0.0
        %2564 = vmatprep.subr.mxu0 0.0
        %2565 = vmatpush1.msra.mxu0 0.0
        %2566 = vmatprep.subr.mxu0 0.0
        %2567 = vmatpush1.msra.mxu0 0.0
        %2568 = vmatprep.subr.mxu0 0.0
        %2569 = vmatpush1.msra.mxu0 0.0
        %2570 = vmatprep.mubr.f32.mxu0 0.0
        %2571 = vmatmul.mubr.f32.gmra.mrb[0].mxu0 %v2504
        %v2572 = vpop.f32.mrb[0].mxu0
        %v2573 = vadd.f32 %v2502, %v2572
        %v2574 = vpop.f32.mrb[0].mxu0
        %2575 = vdwg.mxu0
        %v2576 = vadd.f32 %v359, %v1581
        %v2577 = vld [vmem:[#allocation2 + $0x1b0] sm:$0x1]
        %v2578 = vld [vmem:[#allocation2 + $0x1b8] sm:$0x1]
        %v2579 = vsel %vm478, %v2576, 0.0
        %2580 = vadd.xlane.f32.xlu0 %v2579
        %v2581 = vpop.xlane.xlu0 %2580
        %v2582 = vrcp.pop 32.0
        %v2583 = vmul.f32 %v2581, %v2582
        %v2584 = vsub.f32 %v2576, %v2583
        %v2585 = vmul.f32 %v2584, %v2584
        %v2586 = vsel %vm478, %v2585, 0.0
        %2587 = vadd.xlane.f32.xlu0 %v2586
        %v2588 = vpop.xlane.xlu0 %2587
        %v2589 = vmul.f32 %v2588, %v2582
        %v2590 = vadd.f32 %v2589, 1e-05
        %v2591 = vrsqrt.pop %v2590
        %v2592 = vmul.f32 %v2584, %v2591
        %v2593 = vlaneseq
        %v2594 = vshrl.u32 %v2593, 7
        %v2595 = vsub.s32 0, %v2594
        %v2596 = vrot.slane %v2577, %v2595
        %v2597 = vmul.f32 %v2592, %v2596
        %v2598 = vlaneseq
        %v2599 = vshrl.u32 %v2598, 7
        %v2600 = vsub.s32 0, %v2599
        %v2601 = vrot.slane %v2578, %v2600
        %v2602 = vadd.f32 %v2597, %v2601
        %v2603 = vld [vmem:[#allocation2 + $0x1c0] sm:$0xff]
        %v2604 = vld [vmem:[#allocation2 + $0x1c8] sm:$0xff]
        %v2605 = vld [vmem:[#allocation2 + $0x1d0] sm:$0xff]
        %v2606 = vld [vmem:[#allocation2 + $0x1d8] sm:$0xff]
        %v2607 = vld [vmem:[#allocation2 + $0x1e0] sm:$0x1]
        %v2608 = vlaneseq
        %v2609 = vshrl.u32 %v2608, 7
        %v2610 = vsub.s32 0, %v2609
        %v2611 = vrot.slane %v2607, %v2610
        %v2613 = vsel %vm478, %v2602, 0
        %2615 = vmatprep.subr.mxu0 0.0
        %2616 = vmatpush1.msra.mxu0 %v2603
        %2617 = vmatprep.subr.mxu0 0.0
        %2618 = vmatpush1.msra.mxu0 %v2604
        %2619 = vmatprep.subr.mxu0 0.0
        %2620 = vmatpush1.msra.mxu0 %v2605
        %2621 = vmatprep.subr.mxu0 0.0
        %2622 = vmatpush1.msra.mxu0 %v2606
        %2623 = vmatprep.subr.mxu0 0.0
        %2624 = vmatpush1.msra.mxu0 0.0
        %2625 = vmatprep.subr.mxu0 0.0
        %2626 = vmatpush1.msra.mxu0 0.0
        %2627 = vmatprep.subr.mxu0 0.0
        %2628 = vmatpush1.msra.mxu0 0.0
        %2629 = vmatprep.subr.mxu0 0.0
        %2630 = vmatpush1.msra.mxu0 0.0
        %2631 = vmatprep.subr.mxu0 0.0
        %2632 = vmatpush1.msra.mxu0 0.0
        %2633 = vmatprep.subr.mxu0 0.0
        %2634 = vmatpush1.msra.mxu0 0.0
        %2635 = vmatprep.subr.mxu0 0.0
        %2636 = vmatpush1.msra.mxu0 0.0
        %2637 = vmatprep.subr.mxu0 0.0
        %2638 = vmatpush1.msra.mxu0 0.0
        %2639 = vmatprep.subr.mxu0 0.0
        %2640 = vmatpush1.msra.mxu0 0.0
        %2641 = vmatprep.subr.mxu0 0.0
        %2642 = vmatpush1.msra.mxu0 0.0
        %2643 = vmatprep.subr.mxu0 0.0
        %2644 = vmatpush1.msra.mxu0 0.0
        %2645 = vmatprep.subr.mxu0 0.0
        %2646 = vmatpush1.msra.mxu0 0.0
        %2647 = vmatprep.subr.mxu0 0.0
        %2648 = vmatpush1.msra.mxu0 0.0
        %2649 = vmatprep.subr.mxu0 0.0
        %2650 = vmatpush1.msra.mxu0 0.0
        %2651 = vmatprep.subr.mxu0 0.0
        %2652 = vmatpush1.msra.mxu0 0.0
        %2653 = vmatprep.subr.mxu0 0.0
        %2654 = vmatpush1.msra.mxu0 0.0
        %2655 = vmatprep.subr.mxu0 0.0
        %2656 = vmatpush1.msra.mxu0 0.0
        %2657 = vmatprep.subr.mxu0 0.0
        %2658 = vmatpush1.msra.mxu0 0.0
        %2659 = vmatprep.subr.mxu0 0.0
        %2660 = vmatpush1.msra.mxu0 0.0
        %2661 = vmatprep.subr.mxu0 0.0
        %2662 = vmatpush1.msra.mxu0 0.0
        %2663 = vmatprep.subr.mxu0 0.0
        %2664 = vmatpush1.msra.mxu0 0.0
        %2665 = vmatprep.subr.mxu0 0.0
        %2666 = vmatpush1.msra.mxu0 0.0
        %2667 = vmatprep.subr.mxu0 0.0
        %2668 = vmatpush1.msra.mxu0 0.0
        %2669 = vmatprep.subr.mxu0 0.0
        %2670 = vmatpush1.msra.mxu0 0.0
        %2671 = vmatprep.subr.mxu0 0.0
        %2672 = vmatpush1.msra.mxu0 0.0
        %2673 = vmatprep.subr.mxu0 0.0
        %2674 = vmatpush1.msra.mxu0 0.0
        %2675 = vmatprep.subr.mxu0 0.0
        %2676 = vmatpush1.msra.mxu0 0.0
        %2677 = vmatprep.subr.mxu0 0.0
        %2678 = vmatpush1.msra.mxu0 0.0
        %2679 = vmatprep.mubr.f32.mxu0 0.0
        %2680 = vmatmul.mubr.f32.gmra.mrb[0].mxu0 %v2613
        %v2681 = vpop.f32.mrb[0].mxu0
        %v2682 = vadd.f32 %v2611, %v2681
        %v2683 = vpop.f32.mrb[0].mxu0
        %2684 = vdwg.mxu0
        %v2685 = vmax.f32 %v2682, 0.0
        %v2686 = vld [vmem:[#allocation2 + $0x1e8] sm:$0xff]
        %v2687 = vld [vmem:[#allocation2 + $0x1f0] sm:$0xff]
        %v2688 = vld [vmem:[#allocation2 + $0x1f8] sm:$0xff]
        %v2689 = vld [vmem:[#allocation2 + $0x200] sm:$0xff]
        %v2690 = vld [vmem:[#allocation2 + $0x208] sm:$0xff]
        %v2691 = vld [vmem:[#allocation2 + $0x210] sm:$0xff]
        %v2692 = vld [vmem:[#allocation2 + $0x218] sm:$0xff]
        %v2693 = vld [vmem:[#allocation2 + $0x220] sm:$0xff]
        %vm2694 = vcmask 523264
        %v2696 = vsel %vm2694, %v2685, 0
        %2698 = vmatprep.subr.mxu0 0.0
        %2699 = vmatpush1.msra.mxu0 %v2686
        %2700 = vmatprep.subr.mxu0 0.0
        %2701 = vmatpush1.msra.mxu0 %v2687
        %2702 = vmatprep.subr.mxu0 0.0
        %2703 = vmatpush1.msra.mxu0 %v2688
        %2704 = vmatprep.subr.mxu0 0.0
        %2705 = vmatpush1.msra.mxu0 %v2689
        %2706 = vmatprep.subr.mxu0 0.0
        %2707 = vmatpush1.msra.mxu0 %v2690
        %2708 = vmatprep.subr.mxu0 0.0
        %2709 = vmatpush1.msra.mxu0 %v2691
        %2710 = vmatprep.subr.mxu0 0.0
        %2711 = vmatpush1.msra.mxu0 %v2692
        %2712 = vmatprep.subr.mxu0 0.0
        %2713 = vmatpush1.msra.mxu0 %v2693
        %2714 = vmatprep.subr.mxu0 0.0
        %2715 = vmatpush1.msra.mxu0 0.0
        %2716 = vmatprep.subr.mxu0 0.0
        %2717 = vmatpush1.msra.mxu0 0.0
        %2718 = vmatprep.subr.mxu0 0.0
        %2719 = vmatpush1.msra.mxu0 0.0
        %2720 = vmatprep.subr.mxu0 0.0
        %2721 = vmatpush1.msra.mxu0 0.0
        %2722 = vmatprep.subr.mxu0 0.0
        %2723 = vmatpush1.msra.mxu0 0.0
        %2724 = vmatprep.subr.mxu0 0.0
        %2725 = vmatpush1.msra.mxu0 0.0
        %2726 = vmatprep.subr.mxu0 0.0
        %2727 = vmatpush1.msra.mxu0 0.0
        %2728 = vmatprep.subr.mxu0 0.0
        %2729 = vmatpush1.msra.mxu0 0.0
        %2730 = vmatprep.subr.mxu0 0.0
        %2731 = vmatpush1.msra.mxu0 0.0
        %2732 = vmatprep.subr.mxu0 0.0
        %2733 = vmatpush1.msra.mxu0 0.0
        %2734 = vmatprep.subr.mxu0 0.0
        %2735 = vmatpush1.msra.mxu0 0.0
        %2736 = vmatprep.subr.mxu0 0.0
        %2737 = vmatpush1.msra.mxu0 0.0
        %2738 = vmatprep.subr.mxu0 0.0
        %2739 = vmatpush1.msra.mxu0 0.0
        %2740 = vmatprep.subr.mxu0 0.0
        %2741 = vmatpush1.msra.mxu0 0.0
        %2742 = vmatprep.subr.mxu0 0.0
        %2743 = vmatpush1.msra.mxu0 0.0
        %2744 = vmatprep.subr.mxu0 0.0
        %2745 = vmatpush1.msra.mxu0 0.0
        %2746 = vmatprep.subr.mxu0 0.0
        %2747 = vmatpush1.msra.mxu0 0.0
        %2748 = vmatprep.subr.mxu0 0.0
        %2749 = vmatpush1.msra.mxu0 0.0
        %2750 = vmatprep.subr.mxu0 0.0
        %2751 = vmatpush1.msra.mxu0 0.0
        %2752 = vmatprep.subr.mxu0 0.0
        %2753 = vmatpush1.msra.mxu0 0.0
        %2754 = vmatprep.subr.mxu0 0.0
        %2755 = vmatpush1.msra.mxu0 0.0
        %2756 = vmatprep.subr.mxu0 0.0
        %2757 = vmatpush1.msra.mxu0 0.0
        %2758 = vmatprep.subr.mxu0 0.0
        %2759 = vmatpush1.msra.mxu0 0.0
        %2760 = vmatprep.subr.mxu0 0.0
        %2761 = vmatpush1.msra.mxu0 0.0
        %2762 = vmatprep.mubr.f32.mxu0 0.0
        %2763 = vmatmul.mubr.f32.gmra.mrb[0].mxu0 %v2696
        %v2764 = vpop.f32.mrb[0].mxu0
        %v2765 = vadd.f32 0.0, %v2764
        %v2766 = vpop.f32.mrb[0].mxu0
        %2767 = vdwg.mxu0
        %v2768 = vadd.f32 %v2602, %v2765
        %v2769 = vld [vmem:[#allocation2 + $0x228] sm:$0x1]
        %v2770 = vlaneseq
        %v2771 = vshrl.u32 %v2770, 7
        %v2772 = vsub.s32 0, %v2771
        %v2773 = vrot.slane %v2769, %v2772
        %v2774 = vadd.f32 %v2768, %v2773
        %v2775 = vld [vmem:[#allocation2 + $0x230] sm:$0x1]
        %v2776 = vld [vmem:[#allocation2 + $0x238] sm:$0x1]
        %v2777 = vsel %vm478, %v2774, 0.0
        %2778 = vadd.xlane.f32.xlu0 %v2777
        %v2779 = vpop.xlane.xlu0 %2778
        %v2780 = vmul.f32 %v2779, %v2582
        %v2781 = vsub.f32 %v2774, %v2780
        %v2782 = vmul.f32 %v2781, %v2781
        %v2783 = vsel %vm478, %v2782, 0.0
        %2784 = vadd.xlane.f32.xlu0 %v2783
        %v2785 = vpop.xlane.xlu0 %2784
        %v2786 = vmul.f32 %v2785, %v2582
        %v2787 = vadd.f32 %v2786, 1e-05
        %v2788 = vrsqrt.pop %v2787
        %v2789 = vmul.f32 %v2781, %v2788
        %v2790 = vlaneseq
        %v2791 = vshrl.u32 %v2790, 7
        %v2792 = vsub.s32 0, %v2791
        %v2793 = vrot.slane %v2775, %v2792
        %v2794 = vmul.f32 %v2789, %v2793
        %v2795 = vlaneseq
        %v2796 = vshrl.u32 %v2795, 7
        %v2797 = vsub.s32 0, %v2796
        %v2798 = vrot.slane %v2776, %v2797
        %v2799 = vadd.f32 %v2794, %v2798
        %v2800 = vadd.f32 %v360, %v1210
        %v2801 = vadd.f32 %v361, %v1211
        %v2802 = vadd.f32 %v362, %v1212
        %v2803 = vadd.f32 %v363, %v1213
        %v2804 = vadd.f32 %v364, %v1214
        %v2805 = vadd.f32 %v365, %v1215
        %v2806 = vadd.f32 %v366, %v1216
        %v2807 = vadd.f32 %v367, %v1217
        %v2808 = vld [vmem:[#allocation2 + $0x240] sm:$0x1]
        %v2809 = vld [vmem:[#allocation2 + $0x248] sm:$0x1]
        %v2810 = vsel %vm564, %v2800, 0.0
        %2811 = vadd.xlane.f32.xlu0 %v2810
        %v2812 = vpop.xlane.xlu0 %2811
        %v2813 = vsel %vm564, %v2801, 0.0
        %2814 = vadd.xlane.f32.xlu0 %v2813
        %v2815 = vpop.xlane.xlu0 %2814
        %v2816 = vsel %vm564, %v2802, 0.0
        %2817 = vadd.xlane.f32.xlu0 %v2816
        %v2818 = vpop.xlane.xlu0 %2817
        %v2819 = vsel %vm564, %v2803, 0.0
        %2820 = vadd.xlane.f32.xlu0 %v2819
        %v2821 = vpop.xlane.xlu0 %2820
        %v2822 = vsel %vm564, %v2804, 0.0
        %2823 = vadd.xlane.f32.xlu0 %v2822
        %v2824 = vpop.xlane.xlu0 %2823
        %v2825 = vsel %vm564, %v2805, 0.0
        %2826 = vadd.xlane.f32.xlu0 %v2825
        %v2827 = vpop.xlane.xlu0 %2826
        %v2828 = vsel %vm564, %v2806, 0.0
        %2829 = vadd.xlane.f32.xlu0 %v2828
        %v2830 = vpop.xlane.xlu0 %2829
        %v2831 = vsel %vm564, %v2807, 0.0
        %2832 = vadd.xlane.f32.xlu0 %v2831
        %v2833 = vpop.xlane.xlu0 %2832
        %v2834 = vrcp.pop 16.0
        %v2835 = vmul.f32 %v2812, %v2834
        %v2836 = vmul.f32 %v2815, %v2834
        %v2837 = vmul.f32 %v2818, %v2834
        %v2838 = vmul.f32 %v2821, %v2834
        %v2839 = vmul.f32 %v2824, %v2834
        %v2840 = vmul.f32 %v2827, %v2834
        %v2841 = vmul.f32 %v2830, %v2834
        %v2842 = vmul.f32 %v2833, %v2834
        %v2843 = vsub.f32 %v2800, %v2835
        %v2844 = vsub.f32 %v2801, %v2836
        %v2845 = vsub.f32 %v2802, %v2837
        %v2846 = vsub.f32 %v2803, %v2838
        %v2847 = vsub.f32 %v2804, %v2839
        %v2848 = vsub.f32 %v2805, %v2840
        %v2849 = vsub.f32 %v2806, %v2841
        %v2850 = vsub.f32 %v2807, %v2842
        %v2851 = vmul.f32 %v2843, %v2843
        %v2852 = vmul.f32 %v2844, %v2844
        %v2853 = vmul.f32 %v2845, %v2845
        %v2854 = vmul.f32 %v2846, %v2846
        %v2855 = vmul.f32 %v2847, %v2847
        %v2856 = vmul.f32 %v2848, %v2848
        %v2857 = vmul.f32 %v2849, %v2849
        %v2858 = vmul.f32 %v2850, %v2850
        %v2859 = vsel %vm564, %v2851, 0.0
        %2860 = vadd.xlane.f32.xlu0 %v2859
        %v2861 = vpop.xlane.xlu0 %2860
        %v2862 = vsel %vm564, %v2852, 0.0
        %2863 = vadd.xlane.f32.xlu0 %v2862
        %v2864 = vpop.xlane.xlu0 %2863
        %v2865 = vsel %vm564, %v2853, 0.0
        %2866 = vadd.xlane.f32.xlu0 %v2865
        %v2867 = vpop.xlane.xlu0 %2866
        %v2868 = vsel %vm564, %v2854, 0.0
        %2869 = vadd.xlane.f32.xlu0 %v2868
        %v2870 = vpop.xlane.xlu0 %2869
        %v2871 = vsel %vm564, %v2855, 0.0
        %2872 = vadd.xlane.f32.xlu0 %v2871
        %v2873 = vpop.xlane.xlu0 %2872
        %v2874 = vsel %vm564, %v2856, 0.0
        %2875 = vadd.xlane.f32.xlu0 %v2874
        %v2876 = vpop.xlane.xlu0 %2875
        %v2877 = vsel %vm564, %v2857, 0.0
        %2878 = vadd.xlane.f32.xlu0 %v2877
        %v2879 = vpop.xlane.xlu0 %2878
        %v2880 = vsel %vm564, %v2858, 0.0
        %2881 = vadd.xlane.f32.xlu0 %v2880
        %v2882 = vpop.xlane.xlu0 %2881
        %v2883 = vmul.f32 %v2861, %v2834
        %v2884 = vmul.f32 %v2864, %v2834
        %v2885 = vmul.f32 %v2867, %v2834
        %v2886 = vmul.f32 %v2870, %v2834
        %v2887 = vmul.f32 %v2873, %v2834
        %v2888 = vmul.f32 %v2876, %v2834
        %v2889 = vmul.f32 %v2879, %v2834
        %v2890 = vmul.f32 %v2882, %v2834
        %v2891 = vadd.f32 %v2883, 1e-05
        %v2892 = vadd.f32 %v2884, 1e-05
        %v2893 = vadd.f32 %v2885, 1e-05
        %v2894 = vadd.f32 %v2886, 1e-05
        %v2895 = vadd.f32 %v2887, 1e-05
        %v2896 = vadd.f32 %v2888, 1e-05
        %v2897 = vadd.f32 %v2889, 1e-05
        %v2898 = vadd.f32 %v2890, 1e-05
        %v2899 = vrsqrt.pop %v2891
        %v2900 = vrsqrt.pop %v2892
        %v2901 = vrsqrt.pop %v2893
        %v2902 = vrsqrt.pop %v2894
        %v2903 = vrsqrt.pop %v2895
        %v2904 = vrsqrt.pop %v2896
        %v2905 = vrsqrt.pop %v2897
        %v2906 = vrsqrt.pop %v2898
        %v2907 = vmul.f32 %v2843, %v2899
        %v2908 = vmul.f32 %v2844, %v2900
        %v2909 = vmul.f32 %v2845, %v2901
        %v2910 = vmul.f32 %v2846, %v2902
        %v2911 = vmul.f32 %v2847, %v2903
        %v2912 = vmul.f32 %v2848, %v2904
        %v2913 = vmul.f32 %v2849, %v2905
        %v2914 = vmul.f32 %v2850, %v2906
        %v2915 = vlaneseq
        %v2916 = vshrl.u32 %v2915, 7
        %v2917 = vsub.s32 0, %v2916
        %v2918 = vrot.slane %v2808, %v2917
        %v2919 = vmul.f32 %v2907, %v2918
        %v2920 = vmul.f32 %v2908, %v2918
        %v2921 = vmul.f32 %v2909, %v2918
        %v2922 = vmul.f32 %v2910, %v2918
        %v2923 = vmul.f32 %v2911, %v2918
        %v2924 = vmul.f32 %v2912, %v2918
        %v2925 = vmul.f32 %v2913, %v2918
        %v2926 = vmul.f32 %v2914, %v2918
        %v2927 = vlaneseq
        %v2928 = vshrl.u32 %v2927, 7
        %v2929 = vsub.s32 0, %v2928
        %v2930 = vrot.slane %v2809, %v2929
        %v2931 = vadd.f32 %v2919, %v2930
        %v2932 = vadd.f32 %v2920, %v2930
        %v2933 = vadd.f32 %v2921, %v2930
        %v2934 = vadd.f32 %v2922, %v2930
        %v2935 = vadd.f32 %v2923, %v2930
        %v2936 = vadd.f32 %v2924, %v2930
        %v2937 = vadd.f32 %v2925, %v2930
        %v2938 = vadd.f32 %v2926, %v2930
        %v2939 = vld [vmem:[#allocation2 + $0x250] sm:$0xff]
        %v2940 = vld [vmem:[#allocation2 + $0x258] sm:$0xff]
        %v2941 = vld [vmem:[#allocation2 + $0x260] sm:$0x1]
        %v2942 = vlaneseq
        %v2943 = vshrl.u32 %v2942, 7
        %v2944 = vsub.s32 0, %v2943
        %v2945 = vrot.slane %v2941, %v2944
        %v2947 = vsel %vm564, %v2931, 0
        %v2950 = vsel %vm564, %v2932, 0
        %v2953 = vsel %vm564, %v2933, 0
        %v2956 = vsel %vm564, %v2934, 0
        %v2959 = vsel %vm564, %v2935, 0
        %v2962 = vsel %vm564, %v2936, 0
        %v2965 = vsel %vm564, %v2937, 0
        %v2968 = vsel %vm564, %v2938, 0
        %2970 = vmatprep.subr.mxu0 0.0
        %2971 = vmatpush1.msra.mxu0 %v2939
        %2972 = vmatprep.subr.mxu0 0.0
        %2973 = vmatpush1.msra.mxu0 %v2940
        %2974 = vmatprep.subr.mxu0 0.0
        %2975 = vmatpush1.msra.mxu0 0.0
        %2976 = vmatprep.subr.mxu0 0.0
        %2977 = vmatpush1.msra.mxu0 0.0
        %2978 = vmatprep.subr.mxu0 0.0
        %2979 = vmatpush1.msra.mxu0 0.0
        %2980 = vmatprep.subr.mxu0 0.0
        %2981 = vmatpush1.msra.mxu0 0.0
        %2982 = vmatprep.subr.mxu0 0.0
        %2983 = vmatpush1.msra.mxu0 0.0
        %2984 = vmatprep.subr.mxu0 0.0
        %2985 = vmatpush1.msra.mxu0 0.0
        %2986 = vmatprep.subr.mxu0 0.0
        %2987 = vmatpush1.msra.mxu0 0.0
        %2988 = vmatprep.subr.mxu0 0.0
        %2989 = vmatpush1.msra.mxu0 0.0
        %2990 = vmatprep.subr.mxu0 0.0
        %2991 = vmatpush1.msra.mxu0 0.0
        %2992 = vmatprep.subr.mxu0 0.0
        %2993 = vmatpush1.msra.mxu0 0.0
        %2994 = vmatprep.subr.mxu0 0.0
        %2995 = vmatpush1.msra.mxu0 0.0
        %2996 = vmatprep.subr.mxu0 0.0
        %2997 = vmatpush1.msra.mxu0 0.0
        %2998 = vmatprep.subr.mxu0 0.0
        %2999 = vmatpush1.msra.mxu0 0.0
        %3000 = vmatprep.subr.mxu0 0.0
        %3001 = vmatpush1.msra.mxu0 0.0
        %3002 = vmatprep.subr.mxu0 0.0
        %3003 = vmatpush1.msra.mxu0 0.0
        %3004 = vmatprep.subr.mxu0 0.0
        %3005 = vmatpush1.msra.mxu0 0.0
        %3006 = vmatprep.subr.mxu0 0.0
        %3007 = vmatpush1.msra.mxu0 0.0
        %3008 = vmatprep.subr.mxu0 0.0
        %3009 = vmatpush1.msra.mxu0 0.0
        %3010 = vmatprep.subr.mxu0 0.0
        %3011 = vmatpush1.msra.mxu0 0.0
        %3012 = vmatprep.subr.mxu0 0.0
        %3013 = vmatpush1.msra.mxu0 0.0
        %3014 = vmatprep.subr.mxu0 0.0
        %3015 = vmatpush1.msra.mxu0 0.0
        %3016 = vmatprep.subr.mxu0 0.0
        %3017 = vmatpush1.msra.mxu0 0.0
        %3018 = vmatprep.subr.mxu0 0.0
        %3019 = vmatpush1.msra.mxu0 0.0
        %3020 = vmatprep.subr.mxu0 0.0
        %3021 = vmatpush1.msra.mxu0 0.0
        %3022 = vmatprep.subr.mxu0 0.0
        %3023 = vmatpush1.msra.mxu0 0.0
        %3024 = vmatprep.subr.mxu0 0.0
        %3025 = vmatpush1.msra.mxu0 0.0
        %3026 = vmatprep.subr.mxu0 0.0
        %3027 = vmatpush1.msra.mxu0 0.0
        %3028 = vmatprep.subr.mxu0 0.0
        %3029 = vmatpush1.msra.mxu0 0.0
        %3030 = vmatprep.subr.mxu0 0.0
        %3031 = vmatpush1.msra.mxu0 0.0
        %3032 = vmatprep.subr.mxu0 0.0
        %3033 = vmatpush1.msra.mxu0 0.0
        %3034 = vmatprep.mubr.f32.mxu0 0.0
        %3035 = vmatmul.mubr.f32.gmra.mrb[0].mxu0 %v2947
        %v3036 = vpop.f32.mrb[0].mxu0
        %v3037 = vadd.f32 %v2945, %v3036
        %v3038 = vpop.f32.mrb[0].mxu0
        %3039 = vmatprep.mubr.f32.mxu0 0.0
        %3040 = vmatmul.mubr.f32.gmra.mrb[0].mxu0 %v2950
        %v3041 = vpop.f32.mrb[0].mxu0
        %v3042 = vadd.f32 %v2945, %v3041
        %v3043 = vpop.f32.mrb[0].mxu0
        %3044 = vmatprep.mubr.f32.mxu0 0.0
        %3045 = vmatmul.mubr.f32.gmra.mrb[0].mxu0 %v2953
        %v3046 = vpop.f32.mrb[0].mxu0
        %v3047 = vadd.f32 %v2945, %v3046
        %v3048 = vpop.f32.mrb[0].mxu0
        %3049 = vmatprep.mubr.f32.mxu0 0.0
        %3050 = vmatmul.mubr.f32.gmra.mrb[0].mxu0 %v2956
        %v3051 = vpop.f32.mrb[0].mxu0
        %v3052 = vadd.f32 %v2945, %v3051
        %v3053 = vpop.f32.mrb[0].mxu0
        %3054 = vmatprep.mubr.f32.mxu0 0.0
        %3055 = vmatmul.mubr.f32.gmra.mrb[0].mxu0 %v2959
        %v3056 = vpop.f32.mrb[0].mxu0
        %v3057 = vadd.f32 %v2945, %v3056
        %v3058 = vpop.f32.mrb[0].mxu0
        %3059 = vmatprep.mubr.f32.mxu0 0.0
        %3060 = vmatmul.mubr.f32.gmra.mrb[0].mxu0 %v2962
        %v3061 = vpop.f32.mrb[0].mxu0
        %v3062 = vadd.f32 %v2945, %v3061
        %v3063 = vpop.f32.mrb[0].mxu0
        %3064 = vmatprep.mubr.f32.mxu0 0.0
        %3065 = vmatmul.mubr.f32.gmra.mrb[0].mxu0 %v2965
        %v3066 = vpop.f32.mrb[0].mxu0
        %v3067 = vadd.f32 %v2945, %v3066
        %v3068 = vpop.f32.mrb[0].mxu0
        %3069 = vmatprep.mubr.f32.mxu0 0.0
        %3070 = vmatmul.mubr.f32.gmra.mrb[0].mxu0 %v2968
        %v3071 = vpop.f32.mrb[0].mxu0
        %v3072 = vadd.f32 %v2945, %v3071
        %v3073 = vpop.f32.mrb[0].mxu0
        %3074 = vdwg.mxu0
        %v3075 = vmax.f32 %v3037, 0.0
        %v3076 = vmax.f32 %v3042, 0.0
        %v3077 = vmax.f32 %v3047, 0.0
        %v3078 = vmax.f32 %v3052, 0.0
        %v3079 = vmax.f32 %v3057, 0.0
        %v3080 = vmax.f32 %v3062, 0.0
        %v3081 = vmax.f32 %v3067, 0.0
        %v3082 = vmax.f32 %v3072, 0.0
        %v3083 = vld [vmem:[#allocation2 + $0x268] sm:$0xff]
        %v3084 = vld [vmem:[#allocation2 + $0x270] sm:$0xff]
        %v3085 = vld [vmem:[#allocation2 + $0x278] sm:$0xff]
        %v3086 = vld [vmem:[#allocation2 + $0x280] sm:$0xff]
        %v3088 = vsel %vm478, %v3075, 0
        %v3091 = vsel %vm478, %v3076, 0
        %v3094 = vsel %vm478, %v3077, 0
        %v3097 = vsel %vm478, %v3078, 0
        %v3100 = vsel %vm478, %v3079, 0
        %v3103 = vsel %vm478, %v3080, 0
        %v3106 = vsel %vm478, %v3081, 0
        %v3109 = vsel %vm478, %v3082, 0
        %3111 = vmatprep.subr.mxu0 0.0
        %3112 = vmatpush1.msra.mxu0 %v3083
        %3113 = vmatprep.subr.mxu0 0.0
        %3114 = vmatpush1.msra.mxu0 %v3084
        %3115 = vmatprep.subr.mxu0 0.0
        %3116 = vmatpush1.msra.mxu0 %v3085
        %3117 = vmatprep.subr.mxu0 0.0
        %3118 = vmatpush1.msra.mxu0 %v3086
        %3119 = vmatprep.subr.mxu0 0.0
        %3120 = vmatpush1.msra.mxu0 0.0
        %3121 = vmatprep.subr.mxu0 0.0
        %3122 = vmatpush1.msra.mxu0 0.0
        %3123 = vmatprep.subr.mxu0 0.0
        %3124 = vmatpush1.msra.mxu0 0.0
        %3125 = vmatprep.subr.mxu0 0.0
        %3126 = vmatpush1.msra.mxu0 0.0
        %3127 = vmatprep.subr.mxu0 0.0
        %3128 = vmatpush1.msra.mxu0 0.0
        %3129 = vmatprep.subr.mxu0 0.0
        %3130 = vmatpush1.msra.mxu0 0.0
        %3131 = vmatprep.subr.mxu0 0.0
        %3132 = vmatpush1.msra.mxu0 0.0
        %3133 = vmatprep.subr.mxu0 0.0
        %3134 = vmatpush1.msra.mxu0 0.0
        %3135 = vmatprep.subr.mxu0 0.0
        %3136 = vmatpush1.msra.mxu0 0.0
        %3137 = vmatprep.subr.mxu0 0.0
        %3138 = vmatpush1.msra.mxu0 0.0
        %3139 = vmatprep.subr.mxu0 0.0
        %3140 = vmatpush1.msra.mxu0 0.0
        %3141 = vmatprep.subr.mxu0 0.0
        %3142 = vmatpush1.msra.mxu0 0.0
        %3143 = vmatprep.subr.mxu0 0.0
        %3144 = vmatpush1.msra.mxu0 0.0
        %3145 = vmatprep.subr.mxu0 0.0
        %3146 = vmatpush1.msra.mxu0 0.0
        %3147 = vmatprep.subr.mxu0 0.0
        %3148 = vmatpush1.msra.mxu0 0.0
        %3149 = vmatprep.subr.mxu0 0.0
        %3150 = vmatpush1.msra.mxu0 0.0
        %3151 = vmatprep.subr.mxu0 0.0
        %3152 = vmatpush1.msra.mxu0 0.0
        %3153 = vmatprep.subr.mxu0 0.0
        %3154 = vmatpush1.msra.mxu0 0.0
        %3155 = vmatprep.subr.mxu0 0.0
        %3156 = vmatpush1.msra.mxu0 0.0
        %3157 = vmatprep.subr.mxu0 0.0
        %3158 = vmatpush1.msra.mxu0 0.0
        %3159 = vmatprep.subr.mxu0 0.0
        %3160 = vmatpush1.msra.mxu0 0.0
        %3161 = vmatprep.subr.mxu0 0.0
        %3162 = vmatpush1.msra.mxu0 0.0
        %3163 = vmatprep.subr.mxu0 0.0
        %3164 = vmatpush1.msra.mxu0 0.0
        %3165 = vmatprep.subr.mxu0 0.0
        %3166 = vmatpush1.msra.mxu0 0.0
        %3167 = vmatprep.subr.mxu0 0.0
        %3168 = vmatpush1.msra.mxu0 0.0
        %3169 = vmatprep.subr.mxu0 0.0
        %3170 = vmatpush1.msra.mxu0 0.0
        %3171 = vmatprep.subr.mxu0 0.0
        %3172 = vmatpush1.msra.mxu0 0.0
        %3173 = vmatprep.subr.mxu0 0.0
        %3174 = vmatpush1.msra.mxu0 0.0
        %3175 = vmatprep.mubr.f32.mxu0 0.0
        %3176 = vmatmul.mubr.f32.gmra.mrb[0].mxu0 %v3088
        %v3177 = vpop.f32.mrb[0].mxu0
        %v3178 = vadd.f32 0.0, %v3177
        %v3179 = vpop.f32.mrb[0].mxu0
        %3180 = vmatprep.mubr.f32.mxu0 0.0
        %3181 = vmatmul.mubr.f32.gmra.mrb[0].mxu0 %v3091
        %v3182 = vpop.f32.mrb[0].mxu0
        %v3183 = vadd.f32 0.0, %v3182
        %v3184 = vpop.f32.mrb[0].mxu0
        %3185 = vmatprep.mubr.f32.mxu0 0.0
        %3186 = vmatmul.mubr.f32.gmra.mrb[0].mxu0 %v3094
        %v3187 = vpop.f32.mrb[0].mxu0
        %v3188 = vadd.f32 0.0, %v3187
        %v3189 = vpop.f32.mrb[0].mxu0
        %3190 = vmatprep.mubr.f32.mxu0 0.0
        %3191 = vmatmul.mubr.f32.gmra.mrb[0].mxu0 %v3097
        %v3192 = vpop.f32.mrb[0].mxu0
        %v3193 = vadd.f32 0.0, %v3192
        %v3194 = vpop.f32.mrb[0].mxu0
        %3195 = vmatprep.mubr.f32.mxu0 0.0
        %3196 = vmatmul.mubr.f32.gmra.mrb[0].mxu0 %v3100
        %v3197 = vpop.f32.mrb[0].mxu0
        %v3198 = vadd.f32 0.0, %v3197
        %v3199 = vpop.f32.mrb[0].mxu0
        %3200 = vmatprep.mubr.f32.mxu0 0.0
        %3201 = vmatmul.mubr.f32.gmra.mrb[0].mxu0 %v3103
        %v3202 = vpop.f32.mrb[0].mxu0
        %v3203 = vadd.f32 0.0, %v3202
        %v3204 = vpop.f32.mrb[0].mxu0
        %3205 = vmatprep.mubr.f32.mxu0 0.0
        %3206 = vmatmul.mubr.f32.gmra.mrb[0].mxu0 %v3106
        %v3207 = vpop.f32.mrb[0].mxu0
        %v3208 = vadd.f32 0.0, %v3207
        %v3209 = vpop.f32.mrb[0].mxu0
        %3210 = vmatprep.mubr.f32.mxu0 0.0
        %3211 = vmatmul.mubr.f32.gmra.mrb[0].mxu0 %v3109
        %v3212 = vpop.f32.mrb[0].mxu0
        %v3213 = vadd.f32 0.0, %v3212
        %v3214 = vpop.f32.mrb[0].mxu0
        %3215 = vdwg.mxu0
        %v3216 = vadd.f32 %v2931, %v3178
        %v3217 = vadd.f32 %v2932, %v3183
        %v3218 = vadd.f32 %v2933, %v3188
        %v3219 = vadd.f32 %v2934, %v3193
        %v3220 = vadd.f32 %v2935, %v3198
        %v3221 = vadd.f32 %v2936, %v3203
        %v3222 = vadd.f32 %v2937, %v3208
        %v3223 = vadd.f32 %v2938, %v3213
        %v3224 = vld [vmem:[#allocation2 + $0x288] sm:$0x1]
        %v3225 = vlaneseq
        %v3226 = vshrl.u32 %v3225, 7
        %v3227 = vsub.s32 0, %v3226
        %v3228 = vrot.slane %v3224, %v3227
        %v3229 = vadd.f32 %v3216, %v3228
        %v3230 = vadd.f32 %v3217, %v3228
        %v3231 = vadd.f32 %v3218, %v3228
        %v3232 = vadd.f32 %v3219, %v3228
        %v3233 = vadd.f32 %v3220, %v3228
        %v3234 = vadd.f32 %v3221, %v3228
        %v3235 = vadd.f32 %v3222, %v3228
        %v3236 = vadd.f32 %v3223, %v3228
        %v3237 = vld [vmem:[#allocation2 + $0x290] sm:$0x1]
        %v3238 = vld [vmem:[#allocation2 + $0x298] sm:$0x1]
        %v3239 = vsel %vm564, %v3229, 0.0
        %3240 = vadd.xlane.f32.xlu0 %v3239
        %v3241 = vpop.xlane.xlu0 %3240
        %v3242 = vsel %vm564, %v3230, 0.0
        %3243 = vadd.xlane.f32.xlu0 %v3242
        %v3244 = vpop.xlane.xlu0 %3243
        %v3245 = vsel %vm564, %v3231, 0.0
        %3246 = vadd.xlane.f32.xlu0 %v3245
        %v3247 = vpop.xlane.xlu0 %3246
        %v3248 = vsel %vm564, %v3232, 0.0
        %3249 = vadd.xlane.f32.xlu0 %v3248
        %v3250 = vpop.xlane.xlu0 %3249
        %v3251 = vsel %vm564, %v3233, 0.0
        %3252 = vadd.xlane.f32.xlu0 %v3251
        %v3253 = vpop.xlane.xlu0 %3252
        %v3254 = vsel %vm564, %v3234, 0.0
        %3255 = vadd.xlane.f32.xlu0 %v3254
        %v3256 = vpop.xlane.xlu0 %3255
        %v3257 = vsel %vm564, %v3235, 0.0
        %3258 = vadd.xlane.f32.xlu0 %v3257
        %v3259 = vpop.xlane.xlu0 %3258
        %v3260 = vsel %vm564, %v3236, 0.0
        %3261 = vadd.xlane.f32.xlu0 %v3260
        %v3262 = vpop.xlane.xlu0 %3261
        %v3263 = vmul.f32 %v3241, %v2834
        %v3264 = vmul.f32 %v3244, %v2834
        %v3265 = vmul.f32 %v3247, %v2834
        %v3266 = vmul.f32 %v3250, %v2834
        %v3267 = vmul.f32 %v3253, %v2834
        %v3268 = vmul.f32 %v3256, %v2834
        %v3269 = vmul.f32 %v3259, %v2834
        %v3270 = vmul.f32 %v3262, %v2834
        %v3271 = vsub.f32 %v3229, %v3263
        %v3272 = vsub.f32 %v3230, %v3264
        %v3273 = vsub.f32 %v3231, %v3265
        %v3274 = vsub.f32 %v3232, %v3266
        %v3275 = vsub.f32 %v3233, %v3267
        %v3276 = vsub.f32 %v3234, %v3268
        %v3277 = vsub.f32 %v3235, %v3269
        %v3278 = vsub.f32 %v3236, %v3270
        %v3279 = vmul.f32 %v3271, %v3271
        %v3280 = vmul.f32 %v3272, %v3272
        %v3281 = vmul.f32 %v3273, %v3273
        %v3282 = vmul.f32 %v3274, %v3274
        %v3283 = vmul.f32 %v3275, %v3275
        %v3284 = vmul.f32 %v3276, %v3276
        %v3285 = vmul.f32 %v3277, %v3277
        %v3286 = vmul.f32 %v3278, %v3278
        %v3287 = vsel %vm564, %v3279, 0.0
        %3288 = vadd.xlane.f32.xlu0 %v3287
        %v3289 = vpop.xlane.xlu0 %3288
        %v3290 = vsel %vm564, %v3280, 0.0
        %3291 = vadd.xlane.f32.xlu0 %v3290
        %v3292 = vpop.xlane.xlu0 %3291
        %v3293 = vsel %vm564, %v3281, 0.0
        %3294 = vadd.xlane.f32.xlu0 %v3293
        %v3295 = vpop.xlane.xlu0 %3294
        %v3296 = vsel %vm564, %v3282, 0.0
        %3297 = vadd.xlane.f32.xlu0 %v3296
        %v3298 = vpop.xlane.xlu0 %3297
        %v3299 = vsel %vm564, %v3283, 0.0
        %3300 = vadd.xlane.f32.xlu0 %v3299
        %v3301 = vpop.xlane.xlu0 %3300
        %v3302 = vsel %vm564, %v3284, 0.0
        %3303 = vadd.xlane.f32.xlu0 %v3302
        %v3304 = vpop.xlane.xlu0 %3303
        %v3305 = vsel %vm564, %v3285, 0.0
        %3306 = vadd.xlane.f32.xlu0 %v3305
        %v3307 = vpop.xlane.xlu0 %3306
        %v3308 = vsel %vm564, %v3286, 0.0
        %3309 = vadd.xlane.f32.xlu0 %v3308
        %v3310 = vpop.xlane.xlu0 %3309
        %v3311 = vmul.f32 %v3289, %v2834
        %v3312 = vmul.f32 %v3292, %v2834
        %v3313 = vmul.f32 %v3295, %v2834
        %v3314 = vmul.f32 %v3298, %v2834
        %v3315 = vmul.f32 %v3301, %v2834
        %v3316 = vmul.f32 %v3304, %v2834
        %v3317 = vmul.f32 %v3307, %v2834
        %v3318 = vmul.f32 %v3310, %v2834
        %v3319 = vadd.f32 %v3311, 1e-05
        %v3320 = vadd.f32 %v3312, 1e-05
        %v3321 = vadd.f32 %v3313, 1e-05
        %v3322 = vadd.f32 %v3314, 1e-05
        %v3323 = vadd.f32 %v3315, 1e-05
        %v3324 = vadd.f32 %v3316, 1e-05
        %v3325 = vadd.f32 %v3317, 1e-05
        %v3326 = vadd.f32 %v3318, 1e-05
        %v3327 = vrsqrt.pop %v3319
        %v3328 = vrsqrt.pop %v3320
        %v3329 = vrsqrt.pop %v3321
        %v3330 = vrsqrt.pop %v3322
        %v3331 = vrsqrt.pop %v3323
        %v3332 = vrsqrt.pop %v3324
        %v3333 = vrsqrt.pop %v3325
        %v3334 = vrsqrt.pop %v3326
        %v3335 = vmul.f32 %v3271, %v3327
        %v3336 = vmul.f32 %v3272, %v3328
        %v3337 = vmul.f32 %v3273, %v3329
        %v3338 = vmul.f32 %v3274, %v3330
        %v3339 = vmul.f32 %v3275, %v3331
        %v3340 = vmul.f32 %v3276, %v3332
        %v3341 = vmul.f32 %v3277, %v3333
        %v3342 = vmul.f32 %v3278, %v3334
        %v3343 = vlaneseq
        %v3344 = vshrl.u32 %v3343, 7
        %v3345 = vsub.s32 0, %v3344
        %v3346 = vrot.slane %v3237, %v3345
        %v3347 = vmul.f32 %v3335, %v3346
        %v3348 = vmul.f32 %v3336, %v3346
        %v3349 = vmul.f32 %v3337, %v3346
        %v3350 = vmul.f32 %v3338, %v3346
        %v3351 = vmul.f32 %v3339, %v3346
        %v3352 = vmul.f32 %v3340, %v3346
        %v3353 = vmul.f32 %v3341, %v3346
        %v3354 = vmul.f32 %v3342, %v3346
        %v3355 = vlaneseq
        %v3356 = vshrl.u32 %v3355, 7
        %v3357 = vsub.s32 0, %v3356
        %v3358 = vrot.slane %v3238, %v3357
        %v3359 = vadd.f32 %v3347, %v3358
        %v3360 = vadd.f32 %v3348, %v3358
        %v3361 = vadd.f32 %v3349, %v3358
        %v3362 = vadd.f32 %v3350, %v3358
        %v3363 = vadd.f32 %v3351, %v3358
        %v3364 = vadd.f32 %v3352, %v3358
        %v3365 = vadd.f32 %v3353, %v3358
        %v3366 = vadd.f32 %v3354, %v3358
        %v3367 = vadd.f32 %v368, %v2573
        %v3368 = vld [vmem:[#allocation2 + $0x2a0] sm:$0x1]
        %v3369 = vld [vmem:[#allocation2 + $0x2a8] sm:$0x1]
        %vm3370 = vcmask 122880
        %v3371 = vsel %vm3370, %v3367, 0.0
        %3372 = vadd.xlane.f32.xlu0 %v3371
        %v3373 = vpop.xlane.xlu0 %3372
        %v3374 = vmul.f32 %v3373, %v2834
        %v3375 = vsub.f32 %v3367, %v3374
        %v3376 = vmul.f32 %v3375, %v3375
        %v3377 = vsel %vm3370, %v3376, 0.0
        %3378 = vadd.xlane.f32.xlu0 %v3377
        %v3379 = vpop.xlane.xlu0 %3378
        %v3380 = vmul.f32 %v3379, %v2834
        %v3381 = vadd.f32 %v3380, 1e-05
        %v3382 = vrsqrt.pop %v3381
        %v3383 = vmul.f32 %v3375, %v3382
        %v3384 = vmul.f32 %v3383, %v3368
        %v3385 = vadd.f32 %v3384, %v3369
        %v3386 = vld [vmem:[#allocation2 + $0x2b0] sm:$0xff]
        %v3387 = vld [vmem:[#allocation2 + $0x2b8] sm:$0xff]
        %v3388 = vld [vmem:[#allocation2 + $0x2c0] sm:$0x1]
        %v3390 = vsel %vm564, %v3385, 0
        %3392 = vmatprep.subr.mxu0 0.0
        %3393 = vmatpush1.msra.mxu0 %v3386
        %3394 = vmatprep.subr.mxu0 0.0
        %3395 = vmatpush1.msra.mxu0 %v3387
        %3396 = vmatprep.subr.mxu0 0.0
        %3397 = vmatpush1.msra.mxu0 0.0
        %3398 = vmatprep.subr.mxu0 0.0
        %3399 = vmatpush1.msra.mxu0 0.0
        %3400 = vmatprep.subr.mxu0 0.0
        %3401 = vmatpush1.msra.mxu0 0.0
        %3402 = vmatprep.subr.mxu0 0.0
        %3403 = vmatpush1.msra.mxu0 0.0
        %3404 = vmatprep.subr.mxu0 0.0
        %3405 = vmatpush1.msra.mxu0 0.0
        %3406 = vmatprep.subr.mxu0 0.0
        %3407 = vmatpush1.msra.mxu0 0.0
        %3408 = vmatprep.subr.mxu0 0.0
        %3409 = vmatpush1.msra.mxu0 0.0
        %3410 = vmatprep.subr.mxu0 0.0
        %3411 = vmatpush1.msra.mxu0 0.0
        %3412 = vmatprep.subr.mxu0 0.0
        %3413 = vmatpush1.msra.mxu0 0.0
        %3414 = vmatprep.subr.mxu0 0.0
        %3415 = vmatpush1.msra.mxu0 0.0
        %3416 = vmatprep.subr.mxu0 0.0
        %3417 = vmatpush1.msra.mxu0 0.0
        %3418 = vmatprep.subr.mxu0 0.0
        %3419 = vmatpush1.msra.mxu0 0.0
        %3420 = vmatprep.subr.mxu0 0.0
        %3421 = vmatpush1.msra.mxu0 0.0
        %3422 = vmatprep.subr.mxu0 0.0
        %3423 = vmatpush1.msra.mxu0 0.0
        %3424 = vmatprep.subr.mxu0 0.0
        %3425 = vmatpush1.msra.mxu0 0.0
        %3426 = vmatprep.subr.mxu0 0.0
        %3427 = vmatpush1.msra.mxu0 0.0
        %3428 = vmatprep.subr.mxu0 0.0
        %3429 = vmatpush1.msra.mxu0 0.0
        %3430 = vmatprep.subr.mxu0 0.0
        %3431 = vmatpush1.msra.mxu0 0.0
        %3432 = vmatprep.subr.mxu0 0.0
        %3433 = vmatpush1.msra.mxu0 0.0
        %3434 = vmatprep.subr.mxu0 0.0
        %3435 = vmatpush1.msra.mxu0 0.0
        %3436 = vmatprep.subr.mxu0 0.0
        %3437 = vmatpush1.msra.mxu0 0.0
        %3438 = vmatprep.subr.mxu0 0.0
        %3439 = vmatpush1.msra.mxu0 0.0
        %3440 = vmatprep.subr.mxu0 0.0
        %3441 = vmatpush1.msra.mxu0 0.0
        %3442 = vmatprep.subr.mxu0 0.0
        %3443 = vmatpush1.msra.mxu0 0.0
        %3444 = vmatprep.subr.mxu0 0.0
        %3445 = vmatpush1.msra.mxu0 0.0
        %3446 = vmatprep.subr.mxu0 0.0
        %3447 = vmatpush1.msra.mxu0 0.0
        %3448 = vmatprep.subr.mxu0 0.0
        %3449 = vmatpush1.msra.mxu0 0.0
        %3450 = vmatprep.subr.mxu0 0.0
        %3451 = vmatpush1.msra.mxu0 0.0
        %3452 = vmatprep.subr.mxu0 0.0
        %3453 = vmatpush1.msra.mxu0 0.0
        %3454 = vmatprep.subr.mxu0 0.0
        %3455 = vmatpush1.msra.mxu0 0.0
        %3456 = vmatprep.mubr.f32.mxu0 0.0
        %3457 = vmatmul.mubr.f32.gmra.mrb[0].mxu0 %v3390
        %v3458 = vpop.f32.mrb[0].mxu0
        %v3459 = vadd.f32 %v3388, %v3458
        %v3460 = vpop.f32.mrb[0].mxu0
        %3461 = vdwg.mxu0
        %v3462 = vmax.f32 %v3459, 0.0
        %v3463 = vld [vmem:[#allocation2 + $0x2c8] sm:$0xff]
        %v3464 = vld [vmem:[#allocation2 + $0x2d0] sm:$0xff]
        %v3465 = vld [vmem:[#allocation2 + $0x2d8] sm:$0xff]
        %v3466 = vld [vmem:[#allocation2 + $0x2e0] sm:$0xff]
        %v3468 = vsel %vm478, %v3462, 0
        %3470 = vmatprep.subr.mxu0 0.0
        %3471 = vmatpush1.msra.mxu0 %v3463
        %3472 = vmatprep.subr.mxu0 0.0
        %3473 = vmatpush1.msra.mxu0 %v3464
        %3474 = vmatprep.subr.mxu0 0.0
        %3475 = vmatpush1.msra.mxu0 %v3465
        %3476 = vmatprep.subr.mxu0 0.0
        %3477 = vmatpush1.msra.mxu0 %v3466
        %3478 = vmatprep.subr.mxu0 0.0
        %3479 = vmatpush1.msra.mxu0 0.0
        %3480 = vmatprep.subr.mxu0 0.0
        %3481 = vmatpush1.msra.mxu0 0.0
        %3482 = vmatprep.subr.mxu0 0.0
        %3483 = vmatpush1.msra.mxu0 0.0
        %3484 = vmatprep.subr.mxu0 0.0
        %3485 = vmatpush1.msra.mxu0 0.0
        %3486 = vmatprep.subr.mxu0 0.0
        %3487 = vmatpush1.msra.mxu0 0.0
        %3488 = vmatprep.subr.mxu0 0.0
        %3489 = vmatpush1.msra.mxu0 0.0
        %3490 = vmatprep.subr.mxu0 0.0
        %3491 = vmatpush1.msra.mxu0 0.0
        %3492 = vmatprep.subr.mxu0 0.0
        %3493 = vmatpush1.msra.mxu0 0.0
        %3494 = vmatprep.subr.mxu0 0.0
        %3495 = vmatpush1.msra.mxu0 0.0
        %3496 = vmatprep.subr.mxu0 0.0
        %3497 = vmatpush1.msra.mxu0 0.0
        %3498 = vmatprep.subr.mxu0 0.0
        %3499 = vmatpush1.msra.mxu0 0.0
        %3500 = vmatprep.subr.mxu0 0.0
        %3501 = vmatpush1.msra.mxu0 0.0
        %3502 = vmatprep.subr.mxu0 0.0
        %3503 = vmatpush1.msra.mxu0 0.0
        %3504 = vmatprep.subr.mxu0 0.0
        %3505 = vmatpush1.msra.mxu0 0.0
        %3506 = vmatprep.subr.mxu0 0.0
        %3507 = vmatpush1.msra.mxu0 0.0
        %3508 = vmatprep.subr.mxu0 0.0
        %3509 = vmatpush1.msra.mxu0 0.0
        %3510 = vmatprep.subr.mxu0 0.0
        %3511 = vmatpush1.msra.mxu0 0.0
        %3512 = vmatprep.subr.mxu0 0.0
        %3513 = vmatpush1.msra.mxu0 0.0
        %3514 = vmatprep.subr.mxu0 0.0
        %3515 = vmatpush1.msra.mxu0 0.0
        %3516 = vmatprep.subr.mxu0 0.0
        %3517 = vmatpush1.msra.mxu0 0.0
        %3518 = vmatprep.subr.mxu0 0.0
        %3519 = vmatpush1.msra.mxu0 0.0
        %3520 = vmatprep.subr.mxu0 0.0
        %3521 = vmatpush1.msra.mxu0 0.0
        %3522 = vmatprep.subr.mxu0 0.0
        %3523 = vmatpush1.msra.mxu0 0.0
        %3524 = vmatprep.subr.mxu0 0.0
        %3525 = vmatpush1.msra.mxu0 0.0
        %3526 = vmatprep.subr.mxu0 0.0
        %3527 = vmatpush1.msra.mxu0 0.0
        %3528 = vmatprep.subr.mxu0 0.0
        %3529 = vmatpush1.msra.mxu0 0.0
        %3530 = vmatprep.subr.mxu0 0.0
        %3531 = vmatpush1.msra.mxu0 0.0
        %3532 = vmatprep.subr.mxu0 0.0
        %3533 = vmatpush1.msra.mxu0 0.0
        %3534 = vmatprep.mubr.f32.mxu0 0.0
        %3535 = vmatmul.mubr.f32.gmra.mrb[0].mxu0 %v3468
        %v3536 = vpop.f32.mrb[0].mxu0
        %v3537 = vadd.f32 0.0, %v3536
        %v3538 = vpop.f32.mrb[0].mxu0
        %3539 = vdwg.mxu0
        %v3540 = vadd.f32 %v3385, %v3537
        %v3541 = vld [vmem:[#allocation2 + $0x2e8] sm:$0x1]
        %v3542 = vadd.f32 %v3540, %v3541
        %v3543 = vld [vmem:[#allocation2 + $0x2f0] sm:$0x1]
        %v3544 = vld [vmem:[#allocation2 + $0x2f8] sm:$0x1]
        %v3545 = vsel %vm3370, %v3542, 0.0
        %3546 = vadd.xlane.f32.xlu0 %v3545
        %v3547 = vpop.xlane.xlu0 %3546
        %v3548 = vmul.f32 %v3547, %v2834
        %v3549 = vsub.f32 %v3542, %v3548
        %v3550 = vmul.f32 %v3549, %v3549
        %v3551 = vsel %vm3370, %v3550, 0.0
        %3552 = vadd.xlane.f32.xlu0 %v3551
        %v3553 = vpop.xlane.xlu0 %3552
        %v3554 = vmul.f32 %v3553, %v2834
        %v3555 = vadd.f32 %v3554, 1e-05
        %v3556 = vrsqrt.pop %v3555
        %v3557 = vmul.f32 %v3549, %v3556
        %v3558 = vmul.f32 %v3557, %v3543
        %v3559 = vadd.f32 %v3558, %v3544
        %v3560 = vld [vmem:[#allocation2 + $0x300] sm:$0xff]
        %v3561 = vld [vmem:[#allocation2 + $0x308] sm:$0xff]
        %v3562 = vld [vmem:[#allocation2 + $0x310] sm:$0xff]
        %v3563 = vld [vmem:[#allocation2 + $0x318] sm:$0xff]
        %v3564 = vld [vmem:[#allocation2 + $0x320] sm:$0x1]
        %v3565 = vlaneseq
        %v3566 = vshrl.u32 %v3565, 7
        %v3567 = vsub.s32 0, %v3566
        %v3568 = vrot.slane %v3564, %v3567
        %v3570 = vsel %vm478, %v2799, 0
        %3572 = vmatprep.subr.mxu0 0.0
        %3573 = vmatpush1.msra.mxu0 %v3560
        %3574 = vmatprep.subr.mxu0 0.0
        %3575 = vmatpush1.msra.mxu0 %v3561
        %3576 = vmatprep.subr.mxu0 0.0
        %3577 = vmatpush1.msra.mxu0 %v3562
        %3578 = vmatprep.subr.mxu0 0.0
        %3579 = vmatpush1.msra.mxu0 %v3563
        %3580 = vmatprep.subr.mxu0 0.0
        %3581 = vmatpush1.msra.mxu0 0.0
        %3582 = vmatprep.subr.mxu0 0.0
        %3583 = vmatpush1.msra.mxu0 0.0
        %3584 = vmatprep.subr.mxu0 0.0
        %3585 = vmatpush1.msra.mxu0 0.0
        %3586 = vmatprep.subr.mxu0 0.0
        %3587 = vmatpush1.msra.mxu0 0.0
        %3588 = vmatprep.subr.mxu0 0.0
        %3589 = vmatpush1.msra.mxu0 0.0
        %3590 = vmatprep.subr.mxu0 0.0
        %3591 = vmatpush1.msra.mxu0 0.0
        %3592 = vmatprep.subr.mxu0 0.0
        %3593 = vmatpush1.msra.mxu0 0.0
        %3594 = vmatprep.subr.mxu0 0.0
        %3595 = vmatpush1.msra.mxu0 0.0
        %3596 = vmatprep.subr.mxu0 0.0
        %3597 = vmatpush1.msra.mxu0 0.0
        %3598 = vmatprep.subr.mxu0 0.0
        %3599 = vmatpush1.msra.mxu0 0.0
        %3600 = vmatprep.subr.mxu0 0.0
        %3601 = vmatpush1.msra.mxu0 0.0
        %3602 = vmatprep.subr.mxu0 0.0
        %3603 = vmatpush1.msra.mxu0 0.0
        %3604 = vmatprep.subr.mxu0 0.0
        %3605 = vmatpush1.msra.mxu0 0.0
        %3606 = vmatprep.subr.mxu0 0.0
        %3607 = vmatpush1.msra.mxu0 0.0
        %3608 = vmatprep.subr.mxu0 0.0
        %3609 = vmatpush1.msra.mxu0 0.0
        %3610 = vmatprep.subr.mxu0 0.0
        %3611 = vmatpush1.msra.mxu0 0.0
        %3612 = vmatprep.subr.mxu0 0.0
        %3613 = vmatpush1.msra.mxu0 0.0
        %3614 = vmatprep.subr.mxu0 0.0
        %3615 = vmatpush1.msra.mxu0 0.0
        %3616 = vmatprep.subr.mxu0 0.0
        %3617 = vmatpush1.msra.mxu0 0.0
        %3618 = vmatprep.subr.mxu0 0.0
        %3619 = vmatpush1.msra.mxu0 0.0
        %3620 = vmatprep.subr.mxu0 0.0
        %3621 = vmatpush1.msra.mxu0 0.0
        %3622 = vmatprep.subr.mxu0 0.0
        %3623 = vmatpush1.msra.mxu0 0.0
        %3624 = vmatprep.subr.mxu0 0.0
        %3625 = vmatpush1.msra.mxu0 0.0
        %3626 = vmatprep.subr.mxu0 0.0
        %3627 = vmatpush1.msra.mxu0 0.0
        %3628 = vmatprep.subr.mxu0 0.0
        %3629 = vmatpush1.msra.mxu0 0.0
        %3630 = vmatprep.subr.mxu0 0.0
        %3631 = vmatpush1.msra.mxu0 0.0
        %3632 = vmatprep.subr.mxu0 0.0
        %3633 = vmatpush1.msra.mxu0 0.0
        %3634 = vmatprep.subr.mxu0 0.0
        %3635 = vmatpush1.msra.mxu0 0.0
        %3636 = vmatprep.mubr.f32.mxu0 0.0
        %3637 = vmatmul.mubr.f32.gmra.mrb[0].mxu0 %v3570
        %v3638 = vpop.f32.mrb[0].mxu0
        %v3639 = vadd.f32 %v3568, %v3638
        %v3640 = vpop.f32.mrb[0].mxu0
        %3641 = vdwg.mxu0
        %v3642 = vmul.f32 %v3639, %v554
        %v3643 = vld [vmem:[#allocation2 + $0x328] sm:$0xff]
        %v3644 = vld [vmem:[#allocation2 + $0x330] sm:$0xff]
        %v3645 = vld [vmem:[#allocation2 + $0x338] sm:$0x1]
        %v3646 = vlaneseq
        %v3647 = vshrl.u32 %v3646, 7
        %v3648 = vsub.s32 0, %v3647
        %v3649 = vrot.slane %v3645, %v3648
        %v3651 = vsel %vm564, %v3359, 0
        %v3654 = vsel %vm564, %v3360, 0
        %v3657 = vsel %vm564, %v3361, 0
        %v3660 = vsel %vm564, %v3362, 0
        %v3663 = vsel %vm564, %v3363, 0
        %v3666 = vsel %vm564, %v3364, 0
        %v3669 = vsel %vm564, %v3365, 0
        %v3672 = vsel %vm564, %v3366, 0
        %3674 = vmatprep.subr.mxu0 0.0
        %3675 = vmatpush1.msra.mxu0 %v3643
        %3676 = vmatprep.subr.mxu0 0.0
        %3677 = vmatpush1.msra.mxu0 %v3644
        %3678 = vmatprep.subr.mxu0 0.0
        %3679 = vmatpush1.msra.mxu0 0.0
        %3680 = vmatprep.subr.mxu0 0.0
        %3681 = vmatpush1.msra.mxu0 0.0
        %3682 = vmatprep.subr.mxu0 0.0
        %3683 = vmatpush1.msra.mxu0 0.0
        %3684 = vmatprep.subr.mxu0 0.0
        %3685 = vmatpush1.msra.mxu0 0.0
        %3686 = vmatprep.subr.mxu0 0.0
        %3687 = vmatpush1.msra.mxu0 0.0
        %3688 = vmatprep.subr.mxu0 0.0
        %3689 = vmatpush1.msra.mxu0 0.0
        %3690 = vmatprep.subr.mxu0 0.0
        %3691 = vmatpush1.msra.mxu0 0.0
        %3692 = vmatprep.subr.mxu0 0.0
        %3693 = vmatpush1.msra.mxu0 0.0
        %3694 = vmatprep.subr.mxu0 0.0
        %3695 = vmatpush1.msra.mxu0 0.0
        %3696 = vmatprep.subr.mxu0 0.0
        %3697 = vmatpush1.msra.mxu0 0.0
        %3698 = vmatprep.subr.mxu0 0.0
        %3699 = vmatpush1.msra.mxu0 0.0
        %3700 = vmatprep.subr.mxu0 0.0
        %3701 = vmatpush1.msra.mxu0 0.0
        %3702 = vmatprep.subr.mxu0 0.0
        %3703 = vmatpush1.msra.mxu0 0.0
        %3704 = vmatprep.subr.mxu0 0.0
        %3705 = vmatpush1.msra.mxu0 0.0
        %3706 = vmatprep.subr.mxu0 0.0
        %3707 = vmatpush1.msra.mxu0 0.0
        %3708 = vmatprep.subr.mxu0 0.0
        %3709 = vmatpush1.msra.mxu0 0.0
        %3710 = vmatprep.subr.mxu0 0.0
        %3711 = vmatpush1.msra.mxu0 0.0
        %3712 = vmatprep.subr.mxu0 0.0
        %3713 = vmatpush1.msra.mxu0 0.0
        %3714 = vmatprep.subr.mxu0 0.0
        %3715 = vmatpush1.msra.mxu0 0.0
        %3716 = vmatprep.subr.mxu0 0.0
        %3717 = vmatpush1.msra.mxu0 0.0
        %3718 = vmatprep.subr.mxu0 0.0
        %3719 = vmatpush1.msra.mxu0 0.0
        %3720 = vmatprep.subr.mxu0 0.0
        %3721 = vmatpush1.msra.mxu0 0.0
        %3722 = vmatprep.subr.mxu0 0.0
        %3723 = vmatpush1.msra.mxu0 0.0
        %3724 = vmatprep.subr.mxu0 0.0
        %3725 = vmatpush1.msra.mxu0 0.0
        %3726 = vmatprep.subr.mxu0 0.0
        %3727 = vmatpush1.msra.mxu0 0.0
        %3728 = vmatprep.subr.mxu0 0.0
        %3729 = vmatpush1.msra.mxu0 0.0
        %3730 = vmatprep.subr.mxu0 0.0
        %3731 = vmatpush1.msra.mxu0 0.0
        %3732 = vmatprep.subr.mxu0 0.0
        %3733 = vmatpush1.msra.mxu0 0.0
        %3734 = vmatprep.subr.mxu0 0.0
        %3735 = vmatpush1.msra.mxu0 0.0
        %3736 = vmatprep.subr.mxu0 0.0
        %3737 = vmatpush1.msra.mxu0 0.0
        %3738 = vmatprep.mubr.f32.mxu0 0.0
        %3739 = vmatmul.mubr.f32.gmra.mrb[0].mxu0 %v3651
        %v3740 = vpop.f32.mrb[0].mxu0
        %v3741 = vadd.f32 %v3649, %v3740
        %v3742 = vpop.f32.mrb[0].mxu0
        %3743 = vmatprep.mubr.f32.mxu0 0.0
        %3744 = vmatmul.mubr.f32.gmra.mrb[0].mxu0 %v3654
        %v3745 = vpop.f32.mrb[0].mxu0
        %v3746 = vadd.f32 %v3649, %v3745
        %v3747 = vpop.f32.mrb[0].mxu0
        %3748 = vmatprep.mubr.f32.mxu0 0.0
        %3749 = vmatmul.mubr.f32.gmra.mrb[0].mxu0 %v3657
        %v3750 = vpop.f32.mrb[0].mxu0
        %v3751 = vadd.f32 %v3649, %v3750
        %v3752 = vpop.f32.mrb[0].mxu0
        %3753 = vmatprep.mubr.f32.mxu0 0.0
        %3754 = vmatmul.mubr.f32.gmra.mrb[0].mxu0 %v3660
        %v3755 = vpop.f32.mrb[0].mxu0
        %v3756 = vadd.f32 %v3649, %v3755
        %v3757 = vpop.f32.mrb[0].mxu0
        %3758 = vmatprep.mubr.f32.mxu0 0.0
        %3759 = vmatmul.mubr.f32.gmra.mrb[0].mxu0 %v3663
        %v3760 = vpop.f32.mrb[0].mxu0
        %v3761 = vadd.f32 %v3649, %v3760
        %v3762 = vpop.f32.mrb[0].mxu0
        %3763 = vmatprep.mubr.f32.mxu0 0.0
        %3764 = vmatmul.mubr.f32.gmra.mrb[0].mxu0 %v3666
        %v3765 = vpop.f32.mrb[0].mxu0
        %v3766 = vadd.f32 %v3649, %v3765
        %v3767 = vpop.f32.mrb[0].mxu0
        %3768 = vmatprep.mubr.f32.mxu0 0.0
        %3769 = vmatmul.mubr.f32.gmra.mrb[0].mxu0 %v3669
        %v3770 = vpop.f32.mrb[0].mxu0
        %v3771 = vadd.f32 %v3649, %v3770
        %v3772 = vpop.f32.mrb[0].mxu0
        %3773 = vmatprep.mubr.f32.mxu0 0.0
        %3774 = vmatmul.mubr.f32.gmra.mrb[0].mxu0 %v3672
        %v3775 = vpop.f32.mrb[0].mxu0
        %v3776 = vadd.f32 %v3649, %v3775
        %v3777 = vpop.f32.mrb[0].mxu0
        %3778 = vdwg.mxu0
        %v3779 = vmul.f32 %v3741, %v697
        %v3780 = vmul.f32 %v3746, %v702
        %v3781 = vmul.f32 %v3751, %v707
        %v3782 = vmul.f32 %v3756, %v712
        %v3783 = vmul.f32 %v3761, %v717
        %v3784 = vmul.f32 %v3766, %v722
        %v3785 = vmul.f32 %v3771, %v727
        %v3786 = vmul.f32 %v3776, %v732
        %v3787 = vld [vmem:[#allocation2 + $0x340] sm:$0xff]
        %v3788 = vld [vmem:[#allocation2 + $0x348] sm:$0xff]
        %v3789 = vld [vmem:[#allocation2 + $0x350] sm:$0x1]
        %v3791 = vsel %vm564, %v3559, 0
        %3793 = vmatprep.subr.mxu0 0.0
        %3794 = vmatpush1.msra.mxu0 %v3787
        %3795 = vmatprep.subr.mxu0 0.0
        %3796 = vmatpush1.msra.mxu0 %v3788
        %3797 = vmatprep.subr.mxu0 0.0
        %3798 = vmatpush1.msra.mxu0 0.0
        %3799 = vmatprep.subr.mxu0 0.0
        %3800 = vmatpush1.msra.mxu0 0.0
        %3801 = vmatprep.subr.mxu0 0.0
        %3802 = vmatpush1.msra.mxu0 0.0
        %3803 = vmatprep.subr.mxu0 0.0
        %3804 = vmatpush1.msra.mxu0 0.0
        %3805 = vmatprep.subr.mxu0 0.0
        %3806 = vmatpush1.msra.mxu0 0.0
        %3807 = vmatprep.subr.mxu0 0.0
        %3808 = vmatpush1.msra.mxu0 0.0
        %3809 = vmatprep.subr.mxu0 0.0
        %3810 = vmatpush1.msra.mxu0 0.0
        %3811 = vmatprep.subr.mxu0 0.0
        %3812 = vmatpush1.msra.mxu0 0.0
        %3813 = vmatprep.subr.mxu0 0.0
        %3814 = vmatpush1.msra.mxu0 0.0
        %3815 = vmatprep.subr.mxu0 0.0
        %3816 = vmatpush1.msra.mxu0 0.0
        %3817 = vmatprep.subr.mxu0 0.0
        %3818 = vmatpush1.msra.mxu0 0.0
        %3819 = vmatprep.subr.mxu0 0.0
        %3820 = vmatpush1.msra.mxu0 0.0
        %3821 = vmatprep.subr.mxu0 0.0
        %3822 = vmatpush1.msra.mxu0 0.0
        %3823 = vmatprep.subr.mxu0 0.0
        %3824 = vmatpush1.msra.mxu0 0.0
        %3825 = vmatprep.subr.mxu0 0.0
        %3826 = vmatpush1.msra.mxu0 0.0
        %3827 = vmatprep.subr.mxu0 0.0
        %3828 = vmatpush1.msra.mxu0 0.0
        %3829 = vmatprep.subr.mxu0 0.0
        %3830 = vmatpush1.msra.mxu0 0.0
        %3831 = vmatprep.subr.mxu0 0.0
        %3832 = vmatpush1.msra.mxu0 0.0
        %3833 = vmatprep.subr.mxu0 0.0
        %3834 = vmatpush1.msra.mxu0 0.0
        %3835 = vmatprep.subr.mxu0 0.0
        %3836 = vmatpush1.msra.mxu0 0.0
        %3837 = vmatprep.subr.mxu0 0.0
        %3838 = vmatpush1.msra.mxu0 0.0
        %3839 = vmatprep.subr.mxu0 0.0
        %3840 = vmatpush1.msra.mxu0 0.0
        %3841 = vmatprep.subr.mxu0 0.0
        %3842 = vmatpush1.msra.mxu0 0.0
        %3843 = vmatprep.subr.mxu0 0.0
        %3844 = vmatpush1.msra.mxu0 0.0
        %3845 = vmatprep.subr.mxu0 0.0
        %3846 = vmatpush1.msra.mxu0 0.0
        %3847 = vmatprep.subr.mxu0 0.0
        %3848 = vmatpush1.msra.mxu0 0.0
        %3849 = vmatprep.subr.mxu0 0.0
        %3850 = vmatpush1.msra.mxu0 0.0
        %3851 = vmatprep.subr.mxu0 0.0
        %3852 = vmatpush1.msra.mxu0 0.0
        %3853 = vmatprep.subr.mxu0 0.0
        %3854 = vmatpush1.msra.mxu0 0.0
        %3855 = vmatprep.subr.mxu0 0.0
        %3856 = vmatpush1.msra.mxu0 0.0
        %3857 = vmatprep.mubr.f32.mxu0 0.0
        %3858 = vmatmul.mubr.f32.gmra.mrb[0].mxu0 %v3791
        %v3859 = vpop.f32.mrb[0].mxu0
        %v3860 = vadd.f32 %v3789, %v3859
        %v3861 = vpop.f32.mrb[0].mxu0
        %3862 = vdwg.mxu0
        %v3864 = vcombine.high %v3642, %v3642
        %v3866 = vunpack.c.l.s4 1966171168
        %v3867 = vunpack.c.0.s8 %v3866
        %v3868 = vlaneseq
        %v3869 = vshrl.u32 %v3868, 7
        %v3870 = vsub.s32 %v3867, %v3869
        %v3871 = vrot.slane %v3642, %v3870
        %v3873 = vunpack.c.l.s4 1966171168
        %v3874 = vunpack.c.0.s8 %v3873
        %v3875 = vlaneseq
        %v3876 = vshrl.u32 %v3875, 7
        %v3877 = vsub.s32 %v3874, %v3876
        %v3878 = vrot.slane %v3864, %v3877
        %v3879 = vcombine.high %v3871, %v3871
        %v3880 = vcombine.high %v3878, %v3878
        %v3882 = vunpack.c.l.s4 1966171168
        %v3883 = vunpack.c.0.s8 %v3882
        %v3884 = vlaneseq
        %v3885 = vshrl.u32 %v3884, 7
        %v3886 = vsub.s32 %v3883, %v3885
        %v3887 = vrot.slane %v3871, %v3886
        %v3889 = vunpack.c.l.s4 1966171168
        %v3890 = vunpack.c.0.s8 %v3889
        %v3891 = vlaneseq
        %v3892 = vshrl.u32 %v3891, 7
        %v3893 = vsub.s32 %v3890, %v3892
        %v3894 = vrot.slane %v3878, %v3893
        %v3896 = vunpack.c.l.s4 1966171168
        %v3897 = vunpack.c.0.s8 %v3896
        %v3898 = vlaneseq
        %v3899 = vshrl.u32 %v3898, 7
        %v3900 = vsub.s32 %v3897, %v3899
        %v3901 = vrot.slane %v3879, %v3900
        %v3903 = vunpack.c.l.s4 1966171168
        %v3904 = vunpack.c.0.s8 %v3903
        %v3905 = vlaneseq
        %v3906 = vshrl.u32 %v3905, 7
        %v3907 = vsub.s32 %v3904, %v3906
        %v3908 = vrot.slane %v3880, %v3907
        %v3909 = vcombine.high %v3887, %v3887
        %v3910 = vcombine.high %v3894, %v3894
        %v3911 = vcombine.high %v3901, %v3901
        %v3912 = vcombine.high %v3908, %v3908
        %v3913 = vlaneseq
        %v3914 = vshrl.u32 %v3913, 7
        %v3915 = vsub.s32 0, %v3914
        %v3916 = vrot.slane %v3887, %v3915
        %v3917 = vlaneseq
        %v3918 = vshrl.u32 %v3917, 7
        %v3919 = vsub.s32 0, %v3918
        %v3920 = vrot.slane %v3901, %v3919
        %v3921 = vlaneseq
        %v3922 = vshrl.u32 %v3921, 7
        %v3923 = vsub.s32 0, %v3922
        %v3924 = vrot.slane %v3909, %v3923
        %v3925 = vlaneseq
        %v3926 = vshrl.u32 %v3925, 7
        %v3927 = vsub.s32 0, %v3926
        %v3928 = vrot.slane %v3911, %v3927
        %v3929 = vlaneseq
        %v3930 = vshrl.u32 %v3929, 7
        %v3931 = vsub.s32 0, %v3930
        %v3932 = vrot.slane %v3894, %v3931
        %v3933 = vlaneseq
        %v3934 = vshrl.u32 %v3933, 7
        %v3935 = vsub.s32 0, %v3934
        %v3936 = vrot.slane %v3908, %v3935
        %v3937 = vlaneseq
        %v3938 = vshrl.u32 %v3937, 7
        %v3939 = vsub.s32 0, %v3938
        %v3940 = vrot.slane %v3910, %v3939
        %v3941 = vlaneseq
        %v3942 = vshrl.u32 %v3941, 7
        %v3943 = vsub.s32 0, %v3942
        %v3944 = vrot.slane %v3912, %v3943
        %3953 = vrot.lane.b32.xlu0 %v3642, 96
        %v3954 = vpop.permute.xlu0 %3953
        %v3956 = vmul.f32 %v3916, %v3954
        %v3957 = vmul.f32 %v3920, %v3954
        %v3958 = vmul.f32 %v3924, %v3954
        %v3959 = vmul.f32 %v3928, %v3954
        %v3960 = vmul.f32 %v3932, %v3954
        %v3961 = vmul.f32 %v3936, %v3954
        %v3962 = vmul.f32 %v3940, %v3954
        %v3963 = vmul.f32 %v3944, %v3954
        %v3964 = vmul.f32 %v3956, 0.35355338
        %v3965 = vmul.f32 %v3957, 0.35355338
        %v3966 = vmul.f32 %v3958, 0.35355338
        %v3967 = vmul.f32 %v3959, 0.35355338
        %v3968 = vmul.f32 %v3960, 0.35355338
        %v3969 = vmul.f32 %v3961, 0.35355338
        %v3970 = vmul.f32 %v3962, 0.35355338
        %v3971 = vmul.f32 %v3963, 0.35355338
        %v3972 = vadd.f32 %v3779, 1.0
        %v3973 = vadd.f32 %v3780, 1.0
        %v3974 = vadd.f32 %v3781, 1.0
        %v3975 = vadd.f32 %v3782, 1.0
        %v3976 = vadd.f32 %v3783, 1.0
        %v3977 = vadd.f32 %v3784, 1.0
        %v3978 = vadd.f32 %v3785, 1.0
        %v3979 = vadd.f32 %v3786, 1.0
        %v3980 = vmul.f32 %v3964, %v3972
        %v3981 = vmul.f32 %v3965, %v3973
        %v3982 = vmul.f32 %v3966, %v3974
        %v3983 = vmul.f32 %v3967, %v3975
        %v3984 = vmul.f32 %v3968, %v3976
        %v3985 = vmul.f32 %v3969, %v3977
        %v3986 = vmul.f32 %v3970, %v3978
        %v3987 = vmul.f32 %v3971, %v3979
        %3996 = vrot.lane.b32.xlu0 %v3779, 96
        %v3997 = vpop.permute.xlu0 %3996
        %3998 = vrot.lane.b32.xlu0 %v3780, 96
        %v3999 = vpop.permute.xlu0 %3998
        %4000 = vrot.lane.b32.xlu0 %v3781, 96
        %v4001 = vpop.permute.xlu0 %4000
        %4002 = vrot.lane.b32.xlu0 %v3782, 96
        %v4003 = vpop.permute.xlu0 %4002
        %4004 = vrot.lane.b32.xlu0 %v3783, 96
        %v4005 = vpop.permute.xlu0 %4004
        %4006 = vrot.lane.b32.xlu0 %v3784, 96
        %v4007 = vpop.permute.xlu0 %4006
        %4008 = vrot.lane.b32.xlu0 %v3785, 96
        %v4009 = vpop.permute.xlu0 %4008
        %4010 = vrot.lane.b32.xlu0 %v3786, 96
        %v4011 = vpop.permute.xlu0 %4010
        %v4020 = vadd.f32 %v3980, %v3997
        %v4021 = vadd.f32 %v3981, %v3999
        %v4022 = vadd.f32 %v3982, %v4001
        %v4023 = vadd.f32 %v3983, %v4003
        %v4024 = vadd.f32 %v3984, %v4005
        %v4025 = vadd.f32 %v3985, %v4007
        %v4026 = vadd.f32 %v3986, %v4009
        %v4027 = vadd.f32 %v3987, %v4011
        %v4028 = vadd.f32 %v3860, 1.0
        %v4029 = vlaneseq
        %v4030 = vshrl.u32 %v4029, 7
        %v4031 = vsub.s32 0, %v4030
        %v4032 = vrot.slane %v4028, %v4031
        %4041 = vrot.lane.b32.xlu0 %v4020, 32
        %v4042 = vpop.permute.xlu0 %4041
        %4043 = vrot.lane.b32.xlu0 %v4021, 32
        %v4044 = vpop.permute.xlu0 %4043
        %4045 = vrot.lane.b32.xlu0 %v4022, 32
        %v4046 = vpop.permute.xlu0 %4045
        %4047 = vrot.lane.b32.xlu0 %v4023, 32
        %v4048 = vpop.permute.xlu0 %4047
        %4049 = vrot.lane.b32.xlu0 %v4024, 32
        %v4050 = vpop.permute.xlu0 %4049
        %4051 = vrot.lane.b32.xlu0 %v4025, 32
        %v4052 = vpop.permute.xlu0 %4051
        %4053 = vrot.lane.b32.xlu0 %v4026, 32
        %v4054 = vpop.permute.xlu0 %4053
        %4055 = vrot.lane.b32.xlu0 %v4027, 32
        %v4056 = vpop.permute.xlu0 %4055
        %v4065 = vmul.f32 %v4032, %v4042
        %v4066 = vmul.f32 %v4032, %v4044
        %v4067 = vmul.f32 %v4032, %v4046
        %v4068 = vmul.f32 %v4032, %v4048
        %v4069 = vmul.f32 %v4032, %v4050
        %v4070 = vmul.f32 %v4032, %v4052
        %v4071 = vmul.f32 %v4032, %v4054
        %v4072 = vmul.f32 %v4032, %v4056
        %v4073 = vlaneseq
        %v4074 = vshrl.u32 %v4073, 7
        %v4075 = vsub.s32 0, %v4074
        %v4076 = vrot.slane %v3860, %v4075
        %4085 = vrot.lane.b32.xlu0 %v4065, 96
        %v4086 = vpop.permute.xlu0 %4085
        %4087 = vrot.lane.b32.xlu0 %v4066, 96
        %v4088 = vpop.permute.xlu0 %4087
        %4089 = vrot.lane.b32.xlu0 %v4067, 96
        %v4090 = vpop.permute.xlu0 %4089
        %4091 = vrot.lane.b32.xlu0 %v4068, 96
        %v4092 = vpop.permute.xlu0 %4091
        %4093 = vrot.lane.b32.xlu0 %v4069, 96
        %v4094 = vpop.permute.xlu0 %4093
        %4095 = vrot.lane.b32.xlu0 %v4070, 96
        %v4096 = vpop.permute.xlu0 %4095
        %4097 = vrot.lane.b32.xlu0 %v4071, 96
        %v4098 = vpop.permute.xlu0 %4097
        %4099 = vrot.lane.b32.xlu0 %v4072, 96
        %v4100 = vpop.permute.xlu0 %4099
        %v4109 = vadd.f32 %v4076, %v4086
        %v4110 = vadd.f32 %v4076, %v4088
        %v4111 = vadd.f32 %v4076, %v4090
        %v4112 = vadd.f32 %v4076, %v4092
        %v4113 = vadd.f32 %v4076, %v4094
        %v4114 = vadd.f32 %v4076, %v4096
        %v4115 = vadd.f32 %v4076, %v4098
        %v4116 = vadd.f32 %v4076, %v4100
        %v4117 = vld [vmem:[#allocation2 + $0x358] sm:$0xff]
        %v4118 = vld [vmem:[#allocation2 + $0x360] sm:$0xff]
        %v4119 = vld [vmem:[#allocation2 + $0x368] sm:$0xff]
        %v4120 = vld [vmem:[#allocation2 + $0x370] sm:$0xff]
        %v4121 = vld [vmem:[#allocation2 + $0x378] sm:$0x1]
        %v4122 = vlaneseq
        %v4123 = vshrl.u32 %v4122, 7
        %v4124 = vsub.s32 0, %v4123
        %v4125 = vrot.slane %v4121, %v4124
        %v4127 = vsel %vm478, %v4109, 0
        %v4130 = vsel %vm478, %v4110, 0
        %v4133 = vsel %vm478, %v4111, 0
        %v4136 = vsel %vm478, %v4112, 0
        %v4139 = vsel %vm478, %v4113, 0
        %v4142 = vsel %vm478, %v4114, 0
        %v4145 = vsel %vm478, %v4115, 0
        %v4148 = vsel %vm478, %v4116, 0
        %4150 = vmatprep.subr.mxu0 0.0
        %4151 = vmatpush1.msra.mxu0 %v4117
        %4152 = vmatprep.subr.mxu0 0.0
        %4153 = vmatpush1.msra.mxu0 %v4118
        %4154 = vmatprep.subr.mxu0 0.0
        %4155 = vmatpush1.msra.mxu0 %v4119
        %4156 = vmatprep.subr.mxu0 0.0
        %4157 = vmatpush1.msra.mxu0 %v4120
        %4158 = vmatprep.subr.mxu0 0.0
        %4159 = vmatpush1.msra.mxu0 0.0
        %4160 = vmatprep.subr.mxu0 0.0
        %4161 = vmatpush1.msra.mxu0 0.0
        %4162 = vmatprep.subr.mxu0 0.0
        %4163 = vmatpush1.msra.mxu0 0.0
        %4164 = vmatprep.subr.mxu0 0.0
        %4165 = vmatpush1.msra.mxu0 0.0
        %4166 = vmatprep.subr.mxu0 0.0
        %4167 = vmatpush1.msra.mxu0 0.0
        %4168 = vmatprep.subr.mxu0 0.0
        %4169 = vmatpush1.msra.mxu0 0.0
        %4170 = vmatprep.subr.mxu0 0.0
        %4171 = vmatpush1.msra.mxu0 0.0
        %4172 = vmatprep.subr.mxu0 0.0
        %4173 = vmatpush1.msra.mxu0 0.0
        %4174 = vmatprep.subr.mxu0 0.0
        %4175 = vmatpush1.msra.mxu0 0.0
        %4176 = vmatprep.subr.mxu0 0.0
        %4177 = vmatpush1.msra.mxu0 0.0
        %4178 = vmatprep.subr.mxu0 0.0
        %4179 = vmatpush1.msra.mxu0 0.0
        %4180 = vmatprep.subr.mxu0 0.0
        %4181 = vmatpush1.msra.mxu0 0.0
        %4182 = vmatprep.subr.mxu0 0.0
        %4183 = vmatpush1.msra.mxu0 0.0
        %4184 = vmatprep.subr.mxu0 0.0
        %4185 = vmatpush1.msra.mxu0 0.0
        %4186 = vmatprep.subr.mxu0 0.0
        %4187 = vmatpush1.msra.mxu0 0.0
        %4188 = vmatprep.subr.mxu0 0.0
        %4189 = vmatpush1.msra.mxu0 0.0
        %4190 = vmatprep.subr.mxu0 0.0
        %4191 = vmatpush1.msra.mxu0 0.0
        %4192 = vmatprep.subr.mxu0 0.0
        %4193 = vmatpush1.msra.mxu0 0.0
        %4194 = vmatprep.subr.mxu0 0.0
        %4195 = vmatpush1.msra.mxu0 0.0
        %4196 = vmatprep.subr.mxu0 0.0
        %4197 = vmatpush1.msra.mxu0 0.0
        %4198 = vmatprep.subr.mxu0 0.0
        %4199 = vmatpush1.msra.mxu0 0.0
        %4200 = vmatprep.subr.mxu0 0.0
        %4201 = vmatpush1.msra.mxu0 0.0
        %4202 = vmatprep.subr.mxu0 0.0
        %4203 = vmatpush1.msra.mxu0 0.0
        %4204 = vmatprep.subr.mxu0 0.0
        %4205 = vmatpush1.msra.mxu0 0.0
        %4206 = vmatprep.subr.mxu0 0.0
        %4207 = vmatpush1.msra.mxu0 0.0
        %4208 = vmatprep.subr.mxu0 0.0
        %4209 = vmatpush1.msra.mxu0 0.0
        %4210 = vmatprep.subr.mxu0 0.0
        %4211 = vmatpush1.msra.mxu0 0.0
        %4212 = vmatprep.subr.mxu0 0.0
        %4213 = vmatpush1.msra.mxu0 0.0
        %4214 = vmatprep.mubr.f32.mxu0 0.0
        %4215 = vmatmul.mubr.f32.gmra.mrb[0].mxu0 %v4127
        %v4216 = vpop.f32.mrb[0].mxu0
        %v4217 = vadd.f32 %v4125, %v4216
        %v4218 = vpop.f32.mrb[0].mxu0
        %4219 = vmatprep.mubr.f32.mxu0 0.0
        %4220 = vmatmul.mubr.f32.gmra.mrb[0].mxu0 %v4130
        %v4221 = vpop.f32.mrb[0].mxu0
        %v4222 = vadd.f32 %v4125, %v4221
        %v4223 = vpop.f32.mrb[0].mxu0
        %4224 = vmatprep.mubr.f32.mxu0 0.0
        %4225 = vmatmul.mubr.f32.gmra.mrb[0].mxu0 %v4133
        %v4226 = vpop.f32.mrb[0].mxu0
        %v4227 = vadd.f32 %v4125, %v4226
        %v4228 = vpop.f32.mrb[0].mxu0
        %4229 = vmatprep.mubr.f32.mxu0 0.0
        %4230 = vmatmul.mubr.f32.gmra.mrb[0].mxu0 %v4136
        %v4231 = vpop.f32.mrb[0].mxu0
        %v4232 = vadd.f32 %v4125, %v4231
        %v4233 = vpop.f32.mrb[0].mxu0
        %4234 = vmatprep.mubr.f32.mxu0 0.0
        %4235 = vmatmul.mubr.f32.gmra.mrb[0].mxu0 %v4139
        %v4236 = vpop.f32.mrb[0].mxu0
        %v4237 = vadd.f32 %v4125, %v4236
        %v4238 = vpop.f32.mrb[0].mxu0
        %4239 = vmatprep.mubr.f32.mxu0 0.0
        %4240 = vmatmul.mubr.f32.gmra.mrb[0].mxu0 %v4142
        %v4241 = vpop.f32.mrb[0].mxu0
        %v4242 = vadd.f32 %v4125, %v4241
        %v4243 = vpop.f32.mrb[0].mxu0
        %4244 = vmatprep.mubr.f32.mxu0 0.0
        %4245 = vmatmul.mubr.f32.gmra.mrb[0].mxu0 %v4145
        %v4246 = vpop.f32.mrb[0].mxu0
        %v4247 = vadd.f32 %v4125, %v4246
        %v4248 = vpop.f32.mrb[0].mxu0
        %4249 = vmatprep.mubr.f32.mxu0 0.0
        %4250 = vmatmul.mubr.f32.gmra.mrb[0].mxu0 %v4148
        %v4251 = vpop.f32.mrb[0].mxu0
        %v4252 = vadd.f32 %v4125, %v4251
        %v4253 = vpop.f32.mrb[0].mxu0
        %4254 = vdwg.mxu0
        %v4255 = vmul.f32 %v4217, %v697
        %v4256 = vmul.f32 %v4222, %v702
        %v4257 = vmul.f32 %v4227, %v707
        %v4258 = vmul.f32 %v4232, %v712
        %v4259 = vmul.f32 %v4237, %v717
        %v4260 = vmul.f32 %v4242, %v722
        %v4261 = vmul.f32 %v4247, %v727
        %v4262 = vmul.f32 %v4252, %v732
        %v4263 = vsel %vm1222, %v4020, -1e+30
        %v4264 = vsel %vm1222, %v4021, -1e+30
        %v4265 = vsel %vm1222, %v4022, -1e+30
        %v4266 = vsel %vm1222, %v4023, -1e+30
        %v4267 = vsel %vm1222, %v4024, -1e+30
        %v4268 = vsel %vm1222, %v4025, -1e+30
        %v4269 = vsel %vm1222, %v4026, -1e+30
        %v4270 = vsel %vm1222, %v4027, -1e+30
        %v4271 = vsel %vm478, %v4263, -inf
        %v4272 = vrot.slane %v4271, 4
        %v4273 = vmax.f32 %v4271, %v4272
        %v4274 = vrot.slane %v4273, 2
        %v4275 = vmax.f32 %v4273, %v4274
        %v4276 = vrot.slane %v4275, 1
        %v4277 = vmax.f32 %v4275, %v4276
        %v4278 = vsel %vm478, %v4264, -inf
        %v4279 = vrot.slane %v4278, 4
        %v4280 = vmax.f32 %v4278, %v4279
        %v4281 = vrot.slane %v4280, 2
        %v4282 = vmax.f32 %v4280, %v4281
        %v4283 = vrot.slane %v4282, 1
        %v4284 = vmax.f32 %v4282, %v4283
        %v4285 = vsel %vm478, %v4265, -inf
        %v4286 = vrot.slane %v4285, 4
        %v4287 = vmax.f32 %v4285, %v4286
        %v4288 = vrot.slane %v4287, 2
        %v4289 = vmax.f32 %v4287, %v4288
        %v4290 = vrot.slane %v4289, 1
        %v4291 = vmax.f32 %v4289, %v4290
        %v4292 = vsel %vm478, %v4266, -inf
        %v4293 = vrot.slane %v4292, 4
        %v4294 = vmax.f32 %v4292, %v4293
        %v4295 = vrot.slane %v4294, 2
        %v4296 = vmax.f32 %v4294, %v4295
        %v4297 = vrot.slane %v4296, 1
        %v4298 = vmax.f32 %v4296, %v4297
        %v4299 = vsel %vm478, %v4267, -inf
        %v4300 = vrot.slane %v4299, 4
        %v4301 = vmax.f32 %v4299, %v4300
        %v4302 = vrot.slane %v4301, 2
        %v4303 = vmax.f32 %v4301, %v4302
        %v4304 = vrot.slane %v4303, 1
        %v4305 = vmax.f32 %v4303, %v4304
        %v4306 = vsel %vm478, %v4268, -inf
        %v4307 = vrot.slane %v4306, 4
        %v4308 = vmax.f32 %v4306, %v4307
        %v4309 = vrot.slane %v4308, 2
        %v4310 = vmax.f32 %v4308, %v4309
        %v4311 = vrot.slane %v4310, 1
        %v4312 = vmax.f32 %v4310, %v4311
        %v4313 = vsel %vm478, %v4269, -inf
        %v4314 = vrot.slane %v4313, 4
        %v4315 = vmax.f32 %v4313, %v4314
        %v4316 = vrot.slane %v4315, 2
        %v4317 = vmax.f32 %v4315, %v4316
        %v4318 = vrot.slane %v4317, 1
        %v4319 = vmax.f32 %v4317, %v4318
        %v4320 = vsel %vm478, %v4270, -inf
        %v4321 = vrot.slane %v4320, 4
        %v4322 = vmax.f32 %v4320, %v4321
        %v4323 = vrot.slane %v4322, 2
        %v4324 = vmax.f32 %v4322, %v4323
        %v4325 = vrot.slane %v4324, 1
        %v4326 = vmax.f32 %v4324, %v4325
        %v4327 = vsub.f32 %v4263, %v4277
        %v4328 = vsub.f32 %v4264, %v4284
        %v4329 = vsub.f32 %v4265, %v4291
        %v4330 = vsub.f32 %v4266, %v4298
        %v4331 = vsub.f32 %v4267, %v4305
        %v4332 = vsub.f32 %v4268, %v4312
        %v4333 = vsub.f32 %v4269, %v4319
        %v4334 = vsub.f32 %v4270, %v4326
        %v4335 = vmul.f32 %v4327, 1.442695
        %v4336 = vpow.pop %v4335
        %v4337 = vmul.f32 %v4328, 1.442695
        %v4338 = vpow.pop %v4337
        %v4339 = vmul.f32 %v4329, 1.442695
        %v4340 = vpow.pop %v4339
        %v4341 = vmul.f32 %v4330, 1.442695
        %v4342 = vpow.pop %v4341
        %v4343 = vmul.f32 %v4331, 1.442695
        %v4344 = vpow.pop %v4343
        %v4345 = vmul.f32 %v4332, 1.442695
        %v4346 = vpow.pop %v4345
        %v4347 = vmul.f32 %v4333, 1.442695
        %v4348 = vpow.pop %v4347
        %v4349 = vmul.f32 %v4334, 1.442695
        %v4350 = vpow.pop %v4349
        %v4351 = vsel %vm1222, %v4336, 0.0
        %v4352 = vsel %vm1222, %v4338, 0.0
        %v4353 = vsel %vm1222, %v4340, 0.0
        %v4354 = vsel %vm1222, %v4342, 0.0
        %v4355 = vsel %vm1222, %v4344, 0.0
        %v4356 = vsel %vm1222, %v4346, 0.0
        %v4357 = vsel %vm1222, %v4348, 0.0
        %v4358 = vsel %vm1222, %v4350, 0.0
        %v4359 = vsel %vm478, %v4351, 0.0
        %v4360 = vrot.slane %v4359, 4
        %v4361 = vadd.f32 %v4359, %v4360
        %v4362 = vrot.slane %v4361, 2
        %v4363 = vadd.f32 %v4361, %v4362
        %v4364 = vrot.slane %v4363, 1
        %v4365 = vadd.f32 %v4363, %v4364
        %v4366 = vsel %vm478, %v4352, 0.0
        %v4367 = vrot.slane %v4366, 4
        %v4368 = vadd.f32 %v4366, %v4367
        %v4369 = vrot.slane %v4368, 2
        %v4370 = vadd.f32 %v4368, %v4369
        %v4371 = vrot.slane %v4370, 1
        %v4372 = vadd.f32 %v4370, %v4371
        %v4373 = vsel %vm478, %v4353, 0.0
        %v4374 = vrot.slane %v4373, 4
        %v4375 = vadd.f32 %v4373, %v4374
        %v4376 = vrot.slane %v4375, 2
        %v4377 = vadd.f32 %v4375, %v4376
        %v4378 = vrot.slane %v4377, 1
        %v4379 = vadd.f32 %v4377, %v4378
        %v4380 = vsel %vm478, %v4354, 0.0
        %v4381 = vrot.slane %v4380, 4
        %v4382 = vadd.f32 %v4380, %v4381
        %v4383 = vrot.slane %v4382, 2
        %v4384 = vadd.f32 %v4382, %v4383
        %v4385 = vrot.slane %v4384, 1
        %v4386 = vadd.f32 %v4384, %v4385
        %v4387 = vsel %vm478, %v4355, 0.0
        %v4388 = vrot.slane %v4387, 4
        %v4389 = vadd.f32 %v4387, %v4388
        %v4390 = vrot.slane %v4389, 2
        %v4391 = vadd.f32 %v4389, %v4390
        %v4392 = vrot.slane %v4391, 1
        %v4393 = vadd.f32 %v4391, %v4392
        %v4394 = vsel %vm478, %v4356, 0.0
        %v4395 = vrot.slane %v4394, 4
        %v4396 = vadd.f32 %v4394, %v4395
        %v4397 = vrot.slane %v4396, 2
        %v4398 = vadd.f32 %v4396, %v4397
        %v4399 = vrot.slane %v4398, 1
        %v4400 = vadd.f32 %v4398, %v4399
        %v4401 = vsel %vm478, %v4357, 0.0
        %v4402 = vrot.slane %v4401, 4
        %v4403 = vadd.f32 %v4401, %v4402
        %v4404 = vrot.slane %v4403, 2
        %v4405 = vadd.f32 %v4403, %v4404
        %v4406 = vrot.slane %v4405, 1
        %v4407 = vadd.f32 %v4405, %v4406
        %v4408 = vsel %vm478, %v4358, 0.0
        %v4409 = vrot.slane %v4408, 4
        %v4410 = vadd.f32 %v4408, %v4409
        %v4411 = vrot.slane %v4410, 2
        %v4412 = vadd.f32 %v4410, %v4411
        %v4413 = vrot.slane %v4412, 1
        %v4414 = vadd.f32 %v4412, %v4413
        %v4415 = vmax.f32 %v4365, 1e-30
        %v4416 = vmax.f32 %v4372, 1e-30
        %v4417 = vmax.f32 %v4379, 1e-30
        %v4418 = vmax.f32 %v4386, 1e-30
        %v4419 = vmax.f32 %v4393, 1e-30
        %v4420 = vmax.f32 %v4400, 1e-30
        %v4421 = vmax.f32 %v4407, 1e-30
        %v4422 = vmax.f32 %v4414, 1e-30
        %v4423 = vrcp.pop %v4415
        %v4424 = vmul.f32 %v4351, %v4423
        %v4425 = vrcp.pop %v4416
        %v4426 = vmul.f32 %v4352, %v4425
        %v4427 = vrcp.pop %v4417
        %v4428 = vmul.f32 %v4353, %v4427
        %v4429 = vrcp.pop %v4418
        %v4430 = vmul.f32 %v4354, %v4429
        %v4431 = vrcp.pop %v4419
        %v4432 = vmul.f32 %v4355, %v4431
        %v4433 = vrcp.pop %v4420
        %v4434 = vmul.f32 %v4356, %v4433
        %v4435 = vrcp.pop %v4421
        %v4436 = vmul.f32 %v4357, %v4435
        %v4437 = vrcp.pop %v4422
        %v4438 = vmul.f32 %v4358, %v4437
        %4439 = vrot.lane.b32.xlu0 %v3642, 64
        %v4440 = vpop.permute.xlu0 %4439
        %v4442 = vmul.f32 %v4424, %v4440
        %v4443 = vmul.f32 %v4426, %v4440
        %v4444 = vmul.f32 %v4428, %v4440
        %v4445 = vmul.f32 %v4430, %v4440
        %v4446 = vmul.f32 %v4432, %v4440
        %v4447 = vmul.f32 %v4434, %v4440
        %v4448 = vmul.f32 %v4436, %v4440
        %v4449 = vmul.f32 %v4438, %v4440
        %v4450 = vsel %vm478, %v4442, 0.0
        %v4451 = vrot.slane %v4450, 4
        %v4452 = vadd.f32 %v4450, %v4451
        %v4453 = vrot.slane %v4452, 2
        %v4454 = vadd.f32 %v4452, %v4453
        %v4455 = vrot.slane %v4454, 1
        %v4456 = vadd.f32 %v4454, %v4455
        %v4457 = vsel %vm478, %v4443, 0.0
        %v4458 = vrot.slane %v4457, 4
        %v4459 = vadd.f32 %v4457, %v4458
        %v4460 = vrot.slane %v4459, 2
        %v4461 = vadd.f32 %v4459, %v4460
        %v4462 = vrot.slane %v4461, 1
        %v4463 = vadd.f32 %v4461, %v4462
        %v4464 = vsel %vm478, %v4444, 0.0
        %v4465 = vrot.slane %v4464, 4
        %v4466 = vadd.f32 %v4464, %v4465
        %v4467 = vrot.slane %v4466, 2
        %v4468 = vadd.f32 %v4466, %v4467
        %v4469 = vrot.slane %v4468, 1
        %v4470 = vadd.f32 %v4468, %v4469
        %v4471 = vsel %vm478, %v4445, 0.0
        %v4472 = vrot.slane %v4471, 4
        %v4473 = vadd.f32 %v4471, %v4472
        %v4474 = vrot.slane %v4473, 2
        %v4475 = vadd.f32 %v4473, %v4474
        %v4476 = vrot.slane %v4475, 1
        %v4477 = vadd.f32 %v4475, %v4476
        %v4478 = vsel %vm478, %v4446, 0.0
        %v4479 = vrot.slane %v4478, 4
        %v4480 = vadd.f32 %v4478, %v4479
        %v4481 = vrot.slane %v4480, 2
        %v4482 = vadd.f32 %v4480, %v4481
        %v4483 = vrot.slane %v4482, 1
        %v4484 = vadd.f32 %v4482, %v4483
        %v4485 = vsel %vm478, %v4447, 0.0
        %v4486 = vrot.slane %v4485, 4
        %v4487 = vadd.f32 %v4485, %v4486
        %v4488 = vrot.slane %v4487, 2
        %v4489 = vadd.f32 %v4487, %v4488
        %v4490 = vrot.slane %v4489, 1
        %v4491 = vadd.f32 %v4489, %v4490
        %v4492 = vsel %vm478, %v4448, 0.0
        %v4493 = vrot.slane %v4492, 4
        %v4494 = vadd.f32 %v4492, %v4493
        %v4495 = vrot.slane %v4494, 2
        %v4496 = vadd.f32 %v4494, %v4495
        %v4497 = vrot.slane %v4496, 1
        %v4498 = vadd.f32 %v4496, %v4497
        %v4499 = vsel %vm478, %v4449, 0.0
        %v4500 = vrot.slane %v4499, 4
        %v4501 = vadd.f32 %v4499, %v4500
        %v4502 = vrot.slane %v4501, 2
        %v4503 = vadd.f32 %v4501, %v4502
        %v4504 = vrot.slane %v4503, 1
        %v4505 = vadd.f32 %v4503, %v4504
        %v4514 = vsel %vm1474, %v4463, %v4456
        %v4515 = vsel %vm1476, %v4470, %v4514
        %v4516 = vsel %vm1478, %v4477, %v4515
        %v4517 = vsel %vm1480, %v4484, %v4516
        %v4518 = vsel %vm1482, %v4491, %v4517
        %v4519 = vsel %vm1484, %v4498, %v4518
        %v4520 = vsel %vm1486, %v4505, %v4519
        %4521 = vrot.lane.b32.xlu0 %v4520, 96
        %v4522 = vpop.permute.xlu0 %4521
        %v4524 = vmul.f32 %v4032, %v4522
        %4526 = vrot.lane.b32.xlu0 %v4524, 96
        %v4527 = vpop.permute.xlu0 %4526
        %v4529 = vadd.f32 %v4076, %v4527
        %v4530 = vld [vmem:[#allocation2 + $0x380] sm:$0xff]
        %v4531 = vld [vmem:[#allocation2 + $0x388] sm:$0xff]
        %v4532 = vld [vmem:[#allocation2 + $0x390] sm:$0xff]
        %v4533 = vld [vmem:[#allocation2 + $0x398] sm:$0xff]
        %v4534 = vld [vmem:[#allocation2 + $0x3a0] sm:$0x1]
        %v4535 = vlaneseq
        %v4536 = vshrl.u32 %v4535, 7
        %v4537 = vsub.s32 0, %v4536
        %v4538 = vrot.slane %v4534, %v4537
        %4540 = vrot.lane.b32.xlu0 %v4529, 64
        %v4541 = vpop.permute.xlu0 %4540
        %v4542 = vsel %vm478, %v4541, 0
        %4544 = vmatprep.subr.mxu0 0.0
        %4545 = vmatpush1.msra.mxu0 %v4530
        %4546 = vmatprep.subr.mxu0 0.0
        %4547 = vmatpush1.msra.mxu0 %v4531
        %4548 = vmatprep.subr.mxu0 0.0
        %4549 = vmatpush1.msra.mxu0 %v4532
        %4550 = vmatprep.subr.mxu0 0.0
        %4551 = vmatpush1.msra.mxu0 %v4533
        %4552 = vmatprep.subr.mxu0 0.0
        %4553 = vmatpush1.msra.mxu0 0.0
        %4554 = vmatprep.subr.mxu0 0.0
        %4555 = vmatpush1.msra.mxu0 0.0
        %4556 = vmatprep.subr.mxu0 0.0
        %4557 = vmatpush1.msra.mxu0 0.0
        %4558 = vmatprep.subr.mxu0 0.0
        %4559 = vmatpush1.msra.mxu0 0.0
        %4560 = vmatprep.subr.mxu0 0.0
        %4561 = vmatpush1.msra.mxu0 0.0
        %4562 = vmatprep.subr.mxu0 0.0
        %4563 = vmatpush1.msra.mxu0 0.0
        %4564 = vmatprep.subr.mxu0 0.0
        %4565 = vmatpush1.msra.mxu0 0.0
        %4566 = vmatprep.subr.mxu0 0.0
        %4567 = vmatpush1.msra.mxu0 0.0
        %4568 = vmatprep.subr.mxu0 0.0
        %4569 = vmatpush1.msra.mxu0 0.0
        %4570 = vmatprep.subr.mxu0 0.0
        %4571 = vmatpush1.msra.mxu0 0.0
        %4572 = vmatprep.subr.mxu0 0.0
        %4573 = vmatpush1.msra.mxu0 0.0
        %4574 = vmatprep.subr.mxu0 0.0
        %4575 = vmatpush1.msra.mxu0 0.0
        %4576 = vmatprep.subr.mxu0 0.0
        %4577 = vmatpush1.msra.mxu0 0.0
        %4578 = vmatprep.subr.mxu0 0.0
        %4579 = vmatpush1.msra.mxu0 0.0
        %4580 = vmatprep.subr.mxu0 0.0
        %4581 = vmatpush1.msra.mxu0 0.0
        %4582 = vmatprep.subr.mxu0 0.0
        %4583 = vmatpush1.msra.mxu0 0.0
        %4584 = vmatprep.subr.mxu0 0.0
        %4585 = vmatpush1.msra.mxu0 0.0
        %4586 = vmatprep.subr.mxu0 0.0
        %4587 = vmatpush1.msra.mxu0 0.0
        %4588 = vmatprep.subr.mxu0 0.0
        %4589 = vmatpush1.msra.mxu0 0.0
        %4590 = vmatprep.subr.mxu0 0.0
        %4591 = vmatpush1.msra.mxu0 0.0
        %4592 = vmatprep.subr.mxu0 0.0
        %4593 = vmatpush1.msra.mxu0 0.0
        %4594 = vmatprep.subr.mxu0 0.0
        %4595 = vmatpush1.msra.mxu0 0.0
        %4596 = vmatprep.subr.mxu0 0.0
        %4597 = vmatpush1.msra.mxu0 0.0
        %4598 = vmatprep.subr.mxu0 0.0
        %4599 = vmatpush1.msra.mxu0 0.0
        %4600 = vmatprep.subr.mxu0 0.0
        %4601 = vmatpush1.msra.mxu0 0.0
        %4602 = vmatprep.subr.mxu0 0.0
        %4603 = vmatpush1.msra.mxu0 0.0
        %4604 = vmatprep.subr.mxu0 0.0
        %4605 = vmatpush1.msra.mxu0 0.0
        %4606 = vmatprep.subr.mxu0 0.0
        %4607 = vmatpush1.msra.mxu0 0.0
        %4608 = vmatprep.mubr.f32.mxu0 0.0
        %4609 = vmatmul.mubr.f32.gmra.mrb[0].mxu0 %v4542
        %v4610 = vpop.f32.mrb[0].mxu0
        %v4611 = vadd.f32 %v4538, %v4610
        %v4612 = vpop.f32.mrb[0].mxu0
        %4613 = vdwg.mxu0
        %v4614 = vmul.f32 %v4611, %v554
        %v4615 = vld [vmem:[#allocation2 + $0x3a8] sm:$0xff]
        %v4616 = vld [vmem:[#allocation2 + $0x3b0] sm:$0xff]
        %v4617 = vld [vmem:[#allocation2 + $0x478] sm:$0x1]
        %4618 = vmatprep.subr.mxu0 0.0
        %4619 = vmatpush1.msra.mxu0 %v4615
        %4620 = vmatprep.subr.mxu0 0.0
        %4621 = vmatpush1.msra.mxu0 %v4616
        %4622 = vmatprep.subr.mxu0 0.0
        %4623 = vmatpush1.msra.mxu0 0.0
        %4624 = vmatprep.subr.mxu0 0.0
        %4625 = vmatpush1.msra.mxu0 0.0
        %4626 = vmatprep.subr.mxu0 0.0
        %4627 = vmatpush1.msra.mxu0 0.0
        %4628 = vmatprep.subr.mxu0 0.0
        %4629 = vmatpush1.msra.mxu0 0.0
        %4630 = vmatprep.subr.mxu0 0.0
        %4631 = vmatpush1.msra.mxu0 0.0
        %4632 = vmatprep.subr.mxu0 0.0
        %4633 = vmatpush1.msra.mxu0 0.0
        %4634 = vmatprep.subr.mxu0 0.0
        %4635 = vmatpush1.msra.mxu0 0.0
        %4636 = vmatprep.subr.mxu0 0.0
        %4637 = vmatpush1.msra.mxu0 0.0
        %4638 = vmatprep.subr.mxu0 0.0
        %4639 = vmatpush1.msra.mxu0 0.0
        %4640 = vmatprep.subr.mxu0 0.0
        %4641 = vmatpush1.msra.mxu0 0.0
        %4642 = vmatprep.subr.mxu0 0.0
        %4643 = vmatpush1.msra.mxu0 0.0
        %4644 = vmatprep.subr.mxu0 0.0
        %4645 = vmatpush1.msra.mxu0 0.0
        %4646 = vmatprep.subr.mxu0 0.0
        %4647 = vmatpush1.msra.mxu0 0.0
        %4648 = vmatprep.subr.mxu0 0.0
        %4649 = vmatpush1.msra.mxu0 0.0
        %4650 = vmatprep.subr.mxu0 0.0
        %4651 = vmatpush1.msra.mxu0 0.0
        %4652 = vmatprep.subr.mxu0 0.0
        %4653 = vmatpush1.msra.mxu0 0.0
        %4654 = vmatprep.subr.mxu0 0.0
        %4655 = vmatpush1.msra.mxu0 0.0
        %4656 = vmatprep.subr.mxu0 0.0
        %4657 = vmatpush1.msra.mxu0 0.0
        %4658 = vmatprep.subr.mxu0 0.0
        %4659 = vmatpush1.msra.mxu0 0.0
        %4660 = vmatprep.subr.mxu0 0.0
        %4661 = vmatpush1.msra.mxu0 0.0
        %4662 = vmatprep.subr.mxu0 0.0
        %4663 = vmatpush1.msra.mxu0 0.0
        %4664 = vmatprep.subr.mxu0 0.0
        %4665 = vmatpush1.msra.mxu0 0.0
        %4666 = vmatprep.subr.mxu0 0.0
        %4667 = vmatpush1.msra.mxu0 0.0
        %4668 = vmatprep.subr.mxu0 0.0
        %4669 = vmatpush1.msra.mxu0 0.0
        %4670 = vmatprep.subr.mxu0 0.0
        %4671 = vmatpush1.msra.mxu0 0.0
        %4672 = vmatprep.subr.mxu0 0.0
        %4673 = vmatpush1.msra.mxu0 0.0
        %4674 = vmatprep.subr.mxu0 0.0
        %4675 = vmatpush1.msra.mxu0 0.0
        %4676 = vmatprep.subr.mxu0 0.0
        %4677 = vmatpush1.msra.mxu0 0.0
        %4678 = vmatprep.subr.mxu0 0.0
        %4679 = vmatpush1.msra.mxu0 0.0
        %4680 = vmatprep.subr.mxu0 0.0
        %4681 = vmatpush1.msra.mxu0 0.0
        %4682 = vmatprep.mubr.f32.mxu0 0.0
        %4683 = vmatmul.mubr.f32.gmra.mrb[0].mxu0 %v3791
        %v4684 = vpop.f32.mrb[0].mxu0
        %v4685 = vadd.f32 %v4617, %v4684
        %v4686 = vpop.f32.mrb[0].mxu0
        %4687 = vdwg.mxu0
        %v4688 = vsel %vm478, %v2799, 0.0
        %v4689 = vrot.slane %v4688, 4
        %v4690 = vadd.f32 %v4688, %v4689
        %v4691 = vrot.slane %v4690, 2
        %v4692 = vadd.f32 %v4690, %v4691
        %v4693 = vrot.slane %v4692, 1
        %v4694 = vadd.f32 %v4692, %v4693
        %v4695 = vmul.f32 %v4694, %v1662
        %v4696 = vsel %vm478, %v2799, inf
        %v4697 = vrot.slane %v4696, 4
        %v4698 = vmin.f32 %v4696, %v4697
        %v4699 = vrot.slane %v4698, 2
        %v4700 = vmin.f32 %v4698, %v4699
        %v4701 = vrot.slane %v4700, 1
        %v4702 = vmin.f32 %v4700, %v4701
        %v4703 = vsel %vm478, %v2799, -inf
        %v4704 = vrot.slane %v4703, 4
        %v4705 = vmax.f32 %v4703, %v4704
        %v4706 = vrot.slane %v4705, 2
        %v4707 = vmax.f32 %v4705, %v4706
        %v4708 = vrot.slane %v4707, 1
        %v4709 = vmax.f32 %v4707, %v4708
        %v4710 = vsub.f32 %v2799, %v4695
        %v4711 = vmul.f32 %v4710, %v4710
        %v4712 = vsel %vm478, %v4711, 0.0
        %v4713 = vrot.slane %v4712, 4
        %v4714 = vadd.f32 %v4712, %v4713
        %v4715 = vrot.slane %v4714, 2
        %v4716 = vadd.f32 %v4714, %v4715
        %v4717 = vrot.slane %v4716, 1
        %v4718 = vadd.f32 %v4716, %v4717
        %v4719 = vmul.f32 %v4718, %v1687
        %v4720 = vrsqrt.pop %v4719
        %v4721 = vmul.f32 %v4719, %v4720
        %vm4722 = vcmp.eq.f32.partialorder %v4719, inf
        %v4723 = vsel %vm4722, %v4719, %v4721
        %vm4724 = vcmp.eq.f32.partialorder %v4719, 0.0
        %v4725 = vand.u32 %v4719, 2147483648
        %v4726 = vsel %vm4724, %v4725, %v4723
        %v4727 = vld [vmem:[#allocation2 + $0x3b8] sm:$0xff]
        %v4728 = vld [vmem:[#allocation2 + $0x3c0] sm:$0xff]
        %v4729 = vld [vmem:[#allocation2 + $0x3c8] sm:$0xff]
        %v4730 = vld [vmem:[#allocation2 + $0x3d0] sm:$0xff]
        %v4732 = vsel %vm478, %v4695, 0
        %4734 = vmatprep.subr.mxu0 0.0
        %4735 = vmatpush1.msra.mxu0 %v4727
        %4736 = vmatprep.subr.mxu0 0.0
        %4737 = vmatpush1.msra.mxu0 %v4728
        %4738 = vmatprep.subr.mxu0 0.0
        %4739 = vmatpush1.msra.mxu0 %v4729
        %4740 = vmatprep.subr.mxu0 0.0
        %4741 = vmatpush1.msra.mxu0 %v4730
        %4742 = vmatprep.subr.mxu0 0.0
        %4743 = vmatpush1.msra.mxu0 0.0
        %4744 = vmatprep.subr.mxu0 0.0
        %4745 = vmatpush1.msra.mxu0 0.0
        %4746 = vmatprep.subr.mxu0 0.0
        %4747 = vmatpush1.msra.mxu0 0.0
        %4748 = vmatprep.subr.mxu0 0.0
        %4749 = vmatpush1.msra.mxu0 0.0
        %4750 = vmatprep.subr.mxu0 0.0
        %4751 = vmatpush1.msra.mxu0 0.0
        %4752 = vmatprep.subr.mxu0 0.0
        %4753 = vmatpush1.msra.mxu0 0.0
        %4754 = vmatprep.subr.mxu0 0.0
        %4755 = vmatpush1.msra.mxu0 0.0
        %4756 = vmatprep.subr.mxu0 0.0
        %4757 = vmatpush1.msra.mxu0 0.0
        %4758 = vmatprep.subr.mxu0 0.0
        %4759 = vmatpush1.msra.mxu0 0.0
        %4760 = vmatprep.subr.mxu0 0.0
        %4761 = vmatpush1.msra.mxu0 0.0
        %4762 = vmatprep.subr.mxu0 0.0
        %4763 = vmatpush1.msra.mxu0 0.0
        %4764 = vmatprep.subr.mxu0 0.0
        %4765 = vmatpush1.msra.mxu0 0.0
        %4766 = vmatprep.subr.mxu0 0.0
        %4767 = vmatpush1.msra.mxu0 0.0
        %4768 = vmatprep.subr.mxu0 0.0
        %4769 = vmatpush1.msra.mxu0 0.0
        %4770 = vmatprep.subr.mxu0 0.0
        %4771 = vmatpush1.msra.mxu0 0.0
        %4772 = vmatprep.subr.mxu0 0.0
        %4773 = vmatpush1.msra.mxu0 0.0
        %4774 = vmatprep.subr.mxu0 0.0
        %4775 = vmatpush1.msra.mxu0 0.0
        %4776 = vmatprep.subr.mxu0 0.0
        %4777 = vmatpush1.msra.mxu0 0.0
        %4778 = vmatprep.subr.mxu0 0.0
        %4779 = vmatpush1.msra.mxu0 0.0
        %4780 = vmatprep.subr.mxu0 0.0
        %4781 = vmatpush1.msra.mxu0 0.0
        %4782 = vmatprep.subr.mxu0 0.0
        %4783 = vmatpush1.msra.mxu0 0.0
        %4784 = vmatprep.subr.mxu0 0.0
        %4785 = vmatpush1.msra.mxu0 0.0
        %4786 = vmatprep.subr.mxu0 0.0
        %4787 = vmatpush1.msra.mxu0 0.0
        %4788 = vmatprep.subr.mxu0 0.0
        %4789 = vmatpush1.msra.mxu0 0.0
        %4790 = vmatprep.subr.mxu0 0.0
        %4791 = vmatpush1.msra.mxu0 0.0
        %4792 = vmatprep.subr.mxu0 0.0
        %4793 = vmatpush1.msra.mxu0 0.0
        %4794 = vmatprep.subr.mxu0 0.0
        %4795 = vmatpush1.msra.mxu0 0.0
        %4796 = vmatprep.subr.mxu0 0.0
        %4797 = vmatpush1.msra.mxu0 0.0
        %4798 = vmatprep.mubr.f32.mxu0 0.0
        %4799 = vmatmul.mubr.f32.gmra.mrb[0].mxu0 %v4732
        %v4800 = vpop.f32.mrb[0].mxu0
        %v4801 = vadd.f32 0.0, %v4800
        %v4802 = vpop.f32.mrb[0].mxu0
        %4803 = vdwg.mxu0
        %v4804 = vadd.f32 %v4685, %v4801
        %v4805 = vld [vmem:[#allocation2 + $0x3e8] sm:$0xff]
        %v4806 = vld [vmem:[#allocation2 + $0x3f0] sm:$0xff]
        %v4807 = vld [vmem:[#allocation2 + $0x3f8] sm:$0xff]
        %v4808 = vld [vmem:[#allocation2 + $0x400] sm:$0xff]
        %v4810 = vsel %vm478, %v4702, 0
        %4812 = vmatprep.subr.mxu0 0.0
        %4813 = vmatpush1.msra.mxu0 %v4805
        %4814 = vmatprep.subr.mxu0 0.0
        %4815 = vmatpush1.msra.mxu0 %v4806
        %4816 = vmatprep.subr.mxu0 0.0
        %4817 = vmatpush1.msra.mxu0 %v4807
        %4818 = vmatprep.subr.mxu0 0.0
        %4819 = vmatpush1.msra.mxu0 %v4808
        %4820 = vmatprep.subr.mxu0 0.0
        %4821 = vmatpush1.msra.mxu0 0.0
        %4822 = vmatprep.subr.mxu0 0.0
        %4823 = vmatpush1.msra.mxu0 0.0
        %4824 = vmatprep.subr.mxu0 0.0
        %4825 = vmatpush1.msra.mxu0 0.0
        %4826 = vmatprep.subr.mxu0 0.0
        %4827 = vmatpush1.msra.mxu0 0.0
        %4828 = vmatprep.subr.mxu0 0.0
        %4829 = vmatpush1.msra.mxu0 0.0
        %4830 = vmatprep.subr.mxu0 0.0
        %4831 = vmatpush1.msra.mxu0 0.0
        %4832 = vmatprep.subr.mxu0 0.0
        %4833 = vmatpush1.msra.mxu0 0.0
        %4834 = vmatprep.subr.mxu0 0.0
        %4835 = vmatpush1.msra.mxu0 0.0
        %4836 = vmatprep.subr.mxu0 0.0
        %4837 = vmatpush1.msra.mxu0 0.0
        %4838 = vmatprep.subr.mxu0 0.0
        %4839 = vmatpush1.msra.mxu0 0.0
        %4840 = vmatprep.subr.mxu0 0.0
        %4841 = vmatpush1.msra.mxu0 0.0
        %4842 = vmatprep.subr.mxu0 0.0
        %4843 = vmatpush1.msra.mxu0 0.0
        %4844 = vmatprep.subr.mxu0 0.0
        %4845 = vmatpush1.msra.mxu0 0.0
        %4846 = vmatprep.subr.mxu0 0.0
        %4847 = vmatpush1.msra.mxu0 0.0
        %4848 = vmatprep.subr.mxu0 0.0
        %4849 = vmatpush1.msra.mxu0 0.0
        %4850 = vmatprep.subr.mxu0 0.0
        %4851 = vmatpush1.msra.mxu0 0.0
        %4852 = vmatprep.subr.mxu0 0.0
        %4853 = vmatpush1.msra.mxu0 0.0
        %4854 = vmatprep.subr.mxu0 0.0
        %4855 = vmatpush1.msra.mxu0 0.0
        %4856 = vmatprep.subr.mxu0 0.0
        %4857 = vmatpush1.msra.mxu0 0.0
        %4858 = vmatprep.subr.mxu0 0.0
        %4859 = vmatpush1.msra.mxu0 0.0
        %4860 = vmatprep.subr.mxu0 0.0
        %4861 = vmatpush1.msra.mxu0 0.0
        %4862 = vmatprep.subr.mxu0 0.0
        %4863 = vmatpush1.msra.mxu0 0.0
        %4864 = vmatprep.subr.mxu0 0.0
        %4865 = vmatpush1.msra.mxu0 0.0
        %4866 = vmatprep.subr.mxu0 0.0
        %4867 = vmatpush1.msra.mxu0 0.0
        %4868 = vmatprep.subr.mxu0 0.0
        %4869 = vmatpush1.msra.mxu0 0.0
        %4870 = vmatprep.subr.mxu0 0.0
        %4871 = vmatpush1.msra.mxu0 0.0
        %4872 = vmatprep.subr.mxu0 0.0
        %4873 = vmatpush1.msra.mxu0 0.0
        %4874 = vmatprep.subr.mxu0 0.0
        %4875 = vmatpush1.msra.mxu0 0.0
        %4876 = vmatprep.mubr.f32.mxu0 0.0
        %4877 = vmatmul.mubr.f32.gmra.mrb[0].mxu0 %v4810
        %v4878 = vpop.f32.mrb[0].mxu0
        %v4879 = vadd.f32 0.0, %v4878
        %v4880 = vpop.f32.mrb[0].mxu0
        %4881 = vdwg.mxu0
        %v4882 = vadd.f32 %v4804, %v4879
        %v4883 = vld [vmem:[#allocation2 + $0x418] sm:$0xff]
        %v4884 = vld [vmem:[#allocation2 + $0x420] sm:$0xff]
        %v4885 = vld [vmem:[#allocation2 + $0x428] sm:$0xff]
        %v4886 = vld [vmem:[#allocation2 + $0x430] sm:$0xff]
        %v4888 = vsel %vm478, %v4709, 0
        %4890 = vmatprep.subr.mxu0 0.0
        %4891 = vmatpush1.msra.mxu0 %v4883
        %4892 = vmatprep.subr.mxu0 0.0
        %4893 = vmatpush1.msra.mxu0 %v4884
        %4894 = vmatprep.subr.mxu0 0.0
        %4895 = vmatpush1.msra.mxu0 %v4885
        %4896 = vmatprep.subr.mxu0 0.0
        %4897 = vmatpush1.msra.mxu0 %v4886
        %4898 = vmatprep.subr.mxu0 0.0
        %4899 = vmatpush1.msra.mxu0 0.0
        %4900 = vmatprep.subr.mxu0 0.0
        %4901 = vmatpush1.msra.mxu0 0.0
        %4902 = vmatprep.subr.mxu0 0.0
        %4903 = vmatpush1.msra.mxu0 0.0
        %4904 = vmatprep.subr.mxu0 0.0
        %4905 = vmatpush1.msra.mxu0 0.0
        %4906 = vmatprep.subr.mxu0 0.0
        %4907 = vmatpush1.msra.mxu0 0.0
        %4908 = vmatprep.subr.mxu0 0.0
        %4909 = vmatpush1.msra.mxu0 0.0
        %4910 = vmatprep.subr.mxu0 0.0
        %4911 = vmatpush1.msra.mxu0 0.0
        %4912 = vmatprep.subr.mxu0 0.0
        %4913 = vmatpush1.msra.mxu0 0.0
        %4914 = vmatprep.subr.mxu0 0.0
        %4915 = vmatpush1.msra.mxu0 0.0
        %4916 = vmatprep.subr.mxu0 0.0
        %4917 = vmatpush1.msra.mxu0 0.0
        %4918 = vmatprep.subr.mxu0 0.0
        %4919 = vmatpush1.msra.mxu0 0.0
        %4920 = vmatprep.subr.mxu0 0.0
        %4921 = vmatpush1.msra.mxu0 0.0
        %4922 = vmatprep.subr.mxu0 0.0
        %4923 = vmatpush1.msra.mxu0 0.0
        %4924 = vmatprep.subr.mxu0 0.0
        %4925 = vmatpush1.msra.mxu0 0.0
        %4926 = vmatprep.subr.mxu0 0.0
        %4927 = vmatpush1.msra.mxu0 0.0
        %4928 = vmatprep.subr.mxu0 0.0
        %4929 = vmatpush1.msra.mxu0 0.0
        %4930 = vmatprep.subr.mxu0 0.0
        %4931 = vmatpush1.msra.mxu0 0.0
        %4932 = vmatprep.subr.mxu0 0.0
        %4933 = vmatpush1.msra.mxu0 0.0
        %4934 = vmatprep.subr.mxu0 0.0
        %4935 = vmatpush1.msra.mxu0 0.0
        %4936 = vmatprep.subr.mxu0 0.0
        %4937 = vmatpush1.msra.mxu0 0.0
        %4938 = vmatprep.subr.mxu0 0.0
        %4939 = vmatpush1.msra.mxu0 0.0
        %4940 = vmatprep.subr.mxu0 0.0
        %4941 = vmatpush1.msra.mxu0 0.0
        %4942 = vmatprep.subr.mxu0 0.0
        %4943 = vmatpush1.msra.mxu0 0.0
        %4944 = vmatprep.subr.mxu0 0.0
        %4945 = vmatpush1.msra.mxu0 0.0
        %4946 = vmatprep.subr.mxu0 0.0
        %4947 = vmatpush1.msra.mxu0 0.0
        %4948 = vmatprep.subr.mxu0 0.0
        %4949 = vmatpush1.msra.mxu0 0.0
        %4950 = vmatprep.subr.mxu0 0.0
        %4951 = vmatpush1.msra.mxu0 0.0
        %4952 = vmatprep.subr.mxu0 0.0
        %4953 = vmatpush1.msra.mxu0 0.0
        %4954 = vmatprep.mubr.f32.mxu0 0.0
        %4955 = vmatmul.mubr.f32.gmra.mrb[0].mxu0 %v4888
        %v4956 = vpop.f32.mrb[0].mxu0
        %v4957 = vadd.f32 0.0, %v4956
        %v4958 = vpop.f32.mrb[0].mxu0
        %4959 = vdwg.mxu0
        %v4960 = vadd.f32 %v4882, %v4957
        %v4961 = vld [vmem:[#allocation2 + $0x448] sm:$0xff]
        %v4962 = vld [vmem:[#allocation2 + $0x450] sm:$0xff]
        %v4963 = vld [vmem:[#allocation2 + $0x458] sm:$0xff]
        %v4964 = vld [vmem:[#allocation2 + $0x460] sm:$0xff]
        %v4966 = vsel %vm478, %v4726, 0
        %4968 = vmatprep.subr.mxu0 0.0
        %4969 = vmatpush1.msra.mxu0 %v4961
        %4970 = vmatprep.subr.mxu0 0.0
        %4971 = vmatpush1.msra.mxu0 %v4962
        %4972 = vmatprep.subr.mxu0 0.0
        %4973 = vmatpush1.msra.mxu0 %v4963
        %4974 = vmatprep.subr.mxu0 0.0
        %4975 = vmatpush1.msra.mxu0 %v4964
        %4976 = vmatprep.subr.mxu0 0.0
        %4977 = vmatpush1.msra.mxu0 0.0
        %4978 = vmatprep.subr.mxu0 0.0
        %4979 = vmatpush1.msra.mxu0 0.0
        %4980 = vmatprep.subr.mxu0 0.0
        %4981 = vmatpush1.msra.mxu0 0.0
        %4982 = vmatprep.subr.mxu0 0.0
        %4983 = vmatpush1.msra.mxu0 0.0
        %4984 = vmatprep.subr.mxu0 0.0
        %4985 = vmatpush1.msra.mxu0 0.0
        %4986 = vmatprep.subr.mxu0 0.0
        %4987 = vmatpush1.msra.mxu0 0.0
        %4988 = vmatprep.subr.mxu0 0.0
        %4989 = vmatpush1.msra.mxu0 0.0
        %4990 = vmatprep.subr.mxu0 0.0
        %4991 = vmatpush1.msra.mxu0 0.0
        %4992 = vmatprep.subr.mxu0 0.0
        %4993 = vmatpush1.msra.mxu0 0.0
        %4994 = vmatprep.subr.mxu0 0.0
        %4995 = vmatpush1.msra.mxu0 0.0
        %4996 = vmatprep.subr.mxu0 0.0
        %4997 = vmatpush1.msra.mxu0 0.0
        %4998 = vmatprep.subr.mxu0 0.0
        %4999 = vmatpush1.msra.mxu0 0.0
        %5000 = vmatprep.subr.mxu0 0.0
        %5001 = vmatpush1.msra.mxu0 0.0
        %5002 = vmatprep.subr.mxu0 0.0
        %5003 = vmatpush1.msra.mxu0 0.0
        %5004 = vmatprep.subr.mxu0 0.0
        %5005 = vmatpush1.msra.mxu0 0.0
        %5006 = vmatprep.subr.mxu0 0.0
        %5007 = vmatpush1.msra.mxu0 0.0
        %5008 = vmatprep.subr.mxu0 0.0
        %5009 = vmatpush1.msra.mxu0 0.0
        %5010 = vmatprep.subr.mxu0 0.0
        %5011 = vmatpush1.msra.mxu0 0.0
        %5012 = vmatprep.subr.mxu0 0.0
        %5013 = vmatpush1.msra.mxu0 0.0
        %5014 = vmatprep.subr.mxu0 0.0
        %5015 = vmatpush1.msra.mxu0 0.0
        %5016 = vmatprep.subr.mxu0 0.0
        %5017 = vmatpush1.msra.mxu0 0.0
        %5018 = vmatprep.subr.mxu0 0.0
        %5019 = vmatpush1.msra.mxu0 0.0
        %5020 = vmatprep.subr.mxu0 0.0
        %5021 = vmatpush1.msra.mxu0 0.0
        %5022 = vmatprep.subr.mxu0 0.0
        %5023 = vmatpush1.msra.mxu0 0.0
        %5024 = vmatprep.subr.mxu0 0.0
        %5025 = vmatpush1.msra.mxu0 0.0
        %5026 = vmatprep.subr.mxu0 0.0
        %5027 = vmatpush1.msra.mxu0 0.0
        %5028 = vmatprep.subr.mxu0 0.0
        %5029 = vmatpush1.msra.mxu0 0.0
        %5030 = vmatprep.subr.mxu0 0.0
        %5031 = vmatpush1.msra.mxu0 0.0
        %5032 = vmatprep.mubr.f32.mxu0 0.0
        %5033 = vmatmul.mubr.f32.gmra.mrb[0].mxu0 %v4966
        %v5034 = vpop.f32.mrb[0].mxu0
        %v5035 = vadd.f32 0.0, %v5034
        %v5036 = vpop.f32.mrb[0].mxu0
        %5037 = vdwg.mxu0
        %v5038 = vadd.f32 %v4960, %v5035
        %v5039 = vsel %vm564, %v3359, 0.0
        %v5040 = vsel %vm564, %v3360, 0.0
        %v5041 = vadd.f32 %v5039, %v5040
        %v5042 = vsel %vm564, %v3361, 0.0
        %v5043 = vadd.f32 %v5041, %v5042
        %v5044 = vsel %vm564, %v3362, 0.0
        %v5045 = vadd.f32 %v5043, %v5044
        %v5046 = vsel %vm564, %v3363, 0.0
        %v5047 = vadd.f32 %v5045, %v5046
        %v5048 = vsel %vm564, %v3364, 0.0
        %v5049 = vadd.f32 %v5047, %v5048
        %v5050 = vsel %vm564, %v3365, 0.0
        %v5051 = vadd.f32 %v5049, %v5050
        %v5052 = vsel %vm564, %v3366, 0.0
        %v5053 = vadd.f32 %v5051, %v5052
        %v5054 = vrot.slane %v5053, 4
        %v5055 = vadd.f32 %v5053, %v5054
        %v5056 = vrot.slane %v5055, 2
        %v5057 = vadd.f32 %v5055, %v5056
        %v5058 = vrot.slane %v5057, 1
        %v5059 = vadd.f32 %v5057, %v5058
        %v5060 = vmul.f32 %v5059, %v2029
        %v5061 = vsel %vm564, %v3359, inf
        %v5062 = vsel %vm564, %v3360, inf
        %v5063 = vsel %vm564, %v3361, inf
        %v5064 = vsel %vm564, %v3362, inf
        %v5065 = vsel %vm564, %v3363, inf
        %v5066 = vmin.f32 %v5061, %v5065
        %v5067 = vsel %vm564, %v3364, inf
        %v5068 = vmin.f32 %v5062, %v5067
        %v5069 = vsel %vm564, %v3365, inf
        %v5070 = vmin.f32 %v5063, %v5069
        %v5071 = vsel %vm564, %v3366, inf
        %v5072 = vmin.f32 %v5064, %v5071
        %v5073 = vmin.f32 %v5066, %v5068
        %v5074 = vmin.f32 %v5070, %v5072
        %v5075 = vmin.f32 %v5073, %v5074
        %v5076 = vrot.slane %v5075, 4
        %v5077 = vmin.f32 %v5075, %v5076
        %v5078 = vrot.slane %v5077, 2
        %v5079 = vmin.f32 %v5077, %v5078
        %v5080 = vrot.slane %v5079, 1
        %v5081 = vmin.f32 %v5079, %v5080
        %v5082 = vsel %vm564, %v3359, -inf
        %v5083 = vsel %vm564, %v3360, -inf
        %v5084 = vsel %vm564, %v3361, -inf
        %v5085 = vsel %vm564, %v3362, -inf
        %v5086 = vsel %vm564, %v3363, -inf
        %v5087 = vmax.f32 %v5082, %v5086
        %v5088 = vsel %vm564, %v3364, -inf
        %v5089 = vmax.f32 %v5083, %v5088
        %v5090 = vsel %vm564, %v3365, -inf
        %v5091 = vmax.f32 %v5084, %v5090
        %v5092 = vsel %vm564, %v3366, -inf
        %v5093 = vmax.f32 %v5085, %v5092
        %v5094 = vmax.f32 %v5087, %v5089
        %v5095 = vmax.f32 %v5091, %v5093
        %v5096 = vmax.f32 %v5094, %v5095
        %v5097 = vrot.slane %v5096, 4
        %v5098 = vmax.f32 %v5096, %v5097
        %v5099 = vrot.slane %v5098, 2
        %v5100 = vmax.f32 %v5098, %v5099
        %v5101 = vrot.slane %v5100, 1
        %v5102 = vmax.f32 %v5100, %v5101
        %v5103 = vsub.f32 %v3359, %v5060
        %v5104 = vsub.f32 %v3360, %v5060
        %v5105 = vsub.f32 %v3361, %v5060
        %v5106 = vsub.f32 %v3362, %v5060
        %v5107 = vsub.f32 %v3363, %v5060
        %v5108 = vsub.f32 %v3364, %v5060
        %v5109 = vsub.f32 %v3365, %v5060
        %v5110 = vsub.f32 %v3366, %v5060
        %v5111 = vmul.f32 %v5103, %v5103
        %v5112 = vmul.f32 %v5104, %v5104
        %v5113 = vmul.f32 %v5105, %v5105
        %v5114 = vmul.f32 %v5106, %v5106
        %v5115 = vmul.f32 %v5107, %v5107
        %v5116 = vmul.f32 %v5108, %v5108
        %v5117 = vmul.f32 %v5109, %v5109
        %v5118 = vmul.f32 %v5110, %v5110
        %v5119 = vsel %vm564, %v5111, 0.0
        %v5120 = vsel %vm564, %v5112, 0.0
        %v5121 = vadd.f32 %v5119, %v5120
        %v5122 = vsel %vm564, %v5113, 0.0
        %v5123 = vadd.f32 %v5121, %v5122
        %v5124 = vsel %vm564, %v5114, 0.0
        %v5125 = vadd.f32 %v5123, %v5124
        %v5126 = vsel %vm564, %v5115, 0.0
        %v5127 = vadd.f32 %v5125, %v5126
        %v5128 = vsel %vm564, %v5116, 0.0
        %v5129 = vadd.f32 %v5127, %v5128
        %v5130 = vsel %vm564, %v5117, 0.0
        %v5131 = vadd.f32 %v5129, %v5130
        %v5132 = vsel %vm564, %v5118, 0.0
        %v5133 = vadd.f32 %v5131, %v5132
        %v5134 = vrot.slane %v5133, 4
        %v5135 = vadd.f32 %v5133, %v5134
        %v5136 = vrot.slane %v5135, 2
        %v5137 = vadd.f32 %v5135, %v5136
        %v5138 = vrot.slane %v5137, 1
        %v5139 = vadd.f32 %v5137, %v5138
        %v5140 = vmul.f32 %v5139, %v2110
        %v5141 = vrsqrt.pop %v5140
        %v5142 = vmul.f32 %v5140, %v5141
        %vm5143 = vcmp.eq.f32.partialorder %v5140, inf
        %v5144 = vsel %vm5143, %v5140, %v5142
        %vm5145 = vcmp.eq.f32.partialorder %v5140, 0.0
        %v5146 = vand.u32 %v5140, 2147483648
        %v5147 = vsel %vm5145, %v5146, %v5144
        %v5148 = vld [vmem:[#allocation2 + $0x3d8] sm:$0xff]
        %v5149 = vld [vmem:[#allocation2 + $0x3e0] sm:$0xff]
        %v5151 = vsel %vm564, %v5060, 0
        %5153 = vmatprep.subr.mxu0 0.0
        %5154 = vmatpush1.msra.mxu0 %v5148
        %5155 = vmatprep.subr.mxu0 0.0
        %5156 = vmatpush1.msra.mxu0 %v5149
        %5157 = vmatprep.subr.mxu0 0.0
        %5158 = vmatpush1.msra.mxu0 0.0
        %5159 = vmatprep.subr.mxu0 0.0
        %5160 = vmatpush1.msra.mxu0 0.0
        %5161 = vmatprep.subr.mxu0 0.0
        %5162 = vmatpush1.msra.mxu0 0.0
        %5163 = vmatprep.subr.mxu0 0.0
        %5164 = vmatpush1.msra.mxu0 0.0
        %5165 = vmatprep.subr.mxu0 0.0
        %5166 = vmatpush1.msra.mxu0 0.0
        %5167 = vmatprep.subr.mxu0 0.0
        %5168 = vmatpush1.msra.mxu0 0.0
        %5169 = vmatprep.subr.mxu0 0.0
        %5170 = vmatpush1.msra.mxu0 0.0
        %5171 = vmatprep.subr.mxu0 0.0
        %5172 = vmatpush1.msra.mxu0 0.0
        %5173 = vmatprep.subr.mxu0 0.0
        %5174 = vmatpush1.msra.mxu0 0.0
        %5175 = vmatprep.subr.mxu0 0.0
        %5176 = vmatpush1.msra.mxu0 0.0
        %5177 = vmatprep.subr.mxu0 0.0
        %5178 = vmatpush1.msra.mxu0 0.0
        %5179 = vmatprep.subr.mxu0 0.0
        %5180 = vmatpush1.msra.mxu0 0.0
        %5181 = vmatprep.subr.mxu0 0.0
        %5182 = vmatpush1.msra.mxu0 0.0
        %5183 = vmatprep.subr.mxu0 0.0
        %5184 = vmatpush1.msra.mxu0 0.0
        %5185 = vmatprep.subr.mxu0 0.0
        %5186 = vmatpush1.msra.mxu0 0.0
        %5187 = vmatprep.subr.mxu0 0.0
        %5188 = vmatpush1.msra.mxu0 0.0
        %5189 = vmatprep.subr.mxu0 0.0
        %5190 = vmatpush1.msra.mxu0 0.0
        %5191 = vmatprep.subr.mxu0 0.0
        %5192 = vmatpush1.msra.mxu0 0.0
        %5193 = vmatprep.subr.mxu0 0.0
        %5194 = vmatpush1.msra.mxu0 0.0
        %5195 = vmatprep.subr.mxu0 0.0
        %5196 = vmatpush1.msra.mxu0 0.0
        %5197 = vmatprep.subr.mxu0 0.0
        %5198 = vmatpush1.msra.mxu0 0.0
        %5199 = vmatprep.subr.mxu0 0.0
        %5200 = vmatpush1.msra.mxu0 0.0
        %5201 = vmatprep.subr.mxu0 0.0
        %5202 = vmatpush1.msra.mxu0 0.0
        %5203 = vmatprep.subr.mxu0 0.0
        %5204 = vmatpush1.msra.mxu0 0.0
        %5205 = vmatprep.subr.mxu0 0.0
        %5206 = vmatpush1.msra.mxu0 0.0
        %5207 = vmatprep.subr.mxu0 0.0
        %5208 = vmatpush1.msra.mxu0 0.0
        %5209 = vmatprep.subr.mxu0 0.0
        %5210 = vmatpush1.msra.mxu0 0.0
        %5211 = vmatprep.subr.mxu0 0.0
        %5212 = vmatpush1.msra.mxu0 0.0
        %5213 = vmatprep.subr.mxu0 0.0
        %5214 = vmatpush1.msra.mxu0 0.0
        %5215 = vmatprep.subr.mxu0 0.0
        %5216 = vmatpush1.msra.mxu0 0.0
        %5217 = vmatprep.mubr.f32.mxu0 0.0
        %5218 = vmatmul.mubr.f32.gmra.mrb[0].mxu0 %v5151
        %v5219 = vpop.f32.mrb[0].mxu0
        %v5220 = vadd.f32 0.0, %v5219
        %v5221 = vpop.f32.mrb[0].mxu0
        %5222 = vdwg.mxu0
        %v5223 = vadd.f32 %v5038, %v5220
        %v5224 = vld [vmem:[#allocation2 + $0x408] sm:$0xff]
        %v5225 = vld [vmem:[#allocation2 + $0x410] sm:$0xff]
        %v5227 = vsel %vm564, %v5081, 0
        %5229 = vmatprep.subr.mxu0 0.0
        %5230 = vmatpush1.msra.mxu0 %v5224
        %5231 = vmatprep.subr.mxu0 0.0
        %5232 = vmatpush1.msra.mxu0 %v5225
        %5233 = vmatprep.subr.mxu0 0.0
        %5234 = vmatpush1.msra.mxu0 0.0
        %5235 = vmatprep.subr.mxu0 0.0
        %5236 = vmatpush1.msra.mxu0 0.0
        %5237 = vmatprep.subr.mxu0 0.0
        %5238 = vmatpush1.msra.mxu0 0.0
        %5239 = vmatprep.subr.mxu0 0.0
        %5240 = vmatpush1.msra.mxu0 0.0
        %5241 = vmatprep.subr.mxu0 0.0
        %5242 = vmatpush1.msra.mxu0 0.0
        %5243 = vmatprep.subr.mxu0 0.0
        %5244 = vmatpush1.msra.mxu0 0.0
        %5245 = vmatprep.subr.mxu0 0.0
        %5246 = vmatpush1.msra.mxu0 0.0
        %5247 = vmatprep.subr.mxu0 0.0
        %5248 = vmatpush1.msra.mxu0 0.0
        %5249 = vmatprep.subr.mxu0 0.0
        %5250 = vmatpush1.msra.mxu0 0.0
        %5251 = vmatprep.subr.mxu0 0.0
        %5252 = vmatpush1.msra.mxu0 0.0
        %5253 = vmatprep.subr.mxu0 0.0
        %5254 = vmatpush1.msra.mxu0 0.0
        %5255 = vmatprep.subr.mxu0 0.0
        %5256 = vmatpush1.msra.mxu0 0.0
        %5257 = vmatprep.subr.mxu0 0.0
        %5258 = vmatpush1.msra.mxu0 0.0
        %5259 = vmatprep.subr.mxu0 0.0
        %5260 = vmatpush1.msra.mxu0 0.0
        %5261 = vmatprep.subr.mxu0 0.0
        %5262 = vmatpush1.msra.mxu0 0.0
        %5263 = vmatprep.subr.mxu0 0.0
        %5264 = vmatpush1.msra.mxu0 0.0
        %5265 = vmatprep.subr.mxu0 0.0
        %5266 = vmatpush1.msra.mxu0 0.0
        %5267 = vmatprep.subr.mxu0 0.0
        %5268 = vmatpush1.msra.mxu0 0.0
        %5269 = vmatprep.subr.mxu0 0.0
        %5270 = vmatpush1.msra.mxu0 0.0
        %5271 = vmatprep.subr.mxu0 0.0
        %5272 = vmatpush1.msra.mxu0 0.0
        %5273 = vmatprep.subr.mxu0 0.0
        %5274 = vmatpush1.msra.mxu0 0.0
        %5275 = vmatprep.subr.mxu0 0.0
        %5276 = vmatpush1.msra.mxu0 0.0
        %5277 = vmatprep.subr.mxu0 0.0
        %5278 = vmatpush1.msra.mxu0 0.0
        %5279 = vmatprep.subr.mxu0 0.0
        %5280 = vmatpush1.msra.mxu0 0.0
        %5281 = vmatprep.subr.mxu0 0.0
        %5282 = vmatpush1.msra.mxu0 0.0
        %5283 = vmatprep.subr.mxu0 0.0
        %5284 = vmatpush1.msra.mxu0 0.0
        %5285 = vmatprep.subr.mxu0 0.0
        %5286 = vmatpush1.msra.mxu0 0.0
        %5287 = vmatprep.subr.mxu0 0.0
        %5288 = vmatpush1.msra.mxu0 0.0
        %5289 = vmatprep.subr.mxu0 0.0
        %5290 = vmatpush1.msra.mxu0 0.0
        %5291 = vmatprep.subr.mxu0 0.0
        %5292 = vmatpush1.msra.mxu0 0.0
        %5293 = vmatprep.mubr.f32.mxu0 0.0
        %5294 = vmatmul.mubr.f32.gmra.mrb[0].mxu0 %v5227
        %v5295 = vpop.f32.mrb[0].mxu0
        %v5296 = vadd.f32 0.0, %v5295
        %v5297 = vpop.f32.mrb[0].mxu0
        %5298 = vdwg.mxu0
        %v5299 = vadd.f32 %v5223, %v5296
        %v5300 = vld [vmem:[#allocation2 + $0x438] sm:$0xff]
        %v5301 = vld [vmem:[#allocation2 + $0x440] sm:$0xff]
        %v5303 = vsel %vm564, %v5102, 0
        %5305 = vmatprep.subr.mxu0 0.0
        %5306 = vmatpush1.msra.mxu0 %v5300
        %5307 = vmatprep.subr.mxu0 0.0
        %5308 = vmatpush1.msra.mxu0 %v5301
        %5309 = vmatprep.subr.mxu0 0.0
        %5310 = vmatpush1.msra.mxu0 0.0
        %5311 = vmatprep.subr.mxu0 0.0
        %5312 = vmatpush1.msra.mxu0 0.0
        %5313 = vmatprep.subr.mxu0 0.0
        %5314 = vmatpush1.msra.mxu0 0.0
        %5315 = vmatprep.subr.mxu0 0.0
        %5316 = vmatpush1.msra.mxu0 0.0
        %5317 = vmatprep.subr.mxu0 0.0
        %5318 = vmatpush1.msra.mxu0 0.0
        %5319 = vmatprep.subr.mxu0 0.0
        %5320 = vmatpush1.msra.mxu0 0.0
        %5321 = vmatprep.subr.mxu0 0.0
        %5322 = vmatpush1.msra.mxu0 0.0
        %5323 = vmatprep.subr.mxu0 0.0
        %5324 = vmatpush1.msra.mxu0 0.0
        %5325 = vmatprep.subr.mxu0 0.0
        %5326 = vmatpush1.msra.mxu0 0.0
        %5327 = vmatprep.subr.mxu0 0.0
        %5328 = vmatpush1.msra.mxu0 0.0
        %5329 = vmatprep.subr.mxu0 0.0
        %5330 = vmatpush1.msra.mxu0 0.0
        %5331 = vmatprep.subr.mxu0 0.0
        %5332 = vmatpush1.msra.mxu0 0.0
        %5333 = vmatprep.subr.mxu0 0.0
        %5334 = vmatpush1.msra.mxu0 0.0
        %5335 = vmatprep.subr.mxu0 0.0
        %5336 = vmatpush1.msra.mxu0 0.0
        %5337 = vmatprep.subr.mxu0 0.0
        %5338 = vmatpush1.msra.mxu0 0.0
        %5339 = vmatprep.subr.mxu0 0.0
        %5340 = vmatpush1.msra.mxu0 0.0
        %5341 = vmatprep.subr.mxu0 0.0
        %5342 = vmatpush1.msra.mxu0 0.0
        %5343 = vmatprep.subr.mxu0 0.0
        %5344 = vmatpush1.msra.mxu0 0.0
        %5345 = vmatprep.subr.mxu0 0.0
        %5346 = vmatpush1.msra.mxu0 0.0
        %5347 = vmatprep.subr.mxu0 0.0
        %5348 = vmatpush1.msra.mxu0 0.0
        %5349 = vmatprep.subr.mxu0 0.0
        %5350 = vmatpush1.msra.mxu0 0.0
        %5351 = vmatprep.subr.mxu0 0.0
        %5352 = vmatpush1.msra.mxu0 0.0
        %5353 = vmatprep.subr.mxu0 0.0
        %5354 = vmatpush1.msra.mxu0 0.0
        %5355 = vmatprep.subr.mxu0 0.0
        %5356 = vmatpush1.msra.mxu0 0.0
        %5357 = vmatprep.subr.mxu0 0.0
        %5358 = vmatpush1.msra.mxu0 0.0
        %5359 = vmatprep.subr.mxu0 0.0
        %5360 = vmatpush1.msra.mxu0 0.0
        %5361 = vmatprep.subr.mxu0 0.0
        %5362 = vmatpush1.msra.mxu0 0.0
        %5363 = vmatprep.subr.mxu0 0.0
        %5364 = vmatpush1.msra.mxu0 0.0
        %5365 = vmatprep.subr.mxu0 0.0
        %5366 = vmatpush1.msra.mxu0 0.0
        %5367 = vmatprep.subr.mxu0 0.0
        %5368 = vmatpush1.msra.mxu0 0.0
        %5369 = vmatprep.mubr.f32.mxu0 0.0
        %5370 = vmatmul.mubr.f32.gmra.mrb[0].mxu0 %v5303
        %v5371 = vpop.f32.mrb[0].mxu0
        %v5372 = vadd.f32 0.0, %v5371
        %v5373 = vpop.f32.mrb[0].mxu0
        %5374 = vdwg.mxu0
        %v5375 = vadd.f32 %v5299, %v5372
        %v5376 = vld [vmem:[#allocation2 + $0x468] sm:$0xff]
        %v5377 = vld [vmem:[#allocation2 + $0x470] sm:$0xff]
        %v5379 = vsel %vm564, %v5147, 0
        %5381 = vmatprep.subr.mxu0 0.0
        %5382 = vmatpush1.msra.mxu0 %v5376
        %5383 = vmatprep.subr.mxu0 0.0
        %5384 = vmatpush1.msra.mxu0 %v5377
        %5385 = vmatprep.subr.mxu0 0.0
        %5386 = vmatpush1.msra.mxu0 0.0
        %5387 = vmatprep.subr.mxu0 0.0
        %5388 = vmatpush1.msra.mxu0 0.0
        %5389 = vmatprep.subr.mxu0 0.0
        %5390 = vmatpush1.msra.mxu0 0.0
        %5391 = vmatprep.subr.mxu0 0.0
        %5392 = vmatpush1.msra.mxu0 0.0
        %5393 = vmatprep.subr.mxu0 0.0
        %5394 = vmatpush1.msra.mxu0 0.0
        %5395 = vmatprep.subr.mxu0 0.0
        %5396 = vmatpush1.msra.mxu0 0.0
        %5397 = vmatprep.subr.mxu0 0.0
        %5398 = vmatpush1.msra.mxu0 0.0
        %5399 = vmatprep.subr.mxu0 0.0
        %5400 = vmatpush1.msra.mxu0 0.0
        %5401 = vmatprep.subr.mxu0 0.0
        %5402 = vmatpush1.msra.mxu0 0.0
        %5403 = vmatprep.subr.mxu0 0.0
        %5404 = vmatpush1.msra.mxu0 0.0
        %5405 = vmatprep.subr.mxu0 0.0
        %5406 = vmatpush1.msra.mxu0 0.0
        %5407 = vmatprep.subr.mxu0 0.0
        %5408 = vmatpush1.msra.mxu0 0.0
        %5409 = vmatprep.subr.mxu0 0.0
        %5410 = vmatpush1.msra.mxu0 0.0
        %5411 = vmatprep.subr.mxu0 0.0
        %5412 = vmatpush1.msra.mxu0 0.0
        %5413 = vmatprep.subr.mxu0 0.0
        %5414 = vmatpush1.msra.mxu0 0.0
        %5415 = vmatprep.subr.mxu0 0.0
        %5416 = vmatpush1.msra.mxu0 0.0
        %5417 = vmatprep.subr.mxu0 0.0
        %5418 = vmatpush1.msra.mxu0 0.0
        %5419 = vmatprep.subr.mxu0 0.0
        %5420 = vmatpush1.msra.mxu0 0.0
        %5421 = vmatprep.subr.mxu0 0.0
        %5422 = vmatpush1.msra.mxu0 0.0
        %5423 = vmatprep.subr.mxu0 0.0
        %5424 = vmatpush1.msra.mxu0 0.0
        %5425 = vmatprep.subr.mxu0 0.0
        %5426 = vmatpush1.msra.mxu0 0.0
        %5427 = vmatprep.subr.mxu0 0.0
        %5428 = vmatpush1.msra.mxu0 0.0
        %5429 = vmatprep.subr.mxu0 0.0
        %5430 = vmatpush1.msra.mxu0 0.0
        %5431 = vmatprep.subr.mxu0 0.0
        %5432 = vmatpush1.msra.mxu0 0.0
        %5433 = vmatprep.subr.mxu0 0.0
        %5434 = vmatpush1.msra.mxu0 0.0
        %5435 = vmatprep.subr.mxu0 0.0
        %5436 = vmatpush1.msra.mxu0 0.0
        %5437 = vmatprep.subr.mxu0 0.0
        %5438 = vmatpush1.msra.mxu0 0.0
        %5439 = vmatprep.subr.mxu0 0.0
        %5440 = vmatpush1.msra.mxu0 0.0
        %5441 = vmatprep.subr.mxu0 0.0
        %5442 = vmatpush1.msra.mxu0 0.0
        %5443 = vmatprep.subr.mxu0 0.0
        %5444 = vmatpush1.msra.mxu0 0.0
        %5445 = vmatprep.mubr.f32.mxu0 0.0
        %5446 = vmatmul.mubr.f32.gmra.mrb[0].mxu0 %v5379
        %v5447 = vpop.f32.mrb[0].mxu0
        %v5448 = vadd.f32 0.0, %v5447
        %v5449 = vpop.f32.mrb[0].mxu0
        %5450 = vdwg.mxu0
        %v5451 = vadd.f32 %v5375, %v5448
        %v5452 = vld [vmem:[#allocation2 + $0x480] sm:$0xff]
        %v5453 = vld [vmem:[#allocation2 + $0x488] sm:$0xff]
        %v5454 = vld [vmem:[#allocation2 + $0x490] sm:$0x1]
        %v5456 = vsel %vm564, %v5451, 0
        %5458 = vmatprep.subr.mxu0 0.0
        %5459 = vmatpush1.msra.mxu0 %v5452
        %5460 = vmatprep.subr.mxu0 0.0
        %5461 = vmatpush1.msra.mxu0 %v5453
        %5462 = vmatprep.subr.mxu0 0.0
        %5463 = vmatpush1.msra.mxu0 0.0
        %5464 = vmatprep.subr.mxu0 0.0
        %5465 = vmatpush1.msra.mxu0 0.0
        %5466 = vmatprep.subr.mxu0 0.0
        %5467 = vmatpush1.msra.mxu0 0.0
        %5468 = vmatprep.subr.mxu0 0.0
        %5469 = vmatpush1.msra.mxu0 0.0
        %5470 = vmatprep.subr.mxu0 0.0
        %5471 = vmatpush1.msra.mxu0 0.0
        %5472 = vmatprep.subr.mxu0 0.0
        %5473 = vmatpush1.msra.mxu0 0.0
        %5474 = vmatprep.subr.mxu0 0.0
        %5475 = vmatpush1.msra.mxu0 0.0
        %5476 = vmatprep.subr.mxu0 0.0
        %5477 = vmatpush1.msra.mxu0 0.0
        %5478 = vmatprep.subr.mxu0 0.0
        %5479 = vmatpush1.msra.mxu0 0.0
        %5480 = vmatprep.subr.mxu0 0.0
        %5481 = vmatpush1.msra.mxu0 0.0
        %5482 = vmatprep.subr.mxu0 0.0
        %5483 = vmatpush1.msra.mxu0 0.0
        %5484 = vmatprep.subr.mxu0 0.0
        %5485 = vmatpush1.msra.mxu0 0.0
        %5486 = vmatprep.subr.mxu0 0.0
        %5487 = vmatpush1.msra.mxu0 0.0
        %5488 = vmatprep.subr.mxu0 0.0
        %5489 = vmatpush1.msra.mxu0 0.0
        %5490 = vmatprep.subr.mxu0 0.0
        %5491 = vmatpush1.msra.mxu0 0.0
        %5492 = vmatprep.subr.mxu0 0.0
        %5493 = vmatpush1.msra.mxu0 0.0
        %5494 = vmatprep.subr.mxu0 0.0
        %5495 = vmatpush1.msra.mxu0 0.0
        %5496 = vmatprep.subr.mxu0 0.0
        %5497 = vmatpush1.msra.mxu0 0.0
        %5498 = vmatprep.subr.mxu0 0.0
        %5499 = vmatpush1.msra.mxu0 0.0
        %5500 = vmatprep.subr.mxu0 0.0
        %5501 = vmatpush1.msra.mxu0 0.0
        %5502 = vmatprep.subr.mxu0 0.0
        %5503 = vmatpush1.msra.mxu0 0.0
        %5504 = vmatprep.subr.mxu0 0.0
        %5505 = vmatpush1.msra.mxu0 0.0
        %5506 = vmatprep.subr.mxu0 0.0
        %5507 = vmatpush1.msra.mxu0 0.0
        %5508 = vmatprep.subr.mxu0 0.0
        %5509 = vmatpush1.msra.mxu0 0.0
        %5510 = vmatprep.subr.mxu0 0.0
        %5511 = vmatpush1.msra.mxu0 0.0
        %5512 = vmatprep.subr.mxu0 0.0
        %5513 = vmatpush1.msra.mxu0 0.0
        %5514 = vmatprep.subr.mxu0 0.0
        %5515 = vmatpush1.msra.mxu0 0.0
        %5516 = vmatprep.subr.mxu0 0.0
        %5517 = vmatpush1.msra.mxu0 0.0
        %5518 = vmatprep.subr.mxu0 0.0
        %5519 = vmatpush1.msra.mxu0 0.0
        %5520 = vmatprep.subr.mxu0 0.0
        %5521 = vmatpush1.msra.mxu0 0.0
        %5522 = vmatprep.mubr.f32.mxu0 0.0
        %5523 = vmatmul.mubr.f32.gmra.mrb[0].mxu0 %v5456
        %v5524 = vpop.f32.mrb[0].mxu0
        %v5525 = vadd.f32 %v5454, %v5524
        %v5526 = vpop.f32.mrb[0].mxu0
        %5527 = vdwg.mxu0
        %v5528 = vmax.f32 %v5525, 0.0
        %v5529 = vld [vmem:[#allocation2 + $0x498] sm:$0xff]
        %v5530 = vld [vmem:[#allocation2 + $0x4a0] sm:$0xff]
        %v5531 = vld [vmem:[#allocation2 + $0x4a8] sm:$0x1]
        %v5533 = vsel %vm564, %v5528, 0
        %5535 = vmatprep.subr.mxu0 0.0
        %5536 = vmatpush1.msra.mxu0 %v5529
        %5537 = vmatprep.subr.mxu0 0.0
        %5538 = vmatpush1.msra.mxu0 %v5530
        %5539 = vmatprep.subr.mxu0 0.0
        %5540 = vmatpush1.msra.mxu0 0.0
        %5541 = vmatprep.subr.mxu0 0.0
        %5542 = vmatpush1.msra.mxu0 0.0
        %5543 = vmatprep.subr.mxu0 0.0
        %5544 = vmatpush1.msra.mxu0 0.0
        %5545 = vmatprep.subr.mxu0 0.0
        %5546 = vmatpush1.msra.mxu0 0.0
        %5547 = vmatprep.subr.mxu0 0.0
        %5548 = vmatpush1.msra.mxu0 0.0
        %5549 = vmatprep.subr.mxu0 0.0
        %5550 = vmatpush1.msra.mxu0 0.0
        %5551 = vmatprep.subr.mxu0 0.0
        %5552 = vmatpush1.msra.mxu0 0.0
        %5553 = vmatprep.subr.mxu0 0.0
        %5554 = vmatpush1.msra.mxu0 0.0
        %5555 = vmatprep.subr.mxu0 0.0
        %5556 = vmatpush1.msra.mxu0 0.0
        %5557 = vmatprep.subr.mxu0 0.0
        %5558 = vmatpush1.msra.mxu0 0.0
        %5559 = vmatprep.subr.mxu0 0.0
        %5560 = vmatpush1.msra.mxu0 0.0
        %5561 = vmatprep.subr.mxu0 0.0
        %5562 = vmatpush1.msra.mxu0 0.0
        %5563 = vmatprep.subr.mxu0 0.0
        %5564 = vmatpush1.msra.mxu0 0.0
        %5565 = vmatprep.subr.mxu0 0.0
        %5566 = vmatpush1.msra.mxu0 0.0
        %5567 = vmatprep.subr.mxu0 0.0
        %5568 = vmatpush1.msra.mxu0 0.0
        %5569 = vmatprep.subr.mxu0 0.0
        %5570 = vmatpush1.msra.mxu0 0.0
        %5571 = vmatprep.subr.mxu0 0.0
        %5572 = vmatpush1.msra.mxu0 0.0
        %5573 = vmatprep.subr.mxu0 0.0
        %5574 = vmatpush1.msra.mxu0 0.0
        %5575 = vmatprep.subr.mxu0 0.0
        %5576 = vmatpush1.msra.mxu0 0.0
        %5577 = vmatprep.subr.mxu0 0.0
        %5578 = vmatpush1.msra.mxu0 0.0
        %5579 = vmatprep.subr.mxu0 0.0
        %5580 = vmatpush1.msra.mxu0 0.0
        %5581 = vmatprep.subr.mxu0 0.0
        %5582 = vmatpush1.msra.mxu0 0.0
        %5583 = vmatprep.subr.mxu0 0.0
        %5584 = vmatpush1.msra.mxu0 0.0
        %5585 = vmatprep.subr.mxu0 0.0
        %5586 = vmatpush1.msra.mxu0 0.0
        %5587 = vmatprep.subr.mxu0 0.0
        %5588 = vmatpush1.msra.mxu0 0.0
        %5589 = vmatprep.subr.mxu0 0.0
        %5590 = vmatpush1.msra.mxu0 0.0
        %5591 = vmatprep.subr.mxu0 0.0
        %5592 = vmatpush1.msra.mxu0 0.0
        %5593 = vmatprep.subr.mxu0 0.0
        %5594 = vmatpush1.msra.mxu0 0.0
        %5595 = vmatprep.subr.mxu0 0.0
        %5596 = vmatpush1.msra.mxu0 0.0
        %5597 = vmatprep.subr.mxu0 0.0
        %5598 = vmatpush1.msra.mxu0 0.0
        %5599 = vmatprep.mubr.f32.mxu0 0.0
        %5600 = vmatmul.mubr.f32.gmra.mrb[0].mxu0 %v5533
        %v5601 = vpop.f32.mrb[0].mxu0
        %v5602 = vadd.f32 %v5531, %v5601
        %v5603 = vpop.f32.mrb[0].mxu0
        %5604 = vdwg.mxu0
        %v5605 = vadd.f32 %v2799, %v4614
        %v5606 = vld [vmem:[#allocation2 + $0x4b0] sm:$0x1]
        %v5607 = vld [vmem:[#allocation2 + $0x4b8] sm:$0x1]
        %v5608 = vsel %vm478, %v5605, 0.0
        %5609 = vadd.xlane.f32.xlu0 %v5608
        %v5610 = vpop.xlane.xlu0 %5609
        %v5611 = vmul.f32 %v5610, %v2582
        %v5612 = vsub.f32 %v5605, %v5611
        %v5613 = vmul.f32 %v5612, %v5612
        %v5614 = vsel %vm478, %v5613, 0.0
        %5615 = vadd.xlane.f32.xlu0 %v5614
        %v5616 = vpop.xlane.xlu0 %5615
        %v5617 = vmul.f32 %v5616, %v2582
        %v5618 = vadd.f32 %v5617, 1e-05
        %v5619 = vrsqrt.pop %v5618
        %v5620 = vmul.f32 %v5612, %v5619
        %v5621 = vlaneseq
        %v5622 = vshrl.u32 %v5621, 7
        %v5623 = vsub.s32 0, %v5622
        %v5624 = vrot.slane %v5606, %v5623
        %v5625 = vmul.f32 %v5620, %v5624
        %v5626 = vlaneseq
        %v5627 = vshrl.u32 %v5626, 7
        %v5628 = vsub.s32 0, %v5627
        %v5629 = vrot.slane %v5607, %v5628
        %v5630 = vadd.f32 %v5625, %v5629
        %v5631 = vld [vmem:[#allocation2 + $0x4c0] sm:$0xff]
        %v5632 = vld [vmem:[#allocation2 + $0x4c8] sm:$0xff]
        %v5633 = vld [vmem:[#allocation2 + $0x4d0] sm:$0xff]
        %v5634 = vld [vmem:[#allocation2 + $0x4d8] sm:$0xff]
        %v5635 = vld [vmem:[#allocation2 + $0x4e0] sm:$0x1]
        %v5636 = vlaneseq
        %v5637 = vshrl.u32 %v5636, 7
        %v5638 = vsub.s32 0, %v5637
        %v5639 = vrot.slane %v5635, %v5638
        %v5641 = vsel %vm478, %v5630, 0
        %5643 = vmatprep.subr.mxu0 0.0
        %5644 = vmatpush1.msra.mxu0 %v5631
        %5645 = vmatprep.subr.mxu0 0.0
        %5646 = vmatpush1.msra.mxu0 %v5632
        %5647 = vmatprep.subr.mxu0 0.0
        %5648 = vmatpush1.msra.mxu0 %v5633
        %5649 = vmatprep.subr.mxu0 0.0
        %5650 = vmatpush1.msra.mxu0 %v5634
        %5651 = vmatprep.subr.mxu0 0.0
        %5652 = vmatpush1.msra.mxu0 0.0
        %5653 = vmatprep.subr.mxu0 0.0
        %5654 = vmatpush1.msra.mxu0 0.0
        %5655 = vmatprep.subr.mxu0 0.0
        %5656 = vmatpush1.msra.mxu0 0.0
        %5657 = vmatprep.subr.mxu0 0.0
        %5658 = vmatpush1.msra.mxu0 0.0
        %5659 = vmatprep.subr.mxu0 0.0
        %5660 = vmatpush1.msra.mxu0 0.0
        %5661 = vmatprep.subr.mxu0 0.0
        %5662 = vmatpush1.msra.mxu0 0.0
        %5663 = vmatprep.subr.mxu0 0.0
        %5664 = vmatpush1.msra.mxu0 0.0
        %5665 = vmatprep.subr.mxu0 0.0
        %5666 = vmatpush1.msra.mxu0 0.0
        %5667 = vmatprep.subr.mxu0 0.0
        %5668 = vmatpush1.msra.mxu0 0.0
        %5669 = vmatprep.subr.mxu0 0.0
        %5670 = vmatpush1.msra.mxu0 0.0
        %5671 = vmatprep.subr.mxu0 0.0
        %5672 = vmatpush1.msra.mxu0 0.0
        %5673 = vmatprep.subr.mxu0 0.0
        %5674 = vmatpush1.msra.mxu0 0.0
        %5675 = vmatprep.subr.mxu0 0.0
        %5676 = vmatpush1.msra.mxu0 0.0
        %5677 = vmatprep.subr.mxu0 0.0
        %5678 = vmatpush1.msra.mxu0 0.0
        %5679 = vmatprep.subr.mxu0 0.0
        %5680 = vmatpush1.msra.mxu0 0.0
        %5681 = vmatprep.subr.mxu0 0.0
        %5682 = vmatpush1.msra.mxu0 0.0
        %5683 = vmatprep.subr.mxu0 0.0
        %5684 = vmatpush1.msra.mxu0 0.0
        %5685 = vmatprep.subr.mxu0 0.0
        %5686 = vmatpush1.msra.mxu0 0.0
        %5687 = vmatprep.subr.mxu0 0.0
        %5688 = vmatpush1.msra.mxu0 0.0
        %5689 = vmatprep.subr.mxu0 0.0
        %5690 = vmatpush1.msra.mxu0 0.0
        %5691 = vmatprep.subr.mxu0 0.0
        %5692 = vmatpush1.msra.mxu0 0.0
        %5693 = vmatprep.subr.mxu0 0.0
        %5694 = vmatpush1.msra.mxu0 0.0
        %5695 = vmatprep.subr.mxu0 0.0
        %5696 = vmatpush1.msra.mxu0 0.0
        %5697 = vmatprep.subr.mxu0 0.0
        %5698 = vmatpush1.msra.mxu0 0.0
        %5699 = vmatprep.subr.mxu0 0.0
        %5700 = vmatpush1.msra.mxu0 0.0
        %5701 = vmatprep.subr.mxu0 0.0
        %5702 = vmatpush1.msra.mxu0 0.0
        %5703 = vmatprep.subr.mxu0 0.0
        %5704 = vmatpush1.msra.mxu0 0.0
        %5705 = vmatprep.subr.mxu0 0.0
        %5706 = vmatpush1.msra.mxu0 0.0
        %5707 = vmatprep.mubr.f32.mxu0 0.0
        %5708 = vmatmul.mubr.f32.gmra.mrb[0].mxu0 %v5641
        %v5709 = vpop.f32.mrb[0].mxu0
        %v5710 = vadd.f32 %v5639, %v5709
        %v5711 = vpop.f32.mrb[0].mxu0
        %5712 = vdwg.mxu0
        %v5713 = vmax.f32 %v5710, 0.0
        %v5714 = vld [vmem:[#allocation2 + $0x4e8] sm:$0xff]
        %v5715 = vld [vmem:[#allocation2 + $0x4f0] sm:$0xff]
        %v5716 = vld [vmem:[#allocation2 + $0x4f8] sm:$0xff]
        %v5717 = vld [vmem:[#allocation2 + $0x500] sm:$0xff]
        %v5718 = vld [vmem:[#allocation2 + $0x508] sm:$0xff]
        %v5719 = vld [vmem:[#allocation2 + $0x510] sm:$0xff]
        %v5720 = vld [vmem:[#allocation2 + $0x518] sm:$0xff]
        %v5721 = vld [vmem:[#allocation2 + $0x520] sm:$0xff]
        %v5723 = vsel %vm2694, %v5713, 0
        %5725 = vmatprep.subr.mxu0 0.0
        %5726 = vmatpush1.msra.mxu0 %v5714
        %5727 = vmatprep.subr.mxu0 0.0
        %5728 = vmatpush1.msra.mxu0 %v5715
        %5729 = vmatprep.subr.mxu0 0.0
        %5730 = vmatpush1.msra.mxu0 %v5716
        %5731 = vmatprep.subr.mxu0 0.0
        %5732 = vmatpush1.msra.mxu0 %v5717
        %5733 = vmatprep.subr.mxu0 0.0
        %5734 = vmatpush1.msra.mxu0 %v5718
        %5735 = vmatprep.subr.mxu0 0.0
        %5736 = vmatpush1.msra.mxu0 %v5719
        %5737 = vmatprep.subr.mxu0 0.0
        %5738 = vmatpush1.msra.mxu0 %v5720
        %5739 = vmatprep.subr.mxu0 0.0
        %5740 = vmatpush1.msra.mxu0 %v5721
        %5741 = vmatprep.subr.mxu0 0.0
        %5742 = vmatpush1.msra.mxu0 0.0
        %5743 = vmatprep.subr.mxu0 0.0
        %5744 = vmatpush1.msra.mxu0 0.0
        %5745 = vmatprep.subr.mxu0 0.0
        %5746 = vmatpush1.msra.mxu0 0.0
        %5747 = vmatprep.subr.mxu0 0.0
        %5748 = vmatpush1.msra.mxu0 0.0
        %5749 = vmatprep.subr.mxu0 0.0
        %5750 = vmatpush1.msra.mxu0 0.0
        %5751 = vmatprep.subr.mxu0 0.0
        %5752 = vmatpush1.msra.mxu0 0.0
        %5753 = vmatprep.subr.mxu0 0.0
        %5754 = vmatpush1.msra.mxu0 0.0
        %5755 = vmatprep.subr.mxu0 0.0
        %5756 = vmatpush1.msra.mxu0 0.0
        %5757 = vmatprep.subr.mxu0 0.0
        %5758 = vmatpush1.msra.mxu0 0.0
        %5759 = vmatprep.subr.mxu0 0.0
        %5760 = vmatpush1.msra.mxu0 0.0
        %5761 = vmatprep.subr.mxu0 0.0
        %5762 = vmatpush1.msra.mxu0 0.0
        %5763 = vmatprep.subr.mxu0 0.0
        %5764 = vmatpush1.msra.mxu0 0.0
        %5765 = vmatprep.subr.mxu0 0.0
        %5766 = vmatpush1.msra.mxu0 0.0
        %5767 = vmatprep.subr.mxu0 0.0
        %5768 = vmatpush1.msra.mxu0 0.0
        %5769 = vmatprep.subr.mxu0 0.0
        %5770 = vmatpush1.msra.mxu0 0.0
        %5771 = vmatprep.subr.mxu0 0.0
        %5772 = vmatpush1.msra.mxu0 0.0
        %5773 = vmatprep.subr.mxu0 0.0
        %5774 = vmatpush1.msra.mxu0 0.0
        %5775 = vmatprep.subr.mxu0 0.0
        %5776 = vmatpush1.msra.mxu0 0.0
        %5777 = vmatprep.subr.mxu0 0.0
        %5778 = vmatpush1.msra.mxu0 0.0
        %5779 = vmatprep.subr.mxu0 0.0
        %5780 = vmatpush1.msra.mxu0 0.0
        %5781 = vmatprep.subr.mxu0 0.0
        %5782 = vmatpush1.msra.mxu0 0.0
        %5783 = vmatprep.subr.mxu0 0.0
        %5784 = vmatpush1.msra.mxu0 0.0
        %5785 = vmatprep.subr.mxu0 0.0
        %5786 = vmatpush1.msra.mxu0 0.0
        %5787 = vmatprep.subr.mxu0 0.0
        %5788 = vmatpush1.msra.mxu0 0.0
        %5789 = vmatprep.mubr.f32.mxu0 0.0
        %5790 = vmatmul.mubr.f32.gmra.mrb[0].mxu0 %v5723
        %v5791 = vpop.f32.mrb[0].mxu0
        %v5792 = vadd.f32 0.0, %v5791
        %v5793 = vpop.f32.mrb[0].mxu0
        %5794 = vdwg.mxu0
        %v5795 = vadd.f32 %v5630, %v5792
        %v5796 = vld [vmem:[#allocation2 + $0x528] sm:$0x1]
        %v5797 = vlaneseq
        %v5798 = vshrl.u32 %v5797, 7
        %v5799 = vsub.s32 0, %v5798
        %v5800 = vrot.slane %v5796, %v5799
        %v5801 = vadd.f32 %v5795, %v5800
        %v5802 = vld [vmem:[#allocation2 + $0x530] sm:$0x1]
        %v5803 = vld [vmem:[#allocation2 + $0x538] sm:$0x1]
        %v5804 = vsel %vm478, %v5801, 0.0
        %5805 = vadd.xlane.f32.xlu0 %v5804
        %v5806 = vpop.xlane.xlu0 %5805
        %v5807 = vmul.f32 %v5806, %v2582
        %v5808 = vsub.f32 %v5801, %v5807
        %v5809 = vmul.f32 %v5808, %v5808
        %v5810 = vsel %vm478, %v5809, 0.0
        %5811 = vadd.xlane.f32.xlu0 %v5810
        %v5812 = vpop.xlane.xlu0 %5811
        %v5813 = vmul.f32 %v5812, %v2582
        %v5814 = vadd.f32 %v5813, 1e-05
        %v5815 = vrsqrt.pop %v5814
        %v5816 = vmul.f32 %v5808, %v5815
        %v5817 = vlaneseq
        %v5818 = vshrl.u32 %v5817, 7
        %v5819 = vsub.s32 0, %v5818
        %v5820 = vrot.slane %v5802, %v5819
        %v5821 = vmul.f32 %v5816, %v5820
        %v5822 = vlaneseq
        %v5823 = vshrl.u32 %v5822, 7
        %v5824 = vsub.s32 0, %v5823
        %v5825 = vrot.slane %v5803, %v5824
        %v5826 = vadd.f32 %v5821, %v5825
        %v5827 = vadd.f32 %v3359, %v4255
        %v5828 = vadd.f32 %v3360, %v4256
        %v5829 = vadd.f32 %v3361, %v4257
        %v5830 = vadd.f32 %v3362, %v4258
        %v5831 = vadd.f32 %v3363, %v4259
        %v5832 = vadd.f32 %v3364, %v4260
        %v5833 = vadd.f32 %v3365, %v4261
        %v5834 = vadd.f32 %v3366, %v4262
        %v5835 = vld [vmem:[#allocation2 + $0x540] sm:$0x1]
        %v5836 = vld [vmem:[#allocation2 + $0x548] sm:$0x1]
        %v5837 = vsel %vm564, %v5827, 0.0
        %5838 = vadd.xlane.f32.xlu0 %v5837
        %v5839 = vpop.xlane.xlu0 %5838
        %v5840 = vsel %vm564, %v5828, 0.0
        %5841 = vadd.xlane.f32.xlu0 %v5840
        %v5842 = vpop.xlane.xlu0 %5841
        %v5843 = vsel %vm564, %v5829, 0.0
        %5844 = vadd.xlane.f32.xlu0 %v5843
        %v5845 = vpop.xlane.xlu0 %5844
        %v5846 = vsel %vm564, %v5830, 0.0
        %5847 = vadd.xlane.f32.xlu0 %v5846
        %v5848 = vpop.xlane.xlu0 %5847
        %v5849 = vsel %vm564, %v5831, 0.0
        %5850 = vadd.xlane.f32.xlu0 %v5849
        %v5851 = vpop.xlane.xlu0 %5850
        %v5852 = vsel %vm564, %v5832, 0.0
        %5853 = vadd.xlane.f32.xlu0 %v5852
        %v5854 = vpop.xlane.xlu0 %5853
        %v5855 = vsel %vm564, %v5833, 0.0
        %5856 = vadd.xlane.f32.xlu0 %v5855
        %v5857 = vpop.xlane.xlu0 %5856
        %v5858 = vsel %vm564, %v5834, 0.0
        %5859 = vadd.xlane.f32.xlu0 %v5858
        %v5860 = vpop.xlane.xlu0 %5859
        %v5861 = vmul.f32 %v5839, %v2834
        %v5862 = vmul.f32 %v5842, %v2834
        %v5863 = vmul.f32 %v5845, %v2834
        %v5864 = vmul.f32 %v5848, %v2834
        %v5865 = vmul.f32 %v5851, %v2834
        %v5866 = vmul.f32 %v5854, %v2834
        %v5867 = vmul.f32 %v5857, %v2834
        %v5868 = vmul.f32 %v5860, %v2834
        %v5869 = vsub.f32 %v5827, %v5861
        %v5870 = vsub.f32 %v5828, %v5862
        %v5871 = vsub.f32 %v5829, %v5863
        %v5872 = vsub.f32 %v5830, %v5864
        %v5873 = vsub.f32 %v5831, %v5865
        %v5874 = vsub.f32 %v5832, %v5866
        %v5875 = vsub.f32 %v5833, %v5867
        %v5876 = vsub.f32 %v5834, %v5868
        %v5877 = vmul.f32 %v5869, %v5869
        %v5878 = vmul.f32 %v5870, %v5870
        %v5879 = vmul.f32 %v5871, %v5871
        %v5880 = vmul.f32 %v5872, %v5872
        %v5881 = vmul.f32 %v5873, %v5873
        %v5882 = vmul.f32 %v5874, %v5874
        %v5883 = vmul.f32 %v5875, %v5875
        %v5884 = vmul.f32 %v5876, %v5876
        %v5885 = vsel %vm564, %v5877, 0.0
        %5886 = vadd.xlane.f32.xlu0 %v5885
        %v5887 = vpop.xlane.xlu0 %5886
        %v5888 = vsel %vm564, %v5878, 0.0
        %5889 = vadd.xlane.f32.xlu0 %v5888
        %v5890 = vpop.xlane.xlu0 %5889
        %v5891 = vsel %vm564, %v5879, 0.0
        %5892 = vadd.xlane.f32.xlu0 %v5891
        %v5893 = vpop.xlane.xlu0 %5892
        %v5894 = vsel %vm564, %v5880, 0.0
        %5895 = vadd.xlane.f32.xlu0 %v5894
        %v5896 = vpop.xlane.xlu0 %5895
        %v5897 = vsel %vm564, %v5881, 0.0
        %5898 = vadd.xlane.f32.xlu0 %v5897
        %v5899 = vpop.xlane.xlu0 %5898
        %v5900 = vsel %vm564, %v5882, 0.0
        %5901 = vadd.xlane.f32.xlu0 %v5900
        %v5902 = vpop.xlane.xlu0 %5901
        %v5903 = vsel %vm564, %v5883, 0.0
        %5904 = vadd.xlane.f32.xlu0 %v5903
        %v5905 = vpop.xlane.xlu0 %5904
        %v5906 = vsel %vm564, %v5884, 0.0
        %5907 = vadd.xlane.f32.xlu0 %v5906
        %v5908 = vpop.xlane.xlu0 %5907
        %v5909 = vmul.f32 %v5887, %v2834
        %v5910 = vmul.f32 %v5890, %v2834
        %v5911 = vmul.f32 %v5893, %v2834
        %v5912 = vmul.f32 %v5896, %v2834
        %v5913 = vmul.f32 %v5899, %v2834
        %v5914 = vmul.f32 %v5902, %v2834
        %v5915 = vmul.f32 %v5905, %v2834
        %v5916 = vmul.f32 %v5908, %v2834
        %v5917 = vadd.f32 %v5909, 1e-05
        %v5918 = vadd.f32 %v5910, 1e-05
        %v5919 = vadd.f32 %v5911, 1e-05
        %v5920 = vadd.f32 %v5912, 1e-05
        %v5921 = vadd.f32 %v5913, 1e-05
        %v5922 = vadd.f32 %v5914, 1e-05
        %v5923 = vadd.f32 %v5915, 1e-05
        %v5924 = vadd.f32 %v5916, 1e-05
        %v5925 = vrsqrt.pop %v5917
        %v5926 = vrsqrt.pop %v5918
        %v5927 = vrsqrt.pop %v5919
        %v5928 = vrsqrt.pop %v5920
        %v5929 = vrsqrt.pop %v5921
        %v5930 = vrsqrt.pop %v5922
        %v5931 = vrsqrt.pop %v5923
        %v5932 = vrsqrt.pop %v5924
        %v5933 = vmul.f32 %v5869, %v5925
        %v5934 = vmul.f32 %v5870, %v5926
        %v5935 = vmul.f32 %v5871, %v5927
        %v5936 = vmul.f32 %v5872, %v5928
        %v5937 = vmul.f32 %v5873, %v5929
        %v5938 = vmul.f32 %v5874, %v5930
        %v5939 = vmul.f32 %v5875, %v5931
        %v5940 = vmul.f32 %v5876, %v5932
        %v5941 = vlaneseq
        %v5942 = vshrl.u32 %v5941, 7
        %v5943 = vsub.s32 0, %v5942
        %v5944 = vrot.slane %v5835, %v5943
        %v5945 = vmul.f32 %v5933, %v5944
        %v5946 = vmul.f32 %v5934, %v5944
        %v5947 = vmul.f32 %v5935, %v5944
        %v5948 = vmul.f32 %v5936, %v5944
        %v5949 = vmul.f32 %v5937, %v5944
        %v5950 = vmul.f32 %v5938, %v5944
        %v5951 = vmul.f32 %v5939, %v5944
        %v5952 = vmul.f32 %v5940, %v5944
        %v5953 = vlaneseq
        %v5954 = vshrl.u32 %v5953, 7
        %v5955 = vsub.s32 0, %v5954
        %v5956 = vrot.slane %v5836, %v5955
        %v5957 = vadd.f32 %v5945, %v5956
        %v5958 = vadd.f32 %v5946, %v5956
        %v5959 = vadd.f32 %v5947, %v5956
        %v5960 = vadd.f32 %v5948, %v5956
        %v5961 = vadd.f32 %v5949, %v5956
        %v5962 = vadd.f32 %v5950, %v5956
        %v5963 = vadd.f32 %v5951, %v5956
        %v5964 = vadd.f32 %v5952, %v5956
        %v5965 = vld [vmem:[#allocation2 + $0x550] sm:$0xff]
        %v5966 = vld [vmem:[#allocation2 + $0x558] sm:$0xff]
        %v5967 = vld [vmem:[#allocation2 + $0x560] sm:$0x1]
        %v5968 = vlaneseq
        %v5969 = vshrl.u32 %v5968, 7
        %v5970 = vsub.s32 0, %v5969
        %v5971 = vrot.slane %v5967, %v5970
        %v5973 = vsel %vm564, %v5957, 0
        %v5976 = vsel %vm564, %v5958, 0
        %v5979 = vsel %vm564, %v5959, 0
        %v5982 = vsel %vm564, %v5960, 0
        %v5985 = vsel %vm564, %v5961, 0
        %v5988 = vsel %vm564, %v5962, 0
        %v5991 = vsel %vm564, %v5963, 0
        %v5994 = vsel %vm564, %v5964, 0
        %5996 = vmatprep.subr.mxu0 0.0
        %5997 = vmatpush1.msra.mxu0 %v5965
        %5998 = vmatprep.subr.mxu0 0.0
        %5999 = vmatpush1.msra.mxu0 %v5966
        %6000 = vmatprep.subr.mxu0 0.0
        %6001 = vmatpush1.msra.mxu0 0.0
        %6002 = vmatprep.subr.mxu0 0.0
        %6003 = vmatpush1.msra.mxu0 0.0
        %6004 = vmatprep.subr.mxu0 0.0
        %6005 = vmatpush1.msra.mxu0 0.0
        %6006 = vmatprep.subr.mxu0 0.0
        %6007 = vmatpush1.msra.mxu0 0.0
        %6008 = vmatprep.subr.mxu0 0.0
        %6009 = vmatpush1.msra.mxu0 0.0
        %6010 = vmatprep.subr.mxu0 0.0
        %6011 = vmatpush1.msra.mxu0 0.0
        %6012 = vmatprep.subr.mxu0 0.0
        %6013 = vmatpush1.msra.mxu0 0.0
        %6014 = vmatprep.subr.mxu0 0.0
        %6015 = vmatpush1.msra.mxu0 0.0
        %6016 = vmatprep.subr.mxu0 0.0
        %6017 = vmatpush1.msra.mxu0 0.0
        %6018 = vmatprep.subr.mxu0 0.0
        %6019 = vmatpush1.msra.mxu0 0.0
        %6020 = vmatprep.subr.mxu0 0.0
        %6021 = vmatpush1.msra.mxu0 0.0
        %6022 = vmatprep.subr.mxu0 0.0
        %6023 = vmatpush1.msra.mxu0 0.0
        %6024 = vmatprep.subr.mxu0 0.0
        %6025 = vmatpush1.msra.mxu0 0.0
        %6026 = vmatprep.subr.mxu0 0.0
        %6027 = vmatpush1.msra.mxu0 0.0
        %6028 = vmatprep.subr.mxu0 0.0
        %6029 = vmatpush1.msra.mxu0 0.0
        %6030 = vmatprep.subr.mxu0 0.0
        %6031 = vmatpush1.msra.mxu0 0.0
        %6032 = vmatprep.subr.mxu0 0.0
        %6033 = vmatpush1.msra.mxu0 0.0
        %6034 = vmatprep.subr.mxu0 0.0
        %6035 = vmatpush1.msra.mxu0 0.0
        %6036 = vmatprep.subr.mxu0 0.0
        %6037 = vmatpush1.msra.mxu0 0.0
        %6038 = vmatprep.subr.mxu0 0.0
        %6039 = vmatpush1.msra.mxu0 0.0
        %6040 = vmatprep.subr.mxu0 0.0
        %6041 = vmatpush1.msra.mxu0 0.0
        %6042 = vmatprep.subr.mxu0 0.0
        %6043 = vmatpush1.msra.mxu0 0.0
        %6044 = vmatprep.subr.mxu0 0.0
        %6045 = vmatpush1.msra.mxu0 0.0
        %6046 = vmatprep.subr.mxu0 0.0
        %6047 = vmatpush1.msra.mxu0 0.0
        %6048 = vmatprep.subr.mxu0 0.0
        %6049 = vmatpush1.msra.mxu0 0.0
        %6050 = vmatprep.subr.mxu0 0.0
        %6051 = vmatpush1.msra.mxu0 0.0
        %6052 = vmatprep.subr.mxu0 0.0
        %6053 = vmatpush1.msra.mxu0 0.0
        %6054 = vmatprep.subr.mxu0 0.0
        %6055 = vmatpush1.msra.mxu0 0.0
        %6056 = vmatprep.subr.mxu0 0.0
        %6057 = vmatpush1.msra.mxu0 0.0
        %6058 = vmatprep.subr.mxu0 0.0
        %6059 = vmatpush1.msra.mxu0 0.0
        %6060 = vmatprep.mubr.f32.mxu0 0.0
        %6061 = vmatmul.mubr.f32.gmra.mrb[0].mxu0 %v5973
        %v6062 = vpop.f32.mrb[0].mxu0
        %v6063 = vadd.f32 %v5971, %v6062
        %v6064 = vpop.f32.mrb[0].mxu0
        %6065 = vmatprep.mubr.f32.mxu0 0.0
        %6066 = vmatmul.mubr.f32.gmra.mrb[0].mxu0 %v5976
        %v6067 = vpop.f32.mrb[0].mxu0
        %v6068 = vadd.f32 %v5971, %v6067
        %v6069 = vpop.f32.mrb[0].mxu0
        %6070 = vmatprep.mubr.f32.mxu0 0.0
        %6071 = vmatmul.mubr.f32.gmra.mrb[0].mxu0 %v5979
        %v6072 = vpop.f32.mrb[0].mxu0
        %v6073 = vadd.f32 %v5971, %v6072
        %v6074 = vpop.f32.mrb[0].mxu0
        %6075 = vmatprep.mubr.f32.mxu0 0.0
        %6076 = vmatmul.mubr.f32.gmra.mrb[0].mxu0 %v5982
        %v6077 = vpop.f32.mrb[0].mxu0
        %v6078 = vadd.f32 %v5971, %v6077
        %v6079 = vpop.f32.mrb[0].mxu0
        %6080 = vmatprep.mubr.f32.mxu0 0.0
        %6081 = vmatmul.mubr.f32.gmra.mrb[0].mxu0 %v5985
        %v6082 = vpop.f32.mrb[0].mxu0
        %v6083 = vadd.f32 %v5971, %v6082
        %v6084 = vpop.f32.mrb[0].mxu0
        %6085 = vmatprep.mubr.f32.mxu0 0.0
        %6086 = vmatmul.mubr.f32.gmra.mrb[0].mxu0 %v5988
        %v6087 = vpop.f32.mrb[0].mxu0
        %v6088 = vadd.f32 %v5971, %v6087
        %v6089 = vpop.f32.mrb[0].mxu0
        %6090 = vmatprep.mubr.f32.mxu0 0.0
        %6091 = vmatmul.mubr.f32.gmra.mrb[0].mxu0 %v5991
        %v6092 = vpop.f32.mrb[0].mxu0
        %v6093 = vadd.f32 %v5971, %v6092
        %v6094 = vpop.f32.mrb[0].mxu0
        %6095 = vmatprep.mubr.f32.mxu0 0.0
        %6096 = vmatmul.mubr.f32.gmra.mrb[0].mxu0 %v5994
        %v6097 = vpop.f32.mrb[0].mxu0
        %v6098 = vadd.f32 %v5971, %v6097
        %v6099 = vpop.f32.mrb[0].mxu0
        %6100 = vdwg.mxu0
        %v6101 = vmax.f32 %v6063, 0.0
        %v6102 = vmax.f32 %v6068, 0.0
        %v6103 = vmax.f32 %v6073, 0.0
        %v6104 = vmax.f32 %v6078, 0.0
        %v6105 = vmax.f32 %v6083, 0.0
        %v6106 = vmax.f32 %v6088, 0.0
        %v6107 = vmax.f32 %v6093, 0.0
        %v6108 = vmax.f32 %v6098, 0.0
        %v6109 = vld [vmem:[#allocation2 + $0x568] sm:$0xff]
        %v6110 = vld [vmem:[#allocation2 + $0x570] sm:$0xff]
        %v6111 = vld [vmem:[#allocation2 + $0x578] sm:$0xff]
        %v6112 = vld [vmem:[#allocation2 + $0x580] sm:$0xff]
        %v6114 = vsel %vm478, %v6101, 0
        %v6117 = vsel %vm478, %v6102, 0
        %v6120 = vsel %vm478, %v6103, 0
        %v6123 = vsel %vm478, %v6104, 0
        %v6126 = vsel %vm478, %v6105, 0
        %v6129 = vsel %vm478, %v6106, 0
        %v6132 = vsel %vm478, %v6107, 0
        %v6135 = vsel %vm478, %v6108, 0
        %6137 = vmatprep.subr.mxu0 0.0
        %6138 = vmatpush1.msra.mxu0 %v6109
        %6139 = vmatprep.subr.mxu0 0.0
        %6140 = vmatpush1.msra.mxu0 %v6110
        %6141 = vmatprep.subr.mxu0 0.0
        %6142 = vmatpush1.msra.mxu0 %v6111
        %6143 = vmatprep.subr.mxu0 0.0
        %6144 = vmatpush1.msra.mxu0 %v6112
        %6145 = vmatprep.subr.mxu0 0.0
        %6146 = vmatpush1.msra.mxu0 0.0
        %6147 = vmatprep.subr.mxu0 0.0
        %6148 = vmatpush1.msra.mxu0 0.0
        %6149 = vmatprep.subr.mxu0 0.0
        %6150 = vmatpush1.msra.mxu0 0.0
        %6151 = vmatprep.subr.mxu0 0.0
        %6152 = vmatpush1.msra.mxu0 0.0
        %6153 = vmatprep.subr.mxu0 0.0
        %6154 = vmatpush1.msra.mxu0 0.0
        %6155 = vmatprep.subr.mxu0 0.0
        %6156 = vmatpush1.msra.mxu0 0.0
        %6157 = vmatprep.subr.mxu0 0.0
        %6158 = vmatpush1.msra.mxu0 0.0
        %6159 = vmatprep.subr.mxu0 0.0
        %6160 = vmatpush1.msra.mxu0 0.0
        %6161 = vmatprep.subr.mxu0 0.0
        %6162 = vmatpush1.msra.mxu0 0.0
        %6163 = vmatprep.subr.mxu0 0.0
        %6164 = vmatpush1.msra.mxu0 0.0
        %6165 = vmatprep.subr.mxu0 0.0
        %6166 = vmatpush1.msra.mxu0 0.0
        %6167 = vmatprep.subr.mxu0 0.0
        %6168 = vmatpush1.msra.mxu0 0.0
        %6169 = vmatprep.subr.mxu0 0.0
        %6170 = vmatpush1.msra.mxu0 0.0
        %6171 = vmatprep.subr.mxu0 0.0
        %6172 = vmatpush1.msra.mxu0 0.0
        %6173 = vmatprep.subr.mxu0 0.0
        %6174 = vmatpush1.msra.mxu0 0.0
        %6175 = vmatprep.subr.mxu0 0.0
        %6176 = vmatpush1.msra.mxu0 0.0
        %6177 = vmatprep.subr.mxu0 0.0
        %6178 = vmatpush1.msra.mxu0 0.0
        %6179 = vmatprep.subr.mxu0 0.0
        %6180 = vmatpush1.msra.mxu0 0.0
        %6181 = vmatprep.subr.mxu0 0.0
        %6182 = vmatpush1.msra.mxu0 0.0
        %6183 = vmatprep.subr.mxu0 0.0
        %6184 = vmatpush1.msra.mxu0 0.0
        %6185 = vmatprep.subr.mxu0 0.0
        %6186 = vmatpush1.msra.mxu0 0.0
        %6187 = vmatprep.subr.mxu0 0.0
        %6188 = vmatpush1.msra.mxu0 0.0
        %6189 = vmatprep.subr.mxu0 0.0
        %6190 = vmatpush1.msra.mxu0 0.0
        %6191 = vmatprep.subr.mxu0 0.0
        %6192 = vmatpush1.msra.mxu0 0.0
        %6193 = vmatprep.subr.mxu0 0.0
        %6194 = vmatpush1.msra.mxu0 0.0
        %6195 = vmatprep.subr.mxu0 0.0
        %6196 = vmatpush1.msra.mxu0 0.0
        %6197 = vmatprep.subr.mxu0 0.0
        %6198 = vmatpush1.msra.mxu0 0.0
        %6199 = vmatprep.subr.mxu0 0.0
        %6200 = vmatpush1.msra.mxu0 0.0
        %6201 = vmatprep.mubr.f32.mxu0 0.0
        %6202 = vmatmul.mubr.f32.gmra.mrb[0].mxu0 %v6114
        %v6203 = vpop.f32.mrb[0].mxu0
        %v6204 = vadd.f32 0.0, %v6203
        %v6205 = vpop.f32.mrb[0].mxu0
        %6206 = vmatprep.mubr.f32.mxu0 0.0
        %6207 = vmatmul.mubr.f32.gmra.mrb[0].mxu0 %v6117
        %v6208 = vpop.f32.mrb[0].mxu0
        %v6209 = vadd.f32 0.0, %v6208
        %v6210 = vpop.f32.mrb[0].mxu0
        %6211 = vmatprep.mubr.f32.mxu0 0.0
        %6212 = vmatmul.mubr.f32.gmra.mrb[0].mxu0 %v6120
        %v6213 = vpop.f32.mrb[0].mxu0
        %v6214 = vadd.f32 0.0, %v6213
        %v6215 = vpop.f32.mrb[0].mxu0
        %6216 = vmatprep.mubr.f32.mxu0 0.0
        %6217 = vmatmul.mubr.f32.gmra.mrb[0].mxu0 %v6123
        %v6218 = vpop.f32.mrb[0].mxu0
        %v6219 = vadd.f32 0.0, %v6218
        %v6220 = vpop.f32.mrb[0].mxu0
        %6221 = vmatprep.mubr.f32.mxu0 0.0
        %6222 = vmatmul.mubr.f32.gmra.mrb[0].mxu0 %v6126
        %v6223 = vpop.f32.mrb[0].mxu0
        %v6224 = vadd.f32 0.0, %v6223
        %v6225 = vpop.f32.mrb[0].mxu0
        %6226 = vmatprep.mubr.f32.mxu0 0.0
        %6227 = vmatmul.mubr.f32.gmra.mrb[0].mxu0 %v6129
        %v6228 = vpop.f32.mrb[0].mxu0
        %v6229 = vadd.f32 0.0, %v6228
        %v6230 = vpop.f32.mrb[0].mxu0
        %6231 = vmatprep.mubr.f32.mxu0 0.0
        %6232 = vmatmul.mubr.f32.gmra.mrb[0].mxu0 %v6132
        %v6233 = vpop.f32.mrb[0].mxu0
        %v6234 = vadd.f32 0.0, %v6233
        %v6235 = vpop.f32.mrb[0].mxu0
        %6236 = vmatprep.mubr.f32.mxu0 0.0
        %6237 = vmatmul.mubr.f32.gmra.mrb[0].mxu0 %v6135
        %v6238 = vpop.f32.mrb[0].mxu0
        %v6239 = vadd.f32 0.0, %v6238
        %v6240 = vpop.f32.mrb[0].mxu0
        %6241 = vdwg.mxu0
        %v6242 = vadd.f32 %v5957, %v6204
        %v6243 = vadd.f32 %v5958, %v6209
        %v6244 = vadd.f32 %v5959, %v6214
        %v6245 = vadd.f32 %v5960, %v6219
        %v6246 = vadd.f32 %v5961, %v6224
        %v6247 = vadd.f32 %v5962, %v6229
        %v6248 = vadd.f32 %v5963, %v6234
        %v6249 = vadd.f32 %v5964, %v6239
        %v6250 = vld [vmem:[#allocation2 + $0x588] sm:$0x1]
        %v6251 = vlaneseq
        %v6252 = vshrl.u32 %v6251, 7
        %v6253 = vsub.s32 0, %v6252
        %v6254 = vrot.slane %v6250, %v6253
        %v6255 = vadd.f32 %v6242, %v6254
        %v6256 = vadd.f32 %v6243, %v6254
        %v6257 = vadd.f32 %v6244, %v6254
        %v6258 = vadd.f32 %v6245, %v6254
        %v6259 = vadd.f32 %v6246, %v6254
        %v6260 = vadd.f32 %v6247, %v6254
        %v6261 = vadd.f32 %v6248, %v6254
        %v6262 = vadd.f32 %v6249, %v6254
        %v6263 = vld [vmem:[#allocation2 + $0x590] sm:$0x1]
        %v6264 = vld [vmem:[#allocation2 + $0x598] sm:$0x1]
        %v6265 = vsel %vm564, %v6255, 0.0
        %6266 = vadd.xlane.f32.xlu0 %v6265
        %v6267 = vpop.xlane.xlu0 %6266
        %v6268 = vsel %vm564, %v6256, 0.0
        %6269 = vadd.xlane.f32.xlu0 %v6268
        %v6270 = vpop.xlane.xlu0 %6269
        %v6271 = vsel %vm564, %v6257, 0.0
        %6272 = vadd.xlane.f32.xlu0 %v6271
        %v6273 = vpop.xlane.xlu0 %6272
        %v6274 = vsel %vm564, %v6258, 0.0
        %6275 = vadd.xlane.f32.xlu0 %v6274
        %v6276 = vpop.xlane.xlu0 %6275
        %v6277 = vsel %vm564, %v6259, 0.0
        %6278 = vadd.xlane.f32.xlu0 %v6277
        %v6279 = vpop.xlane.xlu0 %6278
        %v6280 = vsel %vm564, %v6260, 0.0
        %6281 = vadd.xlane.f32.xlu0 %v6280
        %v6282 = vpop.xlane.xlu0 %6281
        %v6283 = vsel %vm564, %v6261, 0.0
        %6284 = vadd.xlane.f32.xlu0 %v6283
        %v6285 = vpop.xlane.xlu0 %6284
        %v6286 = vsel %vm564, %v6262, 0.0
        %6287 = vadd.xlane.f32.xlu0 %v6286
        %v6288 = vpop.xlane.xlu0 %6287
        %v6289 = vmul.f32 %v6267, %v2834
        %v6290 = vmul.f32 %v6270, %v2834
        %v6291 = vmul.f32 %v6273, %v2834
        %v6292 = vmul.f32 %v6276, %v2834
        %v6293 = vmul.f32 %v6279, %v2834
        %v6294 = vmul.f32 %v6282, %v2834
        %v6295 = vmul.f32 %v6285, %v2834
        %v6296 = vmul.f32 %v6288, %v2834
        %v6297 = vsub.f32 %v6255, %v6289
        %v6298 = vsub.f32 %v6256, %v6290
        %v6299 = vsub.f32 %v6257, %v6291
        %v6300 = vsub.f32 %v6258, %v6292
        %v6301 = vsub.f32 %v6259, %v6293
        %v6302 = vsub.f32 %v6260, %v6294
        %v6303 = vsub.f32 %v6261, %v6295
        %v6304 = vsub.f32 %v6262, %v6296
        %v6305 = vmul.f32 %v6297, %v6297
        %v6306 = vmul.f32 %v6298, %v6298
        %v6307 = vmul.f32 %v6299, %v6299
        %v6308 = vmul.f32 %v6300, %v6300
        %v6309 = vmul.f32 %v6301, %v6301
        %v6310 = vmul.f32 %v6302, %v6302
        %v6311 = vmul.f32 %v6303, %v6303
        %v6312 = vmul.f32 %v6304, %v6304
        %v6313 = vsel %vm564, %v6305, 0.0
        %6314 = vadd.xlane.f32.xlu0 %v6313
        %v6315 = vpop.xlane.xlu0 %6314
        %v6316 = vsel %vm564, %v6306, 0.0
        %6317 = vadd.xlane.f32.xlu0 %v6316
        %v6318 = vpop.xlane.xlu0 %6317
        %v6319 = vsel %vm564, %v6307, 0.0
        %6320 = vadd.xlane.f32.xlu0 %v6319
        %v6321 = vpop.xlane.xlu0 %6320
        %v6322 = vsel %vm564, %v6308, 0.0
        %6323 = vadd.xlane.f32.xlu0 %v6322
        %v6324 = vpop.xlane.xlu0 %6323
        %v6325 = vsel %vm564, %v6309, 0.0
        %6326 = vadd.xlane.f32.xlu0 %v6325
        %v6327 = vpop.xlane.xlu0 %6326
        %v6328 = vsel %vm564, %v6310, 0.0
        %6329 = vadd.xlane.f32.xlu0 %v6328
        %v6330 = vpop.xlane.xlu0 %6329
        %v6331 = vsel %vm564, %v6311, 0.0
        %6332 = vadd.xlane.f32.xlu0 %v6331
        %v6333 = vpop.xlane.xlu0 %6332
        %v6334 = vsel %vm564, %v6312, 0.0
        %6335 = vadd.xlane.f32.xlu0 %v6334
        %v6336 = vpop.xlane.xlu0 %6335
        %v6337 = vmul.f32 %v6315, %v2834
        %v6338 = vmul.f32 %v6318, %v2834
        %v6339 = vmul.f32 %v6321, %v2834
        %v6340 = vmul.f32 %v6324, %v2834
        %v6341 = vmul.f32 %v6327, %v2834
        %v6342 = vmul.f32 %v6330, %v2834
        %v6343 = vmul.f32 %v6333, %v2834
        %v6344 = vmul.f32 %v6336, %v2834
        %v6345 = vadd.f32 %v6337, 1e-05
        %v6346 = vadd.f32 %v6338, 1e-05
        %v6347 = vadd.f32 %v6339, 1e-05
        %v6348 = vadd.f32 %v6340, 1e-05
        %v6349 = vadd.f32 %v6341, 1e-05
        %v6350 = vadd.f32 %v6342, 1e-05
        %v6351 = vadd.f32 %v6343, 1e-05
        %v6352 = vadd.f32 %v6344, 1e-05
        %v6353 = vrsqrt.pop %v6345
        %v6354 = vrsqrt.pop %v6346
        %v6355 = vrsqrt.pop %v6347
        %v6356 = vrsqrt.pop %v6348
        %v6357 = vrsqrt.pop %v6349
        %v6358 = vrsqrt.pop %v6350
        %v6359 = vrsqrt.pop %v6351
        %v6360 = vrsqrt.pop %v6352
        %v6361 = vmul.f32 %v6297, %v6353
        %v6362 = vmul.f32 %v6298, %v6354
        %v6363 = vmul.f32 %v6299, %v6355
        %v6364 = vmul.f32 %v6300, %v6356
        %v6365 = vmul.f32 %v6301, %v6357
        %v6366 = vmul.f32 %v6302, %v6358
        %v6367 = vmul.f32 %v6303, %v6359
        %v6368 = vmul.f32 %v6304, %v6360
        %v6369 = vlaneseq
        %v6370 = vshrl.u32 %v6369, 7
        %v6371 = vsub.s32 0, %v6370
        %v6372 = vrot.slane %v6263, %v6371
        %v6373 = vmul.f32 %v6361, %v6372
        %v6374 = vmul.f32 %v6362, %v6372
        %v6375 = vmul.f32 %v6363, %v6372
        %v6376 = vmul.f32 %v6364, %v6372
        %v6377 = vmul.f32 %v6365, %v6372
        %v6378 = vmul.f32 %v6366, %v6372
        %v6379 = vmul.f32 %v6367, %v6372
        %v6380 = vmul.f32 %v6368, %v6372
        %v6381 = vlaneseq
        %v6382 = vshrl.u32 %v6381, 7
        %v6383 = vsub.s32 0, %v6382
        %v6384 = vrot.slane %v6264, %v6383
        %v6385 = vadd.f32 %v6373, %v6384
        %v6386 = vadd.f32 %v6374, %v6384
        %v6387 = vadd.f32 %v6375, %v6384
        %v6388 = vadd.f32 %v6376, %v6384
        %v6389 = vadd.f32 %v6377, %v6384
        %v6390 = vadd.f32 %v6378, %v6384
        %v6391 = vadd.f32 %v6379, %v6384
        %v6392 = vadd.f32 %v6380, %v6384
        %v6393 = vadd.f32 %v3559, %v5602
        %v6394 = vld [vmem:[#allocation2 + $0x5a0] sm:$0x1]
        %v6395 = vld [vmem:[#allocation2 + $0x5a8] sm:$0x1]
        %v6396 = vsel %vm3370, %v6393, 0.0
        %6397 = vadd.xlane.f32.xlu0 %v6396
        %v6398 = vpop.xlane.xlu0 %6397
        %v6399 = vmul.f32 %v6398, %v2834
        %v6400 = vsub.f32 %v6393, %v6399
        %v6401 = vmul.f32 %v6400, %v6400
        %v6402 = vsel %vm3370, %v6401, 0.0
        %6403 = vadd.xlane.f32.xlu0 %v6402
        %v6404 = vpop.xlane.xlu0 %6403
        %v6405 = vmul.f32 %v6404, %v2834
        %v6406 = vadd.f32 %v6405, 1e-05
        %v6407 = vrsqrt.pop %v6406
        %v6408 = vmul.f32 %v6400, %v6407
        %v6409 = vmul.f32 %v6408, %v6394
        %v6410 = vadd.f32 %v6409, %v6395
        %v6411 = vld [vmem:[#allocation2 + $0x5b0] sm:$0xff]
        %v6412 = vld [vmem:[#allocation2 + $0x5b8] sm:$0xff]
        %v6413 = vld [vmem:[#allocation2 + $0x5c0] sm:$0x1]
        %v6415 = vsel %vm564, %v6410, 0
        %6417 = vmatprep.subr.mxu0 0.0
        %6418 = vmatpush1.msra.mxu0 %v6411
        %6419 = vmatprep.subr.mxu0 0.0
        %6420 = vmatpush1.msra.mxu0 %v6412
        %6421 = vmatprep.subr.mxu0 0.0
        %6422 = vmatpush1.msra.mxu0 0.0
        %6423 = vmatprep.subr.mxu0 0.0
        %6424 = vmatpush1.msra.mxu0 0.0
        %6425 = vmatprep.subr.mxu0 0.0
        %6426 = vmatpush1.msra.mxu0 0.0
        %6427 = vmatprep.subr.mxu0 0.0
        %6428 = vmatpush1.msra.mxu0 0.0
        %6429 = vmatprep.subr.mxu0 0.0
        %6430 = vmatpush1.msra.mxu0 0.0
        %6431 = vmatprep.subr.mxu0 0.0
        %6432 = vmatpush1.msra.mxu0 0.0
        %6433 = vmatprep.subr.mxu0 0.0
        %6434 = vmatpush1.msra.mxu0 0.0
        %6435 = vmatprep.subr.mxu0 0.0
        %6436 = vmatpush1.msra.mxu0 0.0
        %6437 = vmatprep.subr.mxu0 0.0
        %6438 = vmatpush1.msra.mxu0 0.0
        %6439 = vmatprep.subr.mxu0 0.0
        %6440 = vmatpush1.msra.mxu0 0.0
        %6441 = vmatprep.subr.mxu0 0.0
        %6442 = vmatpush1.msra.mxu0 0.0
        %6443 = vmatprep.subr.mxu0 0.0
        %6444 = vmatpush1.msra.mxu0 0.0
        %6445 = vmatprep.subr.mxu0 0.0
        %6446 = vmatpush1.msra.mxu0 0.0
        %6447 = vmatprep.subr.mxu0 0.0
        %6448 = vmatpush1.msra.mxu0 0.0
        %6449 = vmatprep.subr.mxu0 0.0
        %6450 = vmatpush1.msra.mxu0 0.0
        %6451 = vmatprep.subr.mxu0 0.0
        %6452 = vmatpush1.msra.mxu0 0.0
        %6453 = vmatprep.subr.mxu0 0.0
        %6454 = vmatpush1.msra.mxu0 0.0
        %6455 = vmatprep.subr.mxu0 0.0
        %6456 = vmatpush1.msra.mxu0 0.0
        %6457 = vmatprep.subr.mxu0 0.0
        %6458 = vmatpush1.msra.mxu0 0.0
        %6459 = vmatprep.subr.mxu0 0.0
        %6460 = vmatpush1.msra.mxu0 0.0
        %6461 = vmatprep.subr.mxu0 0.0
        %6462 = vmatpush1.msra.mxu0 0.0
        %6463 = vmatprep.subr.mxu0 0.0
        %6464 = vmatpush1.msra.mxu0 0.0
        %6465 = vmatprep.subr.mxu0 0.0
        %6466 = vmatpush1.msra.mxu0 0.0
        %6467 = vmatprep.subr.mxu0 0.0
        %6468 = vmatpush1.msra.mxu0 0.0
        %6469 = vmatprep.subr.mxu0 0.0
        %6470 = vmatpush1.msra.mxu0 0.0
        %6471 = vmatprep.subr.mxu0 0.0
        %6472 = vmatpush1.msra.mxu0 0.0
        %6473 = vmatprep.subr.mxu0 0.0
        %6474 = vmatpush1.msra.mxu0 0.0
        %6475 = vmatprep.subr.mxu0 0.0
        %6476 = vmatpush1.msra.mxu0 0.0
        %6477 = vmatprep.subr.mxu0 0.0
        %6478 = vmatpush1.msra.mxu0 0.0
        %6479 = vmatprep.subr.mxu0 0.0
        %6480 = vmatpush1.msra.mxu0 0.0
        %6481 = vmatprep.mubr.f32.mxu0 0.0
        %6482 = vmatmul.mubr.f32.gmra.mrb[0].mxu0 %v6415
        %v6483 = vpop.f32.mrb[0].mxu0
        %v6484 = vadd.f32 %v6413, %v6483
        %v6485 = vpop.f32.mrb[0].mxu0
        %6486 = vdwg.mxu0
        %v6487 = vmax.f32 %v6484, 0.0
        %v6488 = vld [vmem:[#allocation2 + $0x5c8] sm:$0xff]
        %v6489 = vld [vmem:[#allocation2 + $0x5d0] sm:$0xff]
        %v6490 = vld [vmem:[#allocation2 + $0x5d8] sm:$0xff]
        %v6491 = vld [vmem:[#allocation2 + $0x5e0] sm:$0xff]
        %v6493 = vsel %vm478, %v6487, 0
        %6495 = vmatprep.subr.mxu0 0.0
        %6496 = vmatpush1.msra.mxu0 %v6488
        %6497 = vmatprep.subr.mxu0 0.0
        %6498 = vmatpush1.msra.mxu0 %v6489
        %6499 = vmatprep.subr.mxu0 0.0
        %6500 = vmatpush1.msra.mxu0 %v6490
        %6501 = vmatprep.subr.mxu0 0.0
        %6502 = vmatpush1.msra.mxu0 %v6491
        %6503 = vmatprep.subr.mxu0 0.0
        %6504 = vmatpush1.msra.mxu0 0.0
        %6505 = vmatprep.subr.mxu0 0.0
        %6506 = vmatpush1.msra.mxu0 0.0
        %6507 = vmatprep.subr.mxu0 0.0
        %6508 = vmatpush1.msra.mxu0 0.0
        %6509 = vmatprep.subr.mxu0 0.0
        %6510 = vmatpush1.msra.mxu0 0.0
        %6511 = vmatprep.subr.mxu0 0.0
        %6512 = vmatpush1.msra.mxu0 0.0
        %6513 = vmatprep.subr.mxu0 0.0
        %6514 = vmatpush1.msra.mxu0 0.0
        %6515 = vmatprep.subr.mxu0 0.0
        %6516 = vmatpush1.msra.mxu0 0.0
        %6517 = vmatprep.subr.mxu0 0.0
        %6518 = vmatpush1.msra.mxu0 0.0
        %6519 = vmatprep.subr.mxu0 0.0
        %6520 = vmatpush1.msra.mxu0 0.0
        %6521 = vmatprep.subr.mxu0 0.0
        %6522 = vmatpush1.msra.mxu0 0.0
        %6523 = vmatprep.subr.mxu0 0.0
        %6524 = vmatpush1.msra.mxu0 0.0
        %6525 = vmatprep.subr.mxu0 0.0
        %6526 = vmatpush1.msra.mxu0 0.0
        %6527 = vmatprep.subr.mxu0 0.0
        %6528 = vmatpush1.msra.mxu0 0.0
        %6529 = vmatprep.subr.mxu0 0.0
        %6530 = vmatpush1.msra.mxu0 0.0
        %6531 = vmatprep.subr.mxu0 0.0
        %6532 = vmatpush1.msra.mxu0 0.0
        %6533 = vmatprep.subr.mxu0 0.0
        %6534 = vmatpush1.msra.mxu0 0.0
        %6535 = vmatprep.subr.mxu0 0.0
        %6536 = vmatpush1.msra.mxu0 0.0
        %6537 = vmatprep.subr.mxu0 0.0
        %6538 = vmatpush1.msra.mxu0 0.0
        %6539 = vmatprep.subr.mxu0 0.0
        %6540 = vmatpush1.msra.mxu0 0.0
        %6541 = vmatprep.subr.mxu0 0.0
        %6542 = vmatpush1.msra.mxu0 0.0
        %6543 = vmatprep.subr.mxu0 0.0
        %6544 = vmatpush1.msra.mxu0 0.0
        %6545 = vmatprep.subr.mxu0 0.0
        %6546 = vmatpush1.msra.mxu0 0.0
        %6547 = vmatprep.subr.mxu0 0.0
        %6548 = vmatpush1.msra.mxu0 0.0
        %6549 = vmatprep.subr.mxu0 0.0
        %6550 = vmatpush1.msra.mxu0 0.0
        %6551 = vmatprep.subr.mxu0 0.0
        %6552 = vmatpush1.msra.mxu0 0.0
        %6553 = vmatprep.subr.mxu0 0.0
        %6554 = vmatpush1.msra.mxu0 0.0
        %6555 = vmatprep.subr.mxu0 0.0
        %6556 = vmatpush1.msra.mxu0 0.0
        %6557 = vmatprep.subr.mxu0 0.0
        %6558 = vmatpush1.msra.mxu0 0.0
        %6559 = vmatprep.mubr.f32.mxu0 0.0
        %6560 = vmatmul.mubr.f32.gmra.mrb[0].mxu0 %v6493
        %v6561 = vpop.f32.mrb[0].mxu0
        %v6562 = vadd.f32 0.0, %v6561
        %v6563 = vpop.f32.mrb[0].mxu0
        %6564 = vdwg.mxu0
        %v6565 = vadd.f32 %v6410, %v6562
        %v6566 = vld [vmem:[#allocation2 + $0x5e8] sm:$0x1]
        %v6567 = vadd.f32 %v6565, %v6566
        %v6568 = vld [vmem:[#allocation2 + $0x5f0] sm:$0x1]
        %v6569 = vld [vmem:[#allocation2 + $0x5f8] sm:$0x1]
        %v6570 = vsel %vm3370, %v6567, 0.0
        %6571 = vadd.xlane.f32.xlu0 %v6570
        %v6572 = vpop.xlane.xlu0 %6571
        %v6573 = vmul.f32 %v6572, %v2834
        %v6574 = vsub.f32 %v6567, %v6573
        %v6575 = vmul.f32 %v6574, %v6574
        %v6576 = vsel %vm3370, %v6575, 0.0
        %6577 = vadd.xlane.f32.xlu0 %v6576
        %v6578 = vpop.xlane.xlu0 %6577
        %v6579 = vmul.f32 %v6578, %v2834
        %v6580 = vadd.f32 %v6579, 1e-05
        %v6581 = vrsqrt.pop %v6580
        %v6582 = vmul.f32 %v6574, %v6581
        %v6583 = vmul.f32 %v6582, %v6568
        %v6584 = vadd.f32 %v6583, %v6569
        %6585 = vst.msk [vmem:[%s355] sm:$0xff] %vm478, %v5826
        %6586 = vst.msk [vmem:[%s330] sm:$0xff] %vm564, %v6385
        %6587 = vst.msk [vmem:[%s330 + $0x8] sm:$0xff] %vm564, %v6386
        %6588 = vst.msk [vmem:[%s330 + $0x10] sm:$0xff] %vm564, %v6387
        %6589 = vst.msk [vmem:[%s330 + $0x18] sm:$0xff] %vm564, %v6388
        %6590 = vst.msk [vmem:[%s330 + $0x20] sm:$0xff] %vm564, %v6389
        %6591 = vst.msk [vmem:[%s330 + $0x28] sm:$0xff] %vm564, %v6390
        %6592 = vst.msk [vmem:[%s330 + $0x30] sm:$0xff] %vm564, %v6391
        %6593 = vst.msk [vmem:[%s330 + $0x38] sm:$0xff] %vm564, %v6392
        %6594 = vst.msk [vmem:[%s358] sm:$0x1] %vm3370, %v6584
        %p6595 = scmp.lt.s32.totalorder %s23, 1
        %s6596 = scalar_select %p6595, %s23, 1
        %s6597 = smul.addr %s6596, 8
        %s6598 = scalar_lea.vmem %s5, %s6597
        %s6599 = sand.u32 %s182, 1
        %s6600 = scalar_lea.sflag [#allocation4], %s6599
        %s6601 = sand.u32 %s182, 1
        %s6602 = smul.addr %s6601, 64
        %s6603 = scalar_lea.vmem [#allocation5], %s6602
        %p6604 = scmp.lt.s32.totalorder %s23, 1
        %s6605 = scalar_select %p6604, %s23, 1
        %s6606 = scalar_lea.vmem %s7, %s6605
        // Predicated region
        $region45: #{forward.4} parent=39 // pred_check
          %p6607 = pneg %p166
        $region46: #{forward.4} parent=39 // pred_check_branch
          %6609 = sbr.rel (%p6607) target = $region48
        $region47: #{forward.4} parent=39 // pred_region
          _
        $region48: #{forward.4} parent=39 // pred_fallthru
          _
        // Predicated region
        $region49: #{forward.4} parent=39 // pred_check
          %p6610 = pneg %p192
        $region50: #{forward.4} parent=39 // pred_check_branch
          %6612 = sbr.rel (%p6610) target = $region52
        $region51: #{forward.4} parent=39 // pred_region
          %s6614 = ssub.s32 1024, 1024
          %6615 = vsyncadd %s6600, %s6614
          %s6616 = smul.addr %s23, 8
          %s6617 = smul.addr %s6616, 128
          %s6618 = scalar_lea.hbm %s6, %s6617
          %s6619 = sshll.u32 %s6603, 4
          %s6620 = int_to_ptr.vmem [resolvable:$true] %s6619
          %6625 = dma.vmem_to_hbm [thread:$0]  %s6620, 1024, %s6618, %s6600, 128, 128, 8
        $region52: #{forward.4} parent=39 // pred_fallthru
          _
        // Predicated region
        $region53: #{forward.4} parent=39 // pred_check
          %p6626 = pneg %p218
        $region54: #{forward.4} parent=39 // pred_check_branch
          %6628 = sbr.rel (%p6626) target = $region56
        $region55: #{forward.4} parent=39 // pred_region
          _
        $region56: #{forward.4} parent=39 // pred_fallthru
          _
      $region40: #{forward.4} parent=5 // pred_fallthru
        _
      %p6629 = scmp.le.s32.totalorder 2, %s18
      // Predicated region
      $region57: #{forward.4} parent=5 // pred_check
        %p6630 = pneg %p6629
      $region58: #{forward.4} parent=5 // pred_check_branch
        %6632 = sbr.rel (%p6630) target = $region60
      $region59: #{forward.4} parent=5 // pred_region
        %s6633 = ssub.s32 %s18, 2
        // Predicated region
        $region61: #{forward.4} parent=59 // pred_check
          %p6634 = pneg %p172
        $region62: #{forward.4} parent=59 // pred_check_branch
          %6636 = sbr.rel (%p6634) target = $region64
        $region63: #{forward.4} parent=59 // pred_region
          %p6637 = scmp.lt.s32.totalorder %s24, 1
          %s6638 = scalar_select %p6637, %s24, 1
          %s6639 = smul.addr %s6638, 8
          %s6640 = scalar_lea.vmem %s5, %s6639
        $region64: #{forward.4} parent=59 // pred_fallthru
          _
        // Predicated region
        $region65: #{forward.4} parent=59 // pred_check
          %p6641 = pneg %p198
        $region66: #{forward.4} parent=59 // pred_check_branch
          %6643 = sbr.rel (%p6641) target = $region68
        $region67: #{forward.4} parent=59 // pred_region
          %s6644 = sand.u32 %s183, 1
          %s6645 = scalar_lea.sflag [#allocation4], %s6644
          %s6646 = sand.u32 %s183, 1
          %s6647 = smul.addr %s6646, 64
          %s6648 = scalar_lea.vmem [#allocation5], %s6647
          %6649 = dma.done %s6645, 1024
        $region68: #{forward.4} parent=59 // pred_fallthru
          _
        // Predicated region
        $region69: #{forward.4} parent=59 // pred_check
          %p6650 = pneg %p224
        $region70: #{forward.4} parent=59 // pred_check_branch
          %6652 = sbr.rel (%p6650) target = $region72
        $region71: #{forward.4} parent=59 // pred_region
          %p6653 = scmp.lt.s32.totalorder %s24, 1
          %s6654 = scalar_select %p6653, %s24, 1
          %s6655 = scalar_lea.vmem %s7, %s6654
        $region72: #{forward.4} parent=59 // pred_fallthru
          _
      $region60: #{forward.4} parent=5 // pred_fallthru
        _
    $region6: #{forward.4} parent=1 // loop_footer
      %s22 = sadd.s32 1, %s18
    $region7: #{forward.4} parent=1 // loop_footer_branch
      %17 = sbr.rel target = $region3
    $region8: #{forward.4} parent=1 // loop_exit
      _
    %6656 = vsyncpa [#allocation3], 1
    %s6657 = scalar_lea.sflag [#allocation3], 1
    %6658 = vsyncpa %s6657, 1
    %6659 = vsyncpa [#allocation4], 1
    %s6660 = scalar_lea.sflag [#allocation4], 1
    %6661 = vsyncpa %s6660, 1

</llo_original>
